<compile_context>
chip_gen: v5e
topology: v5e:2x2
jax: 0.10.0
libtpu: 0.0.40
codegen_flags: <defaults>
</compile_context>

<pallas_src>
import functools

import jax
import jax.numpy as jnp
from jax.experimental import pallas as pl
from jax.experimental.pallas import tpu as pltpu

LANE = 128
_BN_EPS = 1e-5
_ROW_TILE = 1024                   # large tiles amortize per-step overhead (v5e/v6e);
                                   # still only a few MiB double-buffered -> fine on v7x.
_VMEM_LIMIT = 48 * 1024 * 1024     # < v7x's 64 MiB physical VMEM per TensorCore.


def _pad_to_lanes(c):
    return ((c + LANE - 1) // LANE) * LANE


def _row_tile(n, target=_ROW_TILE):
    """Largest row tile dividing n that is a multiple of 8 and <= target, else full n."""
    if n <= target:
        return n
    d = (target // 8) * 8
    while d >= 8:
        if n % d == 0:
            return d
        d -= 8
    return n


# -----------------------------------------------------------------------------
# Fused conv kernel:
#   y = act( [x_packed | shifted_tap] @ W + bias - corr@boundary_row )
#   (+ optional per-tile BatchNorm partial sums over the post-activation output)
# -----------------------------------------------------------------------------
def _conv_fused_kernel(x_ref, xb_ref, w_ref, bias_ref, corr_ref, *rest,
                       act, cin_b, tm, shift_prev, corr_row, with_stats):
    if with_stats:
        y_ref, sum_ref, sq_ref, shift_buf = rest
    else:
        y_ref, shift_buf = rest
        sum_ref = sq_ref = None

    j = pl.program_id(1)
    x = x_ref[...]                                   # [tm, cin_eff]  bf16
    cin_eff = x.shape[-1]
    bnd = xb_ref[pl.ds(j, 1), :]                     # [1, cin_b]     f32  (this tile's boundary)

    # Assemble the shifted-tap rows in a small f32 VMEM scratch (no HBM duplication):
    #   Conv1d          : shifted[t] = src[t-1], row 0   = boundary (prev tile / zeros)
    #   ConvTranspose1d : shifted[t] = src[t+1], row tm-1 = boundary (next tile / zeros)
    if shift_prev:
        if tm > 1:
            shift_buf[pl.ds(1, tm - 1), :] = x[0:tm - 1, cin_eff - cin_b:].astype(jnp.float32)
        shift_buf[pl.ds(0, 1), :] = bnd
    else:
        if tm > 1:
            shift_buf[pl.ds(0, tm - 1), :] = x[1:tm, cin_eff - cin_b:].astype(jnp.float32)
        shift_buf[pl.ds(tm - 1, 1), :] = bnd
    shifted = shift_buf[...].astype(jnp.bfloat16)

    # Single merged MXU matmul over all taps (bf16 operands, f32 accumulation).
    operand = jnp.concatenate([x, shifted], axis=-1)           # [tm, cin_eff + cin_b]
    out = jnp.dot(operand, w_ref[...], preferred_element_type=jnp.float32)
    out = out + bias_ref[...]

    # Folded-BN boundary fix: the BN-shift term folded into the bias over-counts exactly one
    # output row (the one whose shifted tap is zero padding) -> subtract corr there.
    # corr is all zeros for layers whose input had no BatchNorm.
    grow = jax.lax.broadcasted_iota(jnp.int32, (tm, 1), 0) + j * tm
    out = out - (grow == corr_row).astype(jnp.float32) * corr_ref[...]

    if act == "relu":
        out = jnp.maximum(out, 0.0)
    else:  # sigmoid
        out = jax.nn.sigmoid(out)
    y_ref[...] = out.astype(y_ref.dtype)

    if with_stats:
        # per-tile BatchNorm partial sums over the post-activation output (training-mode BN)
        sum_ref[...] = jnp.sum(out, axis=0, keepdims=True)
        sq_ref[...] = jnp.sum(out * out, axis=0, keepdims=True)


def _conv_rows(x, xb, w, bias, corr, *, act, tm, cin_b, t_rows, shift_prev,
               corr_row, with_stats, out_dtype):
    B = x.shape[0]
    cin_eff = x.shape[-1]
    cout_eff = w.shape[-1]
    nblk = t_rows // tm

    kernel = functools.partial(
        _conv_fused_kernel, act=act, cin_b=cin_b, tm=tm, shift_prev=shift_prev,
        corr_row=corr_row, with_stats=with_stats)

    out_shape = [jax.ShapeDtypeStruct((B, t_rows, cout_eff), out_dtype)]
    out_specs = [pl.BlockSpec((None, tm, cout_eff), lambda b, j: (b, j, 0))]
    if with_stats:
        out_shape += [jax.ShapeDtypeStruct((B, nblk, 1, cout_eff), jnp.float32)] * 2
        out_specs += [pl.BlockSpec((None, None, 1, cout_eff), lambda b, j: (b, j, 0, 0))] * 2

    res = pl.pallas_call(
        kernel,
        grid=(B, nblk),
        in_specs=[
            pl.BlockSpec((None, tm, cin_eff), lambda b, j: (b, j, 0)),
            pl.BlockSpec((None, nblk, cin_b), lambda b, j: (b, 0, 0)),   # all boundary rows, resident
            pl.BlockSpec((cin_eff + cin_b, cout_eff), lambda b, j: (0, 0)),
            pl.BlockSpec((1, cout_eff), lambda b, j: (0, 0)),
            pl.BlockSpec((1, cout_eff), lambda b, j: (0, 0)),
        ],
        out_specs=tuple(out_specs),
        out_shape=tuple(out_shape),
        scratch_shapes=[pltpu.VMEM((tm, cin_b), jnp.float32)],
        compiler_params=pltpu.CompilerParams(
            # both axes fully parallel (per-tile stats outputs -> no resident accumulator),
            # so v7x megacore can shard rows as well as batch.
            dimension_semantics=("parallel", "parallel"),
            vmem_limit_bytes=_VMEM_LIMIT,
        ),
    )(x, xb, w, bias, corr)

    if with_stats:
        y, s1, s2 = res
        return y, s1, s2
    return res[0], None, None


# -----------------------------------------------------------------------------
# BatchNorm finalize (tiny, plain JAX): turn per-tile partial sums into (scale, shift)
# that get folded into the NEXT layer's weights/bias.
# -----------------------------------------------------------------------------
def _bn_scale_shift(s1, s2, n_rows, gamma, beta, cp_out, n_phase):
    s1 = s1.reshape(-1, n_phase, cp_out).sum(axis=(0, 1))
    s2 = s2.reshape(-1, n_phase, cp_out).sum(axis=(0, 1))
    mean = s1 / n_rows
    var = s2 / n_rows - mean * mean                 # biased (training-mode) batch variance
    g = jnp.zeros((cp_out,), jnp.float32).at[:gamma.shape[0]].set(gamma)
    bt = jnp.zeros((cp_out,), jnp.float32).at[:beta.shape[0]].set(beta)
    scale = g * jax.lax.rsqrt(var + _BN_EPS)
    shift = bt - mean * scale
    return scale, shift


# -----------------------------------------------------------------------------
# Layer wrappers (channels-last, channel-padded, bf16 activations)
# -----------------------------------------------------------------------------
def conv1d_layer(h, layer, in_affine, *, act="relu"):
    """Conv1d(k=3, s=2, p=1) + act; previous layer's BN affine folded in.  h: [B, T, cp_in] bf16."""
    B, T, cp_in = h.shape
    wk, bias0 = layer["wk"], layer["bias"]           # [3, cp_in, cp_out], [cp_out]
    cp_out = wk.shape[-1]
    t_out = T // 2
    tm = _row_tile(t_out)
    nblk = t_out // tm

    if in_affine is not None:
        scale, shift = in_affine                      # [cp_in] f32 each
        wk_f = wk * scale[None, :, None]              # fold BN scale into weights
        bias = bias0 + jnp.einsum("kco,c->o", wk, shift)   # fold BN shift into bias
        corr = jnp.einsum("co,c->o", wk[0], shift)    # tap k=0 is zero padding at t=0 only
    else:
        wk_f, bias = wk, bias0
        corr = jnp.zeros((cp_out,), jnp.float32)

    # operand layout [x[2t] | x[2t+1] | x[2t-1]]  ->  stacked weights [W1; W2; W0]
    w = jnp.concatenate([wk_f[1], wk_f[2], wk_f[0]], axis=0).astype(jnp.bfloat16)

    # main operand: FREE reshape of h (no pad/copy of the activation in HBM)
    xmain = h.reshape(B, t_out, 2 * cp_in)
    # per-tile boundary row for the shifted (k=0) tap:  h[2*j*tm - 1], zeros for j == 0
    if nblk > 1:
        bnd = h[:, 2 * tm - 1::2 * tm, :][:, :nblk - 1, :].astype(jnp.float32)
        xb = jnp.concatenate([jnp.zeros((B, 1, cp_in), jnp.float32), bnd], axis=1)
    else:
        xb = jnp.zeros((B, 1, cp_in), jnp.float32)

    with_stats = layer["gamma"] is not None
    y, s1, s2 = _conv_rows(
        xmain, xb, w, bias.reshape(1, cp_out), corr.reshape(1, cp_out),
        act=act, tm=tm, cin_b=cp_in, t_rows=t_out, shift_prev=True, corr_row=0,
        with_stats=with_stats, out_dtype=jnp.bfloat16)

    out_affine = None
    if with_stats:
        out_affine = _bn_scale_shift(s1, s2, B * t_out, layer["gamma"], layer["beta"], cp_out, 1)
    return y, out_affine


def convtranspose1d_layer(h, layer, in_affine, *, act="relu"):
    """ConvTranspose1d(k=3, s=2, p=1, op=1) + act; previous BN folded in.  h: [B, L, cp_in] bf16."""
    B, L, cp_in = h.shape
    wk, bias0 = layer["wk"], layer["bias"]
    cp_out = wk.shape[-1]
    tm = _row_tile(L)
    nblk = L // tm

    if in_affine is not None:
        scale, shift = in_affine
        wk_f = wk * scale[None, :, None]
        bias_even = bias0 + wk[1].T @ shift
        bias_odd = bias0 + (wk[2] + wk[0]).T @ shift
        corr_odd = wk[0].T @ shift                    # tap on x[L] (zero) hits only the last odd row
    else:
        wk_f = wk
        bias_even = bias_odd = bias0
        corr_odd = jnp.zeros((cp_out,), jnp.float32)

    # phase decomposition (no zero-stuffing):
    #   y[2m]   = x[m] @ W1                       (even-phase lanes [:cp_out])
    #   y[2m+1] = x[m] @ W2 + x[m+1] @ W0         (odd-phase lanes [cp_out:], x[L] := 0)
    w_top = jnp.concatenate([wk_f[1], wk_f[2]], axis=1)                 # rows for x[m]
    w_bot = jnp.concatenate([jnp.zeros_like(wk_f[0]), wk_f[0]], axis=1)  # rows for x[m+1]
    w = jnp.concatenate([w_top, w_bot], axis=0).astype(jnp.bfloat16)     # [2cp_in, 2cp_out]
    bias = jnp.concatenate([bias_even, bias_odd]).reshape(1, 2 * cp_out)
    corr = jnp.concatenate([jnp.zeros((cp_out,), jnp.float32), corr_odd]).reshape(1, 2 * cp_out)

    # boundary rows for the next-row tap: h[(j+1)*tm], zeros for the last tile
    if nblk > 1:
        bnd = h[:, tm::tm, :].astype(jnp.float32)                       # [B, nblk-1, cp_in]
        xb = jnp.concatenate([bnd, jnp.zeros((B, 1, cp_in), jnp.float32)], axis=1)
    else:
        xb = jnp.zeros((B, 1, cp_in), jnp.float32)

    with_stats = layer["gamma"] is not None
    out_dtype = jnp.bfloat16 if act == "relu" else jnp.float32           # keep final sigmoid in f32
    y, s1, s2 = _conv_rows(
        h, xb, w, bias, corr,
        act=act, tm=tm, cin_b=cp_in, t_rows=L, shift_prev=False, corr_row=L - 1,
        with_stats=with_stats, out_dtype=out_dtype)
    y = y.reshape(B, 2 * L, cp_out)   # un-interleave even/odd phases (free reshape)

    out_affine = None
    if with_stats:
        out_affine = _bn_scale_shift(s1, s2, B * 2 * L, layer["gamma"], layer["beta"], cp_out, 2)
    return y, out_affine


# -----------------------------------------------------------------------------
# Parameters: PyTorch-style init + one-time packing (hoisted out of forward)
# -----------------------------------------------------------------------------
def _init_conv(key, cout, cin, k):
    kw, kb = jax.random.split(key)
    bound = 1.0 / jnp.sqrt(cin * k)
    w = jax.random.uniform(kw, (cout, cin, k), jnp.float32, -bound, bound)
    b = jax.random.uniform(kb, (cout,), jnp.float32, -bound, bound)
    return w, b


def _init_convT(key, cin, cout, k):
    kw, kb = jax.random.split(key)
    bound = 1.0 / jnp.sqrt(cout * k)
    w = jax.random.uniform(kw, (cin, cout, k), jnp.float32, -bound, bound)
    b = jax.random.uniform(kb, (cout,), jnp.float32, -bound, bound)
    return w, b


def init_params(key, input_channels, latent_dim):
    enc_io = [(input_channels, 64), (64, 128), (128, 256), (256, latent_dim)]
    dec_io = [(latent_dim, 256), (256, 128), (128, 64), (64, input_channels)]
    keys = jax.random.split(key, len(enc_io) + len(dec_io))
    params = {"enc": [], "dec": []}
    for i, (cin, cout) in enumerate(enc_io):
        w, b = _init_conv(keys[i], cout, cin, 3)
        has_bn = i < len(enc_io) - 1
        g = jnp.ones((cout,), jnp.float32) if has_bn else None
        bt = jnp.zeros((cout,), jnp.float32) if has_bn else None
        params["enc"].append((w, b, g, bt))
    for i, (cin, cout) in enumerate(dec_io):
        w, b = _init_convT(keys[len(enc_io) + i], cin, cout, 3)
        has_bn = i < len(dec_io) - 1
        g = jnp.ones((cout,), jnp.float32) if has_bn else None
        bt = jnp.zeros((cout,), jnp.float32) if has_bn else None
        params["dec"].append((w, b, g, bt))
    return params


def _pack_layer(w, b, gamma, beta, *, is_transpose):
    if is_transpose:                                  # ConvTranspose1d weight [Cin, Cout, K]
        cin, cout = w.shape[0], w.shape[1]
        wk = jnp.transpose(w, (2, 0, 1))              # -> [K, Cin, Cout]
    else:                                             # Conv1d weight [Cout, Cin, K]
        cout, cin = w.shape[0], w.shape[1]
        wk = jnp.transpose(w, (2, 1, 0))              # -> [K, Cin, Cout]
    cp_in, cp_out = _pad_to_lanes(cin), _pad_to_lanes(cout)
    wk_p = jnp.zeros((3, cp_in, cp_out), jnp.float32).at[:, :cin, :cout].set(wk)
    bias = jnp.zeros((cp_out,), jnp.float32).at[:cout].set(b)
    return {"wk": wk_p, "bias": bias, "gamma": gamma, "beta": beta}


def prepare_params(params):
    """One-time weight prep (transpose + lane padding) hoisted out of the forward pass."""
    return {
        "enc": [_pack_layer(w, b, g, bt, is_transpose=False) for (w, b, g, bt) in params["enc"]],
        "dec": [_pack_layer(w, b, g, bt, is_transpose=True) for (w, b, g, bt) in params["dec"]],
    }


# -----------------------------------------------------------------------------
# Forward pass (matches nn.Module semantics; BatchNorm uses training-mode batch stats,
# i.e. a freshly constructed module in train() — running-stat buffers are not modeled).
# -----------------------------------------------------------------------------
def conv_autoencoder_forward(x, packed):
    """x: [B, C, T] (PyTorch NCT), T divisible by 16.  Returns decoded [B, C, T] f32."""
    B, C, T = x.shape
    cp = packed["enc"][0]["wk"].shape[1]
    h = jnp.transpose(x, (0, 2, 1)).astype(jnp.float32)         # NCT -> channels-last
    h = jnp.pad(h, ((0, 0), (0, 0), (0, cp - C))).astype(jnp.bfloat16)

    affine = None
    for layer in packed["enc"]:                                  # Conv1d + ReLU (+ BN folded fwd)
        h, affine = conv1d_layer(h, layer, affine, act="relu")
    n_dec = len(packed["dec"])
    for i, layer in enumerate(packed["dec"]):                    # ConvT + ReLU/Sigmoid (+ BN)
        act = "sigmoid" if i == n_dec - 1 else "relu"
        h, affine = convtranspose1d_layer(h, layer, affine, act=act)

    return jnp.transpose(h[:, :, :C].astype(jnp.float32), (0, 2, 1))   # drop pad, back to NCT


# -----------------------------------------------------------------------------
if __name__ == "__main__":
    B, C, T = 2, 4, 16          # T must be divisible by 16 (4 stride-2 convs)
    latent_dim = 32

    key = jax.random.PRNGKey(0)
    kx, kp = jax.random.split(key)
    x = jax.random.uniform(kx, (B, C, T), jnp.float32)
    params = init_params(kp, C, latent_dim)
    packed = prepare_params(params)

    fwd = jax.jit(conv_autoencoder_forward)
    out = jax.block_until_ready(fwd(x, packed))

    assert out.shape == (B, C, T), out.shape
    assert bool(jnp.all(jnp.isfinite(out)))
    assert bool(jnp.all((out >= 0.0) & (out <= 1.0)))  # sigmoid output range
    print("KERNEL_OK")
</pallas_src>

<mosaic_0001>
module attributes {stable_mosaic.version = 11 : i64} {
  func.func @_conv_fused_kernel(%arg0: i32, %arg1: i32, %arg2: memref<1x8x256xbf16, #tpu.memory_space<vmem>>, %arg3: memref<1x1x128xf32, #tpu.memory_space<vmem>>, %arg4: memref<384x128xbf16, #tpu.memory_space<vmem>>, %arg5: memref<1x128xf32, #tpu.memory_space<vmem>>, %arg6: memref<1x128xf32, #tpu.memory_space<vmem>>, %arg7: memref<1x8x128xbf16, #tpu.memory_space<vmem>>, %arg8: memref<1x1x1x128xf32, #tpu.memory_space<vmem>>, %arg9: memref<1x1x1x128xf32, #tpu.memory_space<vmem>>, %arg10: memref<8x128xf32, #tpu.memory_space<vmem>>) attributes {dimension_semantics = [#tpu.dimension_semantics<parallel>, #tpu.dimension_semantics<parallel>], iteration_bounds = array<i64: 2, 1>, scalar_prefetch = 0 : i64, scratch_operands = 1 : i64, tpu.core_type = #tpu.core_type<tc>, window_params = [{transform_indices = @transform_0, window_bounds = array<i64: 1, 8, 256>}, {transform_indices = @transform_1, window_bounds = array<i64: 1, 1, 128>}, {pipeline_mode = #tpu.pipeline_mode<synchronous>, transform_indices = @transform_2, window_bounds = array<i64: 384, 128>}, {pipeline_mode = #tpu.pipeline_mode<synchronous>, transform_indices = @transform_3, window_bounds = array<i64: 1, 128>}, {pipeline_mode = #tpu.pipeline_mode<synchronous>, transform_indices = @transform_4, window_bounds = array<i64: 1, 128>}, {transform_indices = @transform_5, window_bounds = array<i64: 1, 8, 128>}, {transform_indices = @transform_6, window_bounds = array<i64: 1, 1, 1, 128>}, {transform_indices = @transform_7, window_bounds = array<i64: 1, 1, 1, 128>}]} {
    %c0 = arith.constant 0 : index
    %c0_0 = arith.constant 0 : index
    %c0_1 = arith.constant 0 : index
    %0 = vector.load %arg2[%c0, %c0_0, %c0_1] : memref<1x8x256xbf16, #tpu.memory_space<vmem>>, vector<1x8x256xbf16>
    %1 = vector.shape_cast %0 : vector<1x8x256xbf16> to vector<8x256xbf16>
    %c0_2 = arith.constant 0 : index
    %2 = arith.index_cast %arg1 : i32 to index
    %c0_3 = arith.constant 0 : index
    %3 = vector.load %arg3[%c0_2, %2, %c0_3] : memref<1x1x128xf32, #tpu.memory_space<vmem>>, vector<1x1x128xf32>
    %4 = vector.shape_cast %3 : vector<1x1x128xf32> to vector<1x128xf32>
    %5 = vector.extract_strided_slice %1 {offsets = [0, 128], sizes = [7, 128], strides = [1, 1]} : vector<8x256xbf16> to vector<7x128xbf16>
    %6 = arith.extf %5 : vector<7x128xbf16> to vector<7x128xf32>
    %c1 = arith.constant 1 : index
    %c0_4 = arith.constant 0 : index
    %7 = vector.load %arg10[%c1, %c0_4] : memref<8x128xf32, #tpu.memory_space<vmem>>, vector<7x128xf32>
    tpu.vector_store %arg10[%c1, %c0_4], %6 {strides = array<i32>} : memref<8x128xf32, #tpu.memory_space<vmem>>, vector<7x128xf32>,
    %c0_5 = arith.constant 0 : index
    %c0_6 = arith.constant 0 : index
    %8 = vector.load %arg10[%c0_5, %c0_6] : memref<8x128xf32, #tpu.memory_space<vmem>>, vector<1x128xf32>
    tpu.vector_store %arg10[%c0_5, %c0_6], %4 {strides = array<i32>} : memref<8x128xf32, #tpu.memory_space<vmem>>, vector<1x128xf32>,
    %c0_7 = arith.constant 0 : index
    %c0_8 = arith.constant 0 : index
    %9 = vector.load %arg10[%c0_7, %c0_8] : memref<8x128xf32, #tpu.memory_space<vmem>>, vector<8x128xf32>
    %10 = arith.truncf %9 : vector<8x128xf32> to vector<8x128xbf16>
    %11 = tpu.concatenate %1, %10 in 1 : vector<8x256xbf16>, vector<8x128xbf16> -> vector<8x384xbf16>
    %c0_9 = arith.constant 0 : index
    %c0_10 = arith.constant 0 : index
    %12 = vector.load %arg4[%c0_9, %c0_10] : memref<384x128xbf16, #tpu.memory_space<vmem>>, vector<384x128xbf16>
    %cst = arith.constant dense<0.000000e+00> : vector<8x128xf32>
    %13 = tpu.matmul %11, %12, %cst {dimension_numbers = #tpu.dot_dimension_numbers<[1], [0], [0], [1], [0, 0, 1, 1], [], []>} : vector<8x384xbf16>, vector<384x128xbf16>, vector<8x128xf32> -> vector<8x128xf32>
    %c0_11 = arith.constant 0 : index
    %c0_12 = arith.constant 0 : index
    %14 = vector.load %arg5[%c0_11, %c0_12] : memref<1x128xf32, #tpu.memory_space<vmem>>, vector<1x128xf32>
    %15 = vector.broadcast %14 : vector<1x128xf32> to vector<8x128xf32>
    %16 = arith.addf %13, %15 : vector<8x128xf32>
    %17 = tpu.iota {dimensions = array<i32: 0>} : vector<8x1xi32>
    %c8_i32 = arith.constant 8 : i32
    %18 = arith.muli %arg1, %c8_i32 : i32
    %19 = vector.broadcast %18 : i32 to vector<8x1xi32>
    %20 = arith.addi %17, %19 : vector<8x1xi32>
    %c0_i32 = arith.constant 0 : i32
    %21 = vector.broadcast %c0_i32 : i32 to vector<8x1xi32>
    %22 = arith.cmpi eq, %20, %21 : vector<8x1xi32>
    %23 = arith.extui %22 : vector<8x1xi1> to vector<8x1xi32>
    %24 = arith.sitofp %23 : vector<8x1xi32> to vector<8x1xf32>
    %c0_13 = arith.constant 0 : index
    %c0_14 = arith.constant 0 : index
    %25 = vector.load %arg6[%c0_13, %c0_14] : memref<1x128xf32, #tpu.memory_space<vmem>>, vector<1x128xf32>
    %26 = vector.broadcast %24 : vector<8x1xf32> to vector<8x128xf32>
    %27 = vector.broadcast %25 : vector<1x128xf32> to vector<8x128xf32>
    %28 = arith.mulf %26, %27 : vector<8x128xf32>
    %29 = arith.subf %16, %28 : vector<8x128xf32>
    %cst_15 = arith.constant 0.000000e+00 : f32
    %30 = vector.broadcast %cst_15 : f32 to vector<8x128xf32>
    %31 = arith.maximumf %29, %30 : vector<8x128xf32>
    %32 = arith.truncf %31 : vector<8x128xf32> to vector<8x128xbf16>
    %c0_16 = arith.constant 0 : index
    %c0_17 = arith.constant 0 : index
    %c0_18 = arith.constant 0 : index
    %33 = vector.load %arg7[%c0_16, %c0_17, %c0_18] : memref<1x8x128xbf16, #tpu.memory_space<vmem>>, vector<1x8x128xbf16>
    %34 = vector.shape_cast %33 : vector<1x8x128xbf16> to vector<8x128xbf16>
    %35 = vector.shape_cast %32 : vector<8x128xbf16> to vector<1x8x128xbf16>
    tpu.vector_store %arg7[%c0_16, %c0_17, %c0_18], %35 {strides = array<i32>} : memref<1x8x128xbf16, #tpu.memory_space<vmem>>, vector<1x8x128xbf16>,
    %cst_19 = arith.constant dense<0.000000e+00> : vector<128xf32>
    %36 = vector.multi_reduction <add>, %31, %cst_19 [0] : vector<8x128xf32> to vector<128xf32>
    %37 = vector.shape_cast %36 : vector<128xf32> to vector<1x128xf32>
    %c0_20 = arith.constant 0 : index
    %c0_21 = arith.constant 0 : index
    %c0_22 = arith.constant 0 : index
    %c0_23 = arith.constant 0 : index
    %38 = vector.load %arg8[%c0_20, %c0_21, %c0_22, %c0_23] : memref<1x1x1x128xf32, #tpu.memory_space<vmem>>, vector<1x1x1x128xf32>
    %39 = vector.shape_cast %38 : vector<1x1x1x128xf32> to vector<1x128xf32>
    %40 = vector.shape_cast %37 : vector<1x128xf32> to vector<1x1x1x128xf32>
    tpu.vector_store %arg8[%c0_20, %c0_21, %c0_22, %c0_23], %40 {strides = array<i32>} : memref<1x1x1x128xf32, #tpu.memory_space<vmem>>, vector<1x1x1x128xf32>,
    %41 = arith.mulf %31, %31 : vector<8x128xf32>
    %cst_24 = arith.constant dense<0.000000e+00> : vector<128xf32>
    %42 = vector.multi_reduction <add>, %41, %cst_24 [0] : vector<8x128xf32> to vector<128xf32>
    %43 = vector.shape_cast %42 : vector<128xf32> to vector<1x128xf32>
    %c0_25 = arith.constant 0 : index
    %c0_26 = arith.constant 0 : index
    %c0_27 = arith.constant 0 : index
    %c0_28 = arith.constant 0 : index
    %44 = vector.load %arg9[%c0_25, %c0_26, %c0_27, %c0_28] : memref<1x1x1x128xf32, #tpu.memory_space<vmem>>, vector<1x1x1x128xf32>
    %45 = vector.shape_cast %44 : vector<1x1x1x128xf32> to vector<1x128xf32>
    %46 = vector.shape_cast %43 : vector<1x128xf32> to vector<1x1x1x128xf32>
    tpu.vector_store %arg9[%c0_25, %c0_26, %c0_27, %c0_28], %46 {strides = array<i32>} : memref<1x1x1x128xf32, #tpu.memory_space<vmem>>, vector<1x1x1x128xf32>,
    return
  }
  func.func @transform_0(%arg0: i32, %arg1: i32) -> (i32, i32, i32) {
    %c0_i32 = arith.constant 0 : i32
    %c0_i32_0 = arith.constant 0 : i32
    return %arg0, %arg1, %c0_i32 : i32, i32, i32
  }
  func.func @transform_1(%arg0: i32, %arg1: i32) -> (i32, i32, i32) {
    %c0_i32 = arith.constant 0 : i32
    %c0_i32_0 = arith.constant 0 : i32
    %c0_i32_1 = arith.constant 0 : i32
    return %arg0, %c0_i32, %c0_i32_0 : i32, i32, i32
  }
  func.func @transform_2(%arg0: i32, %arg1: i32) -> (i32, i32) {
    %c0_i32 = arith.constant 0 : i32
    %c0_i32_0 = arith.constant 0 : i32
    %c0_i32_1 = arith.constant 0 : i32
    return %c0_i32, %c0_i32_0 : i32, i32
  }
  func.func @transform_3(%arg0: i32, %arg1: i32) -> (i32, i32) {
    %c0_i32 = arith.constant 0 : i32
    %c0_i32_0 = arith.constant 0 : i32
    %c0_i32_1 = arith.constant 0 : i32
    return %c0_i32, %c0_i32_0 : i32, i32
  }
  func.func @transform_4(%arg0: i32, %arg1: i32) -> (i32, i32) {
    %c0_i32 = arith.constant 0 : i32
    %c0_i32_0 = arith.constant 0 : i32
    %c0_i32_1 = arith.constant 0 : i32
    return %c0_i32, %c0_i32_0 : i32, i32
  }
  func.func @transform_5(%arg0: i32, %arg1: i32) -> (i32, i32, i32) {
    %c0_i32 = arith.constant 0 : i32
    %c0_i32_0 = arith.constant 0 : i32
    return %arg0, %arg1, %c0_i32 : i32, i32, i32
  }
  func.func @transform_6(%arg0: i32, %arg1: i32) -> (i32, i32, i32, i32) {
    %c0_i32 = arith.constant 0 : i32
    %c0_i32_0 = arith.constant 0 : i32
    %c0_i32_1 = arith.constant 0 : i32
    return %arg0, %arg1, %c0_i32, %c0_i32_0 : i32, i32, i32, i32
  }
  func.func @transform_7(%arg0: i32, %arg1: i32) -> (i32, i32, i32, i32) {
    %c0_i32 = arith.constant 0 : i32
    %c0_i32_0 = arith.constant 0 : i32
    %c0_i32_1 = arith.constant 0 : i32
    return %arg0, %arg1, %c0_i32, %c0_i32_0 : i32, i32, i32, i32
  }
}

module attributes {stable_mosaic.version = 11 : i64} {
  func.func @_conv_fused_kernel(%arg0: i32, %arg1: i32, %arg2: memref<1x4x256xbf16, #tpu.memory_space<vmem>>, %arg3: memref<1x1x128xf32, #tpu.memory_space<vmem>>, %arg4: memref<384x128xbf16, #tpu.memory_space<vmem>>, %arg5: memref<1x128xf32, #tpu.memory_space<vmem>>, %arg6: memref<1x128xf32, #tpu.memory_space<vmem>>, %arg7: memref<1x4x128xbf16, #tpu.memory_space<vmem>>, %arg8: memref<1x1x1x128xf32, #tpu.memory_space<vmem>>, %arg9: memref<1x1x1x128xf32, #tpu.memory_space<vmem>>, %arg10: memref<4x128xf32, #tpu.memory_space<vmem>>) attributes {dimension_semantics = [#tpu.dimension_semantics<parallel>, #tpu.dimension_semantics<parallel>], iteration_bounds = array<i64: 2, 1>, scalar_prefetch = 0 : i64, scratch_operands = 1 : i64, tpu.core_type = #tpu.core_type<tc>, window_params = [{transform_indices = @transform_0, window_bounds = array<i64: 1, 4, 256>}, {transform_indices = @transform_1, window_bounds = array<i64: 1, 1, 128>}, {pipeline_mode = #tpu.pipeline_mode<synchronous>, transform_indices = @transform_2, window_bounds = array<i64: 384, 128>}, {pipeline_mode = #tpu.pipeline_mode<synchronous>, transform_indices = @transform_3, window_bounds = array<i64: 1, 128>}, {pipeline_mode = #tpu.pipeline_mode<synchronous>, transform_indices = @transform_4, window_bounds = array<i64: 1, 128>}, {transform_indices = @transform_5, window_bounds = array<i64: 1, 4, 128>}, {transform_indices = @transform_6, window_bounds = array<i64: 1, 1, 1, 128>}, {transform_indices = @transform_7, window_bounds = array<i64: 1, 1, 1, 128>}]} {
    %c0 = arith.constant 0 : index
    %c0_0 = arith.constant 0 : index
    %c0_1 = arith.constant 0 : index
    %0 = vector.load %arg2[%c0, %c0_0, %c0_1] : memref<1x4x256xbf16, #tpu.memory_space<vmem>>, vector<1x4x256xbf16>
    %1 = vector.shape_cast %0 : vector<1x4x256xbf16> to vector<4x256xbf16>
    %c0_2 = arith.constant 0 : index
    %2 = arith.index_cast %arg1 : i32 to index
    %c0_3 = arith.constant 0 : index
    %3 = vector.load %arg3[%c0_2, %2, %c0_3] : memref<1x1x128xf32, #tpu.memory_space<vmem>>, vector<1x1x128xf32>
    %4 = vector.shape_cast %3 : vector<1x1x128xf32> to vector<1x128xf32>
    %5 = vector.extract_strided_slice %1 {offsets = [0, 128], sizes = [3, 128], strides = [1, 1]} : vector<4x256xbf16> to vector<3x128xbf16>
    %6 = arith.extf %5 : vector<3x128xbf16> to vector<3x128xf32>
    %c1 = arith.constant 1 : index
    %c0_4 = arith.constant 0 : index
    %7 = vector.load %arg10[%c1, %c0_4] : memref<4x128xf32, #tpu.memory_space<vmem>>, vector<3x128xf32>
    tpu.vector_store %arg10[%c1, %c0_4], %6 {strides = array<i32>} : memref<4x128xf32, #tpu.memory_space<vmem>>, vector<3x128xf32>,
    %c0_5 = arith.constant 0 : index
    %c0_6 = arith.constant 0 : index
    %8 = vector.load %arg10[%c0_5, %c0_6] : memref<4x128xf32, #tpu.memory_space<vmem>>, vector<1x128xf32>
    tpu.vector_store %arg10[%c0_5, %c0_6], %4 {strides = array<i32>} : memref<4x128xf32, #tpu.memory_space<vmem>>, vector<1x128xf32>,
    %c0_7 = arith.constant 0 : index
    %c0_8 = arith.constant 0 : index
    %9 = vector.load %arg10[%c0_7, %c0_8] : memref<4x128xf32, #tpu.memory_space<vmem>>, vector<4x128xf32>
    %10 = arith.truncf %9 : vector<4x128xf32> to vector<4x128xbf16>
    %11 = tpu.concatenate %1, %10 in 1 : vector<4x256xbf16>, vector<4x128xbf16> -> vector<4x384xbf16>
    %c0_9 = arith.constant 0 : index
    %c0_10 = arith.constant 0 : index
    %12 = vector.load %arg4[%c0_9, %c0_10] : memref<384x128xbf16, #tpu.memory_space<vmem>>, vector<384x128xbf16>
    %cst = arith.constant dense<0.000000e+00> : vector<4x128xf32>
    %13 = tpu.matmul %11, %12, %cst {dimension_numbers = #tpu.dot_dimension_numbers<[1], [0], [0], [1], [0, 0, 1, 1], [], []>} : vector<4x384xbf16>, vector<384x128xbf16>, vector<4x128xf32> -> vector<4x128xf32>
    %c0_11 = arith.constant 0 : index
    %c0_12 = arith.constant 0 : index
    %14 = vector.load %arg5[%c0_11, %c0_12] : memref<1x128xf32, #tpu.memory_space<vmem>>, vector<1x128xf32>
    %15 = vector.broadcast %14 : vector<1x128xf32> to vector<4x128xf32>
    %16 = arith.addf %13, %15 : vector<4x128xf32>
    %17 = tpu.iota {dimensions = array<i32: 0>} : vector<4x1xi32>
    %c4_i32 = arith.constant 4 : i32
    %18 = arith.muli %arg1, %c4_i32 : i32
    %19 = vector.broadcast %18 : i32 to vector<4x1xi32>
    %20 = arith.addi %17, %19 : vector<4x1xi32>
    %c0_i32 = arith.constant 0 : i32
    %21 = vector.broadcast %c0_i32 : i32 to vector<4x1xi32>
    %22 = arith.cmpi eq, %20, %21 : vector<4x1xi32>
    %23 = arith.extui %22 : vector<4x1xi1> to vector<4x1xi32>
    %24 = arith.sitofp %23 : vector<4x1xi32> to vector<4x1xf32>
    %c0_13 = arith.constant 0 : index
    %c0_14 = arith.constant 0 : index
    %25 = vector.load %arg6[%c0_13, %c0_14] : memref<1x128xf32, #tpu.memory_space<vmem>>, vector<1x128xf32>
    %26 = vector.broadcast %24 : vector<4x1xf32> to vector<4x128xf32>
    %27 = vector.broadcast %25 : vector<1x128xf32> to vector<4x128xf32>
    %28 = arith.mulf %26, %27 : vector<4x128xf32>
    %29 = arith.subf %16, %28 : vector<4x128xf32>
    %cst_15 = arith.constant 0.000000e+00 : f32
    %30 = vector.broadcast %cst_15 : f32 to vector<4x128xf32>
    %31 = arith.maximumf %29, %30 : vector<4x128xf32>
    %32 = arith.truncf %31 : vector<4x128xf32> to vector<4x128xbf16>
    %c0_16 = arith.constant 0 : index
    %c0_17 = arith.constant 0 : index
    %c0_18 = arith.constant 0 : index
    %33 = vector.load %arg7[%c0_16, %c0_17, %c0_18] : memref<1x4x128xbf16, #tpu.memory_space<vmem>>, vector<1x4x128xbf16>
    %34 = vector.shape_cast %33 : vector<1x4x128xbf16> to vector<4x128xbf16>
    %35 = vector.shape_cast %32 : vector<4x128xbf16> to vector<1x4x128xbf16>
    tpu.vector_store %arg7[%c0_16, %c0_17, %c0_18], %35 {strides = array<i32>} : memref<1x4x128xbf16, #tpu.memory_space<vmem>>, vector<1x4x128xbf16>,
    %cst_19 = arith.constant dense<0.000000e+00> : vector<128xf32>
    %36 = vector.multi_reduction <add>, %31, %cst_19 [0] : vector<4x128xf32> to vector<128xf32>
    %37 = vector.shape_cast %36 : vector<128xf32> to vector<1x128xf32>
    %c0_20 = arith.constant 0 : index
    %c0_21 = arith.constant 0 : index
    %c0_22 = arith.constant 0 : index
    %c0_23 = arith.constant 0 : index
    %38 = vector.load %arg8[%c0_20, %c0_21, %c0_22, %c0_23] : memref<1x1x1x128xf32, #tpu.memory_space<vmem>>, vector<1x1x1x128xf32>
    %39 = vector.shape_cast %38 : vector<1x1x1x128xf32> to vector<1x128xf32>
    %40 = vector.shape_cast %37 : vector<1x128xf32> to vector<1x1x1x128xf32>
    tpu.vector_store %arg8[%c0_20, %c0_21, %c0_22, %c0_23], %40 {strides = array<i32>} : memref<1x1x1x128xf32, #tpu.memory_space<vmem>>, vector<1x1x1x128xf32>,
    %41 = arith.mulf %31, %31 : vector<4x128xf32>
    %cst_24 = arith.constant dense<0.000000e+00> : vector<128xf32>
    %42 = vector.multi_reduction <add>, %41, %cst_24 [0] : vector<4x128xf32> to vector<128xf32>
    %43 = vector.shape_cast %42 : vector<128xf32> to vector<1x128xf32>
    %c0_25 = arith.constant 0 : index
    %c0_26 = arith.constant 0 : index
    %c0_27 = arith.constant 0 : index
    %c0_28 = arith.constant 0 : index
    %44 = vector.load %arg9[%c0_25, %c0_26, %c0_27, %c0_28] : memref<1x1x1x128xf32, #tpu.memory_space<vmem>>, vector<1x1x1x128xf32>
    %45 = vector.shape_cast %44 : vector<1x1x1x128xf32> to vector<1x128xf32>
    %46 = vector.shape_cast %43 : vector<1x128xf32> to vector<1x1x1x128xf32>
    tpu.vector_store %arg9[%c0_25, %c0_26, %c0_27, %c0_28], %46 {strides = array<i32>} : memref<1x1x1x128xf32, #tpu.memory_space<vmem>>, vector<1x1x1x128xf32>,
    return
  }
  func.func @transform_0(%arg0: i32, %arg1: i32) -> (i32, i32, i32) {
    %c0_i32 = arith.constant 0 : i32
    %c0_i32_0 = arith.constant 0 : i32
    return %arg0, %arg1, %c0_i32 : i32, i32, i32
  }
  func.func @transform_1(%arg0: i32, %arg1: i32) -> (i32, i32, i32) {
    %c0_i32 = arith.constant 0 : i32
    %c0_i32_0 = arith.constant 0 : i32
    %c0_i32_1 = arith.constant 0 : i32
    return %arg0, %c0_i32, %c0_i32_0 : i32, i32, i32
  }
  func.func @transform_2(%arg0: i32, %arg1: i32) -> (i32, i32) {
    %c0_i32 = arith.constant 0 : i32
    %c0_i32_0 = arith.constant 0 : i32
    %c0_i32_1 = arith.constant 0 : i32
    return %c0_i32, %c0_i32_0 : i32, i32
  }
  func.func @transform_3(%arg0: i32, %arg1: i32) -> (i32, i32) {
    %c0_i32 = arith.constant 0 : i32
    %c0_i32_0 = arith.constant 0 : i32
    %c0_i32_1 = arith.constant 0 : i32
    return %c0_i32, %c0_i32_0 : i32, i32
  }
  func.func @transform_4(%arg0: i32, %arg1: i32) -> (i32, i32) {
    %c0_i32 = arith.constant 0 : i32
    %c0_i32_0 = arith.constant 0 : i32
    %c0_i32_1 = arith.constant 0 : i32
    return %c0_i32, %c0_i32_0 : i32, i32
  }
  func.func @transform_5(%arg0: i32, %arg1: i32) -> (i32, i32, i32) {
    %c0_i32 = arith.constant 0 : i32
    %c0_i32_0 = arith.constant 0 : i32
    return %arg0, %arg1, %c0_i32 : i32, i32, i32
  }
  func.func @transform_6(%arg0: i32, %arg1: i32) -> (i32, i32, i32, i32) {
    %c0_i32 = arith.constant 0 : i32
    %c0_i32_0 = arith.constant 0 : i32
    %c0_i32_1 = arith.constant 0 : i32
    return %arg0, %arg1, %c0_i32, %c0_i32_0 : i32, i32, i32, i32
  }
  func.func @transform_7(%arg0: i32, %arg1: i32) -> (i32, i32, i32, i32) {
    %c0_i32 = arith.constant 0 : i32
    %c0_i32_0 = arith.constant 0 : i32
    %c0_i32_1 = arith.constant 0 : i32
    return %arg0, %arg1, %c0_i32, %c0_i32_0 : i32, i32, i32, i32
  }
}

module attributes {stable_mosaic.version = 11 : i64} {
  func.func @_conv_fused_kernel(%arg0: i32, %arg1: i32, %arg2: memref<1x2x256xbf16, #tpu.memory_space<vmem>>, %arg3: memref<1x1x128xf32, #tpu.memory_space<vmem>>, %arg4: memref<384x256xbf16, #tpu.memory_space<vmem>>, %arg5: memref<1x256xf32, #tpu.memory_space<vmem>>, %arg6: memref<1x256xf32, #tpu.memory_space<vmem>>, %arg7: memref<1x2x256xbf16, #tpu.memory_space<vmem>>, %arg8: memref<1x1x1x256xf32, #tpu.memory_space<vmem>>, %arg9: memref<1x1x1x256xf32, #tpu.memory_space<vmem>>, %arg10: memref<2x128xf32, #tpu.memory_space<vmem>>) attributes {dimension_semantics = [#tpu.dimension_semantics<parallel>, #tpu.dimension_semantics<parallel>], iteration_bounds = array<i64: 2, 1>, scalar_prefetch = 0 : i64, scratch_operands = 1 : i64, tpu.core_type = #tpu.core_type<tc>, window_params = [{transform_indices = @transform_0, window_bounds = array<i64: 1, 2, 256>}, {transform_indices = @transform_1, window_bounds = array<i64: 1, 1, 128>}, {pipeline_mode = #tpu.pipeline_mode<synchronous>, transform_indices = @transform_2, window_bounds = array<i64: 384, 256>}, {pipeline_mode = #tpu.pipeline_mode<synchronous>, transform_indices = @transform_3, window_bounds = array<i64: 1, 256>}, {pipeline_mode = #tpu.pipeline_mode<synchronous>, transform_indices = @transform_4, window_bounds = array<i64: 1, 256>}, {transform_indices = @transform_5, window_bounds = array<i64: 1, 2, 256>}, {transform_indices = @transform_6, window_bounds = array<i64: 1, 1, 1, 256>}, {transform_indices = @transform_7, window_bounds = array<i64: 1, 1, 1, 256>}]} {
    %c0 = arith.constant 0 : index
    %c0_0 = arith.constant 0 : index
    %c0_1 = arith.constant 0 : index
    %0 = vector.load %arg2[%c0, %c0_0, %c0_1] : memref<1x2x256xbf16, #tpu.memory_space<vmem>>, vector<1x2x256xbf16>
    %1 = vector.shape_cast %0 : vector<1x2x256xbf16> to vector<2x256xbf16>
    %c0_2 = arith.constant 0 : index
    %2 = arith.index_cast %arg1 : i32 to index
    %c0_3 = arith.constant 0 : index
    %3 = vector.load %arg3[%c0_2, %2, %c0_3] : memref<1x1x128xf32, #tpu.memory_space<vmem>>, vector<1x1x128xf32>
    %4 = vector.shape_cast %3 : vector<1x1x128xf32> to vector<1x128xf32>
    %5 = vector.extract_strided_slice %1 {offsets = [0, 128], sizes = [1, 128], strides = [1, 1]} : vector<2x256xbf16> to vector<1x128xbf16>
    %6 = arith.extf %5 : vector<1x128xbf16> to vector<1x128xf32>
    %c1 = arith.constant 1 : index
    %c0_4 = arith.constant 0 : index
    %7 = vector.load %arg10[%c1, %c0_4] : memref<2x128xf32, #tpu.memory_space<vmem>>, vector<1x128xf32>
    tpu.vector_store %arg10[%c1, %c0_4], %6 {strides = array<i32>} : memref<2x128xf32, #tpu.memory_space<vmem>>, vector<1x128xf32>,
    %c0_5 = arith.constant 0 : index
    %c0_6 = arith.constant 0 : index
    %8 = vector.load %arg10[%c0_5, %c0_6] : memref<2x128xf32, #tpu.memory_space<vmem>>, vector<1x128xf32>
    tpu.vector_store %arg10[%c0_5, %c0_6], %4 {strides = array<i32>} : memref<2x128xf32, #tpu.memory_space<vmem>>, vector<1x128xf32>,
    %c0_7 = arith.constant 0 : index
    %c0_8 = arith.constant 0 : index
    %9 = vector.load %arg10[%c0_7, %c0_8] : memref<2x128xf32, #tpu.memory_space<vmem>>, vector<2x128xf32>
    %10 = arith.truncf %9 : vector<2x128xf32> to vector<2x128xbf16>
    %11 = tpu.concatenate %1, %10 in 1 : vector<2x256xbf16>, vector<2x128xbf16> -> vector<2x384xbf16>
    %c0_9 = arith.constant 0 : index
    %c0_10 = arith.constant 0 : index
    %12 = vector.load %arg4[%c0_9, %c0_10] : memref<384x256xbf16, #tpu.memory_space<vmem>>, vector<384x256xbf16>
    %cst = arith.constant dense<0.000000e+00> : vector<2x256xf32>
    %13 = tpu.matmul %11, %12, %cst {dimension_numbers = #tpu.dot_dimension_numbers<[1], [0], [0], [1], [0, 0, 1, 1], [], []>} : vector<2x384xbf16>, vector<384x256xbf16>, vector<2x256xf32> -> vector<2x256xf32>
    %c0_11 = arith.constant 0 : index
    %c0_12 = arith.constant 0 : index
    %14 = vector.load %arg5[%c0_11, %c0_12] : memref<1x256xf32, #tpu.memory_space<vmem>>, vector<1x256xf32>
    %15 = vector.broadcast %14 : vector<1x256xf32> to vector<2x256xf32>
    %16 = arith.addf %13, %15 : vector<2x256xf32>
    %17 = tpu.iota {dimensions = array<i32: 0>} : vector<2x1xi32>
    %c2_i32 = arith.constant 2 : i32
    %18 = arith.muli %arg1, %c2_i32 : i32
    %19 = vector.broadcast %18 : i32 to vector<2x1xi32>
    %20 = arith.addi %17, %19 : vector<2x1xi32>
    %c0_i32 = arith.constant 0 : i32
    %21 = vector.broadcast %c0_i32 : i32 to vector<2x1xi32>
    %22 = arith.cmpi eq, %20, %21 : vector<2x1xi32>
    %23 = arith.extui %22 : vector<2x1xi1> to vector<2x1xi32>
    %24 = arith.sitofp %23 : vector<2x1xi32> to vector<2x1xf32>
    %c0_13 = arith.constant 0 : index
    %c0_14 = arith.constant 0 : index
    %25 = vector.load %arg6[%c0_13, %c0_14] : memref<1x256xf32, #tpu.memory_space<vmem>>, vector<1x256xf32>
    %26 = vector.broadcast %24 : vector<2x1xf32> to vector<2x256xf32>
    %27 = vector.broadcast %25 : vector<1x256xf32> to vector<2x256xf32>
    %28 = arith.mulf %26, %27 : vector<2x256xf32>
    %29 = arith.subf %16, %28 : vector<2x256xf32>
    %cst_15 = arith.constant 0.000000e+00 : f32
    %30 = vector.broadcast %cst_15 : f32 to vector<2x256xf32>
    %31 = arith.maximumf %29, %30 : vector<2x256xf32>
    %32 = arith.truncf %31 : vector<2x256xf32> to vector<2x256xbf16>
    %c0_16 = arith.constant 0 : index
    %c0_17 = arith.constant 0 : index
    %c0_18 = arith.constant 0 : index
    %33 = vector.load %arg7[%c0_16, %c0_17, %c0_18] : memref<1x2x256xbf16, #tpu.memory_space<vmem>>, vector<1x2x256xbf16>
    %34 = vector.shape_cast %33 : vector<1x2x256xbf16> to vector<2x256xbf16>
    %35 = vector.shape_cast %32 : vector<2x256xbf16> to vector<1x2x256xbf16>
    tpu.vector_store %arg7[%c0_16, %c0_17, %c0_18], %35 {strides = array<i32>} : memref<1x2x256xbf16, #tpu.memory_space<vmem>>, vector<1x2x256xbf16>,
    %cst_19 = arith.constant dense<0.000000e+00> : vector<256xf32>
    %36 = vector.multi_reduction <add>, %31, %cst_19 [0] : vector<2x256xf32> to vector<256xf32>
    %37 = vector.shape_cast %36 : vector<256xf32> to vector<1x256xf32>
    %c0_20 = arith.constant 0 : index
    %c0_21 = arith.constant 0 : index
    %c0_22 = arith.constant 0 : index
    %c0_23 = arith.constant 0 : index
    %38 = vector.load %arg8[%c0_20, %c0_21, %c0_22, %c0_23] : memref<1x1x1x256xf32, #tpu.memory_space<vmem>>, vector<1x1x1x256xf32>
    %39 = vector.shape_cast %38 : vector<1x1x1x256xf32> to vector<1x256xf32>
    %40 = vector.shape_cast %37 : vector<1x256xf32> to vector<1x1x1x256xf32>
    tpu.vector_store %arg8[%c0_20, %c0_21, %c0_22, %c0_23], %40 {strides = array<i32>} : memref<1x1x1x256xf32, #tpu.memory_space<vmem>>, vector<1x1x1x256xf32>,
    %41 = arith.mulf %31, %31 : vector<2x256xf32>
    %cst_24 = arith.constant dense<0.000000e+00> : vector<256xf32>
    %42 = vector.multi_reduction <add>, %41, %cst_24 [0] : vector<2x256xf32> to vector<256xf32>
    %43 = vector.shape_cast %42 : vector<256xf32> to vector<1x256xf32>
    %c0_25 = arith.constant 0 : index
    %c0_26 = arith.constant 0 : index
    %c0_27 = arith.constant 0 : index
    %c0_28 = arith.constant 0 : index
    %44 = vector.load %arg9[%c0_25, %c0_26, %c0_27, %c0_28] : memref<1x1x1x256xf32, #tpu.memory_space<vmem>>, vector<1x1x1x256xf32>
    %45 = vector.shape_cast %44 : vector<1x1x1x256xf32> to vector<1x256xf32>
    %46 = vector.shape_cast %43 : vector<1x256xf32> to vector<1x1x1x256xf32>
    tpu.vector_store %arg9[%c0_25, %c0_26, %c0_27, %c0_28], %46 {strides = array<i32>} : memref<1x1x1x256xf32, #tpu.memory_space<vmem>>, vector<1x1x1x256xf32>,
    return
  }
  func.func @transform_0(%arg0: i32, %arg1: i32) -> (i32, i32, i32) {
    %c0_i32 = arith.constant 0 : i32
    %c0_i32_0 = arith.constant 0 : i32
    return %arg0, %arg1, %c0_i32 : i32, i32, i32
  }
  func.func @transform_1(%arg0: i32, %arg1: i32) -> (i32, i32, i32) {
    %c0_i32 = arith.constant 0 : i32
    %c0_i32_0 = arith.constant 0 : i32
    %c0_i32_1 = arith.constant 0 : i32
    return %arg0, %c0_i32, %c0_i32_0 : i32, i32, i32
  }
  func.func @transform_2(%arg0: i32, %arg1: i32) -> (i32, i32) {
    %c0_i32 = arith.constant 0 : i32
    %c0_i32_0 = arith.constant 0 : i32
    %c0_i32_1 = arith.constant 0 : i32
    return %c0_i32, %c0_i32_0 : i32, i32
  }
  func.func @transform_3(%arg0: i32, %arg1: i32) -> (i32, i32) {
    %c0_i32 = arith.constant 0 : i32
    %c0_i32_0 = arith.constant 0 : i32
    %c0_i32_1 = arith.constant 0 : i32
    return %c0_i32, %c0_i32_0 : i32, i32
  }
  func.func @transform_4(%arg0: i32, %arg1: i32) -> (i32, i32) {
    %c0_i32 = arith.constant 0 : i32
    %c0_i32_0 = arith.constant 0 : i32
    %c0_i32_1 = arith.constant 0 : i32
    return %c0_i32, %c0_i32_0 : i32, i32
  }
  func.func @transform_5(%arg0: i32, %arg1: i32) -> (i32, i32, i32) {
    %c0_i32 = arith.constant 0 : i32
    %c0_i32_0 = arith.constant 0 : i32
    return %arg0, %arg1, %c0_i32 : i32, i32, i32
  }
  func.func @transform_6(%arg0: i32, %arg1: i32) -> (i32, i32, i32, i32) {
    %c0_i32 = arith.constant 0 : i32
    %c0_i32_0 = arith.constant 0 : i32
    %c0_i32_1 = arith.constant 0 : i32
    return %arg0, %arg1, %c0_i32, %c0_i32_0 : i32, i32, i32, i32
  }
  func.func @transform_7(%arg0: i32, %arg1: i32) -> (i32, i32, i32, i32) {
    %c0_i32 = arith.constant 0 : i32
    %c0_i32_0 = arith.constant 0 : i32
    %c0_i32_1 = arith.constant 0 : i32
    return %arg0, %arg1, %c0_i32, %c0_i32_0 : i32, i32, i32, i32
  }
}

module attributes {stable_mosaic.version = 11 : i64} {
  func.func @_conv_fused_kernel(%arg0: i32, %arg1: i32, %arg2: memref<1x1x512xbf16, #tpu.memory_space<vmem>>, %arg3: memref<1x1x256xf32, #tpu.memory_space<vmem>>, %arg4: memref<768x128xbf16, #tpu.memory_space<vmem>>, %arg5: memref<1x128xf32, #tpu.memory_space<vmem>>, %arg6: memref<1x128xf32, #tpu.memory_space<vmem>>, %arg7: memref<1x1x128xbf16, #tpu.memory_space<vmem>>, %arg8: memref<1x256xf32, #tpu.memory_space<vmem>>) attributes {dimension_semantics = [#tpu.dimension_semantics<parallel>, #tpu.dimension_semantics<parallel>], iteration_bounds = array<i64: 2, 1>, scalar_prefetch = 0 : i64, scratch_operands = 1 : i64, tpu.core_type = #tpu.core_type<tc>, window_params = [{transform_indices = @transform_0, window_bounds = array<i64: 1, 1, 512>}, {transform_indices = @transform_1, window_bounds = array<i64: 1, 1, 256>}, {pipeline_mode = #tpu.pipeline_mode<synchronous>, transform_indices = @transform_2, window_bounds = array<i64: 768, 128>}, {pipeline_mode = #tpu.pipeline_mode<synchronous>, transform_indices = @transform_3, window_bounds = array<i64: 1, 128>}, {pipeline_mode = #tpu.pipeline_mode<synchronous>, transform_indices = @transform_4, window_bounds = array<i64: 1, 128>}, {transform_indices = @transform_5, window_bounds = array<i64: 1, 1, 128>}]} {
    %c0 = arith.constant 0 : index
    %c0_0 = arith.constant 0 : index
    %c0_1 = arith.constant 0 : index
    %0 = vector.load %arg2[%c0, %c0_0, %c0_1] : memref<1x1x512xbf16, #tpu.memory_space<vmem>>, vector<1x1x512xbf16>
    %1 = vector.shape_cast %0 : vector<1x1x512xbf16> to vector<1x512xbf16>
    %c0_2 = arith.constant 0 : index
    %2 = arith.index_cast %arg1 : i32 to index
    %c0_3 = arith.constant 0 : index
    %3 = vector.load %arg3[%c0_2, %2, %c0_3] : memref<1x1x256xf32, #tpu.memory_space<vmem>>, vector<1x1x256xf32>
    %4 = vector.shape_cast %3 : vector<1x1x256xf32> to vector<1x256xf32>
    %c0_4 = arith.constant 0 : index
    %c0_5 = arith.constant 0 : index
    %5 = vector.load %arg8[%c0_4, %c0_5] : memref<1x256xf32, #tpu.memory_space<vmem>>, vector<1x256xf32>
    tpu.vector_store %arg8[%c0_4, %c0_5], %4 {strides = array<i32>} : memref<1x256xf32, #tpu.memory_space<vmem>>, vector<1x256xf32>,
    %c0_6 = arith.constant 0 : index
    %c0_7 = arith.constant 0 : index
    %6 = vector.load %arg8[%c0_6, %c0_7] : memref<1x256xf32, #tpu.memory_space<vmem>>, vector<1x256xf32>
    %7 = arith.truncf %6 : vector<1x256xf32> to vector<1x256xbf16>
    %8 = tpu.concatenate %1, %7 in 1 : vector<1x512xbf16>, vector<1x256xbf16> -> vector<1x768xbf16>
    %c0_8 = arith.constant 0 : index
    %c0_9 = arith.constant 0 : index
    %9 = vector.load %arg4[%c0_8, %c0_9] : memref<768x128xbf16, #tpu.memory_space<vmem>>, vector<768x128xbf16>
    %cst = arith.constant dense<0.000000e+00> : vector<1x128xf32>
    %10 = tpu.matmul %8, %9, %cst {dimension_numbers = #tpu.dot_dimension_numbers<[1], [0], [0], [1], [0, 0, 1, 1], [], []>} : vector<1x768xbf16>, vector<768x128xbf16>, vector<1x128xf32> -> vector<1x128xf32>
    %c0_10 = arith.constant 0 : index
    %c0_11 = arith.constant 0 : index
    %11 = vector.load %arg5[%c0_10, %c0_11] : memref<1x128xf32, #tpu.memory_space<vmem>>, vector<1x128xf32>
    %12 = arith.addf %10, %11 : vector<1x128xf32>
    %13 = tpu.iota {dimensions = array<i32: 0>} : vector<1x1xi32>
    %c1_i32 = arith.constant 1 : i32
    %14 = arith.muli %arg1, %c1_i32 : i32
    %15 = vector.broadcast %14 : i32 to vector<1x1xi32>
    %16 = arith.addi %13, %15 : vector<1x1xi32>
    %c0_i32 = arith.constant 0 : i32
    %17 = vector.broadcast %c0_i32 : i32 to vector<1x1xi32>
    %18 = arith.cmpi eq, %16, %17 : vector<1x1xi32>
    %19 = arith.extui %18 : vector<1x1xi1> to vector<1x1xi32>
    %20 = arith.sitofp %19 : vector<1x1xi32> to vector<1x1xf32>
    %c0_12 = arith.constant 0 : index
    %c0_13 = arith.constant 0 : index
    %21 = vector.load %arg6[%c0_12, %c0_13] : memref<1x128xf32, #tpu.memory_space<vmem>>, vector<1x128xf32>
    %22 = vector.broadcast %20 : vector<1x1xf32> to vector<1x128xf32>
    %23 = arith.mulf %22, %21 : vector<1x128xf32>
    %24 = arith.subf %12, %23 : vector<1x128xf32>
    %cst_14 = arith.constant 0.000000e+00 : f32
    %25 = vector.broadcast %cst_14 : f32 to vector<1x128xf32>
    %26 = arith.maximumf %24, %25 : vector<1x128xf32>
    %27 = arith.truncf %26 : vector<1x128xf32> to vector<1x128xbf16>
    %c0_15 = arith.constant 0 : index
    %c0_16 = arith.constant 0 : index
    %c0_17 = arith.constant 0 : index
    %28 = vector.load %arg7[%c0_15, %c0_16, %c0_17] : memref<1x1x128xbf16, #tpu.memory_space<vmem>>, vector<1x1x128xbf16>
    %29 = vector.shape_cast %28 : vector<1x1x128xbf16> to vector<1x128xbf16>
    %30 = vector.shape_cast %27 : vector<1x128xbf16> to vector<1x1x128xbf16>
    tpu.vector_store %arg7[%c0_15, %c0_16, %c0_17], %30 {strides = array<i32>} : memref<1x1x128xbf16, #tpu.memory_space<vmem>>, vector<1x1x128xbf16>,
    return
  }
  func.func @transform_0(%arg0: i32, %arg1: i32) -> (i32, i32, i32) {
    %c0_i32 = arith.constant 0 : i32
    %c0_i32_0 = arith.constant 0 : i32
    return %arg0, %arg1, %c0_i32 : i32, i32, i32
  }
  func.func @transform_1(%arg0: i32, %arg1: i32) -> (i32, i32, i32) {
    %c0_i32 = arith.constant 0 : i32
    %c0_i32_0 = arith.constant 0 : i32
    %c0_i32_1 = arith.constant 0 : i32
    return %arg0, %c0_i32, %c0_i32_0 : i32, i32, i32
  }
  func.func @transform_2(%arg0: i32, %arg1: i32) -> (i32, i32) {
    %c0_i32 = arith.constant 0 : i32
    %c0_i32_0 = arith.constant 0 : i32
    %c0_i32_1 = arith.constant 0 : i32
    return %c0_i32, %c0_i32_0 : i32, i32
  }
  func.func @transform_3(%arg0: i32, %arg1: i32) -> (i32, i32) {
    %c0_i32 = arith.constant 0 : i32
    %c0_i32_0 = arith.constant 0 : i32
    %c0_i32_1 = arith.constant 0 : i32
    return %c0_i32, %c0_i32_0 : i32, i32
  }
  func.func @transform_4(%arg0: i32, %arg1: i32) -> (i32, i32) {
    %c0_i32 = arith.constant 0 : i32
    %c0_i32_0 = arith.constant 0 : i32
    %c0_i32_1 = arith.constant 0 : i32
    return %c0_i32, %c0_i32_0 : i32, i32
  }
  func.func @transform_5(%arg0: i32, %arg1: i32) -> (i32, i32, i32) {
    %c0_i32 = arith.constant 0 : i32
    %c0_i32_0 = arith.constant 0 : i32
    return %arg0, %arg1, %c0_i32 : i32, i32, i32
  }
}

module attributes {stable_mosaic.version = 11 : i64} {
  func.func @_conv_fused_kernel(%arg0: i32, %arg1: i32, %arg2: memref<1x1x128xbf16, #tpu.memory_space<vmem>>, %arg3: memref<1x1x128xf32, #tpu.memory_space<vmem>>, %arg4: memref<256x512xbf16, #tpu.memory_space<vmem>>, %arg5: memref<1x512xf32, #tpu.memory_space<vmem>>, %arg6: memref<1x512xf32, #tpu.memory_space<vmem>>, %arg7: memref<1x1x512xbf16, #tpu.memory_space<vmem>>, %arg8: memref<1x1x1x512xf32, #tpu.memory_space<vmem>>, %arg9: memref<1x1x1x512xf32, #tpu.memory_space<vmem>>, %arg10: memref<1x128xf32, #tpu.memory_space<vmem>>) attributes {dimension_semantics = [#tpu.dimension_semantics<parallel>, #tpu.dimension_semantics<parallel>], iteration_bounds = array<i64: 2, 1>, scalar_prefetch = 0 : i64, scratch_operands = 1 : i64, tpu.core_type = #tpu.core_type<tc>, window_params = [{transform_indices = @transform_0, window_bounds = array<i64: 1, 1, 128>}, {transform_indices = @transform_1, window_bounds = array<i64: 1, 1, 128>}, {pipeline_mode = #tpu.pipeline_mode<synchronous>, transform_indices = @transform_2, window_bounds = array<i64: 256, 512>}, {pipeline_mode = #tpu.pipeline_mode<synchronous>, transform_indices = @transform_3, window_bounds = array<i64: 1, 512>}, {pipeline_mode = #tpu.pipeline_mode<synchronous>, transform_indices = @transform_4, window_bounds = array<i64: 1, 512>}, {transform_indices = @transform_5, window_bounds = array<i64: 1, 1, 512>}, {transform_indices = @transform_6, window_bounds = array<i64: 1, 1, 1, 512>}, {transform_indices = @transform_7, window_bounds = array<i64: 1, 1, 1, 512>}]} {
    %c0 = arith.constant 0 : index
    %c0_0 = arith.constant 0 : index
    %c0_1 = arith.constant 0 : index
    %0 = vector.load %arg2[%c0, %c0_0, %c0_1] : memref<1x1x128xbf16, #tpu.memory_space<vmem>>, vector<1x1x128xbf16>
    %1 = vector.shape_cast %0 : vector<1x1x128xbf16> to vector<1x128xbf16>
    %c0_2 = arith.constant 0 : index
    %2 = arith.index_cast %arg1 : i32 to index
    %c0_3 = arith.constant 0 : index
    %3 = vector.load %arg3[%c0_2, %2, %c0_3] : memref<1x1x128xf32, #tpu.memory_space<vmem>>, vector<1x1x128xf32>
    %4 = vector.shape_cast %3 : vector<1x1x128xf32> to vector<1x128xf32>
    %c0_4 = arith.constant 0 : index
    %c0_5 = arith.constant 0 : index
    %5 = vector.load %arg10[%c0_4, %c0_5] : memref<1x128xf32, #tpu.memory_space<vmem>>, vector<1x128xf32>
    tpu.vector_store %arg10[%c0_4, %c0_5], %4 {strides = array<i32>} : memref<1x128xf32, #tpu.memory_space<vmem>>, vector<1x128xf32>,
    %c0_6 = arith.constant 0 : index
    %c0_7 = arith.constant 0 : index
    %6 = vector.load %arg10[%c0_6, %c0_7] : memref<1x128xf32, #tpu.memory_space<vmem>>, vector<1x128xf32>
    %7 = arith.truncf %6 : vector<1x128xf32> to vector<1x128xbf16>
    %8 = tpu.concatenate %1, %7 in 1 : vector<1x128xbf16>, vector<1x128xbf16> -> vector<1x256xbf16>
    %c0_8 = arith.constant 0 : index
    %c0_9 = arith.constant 0 : index
    %9 = vector.load %arg4[%c0_8, %c0_9] : memref<256x512xbf16, #tpu.memory_space<vmem>>, vector<256x512xbf16>
    %cst = arith.constant dense<0.000000e+00> : vector<1x512xf32>
    %10 = tpu.matmul %8, %9, %cst {dimension_numbers = #tpu.dot_dimension_numbers<[1], [0], [0], [1], [0, 0, 1, 1], [], []>} : vector<1x256xbf16>, vector<256x512xbf16>, vector<1x512xf32> -> vector<1x512xf32>
    %c0_10 = arith.constant 0 : index
    %c0_11 = arith.constant 0 : index
    %11 = vector.load %arg5[%c0_10, %c0_11] : memref<1x512xf32, #tpu.memory_space<vmem>>, vector<1x512xf32>
    %12 = arith.addf %10, %11 : vector<1x512xf32>
    %13 = tpu.iota {dimensions = array<i32: 0>} : vector<1x1xi32>
    %c1_i32 = arith.constant 1 : i32
    %14 = arith.muli %arg1, %c1_i32 : i32
    %15 = vector.broadcast %14 : i32 to vector<1x1xi32>
    %16 = arith.addi %13, %15 : vector<1x1xi32>
    %c0_i32 = arith.constant 0 : i32
    %17 = vector.broadcast %c0_i32 : i32 to vector<1x1xi32>
    %18 = arith.cmpi eq, %16, %17 : vector<1x1xi32>
    %19 = arith.extui %18 : vector<1x1xi1> to vector<1x1xi32>
    %20 = arith.sitofp %19 : vector<1x1xi32> to vector<1x1xf32>
    %c0_12 = arith.constant 0 : index
    %c0_13 = arith.constant 0 : index
    %21 = vector.load %arg6[%c0_12, %c0_13] : memref<1x512xf32, #tpu.memory_space<vmem>>, vector<1x512xf32>
    %22 = vector.broadcast %20 : vector<1x1xf32> to vector<1x512xf32>
    %23 = arith.mulf %22, %21 : vector<1x512xf32>
    %24 = arith.subf %12, %23 : vector<1x512xf32>
    %cst_14 = arith.constant 0.000000e+00 : f32
    %25 = vector.broadcast %cst_14 : f32 to vector<1x512xf32>
    %26 = arith.maximumf %24, %25 : vector<1x512xf32>
    %27 = arith.truncf %26 : vector<1x512xf32> to vector<1x512xbf16>
    %c0_15 = arith.constant 0 : index
    %c0_16 = arith.constant 0 : index
    %c0_17 = arith.constant 0 : index
    %28 = vector.load %arg7[%c0_15, %c0_16, %c0_17] : memref<1x1x512xbf16, #tpu.memory_space<vmem>>, vector<1x1x512xbf16>
    %29 = vector.shape_cast %28 : vector<1x1x512xbf16> to vector<1x512xbf16>
    %30 = vector.shape_cast %27 : vector<1x512xbf16> to vector<1x1x512xbf16>
    tpu.vector_store %arg7[%c0_15, %c0_16, %c0_17], %30 {strides = array<i32>} : memref<1x1x512xbf16, #tpu.memory_space<vmem>>, vector<1x1x512xbf16>,
    %cst_18 = arith.constant dense<0.000000e+00> : vector<512xf32>
    %31 = vector.multi_reduction <add>, %26, %cst_18 [0] : vector<1x512xf32> to vector<512xf32>
    %32 = vector.shape_cast %31 : vector<512xf32> to vector<1x512xf32>
    %c0_19 = arith.constant 0 : index
    %c0_20 = arith.constant 0 : index
    %c0_21 = arith.constant 0 : index
    %c0_22 = arith.constant 0 : index
    %33 = vector.load %arg8[%c0_19, %c0_20, %c0_21, %c0_22] : memref<1x1x1x512xf32, #tpu.memory_space<vmem>>, vector<1x1x1x512xf32>
    %34 = vector.shape_cast %33 : vector<1x1x1x512xf32> to vector<1x512xf32>
    %35 = vector.shape_cast %32 : vector<1x512xf32> to vector<1x1x1x512xf32>
    tpu.vector_store %arg8[%c0_19, %c0_20, %c0_21, %c0_22], %35 {strides = array<i32>} : memref<1x1x1x512xf32, #tpu.memory_space<vmem>>, vector<1x1x1x512xf32>,
    %36 = arith.mulf %26, %26 : vector<1x512xf32>
    %cst_23 = arith.constant dense<0.000000e+00> : vector<512xf32>
    %37 = vector.multi_reduction <add>, %36, %cst_23 [0] : vector<1x512xf32> to vector<512xf32>
    %38 = vector.shape_cast %37 : vector<512xf32> to vector<1x512xf32>
    %c0_24 = arith.constant 0 : index
    %c0_25 = arith.constant 0 : index
    %c0_26 = arith.constant 0 : index
    %c0_27 = arith.constant 0 : index
    %39 = vector.load %arg9[%c0_24, %c0_25, %c0_26, %c0_27] : memref<1x1x1x512xf32, #tpu.memory_space<vmem>>, vector<1x1x1x512xf32>
    %40 = vector.shape_cast %39 : vector<1x1x1x512xf32> to vector<1x512xf32>
    %41 = vector.shape_cast %38 : vector<1x512xf32> to vector<1x1x1x512xf32>
    tpu.vector_store %arg9[%c0_24, %c0_25, %c0_26, %c0_27], %41 {strides = array<i32>} : memref<1x1x1x512xf32, #tpu.memory_space<vmem>>, vector<1x1x1x512xf32>,
    return
  }
  func.func @transform_0(%arg0: i32, %arg1: i32) -> (i32, i32, i32) {
    %c0_i32 = arith.constant 0 : i32
    %c0_i32_0 = arith.constant 0 : i32
    return %arg0, %arg1, %c0_i32 : i32, i32, i32
  }
  func.func @transform_1(%arg0: i32, %arg1: i32) -> (i32, i32, i32) {
    %c0_i32 = arith.constant 0 : i32
    %c0_i32_0 = arith.constant 0 : i32
    %c0_i32_1 = arith.constant 0 : i32
    return %arg0, %c0_i32, %c0_i32_0 : i32, i32, i32
  }
  func.func @transform_2(%arg0: i32, %arg1: i32) -> (i32, i32) {
    %c0_i32 = arith.constant 0 : i32
    %c0_i32_0 = arith.constant 0 : i32
    %c0_i32_1 = arith.constant 0 : i32
    return %c0_i32, %c0_i32_0 : i32, i32
  }
  func.func @transform_3(%arg0: i32, %arg1: i32) -> (i32, i32) {
    %c0_i32 = arith.constant 0 : i32
    %c0_i32_0 = arith.constant 0 : i32
    %c0_i32_1 = arith.constant 0 : i32
    return %c0_i32, %c0_i32_0 : i32, i32
  }
  func.func @transform_4(%arg0: i32, %arg1: i32) -> (i32, i32) {
    %c0_i32 = arith.constant 0 : i32
    %c0_i32_0 = arith.constant 0 : i32
    %c0_i32_1 = arith.constant 0 : i32
    return %c0_i32, %c0_i32_0 : i32, i32
  }
  func.func @transform_5(%arg0: i32, %arg1: i32) -> (i32, i32, i32) {
    %c0_i32 = arith.constant 0 : i32
    %c0_i32_0 = arith.constant 0 : i32
    return %arg0, %arg1, %c0_i32 : i32, i32, i32
  }
  func.func @transform_6(%arg0: i32, %arg1: i32) -> (i32, i32, i32, i32) {
    %c0_i32 = arith.constant 0 : i32
    %c0_i32_0 = arith.constant 0 : i32
    %c0_i32_1 = arith.constant 0 : i32
    return %arg0, %arg1, %c0_i32, %c0_i32_0 : i32, i32, i32, i32
  }
  func.func @transform_7(%arg0: i32, %arg1: i32) -> (i32, i32, i32, i32) {
    %c0_i32 = arith.constant 0 : i32
    %c0_i32_0 = arith.constant 0 : i32
    %c0_i32_1 = arith.constant 0 : i32
    return %arg0, %arg1, %c0_i32, %c0_i32_0 : i32, i32, i32, i32
  }
}

module attributes {stable_mosaic.version = 11 : i64} {
  func.func @_conv_fused_kernel(%arg0: i32, %arg1: i32, %arg2: memref<1x2x256xbf16, #tpu.memory_space<vmem>>, %arg3: memref<1x1x256xf32, #tpu.memory_space<vmem>>, %arg4: memref<512x256xbf16, #tpu.memory_space<vmem>>, %arg5: memref<1x256xf32, #tpu.memory_space<vmem>>, %arg6: memref<1x256xf32, #tpu.memory_space<vmem>>, %arg7: memref<1x2x256xbf16, #tpu.memory_space<vmem>>, %arg8: memref<1x1x1x256xf32, #tpu.memory_space<vmem>>, %arg9: memref<1x1x1x256xf32, #tpu.memory_space<vmem>>, %arg10: memref<2x256xf32, #tpu.memory_space<vmem>>) attributes {dimension_semantics = [#tpu.dimension_semantics<parallel>, #tpu.dimension_semantics<parallel>], iteration_bounds = array<i64: 2, 1>, scalar_prefetch = 0 : i64, scratch_operands = 1 : i64, tpu.core_type = #tpu.core_type<tc>, window_params = [{transform_indices = @transform_0, window_bounds = array<i64: 1, 2, 256>}, {transform_indices = @transform_1, window_bounds = array<i64: 1, 1, 256>}, {pipeline_mode = #tpu.pipeline_mode<synchronous>, transform_indices = @transform_2, window_bounds = array<i64: 512, 256>}, {pipeline_mode = #tpu.pipeline_mode<synchronous>, transform_indices = @transform_3, window_bounds = array<i64: 1, 256>}, {pipeline_mode = #tpu.pipeline_mode<synchronous>, transform_indices = @transform_4, window_bounds = array<i64: 1, 256>}, {transform_indices = @transform_5, window_bounds = array<i64: 1, 2, 256>}, {transform_indices = @transform_6, window_bounds = array<i64: 1, 1, 1, 256>}, {transform_indices = @transform_7, window_bounds = array<i64: 1, 1, 1, 256>}]} {
    %c0 = arith.constant 0 : index
    %c0_0 = arith.constant 0 : index
    %c0_1 = arith.constant 0 : index
    %0 = vector.load %arg2[%c0, %c0_0, %c0_1] : memref<1x2x256xbf16, #tpu.memory_space<vmem>>, vector<1x2x256xbf16>
    %1 = vector.shape_cast %0 : vector<1x2x256xbf16> to vector<2x256xbf16>
    %c0_2 = arith.constant 0 : index
    %2 = arith.index_cast %arg1 : i32 to index
    %c0_3 = arith.constant 0 : index
    %3 = vector.load %arg3[%c0_2, %2, %c0_3] : memref<1x1x256xf32, #tpu.memory_space<vmem>>, vector<1x1x256xf32>
    %4 = vector.shape_cast %3 : vector<1x1x256xf32> to vector<1x256xf32>
    %5 = vector.extract_strided_slice %1 {offsets = [1, 0], sizes = [1, 256], strides = [1, 1]} : vector<2x256xbf16> to vector<1x256xbf16>
    %6 = arith.extf %5 : vector<1x256xbf16> to vector<1x256xf32>
    %c0_4 = arith.constant 0 : index
    %c0_5 = arith.constant 0 : index
    %7 = vector.load %arg10[%c0_4, %c0_5] : memref<2x256xf32, #tpu.memory_space<vmem>>, vector<1x256xf32>
    tpu.vector_store %arg10[%c0_4, %c0_5], %6 {strides = array<i32>} : memref<2x256xf32, #tpu.memory_space<vmem>>, vector<1x256xf32>,
    %c1 = arith.constant 1 : index
    %c0_6 = arith.constant 0 : index
    %8 = vector.load %arg10[%c1, %c0_6] : memref<2x256xf32, #tpu.memory_space<vmem>>, vector<1x256xf32>
    tpu.vector_store %arg10[%c1, %c0_6], %4 {strides = array<i32>} : memref<2x256xf32, #tpu.memory_space<vmem>>, vector<1x256xf32>,
    %c0_7 = arith.constant 0 : index
    %c0_8 = arith.constant 0 : index
    %9 = vector.load %arg10[%c0_7, %c0_8] : memref<2x256xf32, #tpu.memory_space<vmem>>, vector<2x256xf32>
    %10 = arith.truncf %9 : vector<2x256xf32> to vector<2x256xbf16>
    %11 = tpu.concatenate %1, %10 in 1 : vector<2x256xbf16>, vector<2x256xbf16> -> vector<2x512xbf16>
    %c0_9 = arith.constant 0 : index
    %c0_10 = arith.constant 0 : index
    %12 = vector.load %arg4[%c0_9, %c0_10] : memref<512x256xbf16, #tpu.memory_space<vmem>>, vector<512x256xbf16>
    %cst = arith.constant dense<0.000000e+00> : vector<2x256xf32>
    %13 = tpu.matmul %11, %12, %cst {dimension_numbers = #tpu.dot_dimension_numbers<[1], [0], [0], [1], [0, 0, 1, 1], [], []>} : vector<2x512xbf16>, vector<512x256xbf16>, vector<2x256xf32> -> vector<2x256xf32>
    %c0_11 = arith.constant 0 : index
    %c0_12 = arith.constant 0 : index
    %14 = vector.load %arg5[%c0_11, %c0_12] : memref<1x256xf32, #tpu.memory_space<vmem>>, vector<1x256xf32>
    %15 = vector.broadcast %14 : vector<1x256xf32> to vector<2x256xf32>
    %16 = arith.addf %13, %15 : vector<2x256xf32>
    %17 = tpu.iota {dimensions = array<i32: 0>} : vector<2x1xi32>
    %c2_i32 = arith.constant 2 : i32
    %18 = arith.muli %arg1, %c2_i32 : i32
    %19 = vector.broadcast %18 : i32 to vector<2x1xi32>
    %20 = arith.addi %17, %19 : vector<2x1xi32>
    %c1_i32 = arith.constant 1 : i32
    %21 = vector.broadcast %c1_i32 : i32 to vector<2x1xi32>
    %22 = arith.cmpi eq, %20, %21 : vector<2x1xi32>
    %23 = arith.extui %22 : vector<2x1xi1> to vector<2x1xi32>
    %24 = arith.sitofp %23 : vector<2x1xi32> to vector<2x1xf32>
    %c0_13 = arith.constant 0 : index
    %c0_14 = arith.constant 0 : index
    %25 = vector.load %arg6[%c0_13, %c0_14] : memref<1x256xf32, #tpu.memory_space<vmem>>, vector<1x256xf32>
    %26 = vector.broadcast %24 : vector<2x1xf32> to vector<2x256xf32>
    %27 = vector.broadcast %25 : vector<1x256xf32> to vector<2x256xf32>
    %28 = arith.mulf %26, %27 : vector<2x256xf32>
    %29 = arith.subf %16, %28 : vector<2x256xf32>
    %cst_15 = arith.constant 0.000000e+00 : f32
    %30 = vector.broadcast %cst_15 : f32 to vector<2x256xf32>
    %31 = arith.maximumf %29, %30 : vector<2x256xf32>
    %32 = arith.truncf %31 : vector<2x256xf32> to vector<2x256xbf16>
    %c0_16 = arith.constant 0 : index
    %c0_17 = arith.constant 0 : index
    %c0_18 = arith.constant 0 : index
    %33 = vector.load %arg7[%c0_16, %c0_17, %c0_18] : memref<1x2x256xbf16, #tpu.memory_space<vmem>>, vector<1x2x256xbf16>
    %34 = vector.shape_cast %33 : vector<1x2x256xbf16> to vector<2x256xbf16>
    %35 = vector.shape_cast %32 : vector<2x256xbf16> to vector<1x2x256xbf16>
    tpu.vector_store %arg7[%c0_16, %c0_17, %c0_18], %35 {strides = array<i32>} : memref<1x2x256xbf16, #tpu.memory_space<vmem>>, vector<1x2x256xbf16>,
    %cst_19 = arith.constant dense<0.000000e+00> : vector<256xf32>
    %36 = vector.multi_reduction <add>, %31, %cst_19 [0] : vector<2x256xf32> to vector<256xf32>
    %37 = vector.shape_cast %36 : vector<256xf32> to vector<1x256xf32>
    %c0_20 = arith.constant 0 : index
    %c0_21 = arith.constant 0 : index
    %c0_22 = arith.constant 0 : index
    %c0_23 = arith.constant 0 : index
    %38 = vector.load %arg8[%c0_20, %c0_21, %c0_22, %c0_23] : memref<1x1x1x256xf32, #tpu.memory_space<vmem>>, vector<1x1x1x256xf32>
    %39 = vector.shape_cast %38 : vector<1x1x1x256xf32> to vector<1x256xf32>
    %40 = vector.shape_cast %37 : vector<1x256xf32> to vector<1x1x1x256xf32>
    tpu.vector_store %arg8[%c0_20, %c0_21, %c0_22, %c0_23], %40 {strides = array<i32>} : memref<1x1x1x256xf32, #tpu.memory_space<vmem>>, vector<1x1x1x256xf32>,
    %41 = arith.mulf %31, %31 : vector<2x256xf32>
    %cst_24 = arith.constant dense<0.000000e+00> : vector<256xf32>
    %42 = vector.multi_reduction <add>, %41, %cst_24 [0] : vector<2x256xf32> to vector<256xf32>
    %43 = vector.shape_cast %42 : vector<256xf32> to vector<1x256xf32>
    %c0_25 = arith.constant 0 : index
    %c0_26 = arith.constant 0 : index
    %c0_27 = arith.constant 0 : index
    %c0_28 = arith.constant 0 : index
    %44 = vector.load %arg9[%c0_25, %c0_26, %c0_27, %c0_28] : memref<1x1x1x256xf32, #tpu.memory_space<vmem>>, vector<1x1x1x256xf32>
    %45 = vector.shape_cast %44 : vector<1x1x1x256xf32> to vector<1x256xf32>
    %46 = vector.shape_cast %43 : vector<1x256xf32> to vector<1x1x1x256xf32>
    tpu.vector_store %arg9[%c0_25, %c0_26, %c0_27, %c0_28], %46 {strides = array<i32>} : memref<1x1x1x256xf32, #tpu.memory_space<vmem>>, vector<1x1x1x256xf32>,
    return
  }
  func.func @transform_0(%arg0: i32, %arg1: i32) -> (i32, i32, i32) {
    %c0_i32 = arith.constant 0 : i32
    %c0_i32_0 = arith.constant 0 : i32
    return %arg0, %arg1, %c0_i32 : i32, i32, i32
  }
  func.func @transform_1(%arg0: i32, %arg1: i32) -> (i32, i32, i32) {
    %c0_i32 = arith.constant 0 : i32
    %c0_i32_0 = arith.constant 0 : i32
    %c0_i32_1 = arith.constant 0 : i32
    return %arg0, %c0_i32, %c0_i32_0 : i32, i32, i32
  }
  func.func @transform_2(%arg0: i32, %arg1: i32) -> (i32, i32) {
    %c0_i32 = arith.constant 0 : i32
    %c0_i32_0 = arith.constant 0 : i32
    %c0_i32_1 = arith.constant 0 : i32
    return %c0_i32, %c0_i32_0 : i32, i32
  }
  func.func @transform_3(%arg0: i32, %arg1: i32) -> (i32, i32) {
    %c0_i32 = arith.constant 0 : i32
    %c0_i32_0 = arith.constant 0 : i32
    %c0_i32_1 = arith.constant 0 : i32
    return %c0_i32, %c0_i32_0 : i32, i32
  }
  func.func @transform_4(%arg0: i32, %arg1: i32) -> (i32, i32) {
    %c0_i32 = arith.constant 0 : i32
    %c0_i32_0 = arith.constant 0 : i32
    %c0_i32_1 = arith.constant 0 : i32
    return %c0_i32, %c0_i32_0 : i32, i32
  }
  func.func @transform_5(%arg0: i32, %arg1: i32) -> (i32, i32, i32) {
    %c0_i32 = arith.constant 0 : i32
    %c0_i32_0 = arith.constant 0 : i32
    return %arg0, %arg1, %c0_i32 : i32, i32, i32
  }
  func.func @transform_6(%arg0: i32, %arg1: i32) -> (i32, i32, i32, i32) {
    %c0_i32 = arith.constant 0 : i32
    %c0_i32_0 = arith.constant 0 : i32
    %c0_i32_1 = arith.constant 0 : i32
    return %arg0, %arg1, %c0_i32, %c0_i32_0 : i32, i32, i32, i32
  }
  func.func @transform_7(%arg0: i32, %arg1: i32) -> (i32, i32, i32, i32) {
    %c0_i32 = arith.constant 0 : i32
    %c0_i32_0 = arith.constant 0 : i32
    %c0_i32_1 = arith.constant 0 : i32
    return %arg0, %arg1, %c0_i32, %c0_i32_0 : i32, i32, i32, i32
  }
}

module attributes {stable_mosaic.version = 11 : i64} {
  func.func @_conv_fused_kernel(%arg0: i32, %arg1: i32, %arg2: memref<1x4x128xbf16, #tpu.memory_space<vmem>>, %arg3: memref<1x1x128xf32, #tpu.memory_space<vmem>>, %arg4: memref<256x256xbf16, #tpu.memory_space<vmem>>, %arg5: memref<1x256xf32, #tpu.memory_space<vmem>>, %arg6: memref<1x256xf32, #tpu.memory_space<vmem>>, %arg7: memref<1x4x256xbf16, #tpu.memory_space<vmem>>, %arg8: memref<1x1x1x256xf32, #tpu.memory_space<vmem>>, %arg9: memref<1x1x1x256xf32, #tpu.memory_space<vmem>>, %arg10: memref<4x128xf32, #tpu.memory_space<vmem>>) attributes {dimension_semantics = [#tpu.dimension_semantics<parallel>, #tpu.dimension_semantics<parallel>], iteration_bounds = array<i64: 2, 1>, scalar_prefetch = 0 : i64, scratch_operands = 1 : i64, tpu.core_type = #tpu.core_type<tc>, window_params = [{transform_indices = @transform_0, window_bounds = array<i64: 1, 4, 128>}, {transform_indices = @transform_1, window_bounds = array<i64: 1, 1, 128>}, {pipeline_mode = #tpu.pipeline_mode<synchronous>, transform_indices = @transform_2, window_bounds = array<i64: 256, 256>}, {pipeline_mode = #tpu.pipeline_mode<synchronous>, transform_indices = @transform_3, window_bounds = array<i64: 1, 256>}, {pipeline_mode = #tpu.pipeline_mode<synchronous>, transform_indices = @transform_4, window_bounds = array<i64: 1, 256>}, {transform_indices = @transform_5, window_bounds = array<i64: 1, 4, 256>}, {transform_indices = @transform_6, window_bounds = array<i64: 1, 1, 1, 256>}, {transform_indices = @transform_7, window_bounds = array<i64: 1, 1, 1, 256>}]} {
    %c0 = arith.constant 0 : index
    %c0_0 = arith.constant 0 : index
    %c0_1 = arith.constant 0 : index
    %0 = vector.load %arg2[%c0, %c0_0, %c0_1] : memref<1x4x128xbf16, #tpu.memory_space<vmem>>, vector<1x4x128xbf16>
    %1 = vector.shape_cast %0 : vector<1x4x128xbf16> to vector<4x128xbf16>
    %c0_2 = arith.constant 0 : index
    %2 = arith.index_cast %arg1 : i32 to index
    %c0_3 = arith.constant 0 : index
    %3 = vector.load %arg3[%c0_2, %2, %c0_3] : memref<1x1x128xf32, #tpu.memory_space<vmem>>, vector<1x1x128xf32>
    %4 = vector.shape_cast %3 : vector<1x1x128xf32> to vector<1x128xf32>
    %5 = vector.extract_strided_slice %1 {offsets = [1, 0], sizes = [3, 128], strides = [1, 1]} : vector<4x128xbf16> to vector<3x128xbf16>
    %6 = arith.extf %5 : vector<3x128xbf16> to vector<3x128xf32>
    %c0_4 = arith.constant 0 : index
    %c0_5 = arith.constant 0 : index
    %7 = vector.load %arg10[%c0_4, %c0_5] : memref<4x128xf32, #tpu.memory_space<vmem>>, vector<3x128xf32>
    tpu.vector_store %arg10[%c0_4, %c0_5], %6 {strides = array<i32>} : memref<4x128xf32, #tpu.memory_space<vmem>>, vector<3x128xf32>,
    %c3 = arith.constant 3 : index
    %c0_6 = arith.constant 0 : index
    %8 = vector.load %arg10[%c3, %c0_6] : memref<4x128xf32, #tpu.memory_space<vmem>>, vector<1x128xf32>
    tpu.vector_store %arg10[%c3, %c0_6], %4 {strides = array<i32>} : memref<4x128xf32, #tpu.memory_space<vmem>>, vector<1x128xf32>,
    %c0_7 = arith.constant 0 : index
    %c0_8 = arith.constant 0 : index
    %9 = vector.load %arg10[%c0_7, %c0_8] : memref<4x128xf32, #tpu.memory_space<vmem>>, vector<4x128xf32>
    %10 = arith.truncf %9 : vector<4x128xf32> to vector<4x128xbf16>
    %11 = tpu.concatenate %1, %10 in 1 : vector<4x128xbf16>, vector<4x128xbf16> -> vector<4x256xbf16>
    %c0_9 = arith.constant 0 : index
    %c0_10 = arith.constant 0 : index
    %12 = vector.load %arg4[%c0_9, %c0_10] : memref<256x256xbf16, #tpu.memory_space<vmem>>, vector<256x256xbf16>
    %cst = arith.constant dense<0.000000e+00> : vector<4x256xf32>
    %13 = tpu.matmul %11, %12, %cst {dimension_numbers = #tpu.dot_dimension_numbers<[1], [0], [0], [1], [0, 0, 1, 1], [], []>} : vector<4x256xbf16>, vector<256x256xbf16>, vector<4x256xf32> -> vector<4x256xf32>
    %c0_11 = arith.constant 0 : index
    %c0_12 = arith.constant 0 : index
    %14 = vector.load %arg5[%c0_11, %c0_12] : memref<1x256xf32, #tpu.memory_space<vmem>>, vector<1x256xf32>
    %15 = vector.broadcast %14 : vector<1x256xf32> to vector<4x256xf32>
    %16 = arith.addf %13, %15 : vector<4x256xf32>
    %17 = tpu.iota {dimensions = array<i32: 0>} : vector<4x1xi32>
    %c4_i32 = arith.constant 4 : i32
    %18 = arith.muli %arg1, %c4_i32 : i32
    %19 = vector.broadcast %18 : i32 to vector<4x1xi32>
    %20 = arith.addi %17, %19 : vector<4x1xi32>
    %c3_i32 = arith.constant 3 : i32
    %21 = vector.broadcast %c3_i32 : i32 to vector<4x1xi32>
    %22 = arith.cmpi eq, %20, %21 : vector<4x1xi32>
    %23 = arith.extui %22 : vector<4x1xi1> to vector<4x1xi32>
    %24 = arith.sitofp %23 : vector<4x1xi32> to vector<4x1xf32>
    %c0_13 = arith.constant 0 : index
    %c0_14 = arith.constant 0 : index
    %25 = vector.load %arg6[%c0_13, %c0_14] : memref<1x256xf32, #tpu.memory_space<vmem>>, vector<1x256xf32>
    %26 = vector.broadcast %24 : vector<4x1xf32> to vector<4x256xf32>
    %27 = vector.broadcast %25 : vector<1x256xf32> to vector<4x256xf32>
    %28 = arith.mulf %26, %27 : vector<4x256xf32>
    %29 = arith.subf %16, %28 : vector<4x256xf32>
    %cst_15 = arith.constant 0.000000e+00 : f32
    %30 = vector.broadcast %cst_15 : f32 to vector<4x256xf32>
    %31 = arith.maximumf %29, %30 : vector<4x256xf32>
    %32 = arith.truncf %31 : vector<4x256xf32> to vector<4x256xbf16>
    %c0_16 = arith.constant 0 : index
    %c0_17 = arith.constant 0 : index
    %c0_18 = arith.constant 0 : index
    %33 = vector.load %arg7[%c0_16, %c0_17, %c0_18] : memref<1x4x256xbf16, #tpu.memory_space<vmem>>, vector<1x4x256xbf16>
    %34 = vector.shape_cast %33 : vector<1x4x256xbf16> to vector<4x256xbf16>
    %35 = vector.shape_cast %32 : vector<4x256xbf16> to vector<1x4x256xbf16>
    tpu.vector_store %arg7[%c0_16, %c0_17, %c0_18], %35 {strides = array<i32>} : memref<1x4x256xbf16, #tpu.memory_space<vmem>>, vector<1x4x256xbf16>,
    %cst_19 = arith.constant dense<0.000000e+00> : vector<256xf32>
    %36 = vector.multi_reduction <add>, %31, %cst_19 [0] : vector<4x256xf32> to vector<256xf32>
    %37 = vector.shape_cast %36 : vector<256xf32> to vector<1x256xf32>
    %c0_20 = arith.constant 0 : index
    %c0_21 = arith.constant 0 : index
    %c0_22 = arith.constant 0 : index
    %c0_23 = arith.constant 0 : index
    %38 = vector.load %arg8[%c0_20, %c0_21, %c0_22, %c0_23] : memref<1x1x1x256xf32, #tpu.memory_space<vmem>>, vector<1x1x1x256xf32>
    %39 = vector.shape_cast %38 : vector<1x1x1x256xf32> to vector<1x256xf32>
    %40 = vector.shape_cast %37 : vector<1x256xf32> to vector<1x1x1x256xf32>
    tpu.vector_store %arg8[%c0_20, %c0_21, %c0_22, %c0_23], %40 {strides = array<i32>} : memref<1x1x1x256xf32, #tpu.memory_space<vmem>>, vector<1x1x1x256xf32>,
    %41 = arith.mulf %31, %31 : vector<4x256xf32>
    %cst_24 = arith.constant dense<0.000000e+00> : vector<256xf32>
    %42 = vector.multi_reduction <add>, %41, %cst_24 [0] : vector<4x256xf32> to vector<256xf32>
    %43 = vector.shape_cast %42 : vector<256xf32> to vector<1x256xf32>
    %c0_25 = arith.constant 0 : index
    %c0_26 = arith.constant 0 : index
    %c0_27 = arith.constant 0 : index
    %c0_28 = arith.constant 0 : index
    %44 = vector.load %arg9[%c0_25, %c0_26, %c0_27, %c0_28] : memref<1x1x1x256xf32, #tpu.memory_space<vmem>>, vector<1x1x1x256xf32>
    %45 = vector.shape_cast %44 : vector<1x1x1x256xf32> to vector<1x256xf32>
    %46 = vector.shape_cast %43 : vector<1x256xf32> to vector<1x1x1x256xf32>
    tpu.vector_store %arg9[%c0_25, %c0_26, %c0_27, %c0_28], %46 {strides = array<i32>} : memref<1x1x1x256xf32, #tpu.memory_space<vmem>>, vector<1x1x1x256xf32>,
    return
  }
  func.func @transform_0(%arg0: i32, %arg1: i32) -> (i32, i32, i32) {
    %c0_i32 = arith.constant 0 : i32
    %c0_i32_0 = arith.constant 0 : i32
    return %arg0, %arg1, %c0_i32 : i32, i32, i32
  }
  func.func @transform_1(%arg0: i32, %arg1: i32) -> (i32, i32, i32) {
    %c0_i32 = arith.constant 0 : i32
    %c0_i32_0 = arith.constant 0 : i32
    %c0_i32_1 = arith.constant 0 : i32
    return %arg0, %c0_i32, %c0_i32_0 : i32, i32, i32
  }
  func.func @transform_2(%arg0: i32, %arg1: i32) -> (i32, i32) {
    %c0_i32 = arith.constant 0 : i32
    %c0_i32_0 = arith.constant 0 : i32
    %c0_i32_1 = arith.constant 0 : i32
    return %c0_i32, %c0_i32_0 : i32, i32
  }
  func.func @transform_3(%arg0: i32, %arg1: i32) -> (i32, i32) {
    %c0_i32 = arith.constant 0 : i32
    %c0_i32_0 = arith.constant 0 : i32
    %c0_i32_1 = arith.constant 0 : i32
    return %c0_i32, %c0_i32_0 : i32, i32
  }
  func.func @transform_4(%arg0: i32, %arg1: i32) -> (i32, i32) {
    %c0_i32 = arith.constant 0 : i32
    %c0_i32_0 = arith.constant 0 : i32
    %c0_i32_1 = arith.constant 0 : i32
    return %c0_i32, %c0_i32_0 : i32, i32
  }
  func.func @transform_5(%arg0: i32, %arg1: i32) -> (i32, i32, i32) {
    %c0_i32 = arith.constant 0 : i32
    %c0_i32_0 = arith.constant 0 : i32
    return %arg0, %arg1, %c0_i32 : i32, i32, i32
  }
  func.func @transform_6(%arg0: i32, %arg1: i32) -> (i32, i32, i32, i32) {
    %c0_i32 = arith.constant 0 : i32
    %c0_i32_0 = arith.constant 0 : i32
    %c0_i32_1 = arith.constant 0 : i32
    return %arg0, %arg1, %c0_i32, %c0_i32_0 : i32, i32, i32, i32
  }
  func.func @transform_7(%arg0: i32, %arg1: i32) -> (i32, i32, i32, i32) {
    %c0_i32 = arith.constant 0 : i32
    %c0_i32_0 = arith.constant 0 : i32
    %c0_i32_1 = arith.constant 0 : i32
    return %arg0, %arg1, %c0_i32, %c0_i32_0 : i32, i32, i32, i32
  }
}

module attributes {stable_mosaic.version = 11 : i64} {
  func.func @_conv_fused_kernel(%arg0: i32, %arg1: i32, %arg2: memref<1x8x128xbf16, #tpu.memory_space<vmem>>, %arg3: memref<1x1x128xf32, #tpu.memory_space<vmem>>, %arg4: memref<256x256xbf16, #tpu.memory_space<vmem>>, %arg5: memref<1x256xf32, #tpu.memory_space<vmem>>, %arg6: memref<1x256xf32, #tpu.memory_space<vmem>>, %arg7: memref<1x8x256xf32, #tpu.memory_space<vmem>>, %arg8: memref<8x128xf32, #tpu.memory_space<vmem>>) attributes {dimension_semantics = [#tpu.dimension_semantics<parallel>, #tpu.dimension_semantics<parallel>], iteration_bounds = array<i64: 2, 1>, scalar_prefetch = 0 : i64, scratch_operands = 1 : i64, tpu.core_type = #tpu.core_type<tc>, window_params = [{transform_indices = @transform_0, window_bounds = array<i64: 1, 8, 128>}, {transform_indices = @transform_1, window_bounds = array<i64: 1, 1, 128>}, {pipeline_mode = #tpu.pipeline_mode<synchronous>, transform_indices = @transform_2, window_bounds = array<i64: 256, 256>}, {pipeline_mode = #tpu.pipeline_mode<synchronous>, transform_indices = @transform_3, window_bounds = array<i64: 1, 256>}, {pipeline_mode = #tpu.pipeline_mode<synchronous>, transform_indices = @transform_4, window_bounds = array<i64: 1, 256>}, {transform_indices = @transform_5, window_bounds = array<i64: 1, 8, 256>}]} {
    %c0 = arith.constant 0 : index
    %c0_0 = arith.constant 0 : index
    %c0_1 = arith.constant 0 : index
    %0 = vector.load %arg2[%c0, %c0_0, %c0_1] : memref<1x8x128xbf16, #tpu.memory_space<vmem>>, vector<1x8x128xbf16>
    %1 = vector.shape_cast %0 : vector<1x8x128xbf16> to vector<8x128xbf16>
    %c0_2 = arith.constant 0 : index
    %2 = arith.index_cast %arg1 : i32 to index
    %c0_3 = arith.constant 0 : index
    %3 = vector.load %arg3[%c0_2, %2, %c0_3] : memref<1x1x128xf32, #tpu.memory_space<vmem>>, vector<1x1x128xf32>
    %4 = vector.shape_cast %3 : vector<1x1x128xf32> to vector<1x128xf32>
    %5 = vector.extract_strided_slice %1 {offsets = [1, 0], sizes = [7, 128], strides = [1, 1]} : vector<8x128xbf16> to vector<7x128xbf16>
    %6 = arith.extf %5 : vector<7x128xbf16> to vector<7x128xf32>
    %c0_4 = arith.constant 0 : index
    %c0_5 = arith.constant 0 : index
    %7 = vector.load %arg8[%c0_4, %c0_5] : memref<8x128xf32, #tpu.memory_space<vmem>>, vector<7x128xf32>
    tpu.vector_store %arg8[%c0_4, %c0_5], %6 {strides = array<i32>} : memref<8x128xf32, #tpu.memory_space<vmem>>, vector<7x128xf32>,
    %c7 = arith.constant 7 : index
    %c0_6 = arith.constant 0 : index
    %8 = vector.load %arg8[%c7, %c0_6] : memref<8x128xf32, #tpu.memory_space<vmem>>, vector<1x128xf32>
    tpu.vector_store %arg8[%c7, %c0_6], %4 {strides = array<i32>} : memref<8x128xf32, #tpu.memory_space<vmem>>, vector<1x128xf32>,
    %c0_7 = arith.constant 0 : index
    %c0_8 = arith.constant 0 : index
    %9 = vector.load %arg8[%c0_7, %c0_8] : memref<8x128xf32, #tpu.memory_space<vmem>>, vector<8x128xf32>
    %10 = arith.truncf %9 : vector<8x128xf32> to vector<8x128xbf16>
    %11 = tpu.concatenate %1, %10 in 1 : vector<8x128xbf16>, vector<8x128xbf16> -> vector<8x256xbf16>
    %c0_9 = arith.constant 0 : index
    %c0_10 = arith.constant 0 : index
    %12 = vector.load %arg4[%c0_9, %c0_10] : memref<256x256xbf16, #tpu.memory_space<vmem>>, vector<256x256xbf16>
    %cst = arith.constant dense<0.000000e+00> : vector<8x256xf32>
    %13 = tpu.matmul %11, %12, %cst {dimension_numbers = #tpu.dot_dimension_numbers<[1], [0], [0], [1], [0, 0, 1, 1], [], []>} : vector<8x256xbf16>, vector<256x256xbf16>, vector<8x256xf32> -> vector<8x256xf32>
    %c0_11 = arith.constant 0 : index
    %c0_12 = arith.constant 0 : index
    %14 = vector.load %arg5[%c0_11, %c0_12] : memref<1x256xf32, #tpu.memory_space<vmem>>, vector<1x256xf32>
    %15 = vector.broadcast %14 : vector<1x256xf32> to vector<8x256xf32>
    %16 = arith.addf %13, %15 : vector<8x256xf32>
    %17 = tpu.iota {dimensions = array<i32: 0>} : vector<8x1xi32>
    %c8_i32 = arith.constant 8 : i32
    %18 = arith.muli %arg1, %c8_i32 : i32
    %19 = vector.broadcast %18 : i32 to vector<8x1xi32>
    %20 = arith.addi %17, %19 : vector<8x1xi32>
    %c7_i32 = arith.constant 7 : i32
    %21 = vector.broadcast %c7_i32 : i32 to vector<8x1xi32>
    %22 = arith.cmpi eq, %20, %21 : vector<8x1xi32>
    %23 = arith.extui %22 : vector<8x1xi1> to vector<8x1xi32>
    %24 = arith.sitofp %23 : vector<8x1xi32> to vector<8x1xf32>
    %c0_13 = arith.constant 0 : index
    %c0_14 = arith.constant 0 : index
    %25 = vector.load %arg6[%c0_13, %c0_14] : memref<1x256xf32, #tpu.memory_space<vmem>>, vector<1x256xf32>
    %26 = vector.broadcast %24 : vector<8x1xf32> to vector<8x256xf32>
    %27 = vector.broadcast %25 : vector<1x256xf32> to vector<8x256xf32>
    %28 = arith.mulf %26, %27 : vector<8x256xf32>
    %29 = arith.subf %16, %28 : vector<8x256xf32>
    %30 = arith.negf %29 : vector<8x256xf32>
    %31 = math.exp %30 : vector<8x256xf32>
    %cst_15 = arith.constant 1.000000e+00 : f32
    %32 = vector.broadcast %cst_15 : f32 to vector<8x256xf32>
    %33 = arith.addf %32, %31 : vector<8x256xf32>
    %34 = arith.divf %32, %33 : vector<8x256xf32>
    %c0_16 = arith.constant 0 : index
    %c0_17 = arith.constant 0 : index
    %c0_18 = arith.constant 0 : index
    %35 = vector.load %arg7[%c0_16, %c0_17, %c0_18] : memref<1x8x256xf32, #tpu.memory_space<vmem>>, vector<1x8x256xf32>
    %36 = vector.shape_cast %35 : vector<1x8x256xf32> to vector<8x256xf32>
    %37 = vector.shape_cast %34 : vector<8x256xf32> to vector<1x8x256xf32>
    tpu.vector_store %arg7[%c0_16, %c0_17, %c0_18], %37 {strides = array<i32>} : memref<1x8x256xf32, #tpu.memory_space<vmem>>, vector<1x8x256xf32>,
    return
  }
  func.func @transform_0(%arg0: i32, %arg1: i32) -> (i32, i32, i32) {
    %c0_i32 = arith.constant 0 : i32
    %c0_i32_0 = arith.constant 0 : i32
    return %arg0, %arg1, %c0_i32 : i32, i32, i32
  }
  func.func @transform_1(%arg0: i32, %arg1: i32) -> (i32, i32, i32) {
    %c0_i32 = arith.constant 0 : i32
    %c0_i32_0 = arith.constant 0 : i32
    %c0_i32_1 = arith.constant 0 : i32
    return %arg0, %c0_i32, %c0_i32_0 : i32, i32, i32
  }
  func.func @transform_2(%arg0: i32, %arg1: i32) -> (i32, i32) {
    %c0_i32 = arith.constant 0 : i32
    %c0_i32_0 = arith.constant 0 : i32
    %c0_i32_1 = arith.constant 0 : i32
    return %c0_i32, %c0_i32_0 : i32, i32
  }
  func.func @transform_3(%arg0: i32, %arg1: i32) -> (i32, i32) {
    %c0_i32 = arith.constant 0 : i32
    %c0_i32_0 = arith.constant 0 : i32
    %c0_i32_1 = arith.constant 0 : i32
    return %c0_i32, %c0_i32_0 : i32, i32
  }
  func.func @transform_4(%arg0: i32, %arg1: i32) -> (i32, i32) {
    %c0_i32 = arith.constant 0 : i32
    %c0_i32_0 = arith.constant 0 : i32
    %c0_i32_1 = arith.constant 0 : i32
    return %c0_i32, %c0_i32_0 : i32, i32
  }
  func.func @transform_5(%arg0: i32, %arg1: i32) -> (i32, i32, i32) {
    %c0_i32 = arith.constant 0 : i32
    %c0_i32_0 = arith.constant 0 : i32
    return %arg0, %arg1, %c0_i32 : i32, i32, i32
  }
}

</mosaic_0001>

<llo_original>
// kernel: conv_autoencoder_forward.8
$region0: #{conv_autoencoder_forward.8}
  #allocation0 [shape = 'u32[]', space=smem, size = 0x4, offset = 0x4, fixed_abs, tag = 'smem constant byte address 0x4 - core index']
  #allocation1 [shape = 'u32[72,128]{1,0:T(1,128)}', space=vmem, size = 0x9000, scoped, tag = 'internal scratch']
  #allocation2 [shape = 'f32[8,128]{1,0:T(8,128)}', space=vmem, size = 0x1000, scoped, tag = 'scratch operand']
  %s0 = inlined_call_operand.vmem [shape: bf16[2,8,256], index: 0, kind: input, shape index: {}]
  %s1 = inlined_call_operand.vmem [shape: f32[2,1,128], index: 1, kind: input, shape index: {}]
  %s2 = inlined_call_operand.vmem [shape: bf16[384,128], index: 2, kind: input, shape index: {}]
  %s3 = inlined_call_operand.vmem [shape: f32[1,128], index: 3, kind: input, shape index: {}]
  %s4 = inlined_call_operand.vmem [shape: f32[1,128], index: 4, kind: input, shape index: {}]
  %s5 = inlined_call_operand.vmem [shape: bf16[2,8,128], index: 5, kind: output, shape index: {0}]
  %s6 = inlined_call_operand.vmem [shape: f32[2,1,1,128], index: 6, kind: output, shape index: {1}]
  %s7 = inlined_call_operand.vmem [shape: f32[2,1,1,128], index: 7, kind: output, shape index: {2}]
  %8 = xla_tuple %s5, %s6, %s7
  %s9 = sld [smem:[#allocation0]]
  $region69: #{conv_autoencoder_forward.8} parent=0
    _
  %s11 = ssub.s32 1, %s9
  %s12 = scalar_select 0, %s11, %s9
  loop: start=0, step=1, limit=4
  $region2: #{conv_autoencoder_forward.8} parent=0 // loop_pre_header
    _
  $region3: #{conv_autoencoder_forward.8} parent=0 // loop_header
    %s14 = sphi 0, %s18
    %p15 = scmp.ge.s32.totalorder %s14, 4
    %s21 = sphi 0, %s33
    %s22 = sphi 0, %s29
    %s23 = sphi 0, %s21
    %s24 = sphi 0, %s22
    %s25 = sphi 0, %s23
    %s26 = sphi 0, %s24
    %s38 = sphi 0, %s40
    %s41 = sphi 0, %s38
    %s42 = sphi 0, %s41
    %s58 = sphi 0, %s42
    %s64 = sphi 0, %s66
    %s67 = sphi 0, %s64
    %s68 = sphi 0, %s67
    %s84 = sphi 0, %s68
    %s88 = sphi 0, %s88
    %s90 = sphi 0, %s88
    %s91 = sphi 0, %s90
    %s105 = sphi 0, %s91
    %s109 = sphi 0, %s109
    %s111 = sphi 0, %s109
    %s112 = sphi 0, %s111
    %s126 = sphi 0, %s112
    %s130 = sphi 0, %s130
    %s132 = sphi 0, %s130
    %s133 = sphi 0, %s132
    %s147 = sphi 0, %s133
    %s155 = sphi 0, %s157
    %s158 = sphi 0, %s155
    %s159 = sphi 0, %s158
    %s175 = sphi 0, %s159
    %s183 = sphi 0, %s185
    %s186 = sphi 0, %s183
    %s187 = sphi 0, %s186
    %s203 = sphi 0, %s187
    %s211 = sphi 0, %s213
    %s214 = sphi 0, %s211
    %s215 = sphi 0, %s214
    %s231 = sphi 0, %s215
  $region4: #{conv_autoencoder_forward.8} parent=0 // loop_header_branch
    %17 = sbr.rel (%p15) target = $region8
  $region5: #{conv_autoencoder_forward.8} parent=0 // loop_body
    %s19 = ssub.s32 %s14, 1
    %s20 = ssub.s32 %s14, 2
    %s27 = sadd.s32 1, %s22
    %p28 = scmp.ge.s32.totalorder %s27, 1
    %s29 = scalar_select %p28, 0, %s27
    %s30 = sadd.s32 1, %s21
    %s31 = scalar_select %p28, %s30, %s21
    %p32 = scmp.ge.s32.totalorder %s31, 2
    %s33 = scalar_select %p32, 0, %s31
    %s34 = ssub.s32 %s21, %s33
    %s35 = ssub.s32 %s22, %s29
    %s36 = sor.u32 %s34, %s35
    %p37 = scmp.eq.s32.totalorder %s36, 0
    %s39 = sadd.s32 %s38, 1
    %s40 = scalar_select %p37, %s38, %s39
    %p43 = pneg %p37
    %p44 = scmp.eq.s32.totalorder %s14, 1
    %p45 = por %p43, %p44
    %p46 = scmp.ne.s32.totalorder %s38, %s41
    %p47 = scmp.eq.s32.totalorder %s14, 0
    %p48 = por %p46, %p47
    %p49 = scmp.ne.s32.totalorder %s38, %s41
    %p50 = scmp.eq.s32.totalorder %s19, 1
    %p51 = por %p49, %p50
    %p52 = scmp.ne.s32.totalorder %s41, %s42
    %p53 = scmp.eq.s32.totalorder %s19, 0
    %p54 = por %p52, %p53
    %p55 = scmp.ne.s32.totalorder %s41, %s42
    %p56 = scmp.eq.s32.totalorder %s20, 1
    %p57 = por %p55, %p56
    %p59 = scmp.ne.s32.totalorder %s42, %s58
    %p60 = scmp.eq.s32.totalorder %s20, 0
    %p61 = por %p59, %p60
    %s62 = ssub.s32 %s21, %s33
    %p63 = scmp.eq.s32.totalorder %s62, 0
    %s65 = sadd.s32 %s64, 1
    %s66 = scalar_select %p63, %s64, %s65
    %p69 = pneg %p63
    %p70 = scmp.eq.s32.totalorder %s14, 1
    %p71 = por %p69, %p70
    %p72 = scmp.ne.s32.totalorder %s64, %s67
    %p73 = scmp.eq.s32.totalorder %s14, 0
    %p74 = por %p72, %p73
    %p75 = scmp.ne.s32.totalorder %s64, %s67
    %p76 = scmp.eq.s32.totalorder %s19, 1
    %p77 = por %p75, %p76
    %p78 = scmp.ne.s32.totalorder %s67, %s68
    %p79 = scmp.eq.s32.totalorder %s19, 0
    %p80 = por %p78, %p79
    %p81 = scmp.ne.s32.totalorder %s67, %s68
    %p82 = scmp.eq.s32.totalorder %s20, 1
    %p83 = por %p81, %p82
    %p85 = scmp.ne.s32.totalorder %s68, %s84
    %p86 = scmp.eq.s32.totalorder %s20, 0
    %p87 = por %p85, %p86
    %s89 = sadd.s32 %s88, 1
    %p92 = scmp.eq.s32.totalorder %s14, 1
    %p93 = scmp.ne.s32.totalorder %s88, %s90
    %p94 = scmp.eq.s32.totalorder %s14, 0
    %p95 = por %p93, %p94
    %p96 = scmp.ne.s32.totalorder %s88, %s90
    %p97 = scmp.eq.s32.totalorder %s19, 1
    %p98 = por %p96, %p97
    %p99 = scmp.ne.s32.totalorder %s90, %s91
    %p100 = scmp.eq.s32.totalorder %s19, 0
    %p101 = por %p99, %p100
    %p102 = scmp.ne.s32.totalorder %s90, %s91
    %p103 = scmp.eq.s32.totalorder %s20, 1
    %p104 = por %p102, %p103
    %p106 = scmp.ne.s32.totalorder %s91, %s105
    %p107 = scmp.eq.s32.totalorder %s20, 0
    %p108 = por %p106, %p107
    %s110 = sadd.s32 %s109, 1
    %p113 = scmp.eq.s32.totalorder %s14, 1
    %p114 = scmp.ne.s32.totalorder %s109, %s111
    %p115 = scmp.eq.s32.totalorder %s14, 0
    %p116 = por %p114, %p115
    %p117 = scmp.ne.s32.totalorder %s109, %s111
    %p118 = scmp.eq.s32.totalorder %s19, 1
    %p119 = por %p117, %p118
    %p120 = scmp.ne.s32.totalorder %s111, %s112
    %p121 = scmp.eq.s32.totalorder %s19, 0
    %p122 = por %p120, %p121
    %p123 = scmp.ne.s32.totalorder %s111, %s112
    %p124 = scmp.eq.s32.totalorder %s20, 1
    %p125 = por %p123, %p124
    %p127 = scmp.ne.s32.totalorder %s112, %s126
    %p128 = scmp.eq.s32.totalorder %s20, 0
    %p129 = por %p127, %p128
    %s131 = sadd.s32 %s130, 1
    %p134 = scmp.eq.s32.totalorder %s14, 1
    %p135 = scmp.ne.s32.totalorder %s130, %s132
    %p136 = scmp.eq.s32.totalorder %s14, 0
    %p137 = por %p135, %p136
    %p138 = scmp.ne.s32.totalorder %s130, %s132
    %p139 = scmp.eq.s32.totalorder %s19, 1
    %p140 = por %p138, %p139
    %p141 = scmp.ne.s32.totalorder %s132, %s133
    %p142 = scmp.eq.s32.totalorder %s19, 0
    %p143 = por %p141, %p142
    %p144 = scmp.ne.s32.totalorder %s132, %s133
    %p145 = scmp.eq.s32.totalorder %s20, 1
    %p146 = por %p144, %p145
    %p148 = scmp.ne.s32.totalorder %s133, %s147
    %p149 = scmp.eq.s32.totalorder %s20, 0
    %p150 = por %p148, %p149
    %s151 = ssub.s32 %s21, %s33
    %s152 = ssub.s32 %s22, %s29
    %s153 = sor.u32 %s151, %s152
    %p154 = scmp.eq.s32.totalorder %s153, 0
    %s156 = sadd.s32 %s155, 1
    %s157 = scalar_select %p154, %s155, %s156
    %p160 = pneg %p154
    %p161 = scmp.eq.s32.totalorder %s14, 1
    %p162 = por %p160, %p161
    %p163 = scmp.ne.s32.totalorder %s155, %s158
    %p164 = scmp.eq.s32.totalorder %s14, 0
    %p165 = por %p163, %p164
    %p166 = scmp.ne.s32.totalorder %s155, %s158
    %p167 = scmp.eq.s32.totalorder %s19, 1
    %p168 = por %p166, %p167
    %p169 = scmp.ne.s32.totalorder %s158, %s159
    %p170 = scmp.eq.s32.totalorder %s19, 0
    %p171 = por %p169, %p170
    %p172 = scmp.ne.s32.totalorder %s158, %s159
    %p173 = scmp.eq.s32.totalorder %s20, 1
    %p174 = por %p172, %p173
    %p176 = scmp.ne.s32.totalorder %s159, %s175
    %p177 = scmp.eq.s32.totalorder %s20, 0
    %p178 = por %p176, %p177
    %s179 = ssub.s32 %s21, %s33
    %s180 = ssub.s32 %s22, %s29
    %s181 = sor.u32 %s179, %s180
    %p182 = scmp.eq.s32.totalorder %s181, 0
    %s184 = sadd.s32 %s183, 1
    %s185 = scalar_select %p182, %s183, %s184
    %p188 = pneg %p182
    %p189 = scmp.eq.s32.totalorder %s14, 1
    %p190 = por %p188, %p189
    %p191 = scmp.ne.s32.totalorder %s183, %s186
    %p192 = scmp.eq.s32.totalorder %s14, 0
    %p193 = por %p191, %p192
    %p194 = scmp.ne.s32.totalorder %s183, %s186
    %p195 = scmp.eq.s32.totalorder %s19, 1
    %p196 = por %p194, %p195
    %p197 = scmp.ne.s32.totalorder %s186, %s187
    %p198 = scmp.eq.s32.totalorder %s19, 0
    %p199 = por %p197, %p198
    %p200 = scmp.ne.s32.totalorder %s186, %s187
    %p201 = scmp.eq.s32.totalorder %s20, 1
    %p202 = por %p200, %p201
    %p204 = scmp.ne.s32.totalorder %s187, %s203
    %p205 = scmp.eq.s32.totalorder %s20, 0
    %p206 = por %p204, %p205
    %s207 = ssub.s32 %s21, %s33
    %s208 = ssub.s32 %s22, %s29
    %s209 = sor.u32 %s207, %s208
    %p210 = scmp.eq.s32.totalorder %s209, 0
    %s212 = sadd.s32 %s211, 1
    %s213 = scalar_select %p210, %s211, %s212
    %p216 = pneg %p210
    %p217 = scmp.eq.s32.totalorder %s14, 1
    %p218 = por %p216, %p217
    %p219 = scmp.ne.s32.totalorder %s211, %s214
    %p220 = scmp.eq.s32.totalorder %s14, 0
    %p221 = por %p219, %p220
    %p222 = scmp.ne.s32.totalorder %s211, %s214
    %p223 = scmp.eq.s32.totalorder %s19, 1
    %p224 = por %p222, %p223
    %p225 = scmp.ne.s32.totalorder %s214, %s215
    %p226 = scmp.eq.s32.totalorder %s19, 0
    %p227 = por %p225, %p226
    %p228 = scmp.ne.s32.totalorder %s214, %s215
    %p229 = scmp.eq.s32.totalorder %s20, 1
    %p230 = por %p228, %p229
    %p232 = scmp.ne.s32.totalorder %s215, %s231
    %p233 = scmp.eq.s32.totalorder %s20, 0
    %p234 = por %p232, %p233
    %p235 = scmp.le.s32.totalorder 1, %s14
    %p236 = scmp.lt.s32.totalorder %s14, 3
    %p237 = pnand %p235, %p236
    %p238 = pneg %p237
    // Predicated region
    $region9: #{conv_autoencoder_forward.8} parent=5 // pred_check
      _
    $region10: #{conv_autoencoder_forward.8} parent=5 // pred_check_branch
      %240 = sbr.rel (%p237) target = $region12
    $region11: #{conv_autoencoder_forward.8} parent=5 // pred_region
      %s241 = ssub.s32 %s14, 1
      // Predicated region
      $region13: #{conv_autoencoder_forward.8} parent=11 // pred_check
        %p242 = pneg %p101
      $region14: #{conv_autoencoder_forward.8} parent=11 // pred_check_branch
        %244 = sbr.rel (%p242) target = $region16
      $region15: #{conv_autoencoder_forward.8} parent=11 // pred_region
        _
      $region16: #{conv_autoencoder_forward.8} parent=11 // pred_fallthru
        _
      // Predicated region
      $region17: #{conv_autoencoder_forward.8} parent=11 // pred_check
        %p245 = pneg %p122
      $region18: #{conv_autoencoder_forward.8} parent=11 // pred_check_branch
        %247 = sbr.rel (%p245) target = $region20
      $region19: #{conv_autoencoder_forward.8} parent=11 // pred_region
        _
      $region20: #{conv_autoencoder_forward.8} parent=11 // pred_fallthru
        _
      // Predicated region
      $region21: #{conv_autoencoder_forward.8} parent=11 // pred_check
        %p248 = pneg %p143
      $region22: #{conv_autoencoder_forward.8} parent=11 // pred_check_branch
        %250 = sbr.rel (%p248) target = $region24
      $region23: #{conv_autoencoder_forward.8} parent=11 // pred_region
        _
      $region24: #{conv_autoencoder_forward.8} parent=11 // pred_fallthru
        _
    $region12: #{conv_autoencoder_forward.8} parent=5 // pred_fallthru
      _
    %p251 = scmp.lt.s32.totalorder %s14, 2
    // Predicated region
    $region25: #{conv_autoencoder_forward.8} parent=5 // pred_check
      %p252 = pneg %p251
    $region26: #{conv_autoencoder_forward.8} parent=5 // pred_check_branch
      %254 = sbr.rel (%p252) target = $region28
    $region27: #{conv_autoencoder_forward.8} parent=5 // pred_region
      // Predicated region
      $region29: #{conv_autoencoder_forward.8} parent=27 // pred_check
        %p255 = pneg %p48
      $region30: #{conv_autoencoder_forward.8} parent=27 // pred_check_branch
        %257 = sbr.rel (%p255) target = $region32
      $region31: #{conv_autoencoder_forward.8} parent=27 // pred_region
        %p258 = scmp.lt.s32.totalorder %s21, 1
        %s259 = scalar_select %p258, %s21, 1
        %p260 = scmp.lt.s32.totalorder %s22, 0
        %s261 = scalar_select %p260, %s22, 0
        %s262 = smul.addr %s261, 2
        %s263 = smul.addr %s259, 2
        %s264 = sadd.s32 %s262, %s263
        %s265 = smul.addr %s264, 4
        %s266 = scalar_lea.vmem %s0, %s265
      $region32: #{conv_autoencoder_forward.8} parent=27 // pred_fallthru
        _
      // Predicated region
      $region33: #{conv_autoencoder_forward.8} parent=27 // pred_check
        %p267 = pneg %p74
      $region34: #{conv_autoencoder_forward.8} parent=27 // pred_check_branch
        %269 = sbr.rel (%p267) target = $region36
      $region35: #{conv_autoencoder_forward.8} parent=27 // pred_region
        %p270 = scmp.lt.s32.totalorder %s21, 1
        %s271 = scalar_select %p270, %s21, 1
        %s272 = scalar_lea.vmem %s1, %s271
      $region36: #{conv_autoencoder_forward.8} parent=27 // pred_fallthru
        _
    $region28: #{conv_autoencoder_forward.8} parent=5 // pred_fallthru
      _
    %p273 = scmp.le.s32.totalorder 1, %s14
    %p274 = scmp.lt.s32.totalorder %s14, 3
    %p275 = pnand %p273, %p274
    %p276 = pneg %p275
    // Predicated region
    $region37: #{conv_autoencoder_forward.8} parent=5 // pred_check
      _
    $region38: #{conv_autoencoder_forward.8} parent=5 // pred_check_branch
      %278 = sbr.rel (%p275) target = $region40
    $region39: #{conv_autoencoder_forward.8} parent=5 // pred_region
      %s279 = ssub.s32 %s14, 1
      %p280 = scmp.lt.s32.totalorder %s23, 1
      %s281 = scalar_select %p280, %s23, 1
      %p282 = scmp.lt.s32.totalorder %s24, 0
      %s283 = scalar_select %p282, %s24, 0
      %s284 = smul.addr %s283, 2
      %s285 = smul.addr %s281, 2
      %s286 = sadd.s32 %s284, %s285
      %s287 = smul.addr %s286, 4
      %s288 = scalar_lea.vmem %s0, %s287
      %p289 = pneg %p54
      %p290 = pneg %p51
      %p291 = scmp.lt.s32.totalorder %s23, 1
      %s292 = scalar_select %p291, %s23, 1
      %s293 = scalar_lea.vmem %s1, %s292
      %p294 = pneg %p80
      %p295 = pneg %p77
      %p296 = pneg %p101
      %p297 = pneg %p98
      %p298 = pneg %p122
      %p299 = pneg %p119
      %p300 = pneg %p143
      %p301 = pneg %p140
      %p302 = pneg %p171
      %p303 = pneg %p168
      %p304 = scmp.lt.s32.totalorder %s23, 1
      %s305 = scalar_select %p304, %s23, 1
      %p306 = scmp.lt.s32.totalorder %s24, 0
      %s307 = scalar_select %p306, %s24, 0
      %s308 = sadd.s32 %s307, %s305
      %s309 = smul.addr %s308, 4
      %s310 = scalar_lea.vmem %s5, %s309
      %p311 = pneg %p199
      %p312 = pneg %p196
      %p313 = scmp.lt.s32.totalorder %s23, 1
      %s314 = scalar_select %p313, %s23, 1
      %p315 = scmp.lt.s32.totalorder %s24, 0
      %s316 = scalar_select %p315, %s24, 0
      %s317 = sadd.s32 %s316, %s314
      %s318 = scalar_lea.vmem %s6, %s317
      %p319 = pneg %p227
      %p320 = pneg %p224
      %p321 = scmp.lt.s32.totalorder %s23, 1
      %s322 = scalar_select %p321, %s23, 1
      %p323 = scmp.lt.s32.totalorder %s24, 0
      %s324 = scalar_select %p323, %s24, 0
      %s325 = sadd.s32 %s324, %s322
      %s326 = scalar_lea.vmem %s7, %s325
      %p327 = scmp.lt.s32.totalorder %s23, 1
      %s328 = scalar_select %p327, %s23, 1
      %p329 = scmp.lt.s32.totalorder %s24, 0
      %s330 = scalar_select %p329, %s24, 0
      %s331 = smul.addr %s330, 2
      %s332 = smul.addr %s328, 2
      %s333 = sadd.s32 %s331, %s332
      %s334 = smul.addr %s333, 4
      %s335 = scalar_lea.vmem %s0, %s334
      %p336 = scmp.lt.s32.totalorder %s23, 1
      %s337 = scalar_select %p336, %s23, 1
      %s338 = scalar_lea.vmem %s1, %s337
      %p339 = scmp.lt.s32.totalorder %s23, 1
      %s340 = scalar_select %p339, %s23, 1
      %p341 = scmp.lt.s32.totalorder %s24, 0
      %s342 = scalar_select %p341, %s24, 0
      %s343 = sadd.s32 %s342, %s340
      %s344 = smul.addr %s343, 4
      %s345 = scalar_lea.vmem %s5, %s344
      %p346 = scmp.lt.s32.totalorder %s23, 1
      %s347 = scalar_select %p346, %s23, 1
      %p348 = scmp.lt.s32.totalorder %s24, 0
      %s349 = scalar_select %p348, %s24, 0
      %s350 = sadd.s32 %s349, %s347
      %s351 = scalar_lea.vmem %s6, %s350
      %p352 = scmp.lt.s32.totalorder %s23, 1
      %s353 = scalar_select %p352, %s23, 1
      %p354 = scmp.lt.s32.totalorder %s24, 0
      %s355 = scalar_select %p354, %s24, 0
      %s356 = sadd.s32 %s355, %s353
      %s357 = scalar_lea.vmem %s7, %s356
      %v358 = vld [vmem:[%s335] sm:$0xff]
      %s359 = scalar_lea.vmem %s338, %s24
      %v360 = vld [vmem:[%s359] sm:$0x1]
      %v362 = vrot.slane %v358, 4
      %v364 = vunpack.c.l.bf16 %v362
      %365 = vst [vmem:[#allocation2 + $0x1] sm:$0x7f] %v364
      %366 = vst [vmem:[#allocation2] sm:$0x1] %v360
      %v367 = vld [vmem:[#allocation2] sm:$0xff]
      %v368 = vpack.c.bf16 %v367, %v367
      %v369 = vunpack.c.l.b16 %v358
      %v370 = vunpack.c.h.b16 %v358
      %v371 = vpack.c.b16 %v369, %v369
      %v372 = vpack.c.b16 %v370, %v370
      %v375 = vld [vmem:[%s2] sm:$0xf]
      %v376 = vld [vmem:[%s2 + $0x4] sm:$0xf]
      %v377 = vld [vmem:[%s2 + $0x8] sm:$0xf]
      %v378 = vld [vmem:[%s2 + $0xc] sm:$0xf]
      %v379 = vld [vmem:[%s2 + $0x10] sm:$0xf]
      %v380 = vld [vmem:[%s2 + $0x14] sm:$0xf]
      %v381 = vld [vmem:[%s2 + $0x18] sm:$0xf]
      %v382 = vld [vmem:[%s2 + $0x1c] sm:$0xf]
      %v383 = vld [vmem:[%s2 + $0x20] sm:$0xf]
      %v384 = vld [vmem:[%s2 + $0x24] sm:$0xf]
      %v385 = vld [vmem:[%s2 + $0x28] sm:$0xf]
      %v386 = vld [vmem:[%s2 + $0x2c] sm:$0xf]
      %v387 = vld [vmem:[%s2 + $0x30] sm:$0xf]
      %v388 = vld [vmem:[%s2 + $0x34] sm:$0xf]
      %v389 = vld [vmem:[%s2 + $0x38] sm:$0xf]
      %v390 = vld [vmem:[%s2 + $0x3c] sm:$0xf]
      %v391 = vld [vmem:[%s2 + $0x40] sm:$0xf]
      %v392 = vld [vmem:[%s2 + $0x44] sm:$0xf]
      %v393 = vld [vmem:[%s2 + $0x48] sm:$0xf]
      %v394 = vld [vmem:[%s2 + $0x4c] sm:$0xf]
      %v395 = vld [vmem:[%s2 + $0x50] sm:$0xf]
      %v396 = vld [vmem:[%s2 + $0x54] sm:$0xf]
      %v397 = vld [vmem:[%s2 + $0x58] sm:$0xf]
      %v398 = vld [vmem:[%s2 + $0x5c] sm:$0xf]
      %v399 = vld [vmem:[%s2 + $0x60] sm:$0xf]
      %v400 = vld [vmem:[%s2 + $0x64] sm:$0xf]
      %v401 = vld [vmem:[%s2 + $0x68] sm:$0xf]
      %v402 = vld [vmem:[%s2 + $0x6c] sm:$0xf]
      %v403 = vld [vmem:[%s2 + $0x70] sm:$0xf]
      %v404 = vld [vmem:[%s2 + $0x74] sm:$0xf]
      %v405 = vld [vmem:[%s2 + $0x78] sm:$0xf]
      %v406 = vld [vmem:[%s2 + $0x7c] sm:$0xf]
      %v407 = vld [vmem:[%s2 + $0x80] sm:$0xf]
      %v408 = vld [vmem:[%s2 + $0x84] sm:$0xf]
      %v409 = vld [vmem:[%s2 + $0x88] sm:$0xf]
      %v410 = vld [vmem:[%s2 + $0x8c] sm:$0xf]
      %v411 = vld [vmem:[%s2 + $0x90] sm:$0xf]
      %v412 = vld [vmem:[%s2 + $0x94] sm:$0xf]
      %v413 = vld [vmem:[%s2 + $0x98] sm:$0xf]
      %v414 = vld [vmem:[%s2 + $0x9c] sm:$0xf]
      %v415 = vld [vmem:[%s2 + $0xa0] sm:$0xf]
      %v416 = vld [vmem:[%s2 + $0xa4] sm:$0xf]
      %v417 = vld [vmem:[%s2 + $0xa8] sm:$0xf]
      %v418 = vld [vmem:[%s2 + $0xac] sm:$0xf]
      %v419 = vld [vmem:[%s2 + $0xb0] sm:$0xf]
      %v420 = vld [vmem:[%s2 + $0xb4] sm:$0xf]
      %v421 = vld [vmem:[%s2 + $0xb8] sm:$0xf]
      %v422 = vld [vmem:[%s2 + $0xbc] sm:$0xf]
      %v423 = vld [vmem:[%s3] sm:$0x1]
      %v425 = vperm.slane %v423, 0
      %v475 = vunpack.c.l.b16 %v375
      %v476 = vunpack.c.l.b16 %v376
      %v477 = vunpack.c.l.b16 %v377
      %v478 = vunpack.c.l.b16 %v378
      %v479 = vunpack.c.l.b16 %v379
      %v480 = vunpack.c.l.b16 %v380
      %v481 = vunpack.c.l.b16 %v381
      %v482 = vunpack.c.l.b16 %v382
      %v483 = vunpack.c.l.b16 %v383
      %v484 = vunpack.c.l.b16 %v384
      %v485 = vunpack.c.l.b16 %v385
      %v486 = vunpack.c.l.b16 %v386
      %v487 = vunpack.c.l.b16 %v387
      %v488 = vunpack.c.l.b16 %v388
      %v489 = vunpack.c.l.b16 %v389
      %v490 = vunpack.c.l.b16 %v390
      %v491 = vunpack.c.l.b16 %v391
      %v492 = vunpack.c.l.b16 %v392
      %v493 = vunpack.c.l.b16 %v393
      %v494 = vunpack.c.l.b16 %v394
      %v495 = vunpack.c.l.b16 %v395
      %v496 = vunpack.c.l.b16 %v396
      %v497 = vunpack.c.l.b16 %v397
      %v498 = vunpack.c.l.b16 %v398
      %v499 = vunpack.c.l.b16 %v399
      %v500 = vunpack.c.l.b16 %v400
      %v501 = vunpack.c.l.b16 %v401
      %v502 = vunpack.c.l.b16 %v402
      %v503 = vunpack.c.l.b16 %v403
      %v504 = vunpack.c.l.b16 %v404
      %v505 = vunpack.c.l.b16 %v405
      %v506 = vunpack.c.l.b16 %v406
      %v507 = vunpack.c.l.b16 %v407
      %v508 = vunpack.c.l.b16 %v408
      %v509 = vunpack.c.l.b16 %v409
      %v510 = vunpack.c.l.b16 %v410
      %v511 = vunpack.c.l.b16 %v411
      %v512 = vunpack.c.l.b16 %v412
      %v513 = vunpack.c.l.b16 %v413
      %v514 = vunpack.c.l.b16 %v414
      %v515 = vunpack.c.l.b16 %v415
      %v516 = vunpack.c.l.b16 %v416
      %v517 = vunpack.c.l.b16 %v417
      %v518 = vunpack.c.l.b16 %v418
      %v519 = vunpack.c.l.b16 %v419
      %v520 = vunpack.c.l.b16 %v420
      %v521 = vunpack.c.l.b16 %v421
      %v522 = vunpack.c.l.b16 %v422
      %v523 = vpack.c.b16 %v476, %v475
      %v524 = vpack.c.b16 %v478, %v477
      %v525 = vpack.c.b16 %v480, %v479
      %v526 = vpack.c.b16 %v482, %v481
      %v527 = vpack.c.b16 %v484, %v483
      %v528 = vpack.c.b16 %v486, %v485
      %v529 = vpack.c.b16 %v488, %v487
      %v530 = vpack.c.b16 %v490, %v489
      %v531 = vpack.c.b16 %v492, %v491
      %v532 = vpack.c.b16 %v494, %v493
      %v533 = vpack.c.b16 %v496, %v495
      %v534 = vpack.c.b16 %v498, %v497
      %v535 = vpack.c.b16 %v500, %v499
      %v536 = vpack.c.b16 %v502, %v501
      %v537 = vpack.c.b16 %v504, %v503
      %v538 = vpack.c.b16 %v506, %v505
      %v539 = vpack.c.b16 %v508, %v507
      %v540 = vpack.c.b16 %v510, %v509
      %v541 = vpack.c.b16 %v512, %v511
      %v542 = vpack.c.b16 %v514, %v513
      %v543 = vpack.c.b16 %v516, %v515
      %v544 = vpack.c.b16 %v518, %v517
      %v545 = vpack.c.b16 %v520, %v519
      %v546 = vpack.c.b16 %v522, %v521
      %571 = vmatpush.bf16.msra.mxu0 %v530
      %572 = vmatpush.bf16.msra.mxu0 %v529
      %573 = vmatpush.bf16.msra.mxu0 %v528
      %574 = vmatpush.bf16.msra.mxu0 %v527
      %575 = vmatpush.bf16.msra.mxu0 %v526
      %576 = vmatpush.bf16.msra.mxu0 %v525
      %577 = vmatpush.bf16.msra.mxu0 %v524
      %578 = vmatpush.bf16.msra.mxu0 %v523
      %579 = vmatmul.bf16.gmra.mxu0 %v371
      %v580 = vpop.f32.mrf.mxu0
      %v581 = vadd.f32 %v425, %v580
      %v582 = vpop.f32.mrf.mxu0
      %583 = vdwg.mxu0
      %584 = vmatpush.bf16.msra.mxu0 %v538
      %585 = vmatpush.bf16.msra.mxu0 %v537
      %586 = vmatpush.bf16.msra.mxu0 %v536
      %587 = vmatpush.bf16.msra.mxu0 %v535
      %588 = vmatpush.bf16.msra.mxu0 %v534
      %589 = vmatpush.bf16.msra.mxu0 %v533
      %590 = vmatpush.bf16.msra.mxu0 %v532
      %591 = vmatpush.bf16.msra.mxu0 %v531
      %592 = vmatmul.bf16.gmra.mxu0 %v372
      %v593 = vpop.f32.mrf.mxu0
      %v594 = vadd.f32 %v581, %v593
      %v595 = vpop.f32.mrf.mxu0
      %596 = vdwg.mxu0
      %597 = vmatpush.bf16.msra.mxu0 %v546
      %598 = vmatpush.bf16.msra.mxu0 %v545
      %599 = vmatpush.bf16.msra.mxu0 %v544
      %600 = vmatpush.bf16.msra.mxu0 %v543
      %601 = vmatpush.bf16.msra.mxu0 %v542
      %602 = vmatpush.bf16.msra.mxu0 %v541
      %603 = vmatpush.bf16.msra.mxu0 %v540
      %604 = vmatpush.bf16.msra.mxu0 %v539
      %605 = vmatmul.bf16.gmra.mxu0 %v368
      %v606 = vpop.f32.mrf.mxu0
      %v607 = vadd.f32 %v594, %v606
      %v608 = vpop.f32.mrf.mxu0
      %609 = vdwg.mxu0
      %v610 = vlaneseq
      %v611 = vshrl.u32 %v610, 7
      %s612 = smul.u32 %s24, 8
      %v613 = vstv %s612
      %v614 = vadd.s32 %v611, %v613
      %vm615 = vcmp.eq.s32.totalorder %v614, 0
      %v616 = vsel %vm615, 1, 0
      %v617 = vcvt.s32.f32 %v616
      %v618 = vld [vmem:[%s4] sm:$0x1]
      %v620 = vperm.slane %v618, 0
      %v622 = vmul.f32 %v617, %v620
      %v623 = vsub.f32 %v607, %v622
      %v624 = vmax.f32 %v623, 0.0
      %v625 = vpack.c.bf16 %v624, %v624
      %626 = vst [vmem:[%s345] sm:$0xf] %v625
      %v627 = vrot.slane %v624, 4
      %v628 = vadd.f32 %v624, %v627
      %v629 = vrot.slane %v628, 2
      %v630 = vadd.f32 %v628, %v629
      %v631 = vrot.slane %v630, 1
      %v632 = vadd.f32 %v630, %v631
      %633 = vst [vmem:[%s351] sm:$0x1] %v632
      %v634 = vmul.f32 %v624, %v624
      %v635 = vrot.slane %v634, 4
      %v636 = vadd.f32 %v634, %v635
      %v637 = vrot.slane %v636, 2
      %v638 = vadd.f32 %v636, %v637
      %v639 = vrot.slane %v638, 1
      %v640 = vadd.f32 %v638, %v639
      %641 = vst [vmem:[%s357] sm:$0x1] %v640
      %p642 = scmp.lt.s32.totalorder %s23, 1
      %s643 = scalar_select %p642, %s23, 1
      %p644 = scmp.lt.s32.totalorder %s24, 0
      %s645 = scalar_select %p644, %s24, 0
      %s646 = sadd.s32 %s645, %s643
      %s647 = smul.addr %s646, 4
      %s648 = scalar_lea.vmem %s5, %s647
      %p649 = scmp.lt.s32.totalorder %s23, 1
      %s650 = scalar_select %p649, %s23, 1
      %p651 = scmp.lt.s32.totalorder %s24, 0
      %s652 = scalar_select %p651, %s24, 0
      %s653 = sadd.s32 %s652, %s650
      %s654 = scalar_lea.vmem %s6, %s653
      %p655 = scmp.lt.s32.totalorder %s23, 1
      %s656 = scalar_select %p655, %s23, 1
      %p657 = scmp.lt.s32.totalorder %s24, 0
      %s658 = scalar_select %p657, %s24, 0
      %s659 = sadd.s32 %s658, %s656
      %s660 = scalar_lea.vmem %s7, %s659
      // Predicated region
      $region41: #{conv_autoencoder_forward.8} parent=39 // pred_check
        %p661 = pneg %p168
      $region42: #{conv_autoencoder_forward.8} parent=39 // pred_check_branch
        %663 = sbr.rel (%p661) target = $region44
      $region43: #{conv_autoencoder_forward.8} parent=39 // pred_region
        _
      $region44: #{conv_autoencoder_forward.8} parent=39 // pred_fallthru
        _
      // Predicated region
      $region45: #{conv_autoencoder_forward.8} parent=39 // pred_check
        %p664 = pneg %p196
      $region46: #{conv_autoencoder_forward.8} parent=39 // pred_check_branch
        %666 = sbr.rel (%p664) target = $region48
      $region47: #{conv_autoencoder_forward.8} parent=39 // pred_region
        _
      $region48: #{conv_autoencoder_forward.8} parent=39 // pred_fallthru
        _
      // Predicated region
      $region49: #{conv_autoencoder_forward.8} parent=39 // pred_check
        %p667 = pneg %p224
      $region50: #{conv_autoencoder_forward.8} parent=39 // pred_check_branch
        %669 = sbr.rel (%p667) target = $region52
      $region51: #{conv_autoencoder_forward.8} parent=39 // pred_region
        _
      $region52: #{conv_autoencoder_forward.8} parent=39 // pred_fallthru
        _
    $region40: #{conv_autoencoder_forward.8} parent=5 // pred_fallthru
      _
    %p670 = scmp.le.s32.totalorder 2, %s14
    // Predicated region
    $region53: #{conv_autoencoder_forward.8} parent=5 // pred_check
      %p671 = pneg %p670
    $region54: #{conv_autoencoder_forward.8} parent=5 // pred_check_branch
      %673 = sbr.rel (%p671) target = $region56
    $region55: #{conv_autoencoder_forward.8} parent=5 // pred_region
      %s674 = ssub.s32 %s14, 2
      // Predicated region
      $region57: #{conv_autoencoder_forward.8} parent=55 // pred_check
        %p675 = pneg %p174
      $region58: #{conv_autoencoder_forward.8} parent=55 // pred_check_branch
        %677 = sbr.rel (%p675) target = $region60
      $region59: #{conv_autoencoder_forward.8} parent=55 // pred_region
        %p678 = scmp.lt.s32.totalorder %s25, 1
        %s679 = scalar_select %p678, %s25, 1
        %p680 = scmp.lt.s32.totalorder %s26, 0
        %s681 = scalar_select %p680, %s26, 0
        %s682 = sadd.s32 %s681, %s679
        %s683 = smul.addr %s682, 4
        %s684 = scalar_lea.vmem %s5, %s683
      $region60: #{conv_autoencoder_forward.8} parent=55 // pred_fallthru
        _
      // Predicated region
      $region61: #{conv_autoencoder_forward.8} parent=55 // pred_check
        %p685 = pneg %p202
      $region62: #{conv_autoencoder_forward.8} parent=55 // pred_check_branch
        %687 = sbr.rel (%p685) target = $region64
      $region63: #{conv_autoencoder_forward.8} parent=55 // pred_region
        %p688 = scmp.lt.s32.totalorder %s25, 1
        %s689 = scalar_select %p688, %s25, 1
        %p690 = scmp.lt.s32.totalorder %s26, 0
        %s691 = scalar_select %p690, %s26, 0
        %s692 = sadd.s32 %s691, %s689
        %s693 = scalar_lea.vmem %s6, %s692
      $region64: #{conv_autoencoder_forward.8} parent=55 // pred_fallthru
        _
      // Predicated region
      $region65: #{conv_autoencoder_forward.8} parent=55 // pred_check
        %p694 = pneg %p230
      $region66: #{conv_autoencoder_forward.8} parent=55 // pred_check_branch
        %696 = sbr.rel (%p694) target = $region68
      $region67: #{conv_autoencoder_forward.8} parent=55 // pred_region
        %p697 = scmp.lt.s32.totalorder %s25, 1
        %s698 = scalar_select %p697, %s25, 1
        %p699 = scmp.lt.s32.totalorder %s26, 0
        %s700 = scalar_select %p699, %s26, 0
        %s701 = sadd.s32 %s700, %s698
        %s702 = scalar_lea.vmem %s7, %s701
      $region68: #{conv_autoencoder_forward.8} parent=55 // pred_fallthru
        _
    $region56: #{conv_autoencoder_forward.8} parent=5 // pred_fallthru
      _
  $region6: #{conv_autoencoder_forward.8} parent=0 // loop_footer
    %s18 = sadd.s32 1, %s14
  $region7: #{conv_autoencoder_forward.8} parent=0 // loop_footer_branch
    %13 = sbr.rel target = $region3
  $region8: #{conv_autoencoder_forward.8} parent=0 // loop_exit
    _

// kernel: conv_autoencoder_forward.9
$region0: #{conv_autoencoder_forward.9}
  #allocation0 [shape = 'u32[]', space=smem, size = 0x4, offset = 0x4, fixed_abs, tag = 'smem constant byte address 0x4 - core index']
  #allocation1 [shape = 'u32[72,128]{1,0:T(1,128)}', space=vmem, size = 0x9000, scoped, tag = 'internal scratch']
  #allocation2 [shape = 'f32[4,128]{1,0:T(4,128)}', space=vmem, size = 0x800, scoped, tag = 'scratch operand']
  %s0 = inlined_call_operand.vmem [shape: bf16[2,4,256], index: 0, kind: input, shape index: {}]
  %s1 = inlined_call_operand.vmem [shape: f32[2,1,128], index: 1, kind: input, shape index: {}]
  %s2 = inlined_call_operand.vmem [shape: bf16[384,128], index: 2, kind: input, shape index: {}]
  %s3 = inlined_call_operand.vmem [shape: f32[1,128], index: 3, kind: input, shape index: {}]
  %s4 = inlined_call_operand.vmem [shape: f32[1,128], index: 4, kind: input, shape index: {}]
  %s5 = inlined_call_operand.vmem [shape: bf16[2,4,128], index: 5, kind: output, shape index: {0}]
  %s6 = inlined_call_operand.vmem [shape: f32[2,1,1,128], index: 6, kind: output, shape index: {1}]
  %s7 = inlined_call_operand.vmem [shape: f32[2,1,1,128], index: 7, kind: output, shape index: {2}]
  %8 = xla_tuple %s5, %s6, %s7
  %s9 = sld [smem:[#allocation0]]
  $region69: #{conv_autoencoder_forward.9} parent=0
    _
  %s11 = ssub.s32 1, %s9
  %s12 = scalar_select 0, %s11, %s9
  loop: start=0, step=1, limit=4
  $region2: #{conv_autoencoder_forward.9} parent=0 // loop_pre_header
    _
  $region3: #{conv_autoencoder_forward.9} parent=0 // loop_header
    %s14 = sphi 0, %s18
    %p15 = scmp.ge.s32.totalorder %s14, 4
    %s21 = sphi 0, %s33
    %s22 = sphi 0, %s29
    %s23 = sphi 0, %s21
    %s24 = sphi 0, %s22
    %s25 = sphi 0, %s23
    %s26 = sphi 0, %s24
    %s38 = sphi 0, %s40
    %s41 = sphi 0, %s38
    %s42 = sphi 0, %s41
    %s58 = sphi 0, %s42
    %s64 = sphi 0, %s66
    %s67 = sphi 0, %s64
    %s68 = sphi 0, %s67
    %s84 = sphi 0, %s68
    %s88 = sphi 0, %s88
    %s90 = sphi 0, %s88
    %s91 = sphi 0, %s90
    %s105 = sphi 0, %s91
    %s109 = sphi 0, %s109
    %s111 = sphi 0, %s109
    %s112 = sphi 0, %s111
    %s126 = sphi 0, %s112
    %s130 = sphi 0, %s130
    %s132 = sphi 0, %s130
    %s133 = sphi 0, %s132
    %s147 = sphi 0, %s133
    %s155 = sphi 0, %s157
    %s158 = sphi 0, %s155
    %s159 = sphi 0, %s158
    %s175 = sphi 0, %s159
    %s183 = sphi 0, %s185
    %s186 = sphi 0, %s183
    %s187 = sphi 0, %s186
    %s203 = sphi 0, %s187
    %s211 = sphi 0, %s213
    %s214 = sphi 0, %s211
    %s215 = sphi 0, %s214
    %s231 = sphi 0, %s215
  $region4: #{conv_autoencoder_forward.9} parent=0 // loop_header_branch
    %17 = sbr.rel (%p15) target = $region8
  $region5: #{conv_autoencoder_forward.9} parent=0 // loop_body
    %s19 = ssub.s32 %s14, 1
    %s20 = ssub.s32 %s14, 2
    %s27 = sadd.s32 1, %s22
    %p28 = scmp.ge.s32.totalorder %s27, 1
    %s29 = scalar_select %p28, 0, %s27
    %s30 = sadd.s32 1, %s21
    %s31 = scalar_select %p28, %s30, %s21
    %p32 = scmp.ge.s32.totalorder %s31, 2
    %s33 = scalar_select %p32, 0, %s31
    %s34 = ssub.s32 %s21, %s33
    %s35 = ssub.s32 %s22, %s29
    %s36 = sor.u32 %s34, %s35
    %p37 = scmp.eq.s32.totalorder %s36, 0
    %s39 = sadd.s32 %s38, 1
    %s40 = scalar_select %p37, %s38, %s39
    %p43 = pneg %p37
    %p44 = scmp.eq.s32.totalorder %s14, 1
    %p45 = por %p43, %p44
    %p46 = scmp.ne.s32.totalorder %s38, %s41
    %p47 = scmp.eq.s32.totalorder %s14, 0
    %p48 = por %p46, %p47
    %p49 = scmp.ne.s32.totalorder %s38, %s41
    %p50 = scmp.eq.s32.totalorder %s19, 1
    %p51 = por %p49, %p50
    %p52 = scmp.ne.s32.totalorder %s41, %s42
    %p53 = scmp.eq.s32.totalorder %s19, 0
    %p54 = por %p52, %p53
    %p55 = scmp.ne.s32.totalorder %s41, %s42
    %p56 = scmp.eq.s32.totalorder %s20, 1
    %p57 = por %p55, %p56
    %p59 = scmp.ne.s32.totalorder %s42, %s58
    %p60 = scmp.eq.s32.totalorder %s20, 0
    %p61 = por %p59, %p60
    %s62 = ssub.s32 %s21, %s33
    %p63 = scmp.eq.s32.totalorder %s62, 0
    %s65 = sadd.s32 %s64, 1
    %s66 = scalar_select %p63, %s64, %s65
    %p69 = pneg %p63
    %p70 = scmp.eq.s32.totalorder %s14, 1
    %p71 = por %p69, %p70
    %p72 = scmp.ne.s32.totalorder %s64, %s67
    %p73 = scmp.eq.s32.totalorder %s14, 0
    %p74 = por %p72, %p73
    %p75 = scmp.ne.s32.totalorder %s64, %s67
    %p76 = scmp.eq.s32.totalorder %s19, 1
    %p77 = por %p75, %p76
    %p78 = scmp.ne.s32.totalorder %s67, %s68
    %p79 = scmp.eq.s32.totalorder %s19, 0
    %p80 = por %p78, %p79
    %p81 = scmp.ne.s32.totalorder %s67, %s68
    %p82 = scmp.eq.s32.totalorder %s20, 1
    %p83 = por %p81, %p82
    %p85 = scmp.ne.s32.totalorder %s68, %s84
    %p86 = scmp.eq.s32.totalorder %s20, 0
    %p87 = por %p85, %p86
    %s89 = sadd.s32 %s88, 1
    %p92 = scmp.eq.s32.totalorder %s14, 1
    %p93 = scmp.ne.s32.totalorder %s88, %s90
    %p94 = scmp.eq.s32.totalorder %s14, 0
    %p95 = por %p93, %p94
    %p96 = scmp.ne.s32.totalorder %s88, %s90
    %p97 = scmp.eq.s32.totalorder %s19, 1
    %p98 = por %p96, %p97
    %p99 = scmp.ne.s32.totalorder %s90, %s91
    %p100 = scmp.eq.s32.totalorder %s19, 0
    %p101 = por %p99, %p100
    %p102 = scmp.ne.s32.totalorder %s90, %s91
    %p103 = scmp.eq.s32.totalorder %s20, 1
    %p104 = por %p102, %p103
    %p106 = scmp.ne.s32.totalorder %s91, %s105
    %p107 = scmp.eq.s32.totalorder %s20, 0
    %p108 = por %p106, %p107
    %s110 = sadd.s32 %s109, 1
    %p113 = scmp.eq.s32.totalorder %s14, 1
    %p114 = scmp.ne.s32.totalorder %s109, %s111
    %p115 = scmp.eq.s32.totalorder %s14, 0
    %p116 = por %p114, %p115
    %p117 = scmp.ne.s32.totalorder %s109, %s111
    %p118 = scmp.eq.s32.totalorder %s19, 1
    %p119 = por %p117, %p118
    %p120 = scmp.ne.s32.totalorder %s111, %s112
    %p121 = scmp.eq.s32.totalorder %s19, 0
    %p122 = por %p120, %p121
    %p123 = scmp.ne.s32.totalorder %s111, %s112
    %p124 = scmp.eq.s32.totalorder %s20, 1
    %p125 = por %p123, %p124
    %p127 = scmp.ne.s32.totalorder %s112, %s126
    %p128 = scmp.eq.s32.totalorder %s20, 0
    %p129 = por %p127, %p128
    %s131 = sadd.s32 %s130, 1
    %p134 = scmp.eq.s32.totalorder %s14, 1
    %p135 = scmp.ne.s32.totalorder %s130, %s132
    %p136 = scmp.eq.s32.totalorder %s14, 0
    %p137 = por %p135, %p136
    %p138 = scmp.ne.s32.totalorder %s130, %s132
    %p139 = scmp.eq.s32.totalorder %s19, 1
    %p140 = por %p138, %p139
    %p141 = scmp.ne.s32.totalorder %s132, %s133
    %p142 = scmp.eq.s32.totalorder %s19, 0
    %p143 = por %p141, %p142
    %p144 = scmp.ne.s32.totalorder %s132, %s133
    %p145 = scmp.eq.s32.totalorder %s20, 1
    %p146 = por %p144, %p145
    %p148 = scmp.ne.s32.totalorder %s133, %s147
    %p149 = scmp.eq.s32.totalorder %s20, 0
    %p150 = por %p148, %p149
    %s151 = ssub.s32 %s21, %s33
    %s152 = ssub.s32 %s22, %s29
    %s153 = sor.u32 %s151, %s152
    %p154 = scmp.eq.s32.totalorder %s153, 0
    %s156 = sadd.s32 %s155, 1
    %s157 = scalar_select %p154, %s155, %s156
    %p160 = pneg %p154
    %p161 = scmp.eq.s32.totalorder %s14, 1
    %p162 = por %p160, %p161
    %p163 = scmp.ne.s32.totalorder %s155, %s158
    %p164 = scmp.eq.s32.totalorder %s14, 0
    %p165 = por %p163, %p164
    %p166 = scmp.ne.s32.totalorder %s155, %s158
    %p167 = scmp.eq.s32.totalorder %s19, 1
    %p168 = por %p166, %p167
    %p169 = scmp.ne.s32.totalorder %s158, %s159
    %p170 = scmp.eq.s32.totalorder %s19, 0
    %p171 = por %p169, %p170
    %p172 = scmp.ne.s32.totalorder %s158, %s159
    %p173 = scmp.eq.s32.totalorder %s20, 1
    %p174 = por %p172, %p173
    %p176 = scmp.ne.s32.totalorder %s159, %s175
    %p177 = scmp.eq.s32.totalorder %s20, 0
    %p178 = por %p176, %p177
    %s179 = ssub.s32 %s21, %s33
    %s180 = ssub.s32 %s22, %s29
    %s181 = sor.u32 %s179, %s180
    %p182 = scmp.eq.s32.totalorder %s181, 0
    %s184 = sadd.s32 %s183, 1
    %s185 = scalar_select %p182, %s183, %s184
    %p188 = pneg %p182
    %p189 = scmp.eq.s32.totalorder %s14, 1
    %p190 = por %p188, %p189
    %p191 = scmp.ne.s32.totalorder %s183, %s186
    %p192 = scmp.eq.s32.totalorder %s14, 0
    %p193 = por %p191, %p192
    %p194 = scmp.ne.s32.totalorder %s183, %s186
    %p195 = scmp.eq.s32.totalorder %s19, 1
    %p196 = por %p194, %p195
    %p197 = scmp.ne.s32.totalorder %s186, %s187
    %p198 = scmp.eq.s32.totalorder %s19, 0
    %p199 = por %p197, %p198
    %p200 = scmp.ne.s32.totalorder %s186, %s187
    %p201 = scmp.eq.s32.totalorder %s20, 1
    %p202 = por %p200, %p201
    %p204 = scmp.ne.s32.totalorder %s187, %s203
    %p205 = scmp.eq.s32.totalorder %s20, 0
    %p206 = por %p204, %p205
    %s207 = ssub.s32 %s21, %s33
    %s208 = ssub.s32 %s22, %s29
    %s209 = sor.u32 %s207, %s208
    %p210 = scmp.eq.s32.totalorder %s209, 0
    %s212 = sadd.s32 %s211, 1
    %s213 = scalar_select %p210, %s211, %s212
    %p216 = pneg %p210
    %p217 = scmp.eq.s32.totalorder %s14, 1
    %p218 = por %p216, %p217
    %p219 = scmp.ne.s32.totalorder %s211, %s214
    %p220 = scmp.eq.s32.totalorder %s14, 0
    %p221 = por %p219, %p220
    %p222 = scmp.ne.s32.totalorder %s211, %s214
    %p223 = scmp.eq.s32.totalorder %s19, 1
    %p224 = por %p222, %p223
    %p225 = scmp.ne.s32.totalorder %s214, %s215
    %p226 = scmp.eq.s32.totalorder %s19, 0
    %p227 = por %p225, %p226
    %p228 = scmp.ne.s32.totalorder %s214, %s215
    %p229 = scmp.eq.s32.totalorder %s20, 1
    %p230 = por %p228, %p229
    %p232 = scmp.ne.s32.totalorder %s215, %s231
    %p233 = scmp.eq.s32.totalorder %s20, 0
    %p234 = por %p232, %p233
    %p235 = scmp.le.s32.totalorder 1, %s14
    %p236 = scmp.lt.s32.totalorder %s14, 3
    %p237 = pnand %p235, %p236
    %p238 = pneg %p237
    // Predicated region
    $region9: #{conv_autoencoder_forward.9} parent=5 // pred_check
      _
    $region10: #{conv_autoencoder_forward.9} parent=5 // pred_check_branch
      %240 = sbr.rel (%p237) target = $region12
    $region11: #{conv_autoencoder_forward.9} parent=5 // pred_region
      %s241 = ssub.s32 %s14, 1
      // Predicated region
      $region13: #{conv_autoencoder_forward.9} parent=11 // pred_check
        %p242 = pneg %p101
      $region14: #{conv_autoencoder_forward.9} parent=11 // pred_check_branch
        %244 = sbr.rel (%p242) target = $region16
      $region15: #{conv_autoencoder_forward.9} parent=11 // pred_region
        _
      $region16: #{conv_autoencoder_forward.9} parent=11 // pred_fallthru
        _
      // Predicated region
      $region17: #{conv_autoencoder_forward.9} parent=11 // pred_check
        %p245 = pneg %p122
      $region18: #{conv_autoencoder_forward.9} parent=11 // pred_check_branch
        %247 = sbr.rel (%p245) target = $region20
      $region19: #{conv_autoencoder_forward.9} parent=11 // pred_region
        _
      $region20: #{conv_autoencoder_forward.9} parent=11 // pred_fallthru
        _
      // Predicated region
      $region21: #{conv_autoencoder_forward.9} parent=11 // pred_check
        %p248 = pneg %p143
      $region22: #{conv_autoencoder_forward.9} parent=11 // pred_check_branch
        %250 = sbr.rel (%p248) target = $region24
      $region23: #{conv_autoencoder_forward.9} parent=11 // pred_region
        _
      $region24: #{conv_autoencoder_forward.9} parent=11 // pred_fallthru
        _
    $region12: #{conv_autoencoder_forward.9} parent=5 // pred_fallthru
      _
    %p251 = scmp.lt.s32.totalorder %s14, 2
    // Predicated region
    $region25: #{conv_autoencoder_forward.9} parent=5 // pred_check
      %p252 = pneg %p251
    $region26: #{conv_autoencoder_forward.9} parent=5 // pred_check_branch
      %254 = sbr.rel (%p252) target = $region28
    $region27: #{conv_autoencoder_forward.9} parent=5 // pred_region
      // Predicated region
      $region29: #{conv_autoencoder_forward.9} parent=27 // pred_check
        %p255 = pneg %p48
      $region30: #{conv_autoencoder_forward.9} parent=27 // pred_check_branch
        %257 = sbr.rel (%p255) target = $region32
      $region31: #{conv_autoencoder_forward.9} parent=27 // pred_region
        %p258 = scmp.lt.s32.totalorder %s21, 1
        %s259 = scalar_select %p258, %s21, 1
        %p260 = scmp.lt.s32.totalorder %s22, 0
        %s261 = scalar_select %p260, %s22, 0
        %s262 = smul.addr %s261, 2
        %s263 = smul.addr %s259, 2
        %s264 = sadd.s32 %s262, %s263
        %s265 = smul.addr %s264, 2
        %s266 = scalar_lea.vmem %s0, %s265
      $region32: #{conv_autoencoder_forward.9} parent=27 // pred_fallthru
        _
      // Predicated region
      $region33: #{conv_autoencoder_forward.9} parent=27 // pred_check
        %p267 = pneg %p74
      $region34: #{conv_autoencoder_forward.9} parent=27 // pred_check_branch
        %269 = sbr.rel (%p267) target = $region36
      $region35: #{conv_autoencoder_forward.9} parent=27 // pred_region
        %p270 = scmp.lt.s32.totalorder %s21, 1
        %s271 = scalar_select %p270, %s21, 1
        %s272 = scalar_lea.vmem %s1, %s271
      $region36: #{conv_autoencoder_forward.9} parent=27 // pred_fallthru
        _
    $region28: #{conv_autoencoder_forward.9} parent=5 // pred_fallthru
      _
    %p273 = scmp.le.s32.totalorder 1, %s14
    %p274 = scmp.lt.s32.totalorder %s14, 3
    %p275 = pnand %p273, %p274
    %p276 = pneg %p275
    // Predicated region
    $region37: #{conv_autoencoder_forward.9} parent=5 // pred_check
      _
    $region38: #{conv_autoencoder_forward.9} parent=5 // pred_check_branch
      %278 = sbr.rel (%p275) target = $region40
    $region39: #{conv_autoencoder_forward.9} parent=5 // pred_region
      %s279 = ssub.s32 %s14, 1
      %p280 = scmp.lt.s32.totalorder %s23, 1
      %s281 = scalar_select %p280, %s23, 1
      %p282 = scmp.lt.s32.totalorder %s24, 0
      %s283 = scalar_select %p282, %s24, 0
      %s284 = smul.addr %s283, 2
      %s285 = smul.addr %s281, 2
      %s286 = sadd.s32 %s284, %s285
      %s287 = smul.addr %s286, 2
      %s288 = scalar_lea.vmem %s0, %s287
      %p289 = pneg %p54
      %p290 = pneg %p51
      %p291 = scmp.lt.s32.totalorder %s23, 1
      %s292 = scalar_select %p291, %s23, 1
      %s293 = scalar_lea.vmem %s1, %s292
      %p294 = pneg %p80
      %p295 = pneg %p77
      %p296 = pneg %p101
      %p297 = pneg %p98
      %p298 = pneg %p122
      %p299 = pneg %p119
      %p300 = pneg %p143
      %p301 = pneg %p140
      %p302 = pneg %p171
      %p303 = pneg %p168
      %p304 = scmp.lt.s32.totalorder %s23, 1
      %s305 = scalar_select %p304, %s23, 1
      %p306 = scmp.lt.s32.totalorder %s24, 0
      %s307 = scalar_select %p306, %s24, 0
      %s308 = sadd.s32 %s307, %s305
      %s309 = smul.addr %s308, 2
      %s310 = scalar_lea.vmem %s5, %s309
      %p311 = pneg %p199
      %p312 = pneg %p196
      %p313 = scmp.lt.s32.totalorder %s23, 1
      %s314 = scalar_select %p313, %s23, 1
      %p315 = scmp.lt.s32.totalorder %s24, 0
      %s316 = scalar_select %p315, %s24, 0
      %s317 = sadd.s32 %s316, %s314
      %s318 = scalar_lea.vmem %s6, %s317
      %p319 = pneg %p227
      %p320 = pneg %p224
      %p321 = scmp.lt.s32.totalorder %s23, 1
      %s322 = scalar_select %p321, %s23, 1
      %p323 = scmp.lt.s32.totalorder %s24, 0
      %s324 = scalar_select %p323, %s24, 0
      %s325 = sadd.s32 %s324, %s322
      %s326 = scalar_lea.vmem %s7, %s325
      %p327 = scmp.lt.s32.totalorder %s23, 1
      %s328 = scalar_select %p327, %s23, 1
      %p329 = scmp.lt.s32.totalorder %s24, 0
      %s330 = scalar_select %p329, %s24, 0
      %s331 = smul.addr %s330, 2
      %s332 = smul.addr %s328, 2
      %s333 = sadd.s32 %s331, %s332
      %s334 = smul.addr %s333, 2
      %s335 = scalar_lea.vmem %s0, %s334
      %p336 = scmp.lt.s32.totalorder %s23, 1
      %s337 = scalar_select %p336, %s23, 1
      %s338 = scalar_lea.vmem %s1, %s337
      %p339 = scmp.lt.s32.totalorder %s23, 1
      %s340 = scalar_select %p339, %s23, 1
      %p341 = scmp.lt.s32.totalorder %s24, 0
      %s342 = scalar_select %p341, %s24, 0
      %s343 = sadd.s32 %s342, %s340
      %s344 = smul.addr %s343, 2
      %s345 = scalar_lea.vmem %s5, %s344
      %p346 = scmp.lt.s32.totalorder %s23, 1
      %s347 = scalar_select %p346, %s23, 1
      %p348 = scmp.lt.s32.totalorder %s24, 0
      %s349 = scalar_select %p348, %s24, 0
      %s350 = sadd.s32 %s349, %s347
      %s351 = scalar_lea.vmem %s6, %s350
      %p352 = scmp.lt.s32.totalorder %s23, 1
      %s353 = scalar_select %p352, %s23, 1
      %p354 = scmp.lt.s32.totalorder %s24, 0
      %s355 = scalar_select %p354, %s24, 0
      %s356 = sadd.s32 %s355, %s353
      %s357 = scalar_lea.vmem %s7, %s356
      %v358 = vld [vmem:[%s335] sm:$0xf]
      %s359 = scalar_lea.vmem %s338, %s24
      %v360 = vld [vmem:[%s359] sm:$0x1]
      %v362 = vrot.slane %v358, 2
      %v364 = vunpack.c.l.bf16 %v362
      %365 = vst [vmem:[#allocation2 + $0x1] sm:$0x7] %v364
      %366 = vst [vmem:[#allocation2] sm:$0x1] %v360
      %v367 = vld [vmem:[#allocation2] sm:$0xf]
      %v368 = vpack.c.bf16 %v367, %v367
      %370 = vst [vmem:[#allocation1] ss:$4 sm:$0xff] %v358
      %v371 = vld.sshfl [vmem:[#allocation1] sm:$0xff pattern:$0x73625140]
      %v372 = vld.sshfl [vmem:[#allocation1 + $0x8] sm:$0xff pattern:$0x73625140]
      %v375 = vld [vmem:[%s2] sm:$0xf]
      %v376 = vld [vmem:[%s2 + $0x4] sm:$0xf]
      %v377 = vld [vmem:[%s2 + $0x8] sm:$0xf]
      %v378 = vld [vmem:[%s2 + $0xc] sm:$0xf]
      %v379 = vld [vmem:[%s2 + $0x10] sm:$0xf]
      %v380 = vld [vmem:[%s2 + $0x14] sm:$0xf]
      %v381 = vld [vmem:[%s2 + $0x18] sm:$0xf]
      %v382 = vld [vmem:[%s2 + $0x1c] sm:$0xf]
      %v383 = vld [vmem:[%s2 + $0x20] sm:$0xf]
      %v384 = vld [vmem:[%s2 + $0x24] sm:$0xf]
      %v385 = vld [vmem:[%s2 + $0x28] sm:$0xf]
      %v386 = vld [vmem:[%s2 + $0x2c] sm:$0xf]
      %v387 = vld [vmem:[%s2 + $0x30] sm:$0xf]
      %v388 = vld [vmem:[%s2 + $0x34] sm:$0xf]
      %v389 = vld [vmem:[%s2 + $0x38] sm:$0xf]
      %v390 = vld [vmem:[%s2 + $0x3c] sm:$0xf]
      %v391 = vld [vmem:[%s2 + $0x40] sm:$0xf]
      %v392 = vld [vmem:[%s2 + $0x44] sm:$0xf]
      %v393 = vld [vmem:[%s2 + $0x48] sm:$0xf]
      %v394 = vld [vmem:[%s2 + $0x4c] sm:$0xf]
      %v395 = vld [vmem:[%s2 + $0x50] sm:$0xf]
      %v396 = vld [vmem:[%s2 + $0x54] sm:$0xf]
      %v397 = vld [vmem:[%s2 + $0x58] sm:$0xf]
      %v398 = vld [vmem:[%s2 + $0x5c] sm:$0xf]
      %v399 = vld [vmem:[%s2 + $0x60] sm:$0xf]
      %v400 = vld [vmem:[%s2 + $0x64] sm:$0xf]
      %v401 = vld [vmem:[%s2 + $0x68] sm:$0xf]
      %v402 = vld [vmem:[%s2 + $0x6c] sm:$0xf]
      %v403 = vld [vmem:[%s2 + $0x70] sm:$0xf]
      %v404 = vld [vmem:[%s2 + $0x74] sm:$0xf]
      %v405 = vld [vmem:[%s2 + $0x78] sm:$0xf]
      %v406 = vld [vmem:[%s2 + $0x7c] sm:$0xf]
      %v407 = vld [vmem:[%s2 + $0x80] sm:$0xf]
      %v408 = vld [vmem:[%s2 + $0x84] sm:$0xf]
      %v409 = vld [vmem:[%s2 + $0x88] sm:$0xf]
      %v410 = vld [vmem:[%s2 + $0x8c] sm:$0xf]
      %v411 = vld [vmem:[%s2 + $0x90] sm:$0xf]
      %v412 = vld [vmem:[%s2 + $0x94] sm:$0xf]
      %v413 = vld [vmem:[%s2 + $0x98] sm:$0xf]
      %v414 = vld [vmem:[%s2 + $0x9c] sm:$0xf]
      %v415 = vld [vmem:[%s2 + $0xa0] sm:$0xf]
      %v416 = vld [vmem:[%s2 + $0xa4] sm:$0xf]
      %v417 = vld [vmem:[%s2 + $0xa8] sm:$0xf]
      %v418 = vld [vmem:[%s2 + $0xac] sm:$0xf]
      %v419 = vld [vmem:[%s2 + $0xb0] sm:$0xf]
      %v420 = vld [vmem:[%s2 + $0xb4] sm:$0xf]
      %v421 = vld [vmem:[%s2 + $0xb8] sm:$0xf]
      %v422 = vld [vmem:[%s2 + $0xbc] sm:$0xf]
      %v423 = vld [vmem:[%s3] sm:$0x1]
      %v425 = vperm.slane %v423, 0
      %v475 = vunpack.c.l.b16 %v375
      %v476 = vunpack.c.l.b16 %v376
      %v477 = vunpack.c.l.b16 %v377
      %v478 = vunpack.c.l.b16 %v378
      %v479 = vunpack.c.l.b16 %v379
      %v480 = vunpack.c.l.b16 %v380
      %v481 = vunpack.c.l.b16 %v381
      %v482 = vunpack.c.l.b16 %v382
      %v483 = vunpack.c.l.b16 %v383
      %v484 = vunpack.c.l.b16 %v384
      %v485 = vunpack.c.l.b16 %v385
      %v486 = vunpack.c.l.b16 %v386
      %v487 = vunpack.c.l.b16 %v387
      %v488 = vunpack.c.l.b16 %v388
      %v489 = vunpack.c.l.b16 %v389
      %v490 = vunpack.c.l.b16 %v390
      %v491 = vunpack.c.l.b16 %v391
      %v492 = vunpack.c.l.b16 %v392
      %v493 = vunpack.c.l.b16 %v393
      %v494 = vunpack.c.l.b16 %v394
      %v495 = vunpack.c.l.b16 %v395
      %v496 = vunpack.c.l.b16 %v396
      %v497 = vunpack.c.l.b16 %v397
      %v498 = vunpack.c.l.b16 %v398
      %v499 = vunpack.c.l.b16 %v399
      %v500 = vunpack.c.l.b16 %v400
      %v501 = vunpack.c.l.b16 %v401
      %v502 = vunpack.c.l.b16 %v402
      %v503 = vunpack.c.l.b16 %v403
      %v504 = vunpack.c.l.b16 %v404
      %v505 = vunpack.c.l.b16 %v405
      %v506 = vunpack.c.l.b16 %v406
      %v507 = vunpack.c.l.b16 %v407
      %v508 = vunpack.c.l.b16 %v408
      %v509 = vunpack.c.l.b16 %v409
      %v510 = vunpack.c.l.b16 %v410
      %v511 = vunpack.c.l.b16 %v411
      %v512 = vunpack.c.l.b16 %v412
      %v513 = vunpack.c.l.b16 %v413
      %v514 = vunpack.c.l.b16 %v414
      %v515 = vunpack.c.l.b16 %v415
      %v516 = vunpack.c.l.b16 %v416
      %v517 = vunpack.c.l.b16 %v417
      %v518 = vunpack.c.l.b16 %v418
      %v519 = vunpack.c.l.b16 %v419
      %v520 = vunpack.c.l.b16 %v420
      %v521 = vunpack.c.l.b16 %v421
      %v522 = vunpack.c.l.b16 %v422
      %v523 = vpack.c.b16 %v476, %v475
      %v524 = vpack.c.b16 %v478, %v477
      %v525 = vpack.c.b16 %v480, %v479
      %v526 = vpack.c.b16 %v482, %v481
      %v527 = vpack.c.b16 %v484, %v483
      %v528 = vpack.c.b16 %v486, %v485
      %v529 = vpack.c.b16 %v488, %v487
      %v530 = vpack.c.b16 %v490, %v489
      %v531 = vpack.c.b16 %v492, %v491
      %v532 = vpack.c.b16 %v494, %v493
      %v533 = vpack.c.b16 %v496, %v495
      %v534 = vpack.c.b16 %v498, %v497
      %v535 = vpack.c.b16 %v500, %v499
      %v536 = vpack.c.b16 %v502, %v501
      %v537 = vpack.c.b16 %v504, %v503
      %v538 = vpack.c.b16 %v506, %v505
      %v539 = vpack.c.b16 %v508, %v507
      %v540 = vpack.c.b16 %v510, %v509
      %v541 = vpack.c.b16 %v512, %v511
      %v542 = vpack.c.b16 %v514, %v513
      %v543 = vpack.c.b16 %v516, %v515
      %v544 = vpack.c.b16 %v518, %v517
      %v545 = vpack.c.b16 %v520, %v519
      %v546 = vpack.c.b16 %v522, %v521
      %571 = vmatpush.bf16.msra.mxu0 %v530
      %572 = vmatpush.bf16.msra.mxu0 %v529
      %573 = vmatpush.bf16.msra.mxu0 %v528
      %574 = vmatpush.bf16.msra.mxu0 %v527
      %575 = vmatpush.bf16.msra.mxu0 %v526
      %576 = vmatpush.bf16.msra.mxu0 %v525
      %577 = vmatpush.bf16.msra.mxu0 %v524
      %578 = vmatpush.bf16.msra.mxu0 %v523
      %579 = vmatmul.bf16.gmra.mxu0 %v371
      %v580 = vpop.f32.mrf.mxu0
      %v581 = vadd.f32 %v425, %v580
      %v582 = vpop.f32.mrf.mxu0
      %583 = vdwg.mxu0
      %584 = vmatpush.bf16.msra.mxu0 %v538
      %585 = vmatpush.bf16.msra.mxu0 %v537
      %586 = vmatpush.bf16.msra.mxu0 %v536
      %587 = vmatpush.bf16.msra.mxu0 %v535
      %588 = vmatpush.bf16.msra.mxu0 %v534
      %589 = vmatpush.bf16.msra.mxu0 %v533
      %590 = vmatpush.bf16.msra.mxu0 %v532
      %591 = vmatpush.bf16.msra.mxu0 %v531
      %592 = vmatmul.bf16.gmra.mxu0 %v372
      %v593 = vpop.f32.mrf.mxu0
      %v594 = vadd.f32 %v581, %v593
      %v595 = vpop.f32.mrf.mxu0
      %596 = vdwg.mxu0
      %597 = vmatpush.bf16.msra.mxu0 %v546
      %598 = vmatpush.bf16.msra.mxu0 %v545
      %599 = vmatpush.bf16.msra.mxu0 %v544
      %600 = vmatpush.bf16.msra.mxu0 %v543
      %601 = vmatpush.bf16.msra.mxu0 %v542
      %602 = vmatpush.bf16.msra.mxu0 %v541
      %603 = vmatpush.bf16.msra.mxu0 %v540
      %604 = vmatpush.bf16.msra.mxu0 %v539
      %605 = vmatmul.bf16.gmra.mxu0 %v368
      %v606 = vpop.f32.mrf.mxu0
      %v607 = vadd.f32 %v594, %v606
      %v608 = vpop.f32.mrf.mxu0
      %609 = vdwg.mxu0
      %v610 = vlaneseq
      %v611 = vshrl.u32 %v610, 7
      %s612 = smul.u32 %s24, 4
      %v613 = vstv %s612
      %v614 = vadd.s32 %v611, %v613
      %vm615 = vcmp.eq.s32.totalorder %v614, 0
      %v616 = vsel %vm615, 1, 0
      %v617 = vcvt.s32.f32 %v616
      %v618 = vld [vmem:[%s4] sm:$0x1]
      %v620 = vperm.slane %v618, 0
      %v622 = vmul.f32 %v617, %v620
      %v623 = vsub.f32 %v607, %v622
      %v624 = vmax.f32 %v623, 0.0
      %v625 = vpack.c.bf16 %v624, %v624
      %626 = vst [vmem:[%s345] sm:$0x3] %v625
      %vm627 = vcmask 1043456
      %v628 = vsel %vm627, %v624, 0.0
      %v629 = vrot.slane %v628, 4
      %v630 = vadd.f32 %v628, %v629
      %v631 = vrot.slane %v630, 2
      %v632 = vadd.f32 %v630, %v631
      %v633 = vrot.slane %v632, 1
      %v634 = vadd.f32 %v632, %v633
      %635 = vst [vmem:[%s351] sm:$0x1] %v634
      %v636 = vmul.f32 %v624, %v624
      %v637 = vsel %vm627, %v636, 0.0
      %v638 = vrot.slane %v637, 4
      %v639 = vadd.f32 %v637, %v638
      %v640 = vrot.slane %v639, 2
      %v641 = vadd.f32 %v639, %v640
      %v642 = vrot.slane %v641, 1
      %v643 = vadd.f32 %v641, %v642
      %644 = vst [vmem:[%s357] sm:$0x1] %v643
      %p645 = scmp.lt.s32.totalorder %s23, 1
      %s646 = scalar_select %p645, %s23, 1
      %p647 = scmp.lt.s32.totalorder %s24, 0
      %s648 = scalar_select %p647, %s24, 0
      %s649 = sadd.s32 %s648, %s646
      %s650 = smul.addr %s649, 2
      %s651 = scalar_lea.vmem %s5, %s650
      %p652 = scmp.lt.s32.totalorder %s23, 1
      %s653 = scalar_select %p652, %s23, 1
      %p654 = scmp.lt.s32.totalorder %s24, 0
      %s655 = scalar_select %p654, %s24, 0
      %s656 = sadd.s32 %s655, %s653
      %s657 = scalar_lea.vmem %s6, %s656
      %p658 = scmp.lt.s32.totalorder %s23, 1
      %s659 = scalar_select %p658, %s23, 1
      %p660 = scmp.lt.s32.totalorder %s24, 0
      %s661 = scalar_select %p660, %s24, 0
      %s662 = sadd.s32 %s661, %s659
      %s663 = scalar_lea.vmem %s7, %s662
      // Predicated region
      $region41: #{conv_autoencoder_forward.9} parent=39 // pred_check
        %p664 = pneg %p168
      $region42: #{conv_autoencoder_forward.9} parent=39 // pred_check_branch
        %666 = sbr.rel (%p664) target = $region44
      $region43: #{conv_autoencoder_forward.9} parent=39 // pred_region
        _
      $region44: #{conv_autoencoder_forward.9} parent=39 // pred_fallthru
        _
      // Predicated region
      $region45: #{conv_autoencoder_forward.9} parent=39 // pred_check
        %p667 = pneg %p196
      $region46: #{conv_autoencoder_forward.9} parent=39 // pred_check_branch
        %669 = sbr.rel (%p667) target = $region48
      $region47: #{conv_autoencoder_forward.9} parent=39 // pred_region
        _
      $region48: #{conv_autoencoder_forward.9} parent=39 // pred_fallthru
        _
      // Predicated region
      $region49: #{conv_autoencoder_forward.9} parent=39 // pred_check
        %p670 = pneg %p224
      $region50: #{conv_autoencoder_forward.9} parent=39 // pred_check_branch
        %672 = sbr.rel (%p670) target = $region52
      $region51: #{conv_autoencoder_forward.9} parent=39 // pred_region
        _
      $region52: #{conv_autoencoder_forward.9} parent=39 // pred_fallthru
        _
    $region40: #{conv_autoencoder_forward.9} parent=5 // pred_fallthru
      _
    %p673 = scmp.le.s32.totalorder 2, %s14
    // Predicated region
    $region53: #{conv_autoencoder_forward.9} parent=5 // pred_check
      %p674 = pneg %p673
    $region54: #{conv_autoencoder_forward.9} parent=5 // pred_check_branch
      %676 = sbr.rel (%p674) target = $region56
    $region55: #{conv_autoencoder_forward.9} parent=5 // pred_region
      %s677 = ssub.s32 %s14, 2
      // Predicated region
      $region57: #{conv_autoencoder_forward.9} parent=55 // pred_check
        %p678 = pneg %p174
      $region58: #{conv_autoencoder_forward.9} parent=55 // pred_check_branch
        %680 = sbr.rel (%p678) target = $region60
      $region59: #{conv_autoencoder_forward.9} parent=55 // pred_region
        %p681 = scmp.lt.s32.totalorder %s25, 1
        %s682 = scalar_select %p681, %s25, 1
        %p683 = scmp.lt.s32.totalorder %s26, 0
        %s684 = scalar_select %p683, %s26, 0
        %s685 = sadd.s32 %s684, %s682
        %s686 = smul.addr %s685, 2
        %s687 = scalar_lea.vmem %s5, %s686
      $region60: #{conv_autoencoder_forward.9} parent=55 // pred_fallthru
        _
      // Predicated region
      $region61: #{conv_autoencoder_forward.9} parent=55 // pred_check
        %p688 = pneg %p202
      $region62: #{conv_autoencoder_forward.9} parent=55 // pred_check_branch
        %690 = sbr.rel (%p688) target = $region64
      $region63: #{conv_autoencoder_forward.9} parent=55 // pred_region
        %p691 = scmp.lt.s32.totalorder %s25, 1
        %s692 = scalar_select %p691, %s25, 1
        %p693 = scmp.lt.s32.totalorder %s26, 0
        %s694 = scalar_select %p693, %s26, 0
        %s695 = sadd.s32 %s694, %s692
        %s696 = scalar_lea.vmem %s6, %s695
      $region64: #{conv_autoencoder_forward.9} parent=55 // pred_fallthru
        _
      // Predicated region
      $region65: #{conv_autoencoder_forward.9} parent=55 // pred_check
        %p697 = pneg %p230
      $region66: #{conv_autoencoder_forward.9} parent=55 // pred_check_branch
        %699 = sbr.rel (%p697) target = $region68
      $region67: #{conv_autoencoder_forward.9} parent=55 // pred_region
        %p700 = scmp.lt.s32.totalorder %s25, 1
        %s701 = scalar_select %p700, %s25, 1
        %p702 = scmp.lt.s32.totalorder %s26, 0
        %s703 = scalar_select %p702, %s26, 0
        %s704 = sadd.s32 %s703, %s701
        %s705 = scalar_lea.vmem %s7, %s704
      $region68: #{conv_autoencoder_forward.9} parent=55 // pred_fallthru
        _
    $region56: #{conv_autoencoder_forward.9} parent=5 // pred_fallthru
      _
  $region6: #{conv_autoencoder_forward.9} parent=0 // loop_footer
    %s18 = sadd.s32 1, %s14
  $region7: #{conv_autoencoder_forward.9} parent=0 // loop_footer_branch
    %13 = sbr.rel target = $region3
  $region8: #{conv_autoencoder_forward.9} parent=0 // loop_exit
    _

// kernel: conv_autoencoder_forward.10
$region0: #{conv_autoencoder_forward.10}
  #allocation0 [shape = 'u32[]', space=smem, size = 0x4, offset = 0x4, fixed_abs, tag = 'smem constant byte address 0x4 - core index']
  #allocation1 [shape = 'u32[72,128]{1,0:T(1,128)}', space=vmem, size = 0x9000, scoped, tag = 'internal scratch']
  #allocation2 [shape = 'f32[2,128]{1,0:T(2,128)}', space=vmem, size = 0x400, scoped, tag = 'scratch operand']
  %s0 = inlined_call_operand.vmem [shape: bf16[2,2,256], index: 0, kind: input, shape index: {}]
  %s1 = inlined_call_operand.vmem [shape: f32[2,1,128], index: 1, kind: input, shape index: {}]
  %s2 = inlined_call_operand.vmem [shape: bf16[384,256], index: 2, kind: input, shape index: {}]
  %s3 = inlined_call_operand.vmem [shape: f32[1,256], index: 3, kind: input, shape index: {}]
  %s4 = inlined_call_operand.vmem [shape: f32[1,256], index: 4, kind: input, shape index: {}]
  %s5 = inlined_call_operand.vmem [shape: bf16[2,2,256], index: 5, kind: output, shape index: {0}]
  %s6 = inlined_call_operand.vmem [shape: f32[2,1,1,256], index: 6, kind: output, shape index: {1}]
  %s7 = inlined_call_operand.vmem [shape: f32[2,1,1,256], index: 7, kind: output, shape index: {2}]
  %8 = xla_tuple %s5, %s6, %s7
  %s9 = sld [smem:[#allocation0]]
  $region69: #{conv_autoencoder_forward.10} parent=0
    _
  %s11 = ssub.s32 1, %s9
  %s12 = scalar_select 0, %s11, %s9
  loop: start=0, step=1, limit=4
  $region2: #{conv_autoencoder_forward.10} parent=0 // loop_pre_header
    _
  $region3: #{conv_autoencoder_forward.10} parent=0 // loop_header
    %s14 = sphi 0, %s18
    %p15 = scmp.ge.s32.totalorder %s14, 4
    %s21 = sphi 0, %s33
    %s22 = sphi 0, %s29
    %s23 = sphi 0, %s21
    %s24 = sphi 0, %s22
    %s25 = sphi 0, %s23
    %s26 = sphi 0, %s24
    %s38 = sphi 0, %s40
    %s41 = sphi 0, %s38
    %s42 = sphi 0, %s41
    %s58 = sphi 0, %s42
    %s64 = sphi 0, %s66
    %s67 = sphi 0, %s64
    %s68 = sphi 0, %s67
    %s84 = sphi 0, %s68
    %s88 = sphi 0, %s88
    %s90 = sphi 0, %s88
    %s91 = sphi 0, %s90
    %s105 = sphi 0, %s91
    %s109 = sphi 0, %s109
    %s111 = sphi 0, %s109
    %s112 = sphi 0, %s111
    %s126 = sphi 0, %s112
    %s130 = sphi 0, %s130
    %s132 = sphi 0, %s130
    %s133 = sphi 0, %s132
    %s147 = sphi 0, %s133
    %s155 = sphi 0, %s157
    %s158 = sphi 0, %s155
    %s159 = sphi 0, %s158
    %s175 = sphi 0, %s159
    %s183 = sphi 0, %s185
    %s186 = sphi 0, %s183
    %s187 = sphi 0, %s186
    %s203 = sphi 0, %s187
    %s211 = sphi 0, %s213
    %s214 = sphi 0, %s211
    %s215 = sphi 0, %s214
    %s231 = sphi 0, %s215
  $region4: #{conv_autoencoder_forward.10} parent=0 // loop_header_branch
    %17 = sbr.rel (%p15) target = $region8
  $region5: #{conv_autoencoder_forward.10} parent=0 // loop_body
    %s19 = ssub.s32 %s14, 1
    %s20 = ssub.s32 %s14, 2
    %s27 = sadd.s32 1, %s22
    %p28 = scmp.ge.s32.totalorder %s27, 1
    %s29 = scalar_select %p28, 0, %s27
    %s30 = sadd.s32 1, %s21
    %s31 = scalar_select %p28, %s30, %s21
    %p32 = scmp.ge.s32.totalorder %s31, 2
    %s33 = scalar_select %p32, 0, %s31
    %s34 = ssub.s32 %s21, %s33
    %s35 = ssub.s32 %s22, %s29
    %s36 = sor.u32 %s34, %s35
    %p37 = scmp.eq.s32.totalorder %s36, 0
    %s39 = sadd.s32 %s38, 1
    %s40 = scalar_select %p37, %s38, %s39
    %p43 = pneg %p37
    %p44 = scmp.eq.s32.totalorder %s14, 1
    %p45 = por %p43, %p44
    %p46 = scmp.ne.s32.totalorder %s38, %s41
    %p47 = scmp.eq.s32.totalorder %s14, 0
    %p48 = por %p46, %p47
    %p49 = scmp.ne.s32.totalorder %s38, %s41
    %p50 = scmp.eq.s32.totalorder %s19, 1
    %p51 = por %p49, %p50
    %p52 = scmp.ne.s32.totalorder %s41, %s42
    %p53 = scmp.eq.s32.totalorder %s19, 0
    %p54 = por %p52, %p53
    %p55 = scmp.ne.s32.totalorder %s41, %s42
    %p56 = scmp.eq.s32.totalorder %s20, 1
    %p57 = por %p55, %p56
    %p59 = scmp.ne.s32.totalorder %s42, %s58
    %p60 = scmp.eq.s32.totalorder %s20, 0
    %p61 = por %p59, %p60
    %s62 = ssub.s32 %s21, %s33
    %p63 = scmp.eq.s32.totalorder %s62, 0
    %s65 = sadd.s32 %s64, 1
    %s66 = scalar_select %p63, %s64, %s65
    %p69 = pneg %p63
    %p70 = scmp.eq.s32.totalorder %s14, 1
    %p71 = por %p69, %p70
    %p72 = scmp.ne.s32.totalorder %s64, %s67
    %p73 = scmp.eq.s32.totalorder %s14, 0
    %p74 = por %p72, %p73
    %p75 = scmp.ne.s32.totalorder %s64, %s67
    %p76 = scmp.eq.s32.totalorder %s19, 1
    %p77 = por %p75, %p76
    %p78 = scmp.ne.s32.totalorder %s67, %s68
    %p79 = scmp.eq.s32.totalorder %s19, 0
    %p80 = por %p78, %p79
    %p81 = scmp.ne.s32.totalorder %s67, %s68
    %p82 = scmp.eq.s32.totalorder %s20, 1
    %p83 = por %p81, %p82
    %p85 = scmp.ne.s32.totalorder %s68, %s84
    %p86 = scmp.eq.s32.totalorder %s20, 0
    %p87 = por %p85, %p86
    %s89 = sadd.s32 %s88, 1
    %p92 = scmp.eq.s32.totalorder %s14, 1
    %p93 = scmp.ne.s32.totalorder %s88, %s90
    %p94 = scmp.eq.s32.totalorder %s14, 0
    %p95 = por %p93, %p94
    %p96 = scmp.ne.s32.totalorder %s88, %s90
    %p97 = scmp.eq.s32.totalorder %s19, 1
    %p98 = por %p96, %p97
    %p99 = scmp.ne.s32.totalorder %s90, %s91
    %p100 = scmp.eq.s32.totalorder %s19, 0
    %p101 = por %p99, %p100
    %p102 = scmp.ne.s32.totalorder %s90, %s91
    %p103 = scmp.eq.s32.totalorder %s20, 1
    %p104 = por %p102, %p103
    %p106 = scmp.ne.s32.totalorder %s91, %s105
    %p107 = scmp.eq.s32.totalorder %s20, 0
    %p108 = por %p106, %p107
    %s110 = sadd.s32 %s109, 1
    %p113 = scmp.eq.s32.totalorder %s14, 1
    %p114 = scmp.ne.s32.totalorder %s109, %s111
    %p115 = scmp.eq.s32.totalorder %s14, 0
    %p116 = por %p114, %p115
    %p117 = scmp.ne.s32.totalorder %s109, %s111
    %p118 = scmp.eq.s32.totalorder %s19, 1
    %p119 = por %p117, %p118
    %p120 = scmp.ne.s32.totalorder %s111, %s112
    %p121 = scmp.eq.s32.totalorder %s19, 0
    %p122 = por %p120, %p121
    %p123 = scmp.ne.s32.totalorder %s111, %s112
    %p124 = scmp.eq.s32.totalorder %s20, 1
    %p125 = por %p123, %p124
    %p127 = scmp.ne.s32.totalorder %s112, %s126
    %p128 = scmp.eq.s32.totalorder %s20, 0
    %p129 = por %p127, %p128
    %s131 = sadd.s32 %s130, 1
    %p134 = scmp.eq.s32.totalorder %s14, 1
    %p135 = scmp.ne.s32.totalorder %s130, %s132
    %p136 = scmp.eq.s32.totalorder %s14, 0
    %p137 = por %p135, %p136
    %p138 = scmp.ne.s32.totalorder %s130, %s132
    %p139 = scmp.eq.s32.totalorder %s19, 1
    %p140 = por %p138, %p139
    %p141 = scmp.ne.s32.totalorder %s132, %s133
    %p142 = scmp.eq.s32.totalorder %s19, 0
    %p143 = por %p141, %p142
    %p144 = scmp.ne.s32.totalorder %s132, %s133
    %p145 = scmp.eq.s32.totalorder %s20, 1
    %p146 = por %p144, %p145
    %p148 = scmp.ne.s32.totalorder %s133, %s147
    %p149 = scmp.eq.s32.totalorder %s20, 0
    %p150 = por %p148, %p149
    %s151 = ssub.s32 %s21, %s33
    %s152 = ssub.s32 %s22, %s29
    %s153 = sor.u32 %s151, %s152
    %p154 = scmp.eq.s32.totalorder %s153, 0
    %s156 = sadd.s32 %s155, 1
    %s157 = scalar_select %p154, %s155, %s156
    %p160 = pneg %p154
    %p161 = scmp.eq.s32.totalorder %s14, 1
    %p162 = por %p160, %p161
    %p163 = scmp.ne.s32.totalorder %s155, %s158
    %p164 = scmp.eq.s32.totalorder %s14, 0
    %p165 = por %p163, %p164
    %p166 = scmp.ne.s32.totalorder %s155, %s158
    %p167 = scmp.eq.s32.totalorder %s19, 1
    %p168 = por %p166, %p167
    %p169 = scmp.ne.s32.totalorder %s158, %s159
    %p170 = scmp.eq.s32.totalorder %s19, 0
    %p171 = por %p169, %p170
    %p172 = scmp.ne.s32.totalorder %s158, %s159
    %p173 = scmp.eq.s32.totalorder %s20, 1
    %p174 = por %p172, %p173
    %p176 = scmp.ne.s32.totalorder %s159, %s175
    %p177 = scmp.eq.s32.totalorder %s20, 0
    %p178 = por %p176, %p177
    %s179 = ssub.s32 %s21, %s33
    %s180 = ssub.s32 %s22, %s29
    %s181 = sor.u32 %s179, %s180
    %p182 = scmp.eq.s32.totalorder %s181, 0
    %s184 = sadd.s32 %s183, 1
    %s185 = scalar_select %p182, %s183, %s184
    %p188 = pneg %p182
    %p189 = scmp.eq.s32.totalorder %s14, 1
    %p190 = por %p188, %p189
    %p191 = scmp.ne.s32.totalorder %s183, %s186
    %p192 = scmp.eq.s32.totalorder %s14, 0
    %p193 = por %p191, %p192
    %p194 = scmp.ne.s32.totalorder %s183, %s186
    %p195 = scmp.eq.s32.totalorder %s19, 1
    %p196 = por %p194, %p195
    %p197 = scmp.ne.s32.totalorder %s186, %s187
    %p198 = scmp.eq.s32.totalorder %s19, 0
    %p199 = por %p197, %p198
    %p200 = scmp.ne.s32.totalorder %s186, %s187
    %p201 = scmp.eq.s32.totalorder %s20, 1
    %p202 = por %p200, %p201
    %p204 = scmp.ne.s32.totalorder %s187, %s203
    %p205 = scmp.eq.s32.totalorder %s20, 0
    %p206 = por %p204, %p205
    %s207 = ssub.s32 %s21, %s33
    %s208 = ssub.s32 %s22, %s29
    %s209 = sor.u32 %s207, %s208
    %p210 = scmp.eq.s32.totalorder %s209, 0
    %s212 = sadd.s32 %s211, 1
    %s213 = scalar_select %p210, %s211, %s212
    %p216 = pneg %p210
    %p217 = scmp.eq.s32.totalorder %s14, 1
    %p218 = por %p216, %p217
    %p219 = scmp.ne.s32.totalorder %s211, %s214
    %p220 = scmp.eq.s32.totalorder %s14, 0
    %p221 = por %p219, %p220
    %p222 = scmp.ne.s32.totalorder %s211, %s214
    %p223 = scmp.eq.s32.totalorder %s19, 1
    %p224 = por %p222, %p223
    %p225 = scmp.ne.s32.totalorder %s214, %s215
    %p226 = scmp.eq.s32.totalorder %s19, 0
    %p227 = por %p225, %p226
    %p228 = scmp.ne.s32.totalorder %s214, %s215
    %p229 = scmp.eq.s32.totalorder %s20, 1
    %p230 = por %p228, %p229
    %p232 = scmp.ne.s32.totalorder %s215, %s231
    %p233 = scmp.eq.s32.totalorder %s20, 0
    %p234 = por %p232, %p233
    %p235 = scmp.le.s32.totalorder 1, %s14
    %p236 = scmp.lt.s32.totalorder %s14, 3
    %p237 = pnand %p235, %p236
    %p238 = pneg %p237
    // Predicated region
    $region9: #{conv_autoencoder_forward.10} parent=5 // pred_check
      _
    $region10: #{conv_autoencoder_forward.10} parent=5 // pred_check_branch
      %240 = sbr.rel (%p237) target = $region12
    $region11: #{conv_autoencoder_forward.10} parent=5 // pred_region
      %s241 = ssub.s32 %s14, 1
      // Predicated region
      $region13: #{conv_autoencoder_forward.10} parent=11 // pred_check
        %p242 = pneg %p101
      $region14: #{conv_autoencoder_forward.10} parent=11 // pred_check_branch
        %244 = sbr.rel (%p242) target = $region16
      $region15: #{conv_autoencoder_forward.10} parent=11 // pred_region
        _
      $region16: #{conv_autoencoder_forward.10} parent=11 // pred_fallthru
        _
      // Predicated region
      $region17: #{conv_autoencoder_forward.10} parent=11 // pred_check
        %p245 = pneg %p122
      $region18: #{conv_autoencoder_forward.10} parent=11 // pred_check_branch
        %247 = sbr.rel (%p245) target = $region20
      $region19: #{conv_autoencoder_forward.10} parent=11 // pred_region
        _
      $region20: #{conv_autoencoder_forward.10} parent=11 // pred_fallthru
        _
      // Predicated region
      $region21: #{conv_autoencoder_forward.10} parent=11 // pred_check
        %p248 = pneg %p143
      $region22: #{conv_autoencoder_forward.10} parent=11 // pred_check_branch
        %250 = sbr.rel (%p248) target = $region24
      $region23: #{conv_autoencoder_forward.10} parent=11 // pred_region
        _
      $region24: #{conv_autoencoder_forward.10} parent=11 // pred_fallthru
        _
    $region12: #{conv_autoencoder_forward.10} parent=5 // pred_fallthru
      _
    %p251 = scmp.lt.s32.totalorder %s14, 2
    // Predicated region
    $region25: #{conv_autoencoder_forward.10} parent=5 // pred_check
      %p252 = pneg %p251
    $region26: #{conv_autoencoder_forward.10} parent=5 // pred_check_branch
      %254 = sbr.rel (%p252) target = $region28
    $region27: #{conv_autoencoder_forward.10} parent=5 // pred_region
      // Predicated region
      $region29: #{conv_autoencoder_forward.10} parent=27 // pred_check
        %p255 = pneg %p48
      $region30: #{conv_autoencoder_forward.10} parent=27 // pred_check_branch
        %257 = sbr.rel (%p255) target = $region32
      $region31: #{conv_autoencoder_forward.10} parent=27 // pred_region
        %p258 = scmp.lt.s32.totalorder %s21, 1
        %s259 = scalar_select %p258, %s21, 1
        %p260 = scmp.lt.s32.totalorder %s22, 0
        %s261 = scalar_select %p260, %s22, 0
        %s262 = smul.addr %s261, 2
        %s263 = smul.addr %s259, 2
        %s264 = sadd.s32 %s262, %s263
        %s265 = scalar_lea.vmem %s0, %s264
      $region32: #{conv_autoencoder_forward.10} parent=27 // pred_fallthru
        _
      // Predicated region
      $region33: #{conv_autoencoder_forward.10} parent=27 // pred_check
        %p266 = pneg %p74
      $region34: #{conv_autoencoder_forward.10} parent=27 // pred_check_branch
        %268 = sbr.rel (%p266) target = $region36
      $region35: #{conv_autoencoder_forward.10} parent=27 // pred_region
        %p269 = scmp.lt.s32.totalorder %s21, 1
        %s270 = scalar_select %p269, %s21, 1
        %s271 = scalar_lea.vmem %s1, %s270
      $region36: #{conv_autoencoder_forward.10} parent=27 // pred_fallthru
        _
    $region28: #{conv_autoencoder_forward.10} parent=5 // pred_fallthru
      _
    %p272 = scmp.le.s32.totalorder 1, %s14
    %p273 = scmp.lt.s32.totalorder %s14, 3
    %p274 = pnand %p272, %p273
    %p275 = pneg %p274
    // Predicated region
    $region37: #{conv_autoencoder_forward.10} parent=5 // pred_check
      _
    $region38: #{conv_autoencoder_forward.10} parent=5 // pred_check_branch
      %277 = sbr.rel (%p274) target = $region40
    $region39: #{conv_autoencoder_forward.10} parent=5 // pred_region
      %s278 = ssub.s32 %s14, 1
      %p279 = scmp.lt.s32.totalorder %s23, 1
      %s280 = scalar_select %p279, %s23, 1
      %p281 = scmp.lt.s32.totalorder %s24, 0
      %s282 = scalar_select %p281, %s24, 0
      %s283 = smul.addr %s282, 2
      %s284 = smul.addr %s280, 2
      %s285 = sadd.s32 %s283, %s284
      %s286 = scalar_lea.vmem %s0, %s285
      %p287 = pneg %p54
      %p288 = pneg %p51
      %p289 = scmp.lt.s32.totalorder %s23, 1
      %s290 = scalar_select %p289, %s23, 1
      %s291 = scalar_lea.vmem %s1, %s290
      %p292 = pneg %p80
      %p293 = pneg %p77
      %p294 = pneg %p101
      %p295 = pneg %p98
      %p296 = pneg %p122
      %p297 = pneg %p119
      %p298 = pneg %p143
      %p299 = pneg %p140
      %p300 = pneg %p171
      %p301 = pneg %p168
      %p302 = scmp.lt.s32.totalorder %s23, 1
      %s303 = scalar_select %p302, %s23, 1
      %p304 = scmp.lt.s32.totalorder %s24, 0
      %s305 = scalar_select %p304, %s24, 0
      %s306 = smul.addr %s305, 2
      %s307 = smul.addr %s303, 2
      %s308 = sadd.s32 %s306, %s307
      %s309 = scalar_lea.vmem %s5, %s308
      %p310 = pneg %p199
      %p311 = pneg %p196
      %p312 = scmp.lt.s32.totalorder %s23, 1
      %s313 = scalar_select %p312, %s23, 1
      %p314 = scmp.lt.s32.totalorder %s24, 0
      %s315 = scalar_select %p314, %s24, 0
      %s316 = smul.addr %s315, 2
      %s317 = smul.addr %s313, 2
      %s318 = sadd.s32 %s316, %s317
      %s319 = scalar_lea.vmem %s6, %s318
      %p320 = pneg %p227
      %p321 = pneg %p224
      %p322 = scmp.lt.s32.totalorder %s23, 1
      %s323 = scalar_select %p322, %s23, 1
      %p324 = scmp.lt.s32.totalorder %s24, 0
      %s325 = scalar_select %p324, %s24, 0
      %s326 = smul.addr %s325, 2
      %s327 = smul.addr %s323, 2
      %s328 = sadd.s32 %s326, %s327
      %s329 = scalar_lea.vmem %s7, %s328
      %p330 = scmp.lt.s32.totalorder %s23, 1
      %s331 = scalar_select %p330, %s23, 1
      %p332 = scmp.lt.s32.totalorder %s24, 0
      %s333 = scalar_select %p332, %s24, 0
      %s334 = smul.addr %s333, 2
      %s335 = smul.addr %s331, 2
      %s336 = sadd.s32 %s334, %s335
      %s337 = scalar_lea.vmem %s0, %s336
      %p338 = scmp.lt.s32.totalorder %s23, 1
      %s339 = scalar_select %p338, %s23, 1
      %s340 = scalar_lea.vmem %s1, %s339
      %p341 = scmp.lt.s32.totalorder %s23, 1
      %s342 = scalar_select %p341, %s23, 1
      %p343 = scmp.lt.s32.totalorder %s24, 0
      %s344 = scalar_select %p343, %s24, 0
      %s345 = smul.addr %s344, 2
      %s346 = smul.addr %s342, 2
      %s347 = sadd.s32 %s345, %s346
      %s348 = scalar_lea.vmem %s5, %s347
      %p349 = scmp.lt.s32.totalorder %s23, 1
      %s350 = scalar_select %p349, %s23, 1
      %p351 = scmp.lt.s32.totalorder %s24, 0
      %s352 = scalar_select %p351, %s24, 0
      %s353 = smul.addr %s352, 2
      %s354 = smul.addr %s350, 2
      %s355 = sadd.s32 %s353, %s354
      %s356 = scalar_lea.vmem %s6, %s355
      %p357 = scmp.lt.s32.totalorder %s23, 1
      %s358 = scalar_select %p357, %s23, 1
      %p359 = scmp.lt.s32.totalorder %s24, 0
      %s360 = scalar_select %p359, %s24, 0
      %s361 = smul.addr %s360, 2
      %s362 = smul.addr %s358, 2
      %s363 = sadd.s32 %s361, %s362
      %s364 = scalar_lea.vmem %s7, %s363
      %v365 = vld [vmem:[%s337] sm:$0x3]
      %s366 = scalar_lea.vmem %s340, %s24
      %v367 = vld [vmem:[%s366] sm:$0x1]
      %v369 = vrot.slane %v365, 1
      %v371 = vunpack.c.l.bf16 %v369
      %372 = vst [vmem:[#allocation2 + $0x1] sm:$0x1] %v371
      %373 = vst [vmem:[#allocation2] sm:$0x1] %v367
      %v374 = vld [vmem:[#allocation2] sm:$0x3]
      %v375 = vpack.c.bf16 %v374, %v374
      %377 = vst [vmem:[#allocation1] ss:$9 sm:$0xff] %v365
      %v378 = vld [vmem:[#allocation1] sm:$0xff]
      %v379 = vld [vmem:[#allocation1 + $0x9] sm:$0xff]
      %v382 = vld [vmem:[%s2] sm:$0xff]
      %v383 = vld [vmem:[%s2 + $0x8] sm:$0xff]
      %v384 = vld [vmem:[%s2 + $0x10] sm:$0xff]
      %v385 = vld [vmem:[%s2 + $0x18] sm:$0xff]
      %v386 = vld [vmem:[%s2 + $0x20] sm:$0xff]
      %v387 = vld [vmem:[%s2 + $0x28] sm:$0xff]
      %v388 = vld [vmem:[%s2 + $0x30] sm:$0xff]
      %v389 = vld [vmem:[%s2 + $0x38] sm:$0xff]
      %v390 = vld [vmem:[%s2 + $0x40] sm:$0xff]
      %v391 = vld [vmem:[%s2 + $0x48] sm:$0xff]
      %v392 = vld [vmem:[%s2 + $0x50] sm:$0xff]
      %v393 = vld [vmem:[%s2 + $0x58] sm:$0xff]
      %v394 = vld [vmem:[%s2 + $0x60] sm:$0xff]
      %v395 = vld [vmem:[%s2 + $0x68] sm:$0xff]
      %v396 = vld [vmem:[%s2 + $0x70] sm:$0xff]
      %v397 = vld [vmem:[%s2 + $0x78] sm:$0xff]
      %v398 = vld [vmem:[%s2 + $0x80] sm:$0xff]
      %v399 = vld [vmem:[%s2 + $0x88] sm:$0xff]
      %v400 = vld [vmem:[%s2 + $0x90] sm:$0xff]
      %v401 = vld [vmem:[%s2 + $0x98] sm:$0xff]
      %v402 = vld [vmem:[%s2 + $0xa0] sm:$0xff]
      %v403 = vld [vmem:[%s2 + $0xa8] sm:$0xff]
      %v404 = vld [vmem:[%s2 + $0xb0] sm:$0xff]
      %v405 = vld [vmem:[%s2 + $0xb8] sm:$0xff]
      %v406 = vld [vmem:[%s2 + $0xc0] sm:$0xff]
      %v407 = vld [vmem:[%s2 + $0xc8] sm:$0xff]
      %v408 = vld [vmem:[%s2 + $0xd0] sm:$0xff]
      %v409 = vld [vmem:[%s2 + $0xd8] sm:$0xff]
      %v410 = vld [vmem:[%s2 + $0xe0] sm:$0xff]
      %v411 = vld [vmem:[%s2 + $0xe8] sm:$0xff]
      %v412 = vld [vmem:[%s2 + $0xf0] sm:$0xff]
      %v413 = vld [vmem:[%s2 + $0xf8] sm:$0xff]
      %v414 = vld [vmem:[%s2 + $0x100] sm:$0xff]
      %v415 = vld [vmem:[%s2 + $0x108] sm:$0xff]
      %v416 = vld [vmem:[%s2 + $0x110] sm:$0xff]
      %v417 = vld [vmem:[%s2 + $0x118] sm:$0xff]
      %v418 = vld [vmem:[%s2 + $0x120] sm:$0xff]
      %v419 = vld [vmem:[%s2 + $0x128] sm:$0xff]
      %v420 = vld [vmem:[%s2 + $0x130] sm:$0xff]
      %v421 = vld [vmem:[%s2 + $0x138] sm:$0xff]
      %v422 = vld [vmem:[%s2 + $0x140] sm:$0xff]
      %v423 = vld [vmem:[%s2 + $0x148] sm:$0xff]
      %v424 = vld [vmem:[%s2 + $0x150] sm:$0xff]
      %v425 = vld [vmem:[%s2 + $0x158] sm:$0xff]
      %v426 = vld [vmem:[%s2 + $0x160] sm:$0xff]
      %v427 = vld [vmem:[%s2 + $0x168] sm:$0xff]
      %v428 = vld [vmem:[%s2 + $0x170] sm:$0xff]
      %v429 = vld [vmem:[%s2 + $0x178] sm:$0xff]
      %v430 = vld [vmem:[%s3] sm:$0x3]
      %v432 = vperm.slane %v430, 0
      %v433 = vperm.slane %v430, 1
      %v484 = vunpack.c.l.b16 %v382
      %v485 = vunpack.c.h.b16 %v382
      %v486 = vunpack.c.l.b16 %v383
      %v487 = vunpack.c.h.b16 %v383
      %v488 = vunpack.c.l.b16 %v384
      %v489 = vunpack.c.h.b16 %v384
      %v490 = vunpack.c.l.b16 %v385
      %v491 = vunpack.c.h.b16 %v385
      %v492 = vunpack.c.l.b16 %v386
      %v493 = vunpack.c.h.b16 %v386
      %v494 = vunpack.c.l.b16 %v387
      %v495 = vunpack.c.h.b16 %v387
      %v496 = vunpack.c.l.b16 %v388
      %v497 = vunpack.c.h.b16 %v388
      %v498 = vunpack.c.l.b16 %v389
      %v499 = vunpack.c.h.b16 %v389
      %v500 = vunpack.c.l.b16 %v390
      %v501 = vunpack.c.h.b16 %v390
      %v502 = vunpack.c.l.b16 %v391
      %v503 = vunpack.c.h.b16 %v391
      %v504 = vunpack.c.l.b16 %v392
      %v505 = vunpack.c.h.b16 %v392
      %v506 = vunpack.c.l.b16 %v393
      %v507 = vunpack.c.h.b16 %v393
      %v508 = vunpack.c.l.b16 %v394
      %v509 = vunpack.c.h.b16 %v394
      %v510 = vunpack.c.l.b16 %v395
      %v511 = vunpack.c.h.b16 %v395
      %v512 = vunpack.c.l.b16 %v396
      %v513 = vunpack.c.h.b16 %v396
      %v514 = vunpack.c.l.b16 %v397
      %v515 = vunpack.c.h.b16 %v397
      %v516 = vunpack.c.l.b16 %v398
      %v517 = vunpack.c.h.b16 %v398
      %v518 = vunpack.c.l.b16 %v399
      %v519 = vunpack.c.h.b16 %v399
      %v520 = vunpack.c.l.b16 %v400
      %v521 = vunpack.c.h.b16 %v400
      %v522 = vunpack.c.l.b16 %v401
      %v523 = vunpack.c.h.b16 %v401
      %v524 = vunpack.c.l.b16 %v402
      %v525 = vunpack.c.h.b16 %v402
      %v526 = vunpack.c.l.b16 %v403
      %v527 = vunpack.c.h.b16 %v403
      %v528 = vunpack.c.l.b16 %v404
      %v529 = vunpack.c.h.b16 %v404
      %v530 = vunpack.c.l.b16 %v405
      %v531 = vunpack.c.h.b16 %v405
      %v532 = vunpack.c.l.b16 %v406
      %v533 = vunpack.c.h.b16 %v406
      %v534 = vunpack.c.l.b16 %v407
      %v535 = vunpack.c.h.b16 %v407
      %v536 = vunpack.c.l.b16 %v408
      %v537 = vunpack.c.h.b16 %v408
      %v538 = vunpack.c.l.b16 %v409
      %v539 = vunpack.c.h.b16 %v409
      %v540 = vunpack.c.l.b16 %v410
      %v541 = vunpack.c.h.b16 %v410
      %v542 = vunpack.c.l.b16 %v411
      %v543 = vunpack.c.h.b16 %v411
      %v544 = vunpack.c.l.b16 %v412
      %v545 = vunpack.c.h.b16 %v412
      %v546 = vunpack.c.l.b16 %v413
      %v547 = vunpack.c.h.b16 %v413
      %v548 = vunpack.c.l.b16 %v414
      %v549 = vunpack.c.h.b16 %v414
      %v550 = vunpack.c.l.b16 %v415
      %v551 = vunpack.c.h.b16 %v415
      %v552 = vunpack.c.l.b16 %v416
      %v553 = vunpack.c.h.b16 %v416
      %v554 = vunpack.c.l.b16 %v417
      %v555 = vunpack.c.h.b16 %v417
      %v556 = vunpack.c.l.b16 %v418
      %v557 = vunpack.c.h.b16 %v418
      %v558 = vunpack.c.l.b16 %v419
      %v559 = vunpack.c.h.b16 %v419
      %v560 = vunpack.c.l.b16 %v420
      %v561 = vunpack.c.h.b16 %v420
      %v562 = vunpack.c.l.b16 %v421
      %v563 = vunpack.c.h.b16 %v421
      %v564 = vunpack.c.l.b16 %v422
      %v565 = vunpack.c.h.b16 %v422
      %v566 = vunpack.c.l.b16 %v423
      %v567 = vunpack.c.h.b16 %v423
      %v568 = vunpack.c.l.b16 %v424
      %v569 = vunpack.c.h.b16 %v424
      %v570 = vunpack.c.l.b16 %v425
      %v571 = vunpack.c.h.b16 %v425
      %v572 = vunpack.c.l.b16 %v426
      %v573 = vunpack.c.h.b16 %v426
      %v574 = vunpack.c.l.b16 %v427
      %v575 = vunpack.c.h.b16 %v427
      %v576 = vunpack.c.l.b16 %v428
      %v577 = vunpack.c.h.b16 %v428
      %v578 = vunpack.c.l.b16 %v429
      %v579 = vunpack.c.h.b16 %v429
      %v580 = vpack.c.b16 %v486, %v484
      %v581 = vpack.c.b16 %v487, %v485
      %v582 = vpack.c.b16 %v490, %v488
      %v583 = vpack.c.b16 %v491, %v489
      %v584 = vpack.c.b16 %v494, %v492
      %v585 = vpack.c.b16 %v495, %v493
      %v586 = vpack.c.b16 %v498, %v496
      %v587 = vpack.c.b16 %v499, %v497
      %v588 = vpack.c.b16 %v502, %v500
      %v589 = vpack.c.b16 %v503, %v501
      %v590 = vpack.c.b16 %v506, %v504
      %v591 = vpack.c.b16 %v507, %v505
      %v592 = vpack.c.b16 %v510, %v508
      %v593 = vpack.c.b16 %v511, %v509
      %v594 = vpack.c.b16 %v514, %v512
      %v595 = vpack.c.b16 %v515, %v513
      %v596 = vpack.c.b16 %v518, %v516
      %v597 = vpack.c.b16 %v519, %v517
      %v598 = vpack.c.b16 %v522, %v520
      %v599 = vpack.c.b16 %v523, %v521
      %v600 = vpack.c.b16 %v526, %v524
      %v601 = vpack.c.b16 %v527, %v525
      %v602 = vpack.c.b16 %v530, %v528
      %v603 = vpack.c.b16 %v531, %v529
      %v604 = vpack.c.b16 %v534, %v532
      %v605 = vpack.c.b16 %v535, %v533
      %v606 = vpack.c.b16 %v538, %v536
      %v607 = vpack.c.b16 %v539, %v537
      %v608 = vpack.c.b16 %v542, %v540
      %v609 = vpack.c.b16 %v543, %v541
      %v610 = vpack.c.b16 %v546, %v544
      %v611 = vpack.c.b16 %v547, %v545
      %v612 = vpack.c.b16 %v550, %v548
      %v613 = vpack.c.b16 %v551, %v549
      %v614 = vpack.c.b16 %v554, %v552
      %v615 = vpack.c.b16 %v555, %v553
      %v616 = vpack.c.b16 %v558, %v556
      %v617 = vpack.c.b16 %v559, %v557
      %v618 = vpack.c.b16 %v562, %v560
      %v619 = vpack.c.b16 %v563, %v561
      %v620 = vpack.c.b16 %v566, %v564
      %v621 = vpack.c.b16 %v567, %v565
      %v622 = vpack.c.b16 %v570, %v568
      %v623 = vpack.c.b16 %v571, %v569
      %v624 = vpack.c.b16 %v574, %v572
      %v625 = vpack.c.b16 %v575, %v573
      %v626 = vpack.c.b16 %v578, %v576
      %v627 = vpack.c.b16 %v579, %v577
      %676 = vmatpush.bf16.msra.mxu0 %v594
      %677 = vmatpush.bf16.msra.mxu0 %v592
      %678 = vmatpush.bf16.msra.mxu0 %v590
      %679 = vmatpush.bf16.msra.mxu0 %v588
      %680 = vmatpush.bf16.msra.mxu0 %v586
      %681 = vmatpush.bf16.msra.mxu0 %v584
      %682 = vmatpush.bf16.msra.mxu0 %v582
      %683 = vmatpush.bf16.msra.mxu0 %v580
      %684 = vmatmul.bf16.gmra.mxu0 %v378
      %v685 = vpop.f32.mrf.mxu0
      %v686 = vadd.f32 %v432, %v685
      %v687 = vpop.f32.mrf.mxu0
      %688 = vdwg.mxu0
      %689 = vmatpush.bf16.msra.mxu0 %v610
      %690 = vmatpush.bf16.msra.mxu0 %v608
      %691 = vmatpush.bf16.msra.mxu0 %v606
      %692 = vmatpush.bf16.msra.mxu0 %v604
      %693 = vmatpush.bf16.msra.mxu0 %v602
      %694 = vmatpush.bf16.msra.mxu0 %v600
      %695 = vmatpush.bf16.msra.mxu0 %v598
      %696 = vmatpush.bf16.msra.mxu0 %v596
      %697 = vmatmul.bf16.gmra.mxu0 %v379
      %v698 = vpop.f32.mrf.mxu0
      %v699 = vadd.f32 %v686, %v698
      %v700 = vpop.f32.mrf.mxu0
      %701 = vdwg.mxu0
      %702 = vmatpush.bf16.msra.mxu0 %v626
      %703 = vmatpush.bf16.msra.mxu0 %v624
      %704 = vmatpush.bf16.msra.mxu0 %v622
      %705 = vmatpush.bf16.msra.mxu0 %v620
      %706 = vmatpush.bf16.msra.mxu0 %v618
      %707 = vmatpush.bf16.msra.mxu0 %v616
      %708 = vmatpush.bf16.msra.mxu0 %v614
      %709 = vmatpush.bf16.msra.mxu0 %v612
      %710 = vmatmul.bf16.gmra.mxu0 %v375
      %v711 = vpop.f32.mrf.mxu0
      %v712 = vadd.f32 %v699, %v711
      %v713 = vpop.f32.mrf.mxu0
      %714 = vdwg.mxu0
      %715 = vmatpush.bf16.msra.mxu0 %v595
      %716 = vmatpush.bf16.msra.mxu0 %v593
      %717 = vmatpush.bf16.msra.mxu0 %v591
      %718 = vmatpush.bf16.msra.mxu0 %v589
      %719 = vmatpush.bf16.msra.mxu0 %v587
      %720 = vmatpush.bf16.msra.mxu0 %v585
      %721 = vmatpush.bf16.msra.mxu0 %v583
      %722 = vmatpush.bf16.msra.mxu0 %v581
      %723 = vmatmul.bf16.gmra.mxu0 %v378
      %v724 = vpop.f32.mrf.mxu0
      %v725 = vadd.f32 %v433, %v724
      %v726 = vpop.f32.mrf.mxu0
      %727 = vdwg.mxu0
      %728 = vmatpush.bf16.msra.mxu0 %v611
      %729 = vmatpush.bf16.msra.mxu0 %v609
      %730 = vmatpush.bf16.msra.mxu0 %v607
      %731 = vmatpush.bf16.msra.mxu0 %v605
      %732 = vmatpush.bf16.msra.mxu0 %v603
      %733 = vmatpush.bf16.msra.mxu0 %v601
      %734 = vmatpush.bf16.msra.mxu0 %v599
      %735 = vmatpush.bf16.msra.mxu0 %v597
      %736 = vmatmul.bf16.gmra.mxu0 %v379
      %v737 = vpop.f32.mrf.mxu0
      %v738 = vadd.f32 %v725, %v737
      %v739 = vpop.f32.mrf.mxu0
      %740 = vdwg.mxu0
      %741 = vmatpush.bf16.msra.mxu0 %v627
      %742 = vmatpush.bf16.msra.mxu0 %v625
      %743 = vmatpush.bf16.msra.mxu0 %v623
      %744 = vmatpush.bf16.msra.mxu0 %v621
      %745 = vmatpush.bf16.msra.mxu0 %v619
      %746 = vmatpush.bf16.msra.mxu0 %v617
      %747 = vmatpush.bf16.msra.mxu0 %v615
      %748 = vmatpush.bf16.msra.mxu0 %v613
      %749 = vmatmul.bf16.gmra.mxu0 %v375
      %v750 = vpop.f32.mrf.mxu0
      %v751 = vadd.f32 %v738, %v750
      %v752 = vpop.f32.mrf.mxu0
      %753 = vdwg.mxu0
      %v754 = vlaneseq
      %v755 = vshrl.u32 %v754, 7
      %s756 = smul.u32 %s24, 2
      %v757 = vstv %s756
      %v758 = vadd.s32 %v755, %v757
      %vm759 = vcmp.eq.s32.totalorder %v758, 0
      %v760 = vsel %vm759, 1, 0
      %v761 = vcvt.s32.f32 %v760
      %v762 = vld [vmem:[%s4] sm:$0x3]
      %v764 = vperm.slane %v762, 0
      %v765 = vperm.slane %v762, 1
      %v768 = vmul.f32 %v761, %v764
      %v769 = vmul.f32 %v761, %v765
      %v770 = vsub.f32 %v712, %v768
      %v771 = vsub.f32 %v751, %v769
      %v772 = vmax.f32 %v770, 0.0
      %v773 = vmax.f32 %v771, 0.0
      %v774 = vpack.c.bf16 %v773, %v772
      %v776 = vrot.slane %v774, 3
      %vm777 = vcmask 1040384
      %v780 = vsel %vm777, %v774, %v776
      %782 = vst [vmem:[%s348] sm:$0x3] %v780
      %vm783 = vcmask 1041408
      %v784 = vsel %vm783, %v772, 0.0
      %v785 = vrot.slane %v784, 4
      %v786 = vadd.f32 %v784, %v785
      %v787 = vrot.slane %v786, 2
      %v788 = vadd.f32 %v786, %v787
      %v789 = vrot.slane %v788, 1
      %v790 = vadd.f32 %v788, %v789
      %v791 = vsel %vm783, %v773, 0.0
      %v792 = vrot.slane %v791, 4
      %v793 = vadd.f32 %v791, %v792
      %v794 = vrot.slane %v793, 2
      %v795 = vadd.f32 %v793, %v794
      %v796 = vrot.slane %v795, 1
      %v797 = vadd.f32 %v795, %v796
      %v800 = vrot.slane %v797, 7
      %v801 = vsel %vm777, %v790, %v800
      %v803 = vlaneseq
      %vm804 = vcmp.ge.s32.totalorder %v803, 0
      %vm805 = vcmp.lt.s32.totalorder %v803, 256
      %vm806 = vmand %vm804, %vm805
      %807 = vst.msk [vmem:[%s356] sm:$0x3] %vm806, %v801
      %v808 = vmul.f32 %v772, %v772
      %v809 = vmul.f32 %v773, %v773
      %v810 = vsel %vm783, %v808, 0.0
      %v811 = vrot.slane %v810, 4
      %v812 = vadd.f32 %v810, %v811
      %v813 = vrot.slane %v812, 2
      %v814 = vadd.f32 %v812, %v813
      %v815 = vrot.slane %v814, 1
      %v816 = vadd.f32 %v814, %v815
      %v817 = vsel %vm783, %v809, 0.0
      %v818 = vrot.slane %v817, 4
      %v819 = vadd.f32 %v817, %v818
      %v820 = vrot.slane %v819, 2
      %v821 = vadd.f32 %v819, %v820
      %v822 = vrot.slane %v821, 1
      %v823 = vadd.f32 %v821, %v822
      %v826 = vrot.slane %v823, 7
      %v827 = vsel %vm777, %v816, %v826
      %829 = vst.msk [vmem:[%s364] sm:$0x3] %vm806, %v827
      %p830 = scmp.lt.s32.totalorder %s23, 1
      %s831 = scalar_select %p830, %s23, 1
      %p832 = scmp.lt.s32.totalorder %s24, 0
      %s833 = scalar_select %p832, %s24, 0
      %s834 = smul.addr %s833, 2
      %s835 = smul.addr %s831, 2
      %s836 = sadd.s32 %s834, %s835
      %s837 = scalar_lea.vmem %s5, %s836
      %p838 = scmp.lt.s32.totalorder %s23, 1
      %s839 = scalar_select %p838, %s23, 1
      %p840 = scmp.lt.s32.totalorder %s24, 0
      %s841 = scalar_select %p840, %s24, 0
      %s842 = smul.addr %s841, 2
      %s843 = smul.addr %s839, 2
      %s844 = sadd.s32 %s842, %s843
      %s845 = scalar_lea.vmem %s6, %s844
      %p846 = scmp.lt.s32.totalorder %s23, 1
      %s847 = scalar_select %p846, %s23, 1
      %p848 = scmp.lt.s32.totalorder %s24, 0
      %s849 = scalar_select %p848, %s24, 0
      %s850 = smul.addr %s849, 2
      %s851 = smul.addr %s847, 2
      %s852 = sadd.s32 %s850, %s851
      %s853 = scalar_lea.vmem %s7, %s852
      // Predicated region
      $region41: #{conv_autoencoder_forward.10} parent=39 // pred_check
        %p854 = pneg %p168
      $region42: #{conv_autoencoder_forward.10} parent=39 // pred_check_branch
        %856 = sbr.rel (%p854) target = $region44
      $region43: #{conv_autoencoder_forward.10} parent=39 // pred_region
        _
      $region44: #{conv_autoencoder_forward.10} parent=39 // pred_fallthru
        _
      // Predicated region
      $region45: #{conv_autoencoder_forward.10} parent=39 // pred_check
        %p857 = pneg %p196
      $region46: #{conv_autoencoder_forward.10} parent=39 // pred_check_branch
        %859 = sbr.rel (%p857) target = $region48
      $region47: #{conv_autoencoder_forward.10} parent=39 // pred_region
        _
      $region48: #{conv_autoencoder_forward.10} parent=39 // pred_fallthru
        _
      // Predicated region
      $region49: #{conv_autoencoder_forward.10} parent=39 // pred_check
        %p860 = pneg %p224
      $region50: #{conv_autoencoder_forward.10} parent=39 // pred_check_branch
        %862 = sbr.rel (%p860) target = $region52
      $region51: #{conv_autoencoder_forward.10} parent=39 // pred_region
        _
      $region52: #{conv_autoencoder_forward.10} parent=39 // pred_fallthru
        _
    $region40: #{conv_autoencoder_forward.10} parent=5 // pred_fallthru
      _
    %p863 = scmp.le.s32.totalorder 2, %s14
    // Predicated region
    $region53: #{conv_autoencoder_forward.10} parent=5 // pred_check
      %p864 = pneg %p863
    $region54: #{conv_autoencoder_forward.10} parent=5 // pred_check_branch
      %866 = sbr.rel (%p864) target = $region56
    $region55: #{conv_autoencoder_forward.10} parent=5 // pred_region
      %s867 = ssub.s32 %s14, 2
      // Predicated region
      $region57: #{conv_autoencoder_forward.10} parent=55 // pred_check
        %p868 = pneg %p174
      $region58: #{conv_autoencoder_forward.10} parent=55 // pred_check_branch
        %870 = sbr.rel (%p868) target = $region60
      $region59: #{conv_autoencoder_forward.10} parent=55 // pred_region
        %p871 = scmp.lt.s32.totalorder %s25, 1
        %s872 = scalar_select %p871, %s25, 1
        %p873 = scmp.lt.s32.totalorder %s26, 0
        %s874 = scalar_select %p873, %s26, 0
        %s875 = smul.addr %s874, 2
        %s876 = smul.addr %s872, 2
        %s877 = sadd.s32 %s875, %s876
        %s878 = scalar_lea.vmem %s5, %s877
      $region60: #{conv_autoencoder_forward.10} parent=55 // pred_fallthru
        _
      // Predicated region
      $region61: #{conv_autoencoder_forward.10} parent=55 // pred_check
        %p879 = pneg %p202
      $region62: #{conv_autoencoder_forward.10} parent=55 // pred_check_branch
        %881 = sbr.rel (%p879) target = $region64
      $region63: #{conv_autoencoder_forward.10} parent=55 // pred_region
        %p882 = scmp.lt.s32.totalorder %s25, 1
        %s883 = scalar_select %p882, %s25, 1
        %p884 = scmp.lt.s32.totalorder %s26, 0
        %s885 = scalar_select %p884, %s26, 0
        %s886 = smul.addr %s885, 2
        %s887 = smul.addr %s883, 2
        %s888 = sadd.s32 %s886, %s887
        %s889 = scalar_lea.vmem %s6, %s888
      $region64: #{conv_autoencoder_forward.10} parent=55 // pred_fallthru
        _
      // Predicated region
      $region65: #{conv_autoencoder_forward.10} parent=55 // pred_check
        %p890 = pneg %p230
      $region66: #{conv_autoencoder_forward.10} parent=55 // pred_check_branch
        %892 = sbr.rel (%p890) target = $region68
      $region67: #{conv_autoencoder_forward.10} parent=55 // pred_region
        %p893 = scmp.lt.s32.totalorder %s25, 1
        %s894 = scalar_select %p893, %s25, 1
        %p895 = scmp.lt.s32.totalorder %s26, 0
        %s896 = scalar_select %p895, %s26, 0
        %s897 = smul.addr %s896, 2
        %s898 = smul.addr %s894, 2
        %s899 = sadd.s32 %s897, %s898
        %s900 = scalar_lea.vmem %s7, %s899
      $region68: #{conv_autoencoder_forward.10} parent=55 // pred_fallthru
        _
    $region56: #{conv_autoencoder_forward.10} parent=5 // pred_fallthru
      _
  $region6: #{conv_autoencoder_forward.10} parent=0 // loop_footer
    %s18 = sadd.s32 1, %s14
  $region7: #{conv_autoencoder_forward.10} parent=0 // loop_footer_branch
    %13 = sbr.rel target = $region3
  $region8: #{conv_autoencoder_forward.10} parent=0 // loop_exit
    _

// kernel: conv_autoencoder_forward.11
$region0: #{conv_autoencoder_forward.11}
  #allocation0 [shape = 'u32[]', space=smem, size = 0x4, offset = 0x4, fixed_abs, tag = 'smem constant byte address 0x4 - core index']
  #allocation1 [shape = 'u32[72,128]{1,0:T(1,128)}', space=vmem, size = 0x9000, scoped, tag = 'internal scratch']
  #allocation2 [shape = 'f32[1,256]{1,0:T(1,128)}', space=vmem, size = 0x400, scoped, tag = 'scratch operand']
  %s0 = inlined_call_operand.vmem [shape: bf16[2,1,512], index: 0, kind: input, shape index: {}]
  %s1 = inlined_call_operand.vmem [shape: f32[2,1,256], index: 1, kind: input, shape index: {}]
  %s2 = inlined_call_operand.vmem [shape: bf16[768,128], index: 2, kind: input, shape index: {}]
  %s3 = inlined_call_operand.vmem [shape: f32[1,128], index: 3, kind: input, shape index: {}]
  %s4 = inlined_call_operand.vmem [shape: f32[1,128], index: 4, kind: input, shape index: {}]
  %s5 = inlined_call_operand.vmem [shape: bf16[2,1,128], index: 5, kind: output, shape index: {}]
  %s6 = sld [smem:[#allocation0]]
  $region53: #{conv_autoencoder_forward.11} parent=0
    _
  %s8 = ssub.s32 1, %s6
  %s9 = scalar_select 0, %s8, %s6
  loop: start=0, step=1, limit=4
  $region2: #{conv_autoencoder_forward.11} parent=0 // loop_pre_header
    _
  $region3: #{conv_autoencoder_forward.11} parent=0 // loop_header
    %s11 = sphi 0, %s15
    %p12 = scmp.ge.s32.totalorder %s11, 4
    %s18 = sphi 0, %s30
    %s19 = sphi 0, %s26
    %s20 = sphi 0, %s18
    %s21 = sphi 0, %s19
    %s22 = sphi 0, %s20
    %s23 = sphi 0, %s21
    %s35 = sphi 0, %s37
    %s38 = sphi 0, %s35
    %s39 = sphi 0, %s38
    %s55 = sphi 0, %s39
    %s61 = sphi 0, %s63
    %s64 = sphi 0, %s61
    %s65 = sphi 0, %s64
    %s81 = sphi 0, %s65
    %s85 = sphi 0, %s85
    %s87 = sphi 0, %s85
    %s88 = sphi 0, %s87
    %s102 = sphi 0, %s88
    %s106 = sphi 0, %s106
    %s108 = sphi 0, %s106
    %s109 = sphi 0, %s108
    %s123 = sphi 0, %s109
    %s127 = sphi 0, %s127
    %s129 = sphi 0, %s127
    %s130 = sphi 0, %s129
    %s144 = sphi 0, %s130
    %s152 = sphi 0, %s154
    %s155 = sphi 0, %s152
    %s156 = sphi 0, %s155
    %s172 = sphi 0, %s156
  $region4: #{conv_autoencoder_forward.11} parent=0 // loop_header_branch
    %14 = sbr.rel (%p12) target = $region8
  $region5: #{conv_autoencoder_forward.11} parent=0 // loop_body
    %s16 = ssub.s32 %s11, 1
    %s17 = ssub.s32 %s11, 2
    %s24 = sadd.s32 1, %s19
    %p25 = scmp.ge.s32.totalorder %s24, 1
    %s26 = scalar_select %p25, 0, %s24
    %s27 = sadd.s32 1, %s18
    %s28 = scalar_select %p25, %s27, %s18
    %p29 = scmp.ge.s32.totalorder %s28, 2
    %s30 = scalar_select %p29, 0, %s28
    %s31 = ssub.s32 %s18, %s30
    %s32 = ssub.s32 %s19, %s26
    %s33 = sor.u32 %s31, %s32
    %p34 = scmp.eq.s32.totalorder %s33, 0
    %s36 = sadd.s32 %s35, 1
    %s37 = scalar_select %p34, %s35, %s36
    %p40 = pneg %p34
    %p41 = scmp.eq.s32.totalorder %s11, 1
    %p42 = por %p40, %p41
    %p43 = scmp.ne.s32.totalorder %s35, %s38
    %p44 = scmp.eq.s32.totalorder %s11, 0
    %p45 = por %p43, %p44
    %p46 = scmp.ne.s32.totalorder %s35, %s38
    %p47 = scmp.eq.s32.totalorder %s16, 1
    %p48 = por %p46, %p47
    %p49 = scmp.ne.s32.totalorder %s38, %s39
    %p50 = scmp.eq.s32.totalorder %s16, 0
    %p51 = por %p49, %p50
    %p52 = scmp.ne.s32.totalorder %s38, %s39
    %p53 = scmp.eq.s32.totalorder %s17, 1
    %p54 = por %p52, %p53
    %p56 = scmp.ne.s32.totalorder %s39, %s55
    %p57 = scmp.eq.s32.totalorder %s17, 0
    %p58 = por %p56, %p57
    %s59 = ssub.s32 %s18, %s30
    %p60 = scmp.eq.s32.totalorder %s59, 0
    %s62 = sadd.s32 %s61, 1
    %s63 = scalar_select %p60, %s61, %s62
    %p66 = pneg %p60
    %p67 = scmp.eq.s32.totalorder %s11, 1
    %p68 = por %p66, %p67
    %p69 = scmp.ne.s32.totalorder %s61, %s64
    %p70 = scmp.eq.s32.totalorder %s11, 0
    %p71 = por %p69, %p70
    %p72 = scmp.ne.s32.totalorder %s61, %s64
    %p73 = scmp.eq.s32.totalorder %s16, 1
    %p74 = por %p72, %p73
    %p75 = scmp.ne.s32.totalorder %s64, %s65
    %p76 = scmp.eq.s32.totalorder %s16, 0
    %p77 = por %p75, %p76
    %p78 = scmp.ne.s32.totalorder %s64, %s65
    %p79 = scmp.eq.s32.totalorder %s17, 1
    %p80 = por %p78, %p79
    %p82 = scmp.ne.s32.totalorder %s65, %s81
    %p83 = scmp.eq.s32.totalorder %s17, 0
    %p84 = por %p82, %p83
    %s86 = sadd.s32 %s85, 1
    %p89 = scmp.eq.s32.totalorder %s11, 1
    %p90 = scmp.ne.s32.totalorder %s85, %s87
    %p91 = scmp.eq.s32.totalorder %s11, 0
    %p92 = por %p90, %p91
    %p93 = scmp.ne.s32.totalorder %s85, %s87
    %p94 = scmp.eq.s32.totalorder %s16, 1
    %p95 = por %p93, %p94
    %p96 = scmp.ne.s32.totalorder %s87, %s88
    %p97 = scmp.eq.s32.totalorder %s16, 0
    %p98 = por %p96, %p97
    %p99 = scmp.ne.s32.totalorder %s87, %s88
    %p100 = scmp.eq.s32.totalorder %s17, 1
    %p101 = por %p99, %p100
    %p103 = scmp.ne.s32.totalorder %s88, %s102
    %p104 = scmp.eq.s32.totalorder %s17, 0
    %p105 = por %p103, %p104
    %s107 = sadd.s32 %s106, 1
    %p110 = scmp.eq.s32.totalorder %s11, 1
    %p111 = scmp.ne.s32.totalorder %s106, %s108
    %p112 = scmp.eq.s32.totalorder %s11, 0
    %p113 = por %p111, %p112
    %p114 = scmp.ne.s32.totalorder %s106, %s108
    %p115 = scmp.eq.s32.totalorder %s16, 1
    %p116 = por %p114, %p115
    %p117 = scmp.ne.s32.totalorder %s108, %s109
    %p118 = scmp.eq.s32.totalorder %s16, 0
    %p119 = por %p117, %p118
    %p120 = scmp.ne.s32.totalorder %s108, %s109
    %p121 = scmp.eq.s32.totalorder %s17, 1
    %p122 = por %p120, %p121
    %p124 = scmp.ne.s32.totalorder %s109, %s123
    %p125 = scmp.eq.s32.totalorder %s17, 0
    %p126 = por %p124, %p125
    %s128 = sadd.s32 %s127, 1
    %p131 = scmp.eq.s32.totalorder %s11, 1
    %p132 = scmp.ne.s32.totalorder %s127, %s129
    %p133 = scmp.eq.s32.totalorder %s11, 0
    %p134 = por %p132, %p133
    %p135 = scmp.ne.s32.totalorder %s127, %s129
    %p136 = scmp.eq.s32.totalorder %s16, 1
    %p137 = por %p135, %p136
    %p138 = scmp.ne.s32.totalorder %s129, %s130
    %p139 = scmp.eq.s32.totalorder %s16, 0
    %p140 = por %p138, %p139
    %p141 = scmp.ne.s32.totalorder %s129, %s130
    %p142 = scmp.eq.s32.totalorder %s17, 1
    %p143 = por %p141, %p142
    %p145 = scmp.ne.s32.totalorder %s130, %s144
    %p146 = scmp.eq.s32.totalorder %s17, 0
    %p147 = por %p145, %p146
    %s148 = ssub.s32 %s18, %s30
    %s149 = ssub.s32 %s19, %s26
    %s150 = sor.u32 %s148, %s149
    %p151 = scmp.eq.s32.totalorder %s150, 0
    %s153 = sadd.s32 %s152, 1
    %s154 = scalar_select %p151, %s152, %s153
    %p157 = pneg %p151
    %p158 = scmp.eq.s32.totalorder %s11, 1
    %p159 = por %p157, %p158
    %p160 = scmp.ne.s32.totalorder %s152, %s155
    %p161 = scmp.eq.s32.totalorder %s11, 0
    %p162 = por %p160, %p161
    %p163 = scmp.ne.s32.totalorder %s152, %s155
    %p164 = scmp.eq.s32.totalorder %s16, 1
    %p165 = por %p163, %p164
    %p166 = scmp.ne.s32.totalorder %s155, %s156
    %p167 = scmp.eq.s32.totalorder %s16, 0
    %p168 = por %p166, %p167
    %p169 = scmp.ne.s32.totalorder %s155, %s156
    %p170 = scmp.eq.s32.totalorder %s17, 1
    %p171 = por %p169, %p170
    %p173 = scmp.ne.s32.totalorder %s156, %s172
    %p174 = scmp.eq.s32.totalorder %s17, 0
    %p175 = por %p173, %p174
    %p176 = scmp.le.s32.totalorder 1, %s11
    %p177 = scmp.lt.s32.totalorder %s11, 3
    %p178 = pnand %p176, %p177
    %p179 = pneg %p178
    // Predicated region
    $region9: #{conv_autoencoder_forward.11} parent=5 // pred_check
      _
    $region10: #{conv_autoencoder_forward.11} parent=5 // pred_check_branch
      %181 = sbr.rel (%p178) target = $region12
    $region11: #{conv_autoencoder_forward.11} parent=5 // pred_region
      %s182 = ssub.s32 %s11, 1
      // Predicated region
      $region13: #{conv_autoencoder_forward.11} parent=11 // pred_check
        %p183 = pneg %p98
      $region14: #{conv_autoencoder_forward.11} parent=11 // pred_check_branch
        %185 = sbr.rel (%p183) target = $region16
      $region15: #{conv_autoencoder_forward.11} parent=11 // pred_region
        _
      $region16: #{conv_autoencoder_forward.11} parent=11 // pred_fallthru
        _
      // Predicated region
      $region17: #{conv_autoencoder_forward.11} parent=11 // pred_check
        %p186 = pneg %p119
      $region18: #{conv_autoencoder_forward.11} parent=11 // pred_check_branch
        %188 = sbr.rel (%p186) target = $region20
      $region19: #{conv_autoencoder_forward.11} parent=11 // pred_region
        _
      $region20: #{conv_autoencoder_forward.11} parent=11 // pred_fallthru
        _
      // Predicated region
      $region21: #{conv_autoencoder_forward.11} parent=11 // pred_check
        %p189 = pneg %p140
      $region22: #{conv_autoencoder_forward.11} parent=11 // pred_check_branch
        %191 = sbr.rel (%p189) target = $region24
      $region23: #{conv_autoencoder_forward.11} parent=11 // pred_region
        _
      $region24: #{conv_autoencoder_forward.11} parent=11 // pred_fallthru
        _
    $region12: #{conv_autoencoder_forward.11} parent=5 // pred_fallthru
      _
    %p192 = scmp.lt.s32.totalorder %s11, 2
    // Predicated region
    $region25: #{conv_autoencoder_forward.11} parent=5 // pred_check
      %p193 = pneg %p192
    $region26: #{conv_autoencoder_forward.11} parent=5 // pred_check_branch
      %195 = sbr.rel (%p193) target = $region28
    $region27: #{conv_autoencoder_forward.11} parent=5 // pred_region
      // Predicated region
      $region29: #{conv_autoencoder_forward.11} parent=27 // pred_check
        %p196 = pneg %p45
      $region30: #{conv_autoencoder_forward.11} parent=27 // pred_check_branch
        %198 = sbr.rel (%p196) target = $region32
      $region31: #{conv_autoencoder_forward.11} parent=27 // pred_region
        %p199 = scmp.lt.s32.totalorder %s18, 1
        %s200 = scalar_select %p199, %s18, 1
        %p201 = scmp.lt.s32.totalorder %s19, 0
        %s202 = scalar_select %p201, %s19, 0
        %s203 = smul.addr %s202, 4
        %s204 = smul.addr %s200, 4
        %s205 = sadd.s32 %s203, %s204
        %s206 = scalar_lea.vmem %s0, %s205
      $region32: #{conv_autoencoder_forward.11} parent=27 // pred_fallthru
        _
      // Predicated region
      $region33: #{conv_autoencoder_forward.11} parent=27 // pred_check
        %p207 = pneg %p71
      $region34: #{conv_autoencoder_forward.11} parent=27 // pred_check_branch
        %209 = sbr.rel (%p207) target = $region36
      $region35: #{conv_autoencoder_forward.11} parent=27 // pred_region
        %p210 = scmp.lt.s32.totalorder %s18, 1
        %s211 = scalar_select %p210, %s18, 1
        %s212 = smul.addr %s211, 2
        %s213 = scalar_lea.vmem %s1, %s212
      $region36: #{conv_autoencoder_forward.11} parent=27 // pred_fallthru
        _
    $region28: #{conv_autoencoder_forward.11} parent=5 // pred_fallthru
      _
    %p214 = scmp.le.s32.totalorder 1, %s11
    %p215 = scmp.lt.s32.totalorder %s11, 3
    %p216 = pnand %p214, %p215
    %p217 = pneg %p216
    // Predicated region
    $region37: #{conv_autoencoder_forward.11} parent=5 // pred_check
      _
    $region38: #{conv_autoencoder_forward.11} parent=5 // pred_check_branch
      %219 = sbr.rel (%p216) target = $region40
    $region39: #{conv_autoencoder_forward.11} parent=5 // pred_region
      %s220 = ssub.s32 %s11, 1
      %p221 = scmp.lt.s32.totalorder %s20, 1
      %s222 = scalar_select %p221, %s20, 1
      %p223 = scmp.lt.s32.totalorder %s21, 0
      %s224 = scalar_select %p223, %s21, 0
      %s225 = smul.addr %s224, 4
      %s226 = smul.addr %s222, 4
      %s227 = sadd.s32 %s225, %s226
      %s228 = scalar_lea.vmem %s0, %s227
      %p229 = pneg %p51
      %p230 = pneg %p48
      %p231 = scmp.lt.s32.totalorder %s20, 1
      %s232 = scalar_select %p231, %s20, 1
      %s233 = smul.addr %s232, 2
      %s234 = scalar_lea.vmem %s1, %s233
      %p235 = pneg %p77
      %p236 = pneg %p74
      %p237 = pneg %p98
      %p238 = pneg %p95
      %p239 = pneg %p119
      %p240 = pneg %p116
      %p241 = pneg %p140
      %p242 = pneg %p137
      %p243 = pneg %p168
      %p244 = pneg %p165
      %p245 = scmp.lt.s32.totalorder %s20, 1
      %s246 = scalar_select %p245, %s20, 1
      %p247 = scmp.lt.s32.totalorder %s21, 0
      %s248 = scalar_select %p247, %s21, 0
      %s249 = sadd.s32 %s248, %s246
      %s250 = scalar_lea.vmem %s5, %s249
      %p251 = scmp.lt.s32.totalorder %s20, 1
      %s252 = scalar_select %p251, %s20, 1
      %p253 = scmp.lt.s32.totalorder %s21, 0
      %s254 = scalar_select %p253, %s21, 0
      %s255 = smul.addr %s254, 4
      %s256 = smul.addr %s252, 4
      %s257 = sadd.s32 %s255, %s256
      %s258 = scalar_lea.vmem %s0, %s257
      %p259 = scmp.lt.s32.totalorder %s20, 1
      %s260 = scalar_select %p259, %s20, 1
      %s261 = smul.addr %s260, 2
      %s262 = scalar_lea.vmem %s1, %s261
      %p263 = scmp.lt.s32.totalorder %s20, 1
      %s264 = scalar_select %p263, %s20, 1
      %p265 = scmp.lt.s32.totalorder %s21, 0
      %s266 = scalar_select %p265, %s21, 0
      %s267 = sadd.s32 %s266, %s264
      %s268 = scalar_lea.vmem %s5, %s267
      %v269 = vld [vmem:[%s258] sm:$0xf]
      %s270 = smul.u32 %s21, 2
      %s271 = scalar_lea.vmem %s262, %s270
      %v272 = vld [vmem:[%s271] sm:$0x3]
      %v273 = vlaneseq
      %vm274 = vcmp.ge.s32.totalorder %v273, 0
      %vm275 = vcmp.lt.s32.totalorder %v273, 256
      %vm276 = vmand %vm274, %vm275
      %277 = vst.msk [vmem:[#allocation2] sm:$0x3] %vm276, %v272
      %v278 = vld [vmem:[#allocation2] sm:$0x3]
      %v280 = vperm.slane %v278, 0
      %v281 = vperm.slane %v278, 1
      %v284 = vpack.c.bf16 %v281, %v280
      %286 = vst [vmem:[#allocation1] ss:$9 sm:$0xff] %v269
      %v287 = vld [vmem:[#allocation1] sm:$0xff]
      %v288 = vld [vmem:[#allocation1 + $0x9] sm:$0xff]
      %v289 = vld [vmem:[#allocation1 + $0x12] sm:$0xff]
      %v290 = vld [vmem:[#allocation1 + $0x1b] sm:$0xff]
      %v296 = vunpack.c.l.b16 %v284
      %v297 = vunpack.c.h.b16 %v284
      %v298 = vpack.c.b16 %v296, %v296
      %v299 = vpack.c.b16 %v297, %v297
      %v302 = vld [vmem:[%s2] sm:$0xf]
      %v303 = vld [vmem:[%s2 + $0x4] sm:$0xf]
      %v304 = vld [vmem:[%s2 + $0x8] sm:$0xf]
      %v305 = vld [vmem:[%s2 + $0xc] sm:$0xf]
      %v306 = vld [vmem:[%s2 + $0x10] sm:$0xf]
      %v307 = vld [vmem:[%s2 + $0x14] sm:$0xf]
      %v308 = vld [vmem:[%s2 + $0x18] sm:$0xf]
      %v309 = vld [vmem:[%s2 + $0x1c] sm:$0xf]
      %v310 = vld [vmem:[%s2 + $0x20] sm:$0xf]
      %v311 = vld [vmem:[%s2 + $0x24] sm:$0xf]
      %v312 = vld [vmem:[%s2 + $0x28] sm:$0xf]
      %v313 = vld [vmem:[%s2 + $0x2c] sm:$0xf]
      %v314 = vld [vmem:[%s2 + $0x30] sm:$0xf]
      %v315 = vld [vmem:[%s2 + $0x34] sm:$0xf]
      %v316 = vld [vmem:[%s2 + $0x38] sm:$0xf]
      %v317 = vld [vmem:[%s2 + $0x3c] sm:$0xf]
      %v318 = vld [vmem:[%s2 + $0x40] sm:$0xf]
      %v319 = vld [vmem:[%s2 + $0x44] sm:$0xf]
      %v320 = vld [vmem:[%s2 + $0x48] sm:$0xf]
      %v321 = vld [vmem:[%s2 + $0x4c] sm:$0xf]
      %v322 = vld [vmem:[%s2 + $0x50] sm:$0xf]
      %v323 = vld [vmem:[%s2 + $0x54] sm:$0xf]
      %v324 = vld [vmem:[%s2 + $0x58] sm:$0xf]
      %v325 = vld [vmem:[%s2 + $0x5c] sm:$0xf]
      %v326 = vld [vmem:[%s2 + $0x60] sm:$0xf]
      %v327 = vld [vmem:[%s2 + $0x64] sm:$0xf]
      %v328 = vld [vmem:[%s2 + $0x68] sm:$0xf]
      %v329 = vld [vmem:[%s2 + $0x6c] sm:$0xf]
      %v330 = vld [vmem:[%s2 + $0x70] sm:$0xf]
      %v331 = vld [vmem:[%s2 + $0x74] sm:$0xf]
      %v332 = vld [vmem:[%s2 + $0x78] sm:$0xf]
      %v333 = vld [vmem:[%s2 + $0x7c] sm:$0xf]
      %v334 = vld [vmem:[%s2 + $0x80] sm:$0xf]
      %v335 = vld [vmem:[%s2 + $0x84] sm:$0xf]
      %v336 = vld [vmem:[%s2 + $0x88] sm:$0xf]
      %v337 = vld [vmem:[%s2 + $0x8c] sm:$0xf]
      %v338 = vld [vmem:[%s2 + $0x90] sm:$0xf]
      %v339 = vld [vmem:[%s2 + $0x94] sm:$0xf]
      %v340 = vld [vmem:[%s2 + $0x98] sm:$0xf]
      %v341 = vld [vmem:[%s2 + $0x9c] sm:$0xf]
      %v342 = vld [vmem:[%s2 + $0xa0] sm:$0xf]
      %v343 = vld [vmem:[%s2 + $0xa4] sm:$0xf]
      %v344 = vld [vmem:[%s2 + $0xa8] sm:$0xf]
      %v345 = vld [vmem:[%s2 + $0xac] sm:$0xf]
      %v346 = vld [vmem:[%s2 + $0xb0] sm:$0xf]
      %v347 = vld [vmem:[%s2 + $0xb4] sm:$0xf]
      %v348 = vld [vmem:[%s2 + $0xb8] sm:$0xf]
      %v349 = vld [vmem:[%s2 + $0xbc] sm:$0xf]
      %v350 = vld [vmem:[%s2 + $0xc0] sm:$0xf]
      %v351 = vld [vmem:[%s2 + $0xc4] sm:$0xf]
      %v352 = vld [vmem:[%s2 + $0xc8] sm:$0xf]
      %v353 = vld [vmem:[%s2 + $0xcc] sm:$0xf]
      %v354 = vld [vmem:[%s2 + $0xd0] sm:$0xf]
      %v355 = vld [vmem:[%s2 + $0xd4] sm:$0xf]
      %v356 = vld [vmem:[%s2 + $0xd8] sm:$0xf]
      %v357 = vld [vmem:[%s2 + $0xdc] sm:$0xf]
      %v358 = vld [vmem:[%s2 + $0xe0] sm:$0xf]
      %v359 = vld [vmem:[%s2 + $0xe4] sm:$0xf]
      %v360 = vld [vmem:[%s2 + $0xe8] sm:$0xf]
      %v361 = vld [vmem:[%s2 + $0xec] sm:$0xf]
      %v362 = vld [vmem:[%s2 + $0xf0] sm:$0xf]
      %v363 = vld [vmem:[%s2 + $0xf4] sm:$0xf]
      %v364 = vld [vmem:[%s2 + $0xf8] sm:$0xf]
      %v365 = vld [vmem:[%s2 + $0xfc] sm:$0xf]
      %v366 = vld [vmem:[%s2 + $0x100] sm:$0xf]
      %v367 = vld [vmem:[%s2 + $0x104] sm:$0xf]
      %v368 = vld [vmem:[%s2 + $0x108] sm:$0xf]
      %v369 = vld [vmem:[%s2 + $0x10c] sm:$0xf]
      %v370 = vld [vmem:[%s2 + $0x110] sm:$0xf]
      %v371 = vld [vmem:[%s2 + $0x114] sm:$0xf]
      %v372 = vld [vmem:[%s2 + $0x118] sm:$0xf]
      %v373 = vld [vmem:[%s2 + $0x11c] sm:$0xf]
      %v374 = vld [vmem:[%s2 + $0x120] sm:$0xf]
      %v375 = vld [vmem:[%s2 + $0x124] sm:$0xf]
      %v376 = vld [vmem:[%s2 + $0x128] sm:$0xf]
      %v377 = vld [vmem:[%s2 + $0x12c] sm:$0xf]
      %v378 = vld [vmem:[%s2 + $0x130] sm:$0xf]
      %v379 = vld [vmem:[%s2 + $0x134] sm:$0xf]
      %v380 = vld [vmem:[%s2 + $0x138] sm:$0xf]
      %v381 = vld [vmem:[%s2 + $0x13c] sm:$0xf]
      %v382 = vld [vmem:[%s2 + $0x140] sm:$0xf]
      %v383 = vld [vmem:[%s2 + $0x144] sm:$0xf]
      %v384 = vld [vmem:[%s2 + $0x148] sm:$0xf]
      %v385 = vld [vmem:[%s2 + $0x14c] sm:$0xf]
      %v386 = vld [vmem:[%s2 + $0x150] sm:$0xf]
      %v387 = vld [vmem:[%s2 + $0x154] sm:$0xf]
      %v388 = vld [vmem:[%s2 + $0x158] sm:$0xf]
      %v389 = vld [vmem:[%s2 + $0x15c] sm:$0xf]
      %v390 = vld [vmem:[%s2 + $0x160] sm:$0xf]
      %v391 = vld [vmem:[%s2 + $0x164] sm:$0xf]
      %v392 = vld [vmem:[%s2 + $0x168] sm:$0xf]
      %v393 = vld [vmem:[%s2 + $0x16c] sm:$0xf]
      %v394 = vld [vmem:[%s2 + $0x170] sm:$0xf]
      %v395 = vld [vmem:[%s2 + $0x174] sm:$0xf]
      %v396 = vld [vmem:[%s2 + $0x178] sm:$0xf]
      %v397 = vld [vmem:[%s2 + $0x17c] sm:$0xf]
      %v398 = vld [vmem:[%s3] sm:$0x1]
      %v495 = vunpack.c.l.b16 %v302
      %v496 = vunpack.c.l.b16 %v303
      %v497 = vunpack.c.l.b16 %v304
      %v498 = vunpack.c.l.b16 %v305
      %v499 = vunpack.c.l.b16 %v306
      %v500 = vunpack.c.l.b16 %v307
      %v501 = vunpack.c.l.b16 %v308
      %v502 = vunpack.c.l.b16 %v309
      %v503 = vunpack.c.l.b16 %v310
      %v504 = vunpack.c.l.b16 %v311
      %v505 = vunpack.c.l.b16 %v312
      %v506 = vunpack.c.l.b16 %v313
      %v507 = vunpack.c.l.b16 %v314
      %v508 = vunpack.c.l.b16 %v315
      %v509 = vunpack.c.l.b16 %v316
      %v510 = vunpack.c.l.b16 %v317
      %v511 = vunpack.c.l.b16 %v318
      %v512 = vunpack.c.l.b16 %v319
      %v513 = vunpack.c.l.b16 %v320
      %v514 = vunpack.c.l.b16 %v321
      %v515 = vunpack.c.l.b16 %v322
      %v516 = vunpack.c.l.b16 %v323
      %v517 = vunpack.c.l.b16 %v324
      %v518 = vunpack.c.l.b16 %v325
      %v519 = vunpack.c.l.b16 %v326
      %v520 = vunpack.c.l.b16 %v327
      %v521 = vunpack.c.l.b16 %v328
      %v522 = vunpack.c.l.b16 %v329
      %v523 = vunpack.c.l.b16 %v330
      %v524 = vunpack.c.l.b16 %v331
      %v525 = vunpack.c.l.b16 %v332
      %v526 = vunpack.c.l.b16 %v333
      %v527 = vunpack.c.l.b16 %v334
      %v528 = vunpack.c.l.b16 %v335
      %v529 = vunpack.c.l.b16 %v336
      %v530 = vunpack.c.l.b16 %v337
      %v531 = vunpack.c.l.b16 %v338
      %v532 = vunpack.c.l.b16 %v339
      %v533 = vunpack.c.l.b16 %v340
      %v534 = vunpack.c.l.b16 %v341
      %v535 = vunpack.c.l.b16 %v342
      %v536 = vunpack.c.l.b16 %v343
      %v537 = vunpack.c.l.b16 %v344
      %v538 = vunpack.c.l.b16 %v345
      %v539 = vunpack.c.l.b16 %v346
      %v540 = vunpack.c.l.b16 %v347
      %v541 = vunpack.c.l.b16 %v348
      %v542 = vunpack.c.l.b16 %v349
      %v543 = vunpack.c.l.b16 %v350
      %v544 = vunpack.c.l.b16 %v351
      %v545 = vunpack.c.l.b16 %v352
      %v546 = vunpack.c.l.b16 %v353
      %v547 = vunpack.c.l.b16 %v354
      %v548 = vunpack.c.l.b16 %v355
      %v549 = vunpack.c.l.b16 %v356
      %v550 = vunpack.c.l.b16 %v357
      %v551 = vunpack.c.l.b16 %v358
      %v552 = vunpack.c.l.b16 %v359
      %v553 = vunpack.c.l.b16 %v360
      %v554 = vunpack.c.l.b16 %v361
      %v555 = vunpack.c.l.b16 %v362
      %v556 = vunpack.c.l.b16 %v363
      %v557 = vunpack.c.l.b16 %v364
      %v558 = vunpack.c.l.b16 %v365
      %v559 = vunpack.c.l.b16 %v366
      %v560 = vunpack.c.l.b16 %v367
      %v561 = vunpack.c.l.b16 %v368
      %v562 = vunpack.c.l.b16 %v369
      %v563 = vunpack.c.l.b16 %v370
      %v564 = vunpack.c.l.b16 %v371
      %v565 = vunpack.c.l.b16 %v372
      %v566 = vunpack.c.l.b16 %v373
      %v567 = vunpack.c.l.b16 %v374
      %v568 = vunpack.c.l.b16 %v375
      %v569 = vunpack.c.l.b16 %v376
      %v570 = vunpack.c.l.b16 %v377
      %v571 = vunpack.c.l.b16 %v378
      %v572 = vunpack.c.l.b16 %v379
      %v573 = vunpack.c.l.b16 %v380
      %v574 = vunpack.c.l.b16 %v381
      %v575 = vunpack.c.l.b16 %v382
      %v576 = vunpack.c.l.b16 %v383
      %v577 = vunpack.c.l.b16 %v384
      %v578 = vunpack.c.l.b16 %v385
      %v579 = vunpack.c.l.b16 %v386
      %v580 = vunpack.c.l.b16 %v387
      %v581 = vunpack.c.l.b16 %v388
      %v582 = vunpack.c.l.b16 %v389
      %v583 = vunpack.c.l.b16 %v390
      %v584 = vunpack.c.l.b16 %v391
      %v585 = vunpack.c.l.b16 %v392
      %v586 = vunpack.c.l.b16 %v393
      %v587 = vunpack.c.l.b16 %v394
      %v588 = vunpack.c.l.b16 %v395
      %v589 = vunpack.c.l.b16 %v396
      %v590 = vunpack.c.l.b16 %v397
      %v591 = vpack.c.b16 %v496, %v495
      %v592 = vpack.c.b16 %v498, %v497
      %v593 = vpack.c.b16 %v500, %v499
      %v594 = vpack.c.b16 %v502, %v501
      %v595 = vpack.c.b16 %v504, %v503
      %v596 = vpack.c.b16 %v506, %v505
      %v597 = vpack.c.b16 %v508, %v507
      %v598 = vpack.c.b16 %v510, %v509
      %v599 = vpack.c.b16 %v512, %v511
      %v600 = vpack.c.b16 %v514, %v513
      %v601 = vpack.c.b16 %v516, %v515
      %v602 = vpack.c.b16 %v518, %v517
      %v603 = vpack.c.b16 %v520, %v519
      %v604 = vpack.c.b16 %v522, %v521
      %v605 = vpack.c.b16 %v524, %v523
      %v606 = vpack.c.b16 %v526, %v525
      %v607 = vpack.c.b16 %v528, %v527
      %v608 = vpack.c.b16 %v530, %v529
      %v609 = vpack.c.b16 %v532, %v531
      %v610 = vpack.c.b16 %v534, %v533
      %v611 = vpack.c.b16 %v536, %v535
      %v612 = vpack.c.b16 %v538, %v537
      %v613 = vpack.c.b16 %v540, %v539
      %v614 = vpack.c.b16 %v542, %v541
      %v615 = vpack.c.b16 %v544, %v543
      %v616 = vpack.c.b16 %v546, %v545
      %v617 = vpack.c.b16 %v548, %v547
      %v618 = vpack.c.b16 %v550, %v549
      %v619 = vpack.c.b16 %v552, %v551
      %v620 = vpack.c.b16 %v554, %v553
      %v621 = vpack.c.b16 %v556, %v555
      %v622 = vpack.c.b16 %v558, %v557
      %v623 = vpack.c.b16 %v560, %v559
      %v624 = vpack.c.b16 %v562, %v561
      %v625 = vpack.c.b16 %v564, %v563
      %v626 = vpack.c.b16 %v566, %v565
      %v627 = vpack.c.b16 %v568, %v567
      %v628 = vpack.c.b16 %v570, %v569
      %v629 = vpack.c.b16 %v572, %v571
      %v630 = vpack.c.b16 %v574, %v573
      %v631 = vpack.c.b16 %v576, %v575
      %v632 = vpack.c.b16 %v578, %v577
      %v633 = vpack.c.b16 %v580, %v579
      %v634 = vpack.c.b16 %v582, %v581
      %v635 = vpack.c.b16 %v584, %v583
      %v636 = vpack.c.b16 %v586, %v585
      %v637 = vpack.c.b16 %v588, %v587
      %v638 = vpack.c.b16 %v590, %v589
      %687 = vmatpush.bf16.msra.mxu0 %v598
      %688 = vmatpush.bf16.msra.mxu0 %v597
      %689 = vmatpush.bf16.msra.mxu0 %v596
      %690 = vmatpush.bf16.msra.mxu0 %v595
      %691 = vmatpush.bf16.msra.mxu0 %v594
      %692 = vmatpush.bf16.msra.mxu0 %v593
      %693 = vmatpush.bf16.msra.mxu0 %v592
      %694 = vmatpush.bf16.msra.mxu0 %v591
      %695 = vmatmul.bf16.gmra.mxu0 %v287
      %v696 = vpop.f32.mrf.mxu0
      %v697 = vadd.f32 %v398, %v696
      %v698 = vpop.f32.mrf.mxu0
      %699 = vdwg.mxu0
      %700 = vmatpush.bf16.msra.mxu0 %v606
      %701 = vmatpush.bf16.msra.mxu0 %v605
      %702 = vmatpush.bf16.msra.mxu0 %v604
      %703 = vmatpush.bf16.msra.mxu0 %v603
      %704 = vmatpush.bf16.msra.mxu0 %v602
      %705 = vmatpush.bf16.msra.mxu0 %v601
      %706 = vmatpush.bf16.msra.mxu0 %v600
      %707 = vmatpush.bf16.msra.mxu0 %v599
      %708 = vmatmul.bf16.gmra.mxu0 %v288
      %v709 = vpop.f32.mrf.mxu0
      %v710 = vadd.f32 %v697, %v709
      %v711 = vpop.f32.mrf.mxu0
      %712 = vdwg.mxu0
      %713 = vmatpush.bf16.msra.mxu0 %v614
      %714 = vmatpush.bf16.msra.mxu0 %v613
      %715 = vmatpush.bf16.msra.mxu0 %v612
      %716 = vmatpush.bf16.msra.mxu0 %v611
      %717 = vmatpush.bf16.msra.mxu0 %v610
      %718 = vmatpush.bf16.msra.mxu0 %v609
      %719 = vmatpush.bf16.msra.mxu0 %v608
      %720 = vmatpush.bf16.msra.mxu0 %v607
      %721 = vmatmul.bf16.gmra.mxu0 %v289
      %v722 = vpop.f32.mrf.mxu0
      %v723 = vadd.f32 %v710, %v722
      %v724 = vpop.f32.mrf.mxu0
      %725 = vdwg.mxu0
      %726 = vmatpush.bf16.msra.mxu0 %v622
      %727 = vmatpush.bf16.msra.mxu0 %v621
      %728 = vmatpush.bf16.msra.mxu0 %v620
      %729 = vmatpush.bf16.msra.mxu0 %v619
      %730 = vmatpush.bf16.msra.mxu0 %v618
      %731 = vmatpush.bf16.msra.mxu0 %v617
      %732 = vmatpush.bf16.msra.mxu0 %v616
      %733 = vmatpush.bf16.msra.mxu0 %v615
      %734 = vmatmul.bf16.gmra.mxu0 %v290
      %v735 = vpop.f32.mrf.mxu0
      %v736 = vadd.f32 %v723, %v735
      %v737 = vpop.f32.mrf.mxu0
      %738 = vdwg.mxu0
      %739 = vmatpush.bf16.msra.mxu0 %v630
      %740 = vmatpush.bf16.msra.mxu0 %v629
      %741 = vmatpush.bf16.msra.mxu0 %v628
      %742 = vmatpush.bf16.msra.mxu0 %v627
      %743 = vmatpush.bf16.msra.mxu0 %v626
      %744 = vmatpush.bf16.msra.mxu0 %v625
      %745 = vmatpush.bf16.msra.mxu0 %v624
      %746 = vmatpush.bf16.msra.mxu0 %v623
      %747 = vmatmul.bf16.gmra.mxu0 %v298
      %v748 = vpop.f32.mrf.mxu0
      %v749 = vadd.f32 %v736, %v748
      %v750 = vpop.f32.mrf.mxu0
      %751 = vdwg.mxu0
      %752 = vmatpush.bf16.msra.mxu0 %v638
      %753 = vmatpush.bf16.msra.mxu0 %v637
      %754 = vmatpush.bf16.msra.mxu0 %v636
      %755 = vmatpush.bf16.msra.mxu0 %v635
      %756 = vmatpush.bf16.msra.mxu0 %v634
      %757 = vmatpush.bf16.msra.mxu0 %v633
      %758 = vmatpush.bf16.msra.mxu0 %v632
      %759 = vmatpush.bf16.msra.mxu0 %v631
      %760 = vmatmul.bf16.gmra.mxu0 %v299
      %v761 = vpop.f32.mrf.mxu0
      %v762 = vadd.f32 %v749, %v761
      %v763 = vpop.f32.mrf.mxu0
      %764 = vdwg.mxu0
      %v765 = vlaneseq
      %v766 = vshrl.u32 %v765, 7
      %v767 = vstv %s21
      %v768 = vadd.s32 %v766, %v767
      %vm769 = vcmp.eq.s32.totalorder %v768, 0
      %v770 = vsel %vm769, 1, 0
      %v771 = vcvt.s32.f32 %v770
      %v772 = vld [vmem:[%s4] sm:$0x1]
      %v773 = vmul.f32 %v771, %v772
      %v774 = vsub.f32 %v762, %v773
      %v775 = vmax.f32 %v774, 0.0
      %v776 = vpack.c.bf16 %v775, %v775
      %vm777 = vcmask 1040384
      %vm778 = vsmask.f32 256
      %vm779 = vmand %vm777, %vm778
      %v780 = vld [vmem:[%s268] sm:$0x1]
      %v781 = vsel %vm779, %v776, %v780
      %782 = vst [vmem:[%s268] sm:$0x1] %v781
      %p783 = scmp.lt.s32.totalorder %s20, 1
      %s784 = scalar_select %p783, %s20, 1
      %p785 = scmp.lt.s32.totalorder %s21, 0
      %s786 = scalar_select %p785, %s21, 0
      %s787 = sadd.s32 %s786, %s784
      %s788 = scalar_lea.vmem %s5, %s787
      // Predicated region
      $region41: #{conv_autoencoder_forward.11} parent=39 // pred_check
        %p789 = pneg %p165
      $region42: #{conv_autoencoder_forward.11} parent=39 // pred_check_branch
        %791 = sbr.rel (%p789) target = $region44
      $region43: #{conv_autoencoder_forward.11} parent=39 // pred_region
        _
      $region44: #{conv_autoencoder_forward.11} parent=39 // pred_fallthru
        _
    $region40: #{conv_autoencoder_forward.11} parent=5 // pred_fallthru
      _
    %p792 = scmp.le.s32.totalorder 2, %s11
    // Predicated region
    $region45: #{conv_autoencoder_forward.11} parent=5 // pred_check
      %p793 = pneg %p792
    $region46: #{conv_autoencoder_forward.11} parent=5 // pred_check_branch
      %795 = sbr.rel (%p793) target = $region48
    $region47: #{conv_autoencoder_forward.11} parent=5 // pred_region
      %s796 = ssub.s32 %s11, 2
      // Predicated region
      $region49: #{conv_autoencoder_forward.11} parent=47 // pred_check
        %p797 = pneg %p171
      $region50: #{conv_autoencoder_forward.11} parent=47 // pred_check_branch
        %799 = sbr.rel (%p797) target = $region52
      $region51: #{conv_autoencoder_forward.11} parent=47 // pred_region
        %p800 = scmp.lt.s32.totalorder %s22, 1
        %s801 = scalar_select %p800, %s22, 1
        %p802 = scmp.lt.s32.totalorder %s23, 0
        %s803 = scalar_select %p802, %s23, 0
        %s804 = sadd.s32 %s803, %s801
        %s805 = scalar_lea.vmem %s5, %s804
      $region52: #{conv_autoencoder_forward.11} parent=47 // pred_fallthru
        _
    $region48: #{conv_autoencoder_forward.11} parent=5 // pred_fallthru
      _
  $region6: #{conv_autoencoder_forward.11} parent=0 // loop_footer
    %s15 = sadd.s32 1, %s11
  $region7: #{conv_autoencoder_forward.11} parent=0 // loop_footer_branch
    %10 = sbr.rel target = $region3
  $region8: #{conv_autoencoder_forward.11} parent=0 // loop_exit
    _

// kernel: conv_autoencoder_forward.12
$region0: #{conv_autoencoder_forward.12}
  #allocation0 [shape = 'u32[]', space=smem, size = 0x4, offset = 0x4, fixed_abs, tag = 'smem constant byte address 0x4 - core index']
  #allocation1 [shape = 'u32[72,128]{1,0:T(1,128)}', space=vmem, size = 0x9000, scoped, tag = 'internal scratch']
  #allocation2 [shape = 'f32[1,128]{1,0:T(1,128)}', space=vmem, size = 0x200, scoped, tag = 'scratch operand']
  %s0 = inlined_call_operand.vmem [shape: bf16[2,1,128], index: 0, kind: input, shape index: {}]
  %s1 = inlined_call_operand.vmem [shape: f32[2,1,128], index: 1, kind: input, shape index: {}]
  %s2 = inlined_call_operand.vmem [shape: bf16[256,512], index: 2, kind: input, shape index: {}]
  %s3 = inlined_call_operand.vmem [shape: f32[1,512], index: 3, kind: input, shape index: {}]
  %s4 = inlined_call_operand.vmem [shape: f32[1,512], index: 4, kind: input, shape index: {}]
  %s5 = inlined_call_operand.vmem [shape: bf16[2,1,512], index: 5, kind: output, shape index: {0}]
  %s6 = inlined_call_operand.vmem [shape: f32[2,1,1,512], index: 6, kind: output, shape index: {1}]
  %s7 = inlined_call_operand.vmem [shape: f32[2,1,1,512], index: 7, kind: output, shape index: {2}]
  %8 = xla_tuple %s5, %s6, %s7
  %s9 = sld [smem:[#allocation0]]
  $region69: #{conv_autoencoder_forward.12} parent=0
    _
  %s11 = ssub.s32 1, %s9
  %s12 = scalar_select 0, %s11, %s9
  loop: start=0, step=1, limit=4
  $region2: #{conv_autoencoder_forward.12} parent=0 // loop_pre_header
    _
  $region3: #{conv_autoencoder_forward.12} parent=0 // loop_header
    %s14 = sphi 0, %s18
    %p15 = scmp.ge.s32.totalorder %s14, 4
    %s21 = sphi 0, %s33
    %s22 = sphi 0, %s29
    %s23 = sphi 0, %s21
    %s24 = sphi 0, %s22
    %s25 = sphi 0, %s23
    %s26 = sphi 0, %s24
    %s38 = sphi 0, %s40
    %s41 = sphi 0, %s38
    %s42 = sphi 0, %s41
    %s58 = sphi 0, %s42
    %s64 = sphi 0, %s66
    %s67 = sphi 0, %s64
    %s68 = sphi 0, %s67
    %s84 = sphi 0, %s68
    %s88 = sphi 0, %s88
    %s90 = sphi 0, %s88
    %s91 = sphi 0, %s90
    %s105 = sphi 0, %s91
    %s109 = sphi 0, %s109
    %s111 = sphi 0, %s109
    %s112 = sphi 0, %s111
    %s126 = sphi 0, %s112
    %s130 = sphi 0, %s130
    %s132 = sphi 0, %s130
    %s133 = sphi 0, %s132
    %s147 = sphi 0, %s133
    %s155 = sphi 0, %s157
    %s158 = sphi 0, %s155
    %s159 = sphi 0, %s158
    %s175 = sphi 0, %s159
    %s183 = sphi 0, %s185
    %s186 = sphi 0, %s183
    %s187 = sphi 0, %s186
    %s203 = sphi 0, %s187
    %s211 = sphi 0, %s213
    %s214 = sphi 0, %s211
    %s215 = sphi 0, %s214
    %s231 = sphi 0, %s215
  $region4: #{conv_autoencoder_forward.12} parent=0 // loop_header_branch
    %17 = sbr.rel (%p15) target = $region8
  $region5: #{conv_autoencoder_forward.12} parent=0 // loop_body
    %s19 = ssub.s32 %s14, 1
    %s20 = ssub.s32 %s14, 2
    %s27 = sadd.s32 1, %s22
    %p28 = scmp.ge.s32.totalorder %s27, 1
    %s29 = scalar_select %p28, 0, %s27
    %s30 = sadd.s32 1, %s21
    %s31 = scalar_select %p28, %s30, %s21
    %p32 = scmp.ge.s32.totalorder %s31, 2
    %s33 = scalar_select %p32, 0, %s31
    %s34 = ssub.s32 %s21, %s33
    %s35 = ssub.s32 %s22, %s29
    %s36 = sor.u32 %s34, %s35
    %p37 = scmp.eq.s32.totalorder %s36, 0
    %s39 = sadd.s32 %s38, 1
    %s40 = scalar_select %p37, %s38, %s39
    %p43 = pneg %p37
    %p44 = scmp.eq.s32.totalorder %s14, 1
    %p45 = por %p43, %p44
    %p46 = scmp.ne.s32.totalorder %s38, %s41
    %p47 = scmp.eq.s32.totalorder %s14, 0
    %p48 = por %p46, %p47
    %p49 = scmp.ne.s32.totalorder %s38, %s41
    %p50 = scmp.eq.s32.totalorder %s19, 1
    %p51 = por %p49, %p50
    %p52 = scmp.ne.s32.totalorder %s41, %s42
    %p53 = scmp.eq.s32.totalorder %s19, 0
    %p54 = por %p52, %p53
    %p55 = scmp.ne.s32.totalorder %s41, %s42
    %p56 = scmp.eq.s32.totalorder %s20, 1
    %p57 = por %p55, %p56
    %p59 = scmp.ne.s32.totalorder %s42, %s58
    %p60 = scmp.eq.s32.totalorder %s20, 0
    %p61 = por %p59, %p60
    %s62 = ssub.s32 %s21, %s33
    %p63 = scmp.eq.s32.totalorder %s62, 0
    %s65 = sadd.s32 %s64, 1
    %s66 = scalar_select %p63, %s64, %s65
    %p69 = pneg %p63
    %p70 = scmp.eq.s32.totalorder %s14, 1
    %p71 = por %p69, %p70
    %p72 = scmp.ne.s32.totalorder %s64, %s67
    %p73 = scmp.eq.s32.totalorder %s14, 0
    %p74 = por %p72, %p73
    %p75 = scmp.ne.s32.totalorder %s64, %s67
    %p76 = scmp.eq.s32.totalorder %s19, 1
    %p77 = por %p75, %p76
    %p78 = scmp.ne.s32.totalorder %s67, %s68
    %p79 = scmp.eq.s32.totalorder %s19, 0
    %p80 = por %p78, %p79
    %p81 = scmp.ne.s32.totalorder %s67, %s68
    %p82 = scmp.eq.s32.totalorder %s20, 1
    %p83 = por %p81, %p82
    %p85 = scmp.ne.s32.totalorder %s68, %s84
    %p86 = scmp.eq.s32.totalorder %s20, 0
    %p87 = por %p85, %p86
    %s89 = sadd.s32 %s88, 1
    %p92 = scmp.eq.s32.totalorder %s14, 1
    %p93 = scmp.ne.s32.totalorder %s88, %s90
    %p94 = scmp.eq.s32.totalorder %s14, 0
    %p95 = por %p93, %p94
    %p96 = scmp.ne.s32.totalorder %s88, %s90
    %p97 = scmp.eq.s32.totalorder %s19, 1
    %p98 = por %p96, %p97
    %p99 = scmp.ne.s32.totalorder %s90, %s91
    %p100 = scmp.eq.s32.totalorder %s19, 0
    %p101 = por %p99, %p100
    %p102 = scmp.ne.s32.totalorder %s90, %s91
    %p103 = scmp.eq.s32.totalorder %s20, 1
    %p104 = por %p102, %p103
    %p106 = scmp.ne.s32.totalorder %s91, %s105
    %p107 = scmp.eq.s32.totalorder %s20, 0
    %p108 = por %p106, %p107
    %s110 = sadd.s32 %s109, 1
    %p113 = scmp.eq.s32.totalorder %s14, 1
    %p114 = scmp.ne.s32.totalorder %s109, %s111
    %p115 = scmp.eq.s32.totalorder %s14, 0
    %p116 = por %p114, %p115
    %p117 = scmp.ne.s32.totalorder %s109, %s111
    %p118 = scmp.eq.s32.totalorder %s19, 1
    %p119 = por %p117, %p118
    %p120 = scmp.ne.s32.totalorder %s111, %s112
    %p121 = scmp.eq.s32.totalorder %s19, 0
    %p122 = por %p120, %p121
    %p123 = scmp.ne.s32.totalorder %s111, %s112
    %p124 = scmp.eq.s32.totalorder %s20, 1
    %p125 = por %p123, %p124
    %p127 = scmp.ne.s32.totalorder %s112, %s126
    %p128 = scmp.eq.s32.totalorder %s20, 0
    %p129 = por %p127, %p128
    %s131 = sadd.s32 %s130, 1
    %p134 = scmp.eq.s32.totalorder %s14, 1
    %p135 = scmp.ne.s32.totalorder %s130, %s132
    %p136 = scmp.eq.s32.totalorder %s14, 0
    %p137 = por %p135, %p136
    %p138 = scmp.ne.s32.totalorder %s130, %s132
    %p139 = scmp.eq.s32.totalorder %s19, 1
    %p140 = por %p138, %p139
    %p141 = scmp.ne.s32.totalorder %s132, %s133
    %p142 = scmp.eq.s32.totalorder %s19, 0
    %p143 = por %p141, %p142
    %p144 = scmp.ne.s32.totalorder %s132, %s133
    %p145 = scmp.eq.s32.totalorder %s20, 1
    %p146 = por %p144, %p145
    %p148 = scmp.ne.s32.totalorder %s133, %s147
    %p149 = scmp.eq.s32.totalorder %s20, 0
    %p150 = por %p148, %p149
    %s151 = ssub.s32 %s21, %s33
    %s152 = ssub.s32 %s22, %s29
    %s153 = sor.u32 %s151, %s152
    %p154 = scmp.eq.s32.totalorder %s153, 0
    %s156 = sadd.s32 %s155, 1
    %s157 = scalar_select %p154, %s155, %s156
    %p160 = pneg %p154
    %p161 = scmp.eq.s32.totalorder %s14, 1
    %p162 = por %p160, %p161
    %p163 = scmp.ne.s32.totalorder %s155, %s158
    %p164 = scmp.eq.s32.totalorder %s14, 0
    %p165 = por %p163, %p164
    %p166 = scmp.ne.s32.totalorder %s155, %s158
    %p167 = scmp.eq.s32.totalorder %s19, 1
    %p168 = por %p166, %p167
    %p169 = scmp.ne.s32.totalorder %s158, %s159
    %p170 = scmp.eq.s32.totalorder %s19, 0
    %p171 = por %p169, %p170
    %p172 = scmp.ne.s32.totalorder %s158, %s159
    %p173 = scmp.eq.s32.totalorder %s20, 1
    %p174 = por %p172, %p173
    %p176 = scmp.ne.s32.totalorder %s159, %s175
    %p177 = scmp.eq.s32.totalorder %s20, 0
    %p178 = por %p176, %p177
    %s179 = ssub.s32 %s21, %s33
    %s180 = ssub.s32 %s22, %s29
    %s181 = sor.u32 %s179, %s180
    %p182 = scmp.eq.s32.totalorder %s181, 0
    %s184 = sadd.s32 %s183, 1
    %s185 = scalar_select %p182, %s183, %s184
    %p188 = pneg %p182
    %p189 = scmp.eq.s32.totalorder %s14, 1
    %p190 = por %p188, %p189
    %p191 = scmp.ne.s32.totalorder %s183, %s186
    %p192 = scmp.eq.s32.totalorder %s14, 0
    %p193 = por %p191, %p192
    %p194 = scmp.ne.s32.totalorder %s183, %s186
    %p195 = scmp.eq.s32.totalorder %s19, 1
    %p196 = por %p194, %p195
    %p197 = scmp.ne.s32.totalorder %s186, %s187
    %p198 = scmp.eq.s32.totalorder %s19, 0
    %p199 = por %p197, %p198
    %p200 = scmp.ne.s32.totalorder %s186, %s187
    %p201 = scmp.eq.s32.totalorder %s20, 1
    %p202 = por %p200, %p201
    %p204 = scmp.ne.s32.totalorder %s187, %s203
    %p205 = scmp.eq.s32.totalorder %s20, 0
    %p206 = por %p204, %p205
    %s207 = ssub.s32 %s21, %s33
    %s208 = ssub.s32 %s22, %s29
    %s209 = sor.u32 %s207, %s208
    %p210 = scmp.eq.s32.totalorder %s209, 0
    %s212 = sadd.s32 %s211, 1
    %s213 = scalar_select %p210, %s211, %s212
    %p216 = pneg %p210
    %p217 = scmp.eq.s32.totalorder %s14, 1
    %p218 = por %p216, %p217
    %p219 = scmp.ne.s32.totalorder %s211, %s214
    %p220 = scmp.eq.s32.totalorder %s14, 0
    %p221 = por %p219, %p220
    %p222 = scmp.ne.s32.totalorder %s211, %s214
    %p223 = scmp.eq.s32.totalorder %s19, 1
    %p224 = por %p222, %p223
    %p225 = scmp.ne.s32.totalorder %s214, %s215
    %p226 = scmp.eq.s32.totalorder %s19, 0
    %p227 = por %p225, %p226
    %p228 = scmp.ne.s32.totalorder %s214, %s215
    %p229 = scmp.eq.s32.totalorder %s20, 1
    %p230 = por %p228, %p229
    %p232 = scmp.ne.s32.totalorder %s215, %s231
    %p233 = scmp.eq.s32.totalorder %s20, 0
    %p234 = por %p232, %p233
    %p235 = scmp.le.s32.totalorder 1, %s14
    %p236 = scmp.lt.s32.totalorder %s14, 3
    %p237 = pnand %p235, %p236
    %p238 = pneg %p237
    // Predicated region
    $region9: #{conv_autoencoder_forward.12} parent=5 // pred_check
      _
    $region10: #{conv_autoencoder_forward.12} parent=5 // pred_check_branch
      %240 = sbr.rel (%p237) target = $region12
    $region11: #{conv_autoencoder_forward.12} parent=5 // pred_region
      %s241 = ssub.s32 %s14, 1
      // Predicated region
      $region13: #{conv_autoencoder_forward.12} parent=11 // pred_check
        %p242 = pneg %p101
      $region14: #{conv_autoencoder_forward.12} parent=11 // pred_check_branch
        %244 = sbr.rel (%p242) target = $region16
      $region15: #{conv_autoencoder_forward.12} parent=11 // pred_region
        _
      $region16: #{conv_autoencoder_forward.12} parent=11 // pred_fallthru
        _
      // Predicated region
      $region17: #{conv_autoencoder_forward.12} parent=11 // pred_check
        %p245 = pneg %p122
      $region18: #{conv_autoencoder_forward.12} parent=11 // pred_check_branch
        %247 = sbr.rel (%p245) target = $region20
      $region19: #{conv_autoencoder_forward.12} parent=11 // pred_region
        _
      $region20: #{conv_autoencoder_forward.12} parent=11 // pred_fallthru
        _
      // Predicated region
      $region21: #{conv_autoencoder_forward.12} parent=11 // pred_check
        %p248 = pneg %p143
      $region22: #{conv_autoencoder_forward.12} parent=11 // pred_check_branch
        %250 = sbr.rel (%p248) target = $region24
      $region23: #{conv_autoencoder_forward.12} parent=11 // pred_region
        _
      $region24: #{conv_autoencoder_forward.12} parent=11 // pred_fallthru
        _
    $region12: #{conv_autoencoder_forward.12} parent=5 // pred_fallthru
      _
    %p251 = scmp.lt.s32.totalorder %s14, 2
    // Predicated region
    $region25: #{conv_autoencoder_forward.12} parent=5 // pred_check
      %p252 = pneg %p251
    $region26: #{conv_autoencoder_forward.12} parent=5 // pred_check_branch
      %254 = sbr.rel (%p252) target = $region28
    $region27: #{conv_autoencoder_forward.12} parent=5 // pred_region
      // Predicated region
      $region29: #{conv_autoencoder_forward.12} parent=27 // pred_check
        %p255 = pneg %p48
      $region30: #{conv_autoencoder_forward.12} parent=27 // pred_check_branch
        %257 = sbr.rel (%p255) target = $region32
      $region31: #{conv_autoencoder_forward.12} parent=27 // pred_region
        %p258 = scmp.lt.s32.totalorder %s21, 1
        %s259 = scalar_select %p258, %s21, 1
        %p260 = scmp.lt.s32.totalorder %s22, 0
        %s261 = scalar_select %p260, %s22, 0
        %s262 = sadd.s32 %s261, %s259
        %s263 = scalar_lea.vmem %s0, %s262
      $region32: #{conv_autoencoder_forward.12} parent=27 // pred_fallthru
        _
      // Predicated region
      $region33: #{conv_autoencoder_forward.12} parent=27 // pred_check
        %p264 = pneg %p74
      $region34: #{conv_autoencoder_forward.12} parent=27 // pred_check_branch
        %266 = sbr.rel (%p264) target = $region36
      $region35: #{conv_autoencoder_forward.12} parent=27 // pred_region
        %p267 = scmp.lt.s32.totalorder %s21, 1
        %s268 = scalar_select %p267, %s21, 1
        %s269 = scalar_lea.vmem %s1, %s268
      $region36: #{conv_autoencoder_forward.12} parent=27 // pred_fallthru
        _
    $region28: #{conv_autoencoder_forward.12} parent=5 // pred_fallthru
      _
    %p270 = scmp.le.s32.totalorder 1, %s14
    %p271 = scmp.lt.s32.totalorder %s14, 3
    %p272 = pnand %p270, %p271
    %p273 = pneg %p272
    // Predicated region
    $region37: #{conv_autoencoder_forward.12} parent=5 // pred_check
      _
    $region38: #{conv_autoencoder_forward.12} parent=5 // pred_check_branch
      %275 = sbr.rel (%p272) target = $region40
    $region39: #{conv_autoencoder_forward.12} parent=5 // pred_region
      %s276 = ssub.s32 %s14, 1
      %p277 = scmp.lt.s32.totalorder %s23, 1
      %s278 = scalar_select %p277, %s23, 1
      %p279 = scmp.lt.s32.totalorder %s24, 0
      %s280 = scalar_select %p279, %s24, 0
      %s281 = sadd.s32 %s280, %s278
      %s282 = scalar_lea.vmem %s0, %s281
      %p283 = pneg %p54
      %p284 = pneg %p51
      %p285 = scmp.lt.s32.totalorder %s23, 1
      %s286 = scalar_select %p285, %s23, 1
      %s287 = scalar_lea.vmem %s1, %s286
      %p288 = pneg %p80
      %p289 = pneg %p77
      %p290 = pneg %p101
      %p291 = pneg %p98
      %p292 = pneg %p122
      %p293 = pneg %p119
      %p294 = pneg %p143
      %p295 = pneg %p140
      %p296 = pneg %p171
      %p297 = pneg %p168
      %p298 = scmp.lt.s32.totalorder %s23, 1
      %s299 = scalar_select %p298, %s23, 1
      %p300 = scmp.lt.s32.totalorder %s24, 0
      %s301 = scalar_select %p300, %s24, 0
      %s302 = smul.addr %s301, 4
      %s303 = smul.addr %s299, 4
      %s304 = sadd.s32 %s302, %s303
      %s305 = scalar_lea.vmem %s5, %s304
      %p306 = pneg %p199
      %p307 = pneg %p196
      %p308 = scmp.lt.s32.totalorder %s23, 1
      %s309 = scalar_select %p308, %s23, 1
      %p310 = scmp.lt.s32.totalorder %s24, 0
      %s311 = scalar_select %p310, %s24, 0
      %s312 = smul.addr %s311, 4
      %s313 = smul.addr %s309, 4
      %s314 = sadd.s32 %s312, %s313
      %s315 = scalar_lea.vmem %s6, %s314
      %p316 = pneg %p227
      %p317 = pneg %p224
      %p318 = scmp.lt.s32.totalorder %s23, 1
      %s319 = scalar_select %p318, %s23, 1
      %p320 = scmp.lt.s32.totalorder %s24, 0
      %s321 = scalar_select %p320, %s24, 0
      %s322 = smul.addr %s321, 4
      %s323 = smul.addr %s319, 4
      %s324 = sadd.s32 %s322, %s323
      %s325 = scalar_lea.vmem %s7, %s324
      %p326 = scmp.lt.s32.totalorder %s23, 1
      %s327 = scalar_select %p326, %s23, 1
      %p328 = scmp.lt.s32.totalorder %s24, 0
      %s329 = scalar_select %p328, %s24, 0
      %s330 = sadd.s32 %s329, %s327
      %s331 = scalar_lea.vmem %s0, %s330
      %p332 = scmp.lt.s32.totalorder %s23, 1
      %s333 = scalar_select %p332, %s23, 1
      %s334 = scalar_lea.vmem %s1, %s333
      %p335 = scmp.lt.s32.totalorder %s23, 1
      %s336 = scalar_select %p335, %s23, 1
      %p337 = scmp.lt.s32.totalorder %s24, 0
      %s338 = scalar_select %p337, %s24, 0
      %s339 = smul.addr %s338, 4
      %s340 = smul.addr %s336, 4
      %s341 = sadd.s32 %s339, %s340
      %s342 = scalar_lea.vmem %s5, %s341
      %p343 = scmp.lt.s32.totalorder %s23, 1
      %s344 = scalar_select %p343, %s23, 1
      %p345 = scmp.lt.s32.totalorder %s24, 0
      %s346 = scalar_select %p345, %s24, 0
      %s347 = smul.addr %s346, 4
      %s348 = smul.addr %s344, 4
      %s349 = sadd.s32 %s347, %s348
      %s350 = scalar_lea.vmem %s6, %s349
      %p351 = scmp.lt.s32.totalorder %s23, 1
      %s352 = scalar_select %p351, %s23, 1
      %p353 = scmp.lt.s32.totalorder %s24, 0
      %s354 = scalar_select %p353, %s24, 0
      %s355 = smul.addr %s354, 4
      %s356 = smul.addr %s352, 4
      %s357 = sadd.s32 %s355, %s356
      %s358 = scalar_lea.vmem %s7, %s357
      %v359 = vld [vmem:[%s331] sm:$0x1]
      %s360 = scalar_lea.vmem %s334, %s24
      %v361 = vld [vmem:[%s360] sm:$0x1]
      %362 = vst [vmem:[#allocation2] sm:$0x1] %v361
      %v363 = vld [vmem:[#allocation2] sm:$0x1]
      %v364 = vpack.c.bf16 %v363, %v363
      %v365 = vld [vmem:[%s2] sm:$0xff]
      %v366 = vld [vmem:[%s2 + $0x8] sm:$0xff]
      %v367 = vld [vmem:[%s2 + $0x10] sm:$0xff]
      %v368 = vld [vmem:[%s2 + $0x18] sm:$0xff]
      %v369 = vld [vmem:[%s2 + $0x20] sm:$0xff]
      %v370 = vld [vmem:[%s2 + $0x28] sm:$0xff]
      %v371 = vld [vmem:[%s2 + $0x30] sm:$0xff]
      %v372 = vld [vmem:[%s2 + $0x38] sm:$0xff]
      %v373 = vld [vmem:[%s2 + $0x40] sm:$0xff]
      %v374 = vld [vmem:[%s2 + $0x48] sm:$0xff]
      %v375 = vld [vmem:[%s2 + $0x50] sm:$0xff]
      %v376 = vld [vmem:[%s2 + $0x58] sm:$0xff]
      %v377 = vld [vmem:[%s2 + $0x60] sm:$0xff]
      %v378 = vld [vmem:[%s2 + $0x68] sm:$0xff]
      %v379 = vld [vmem:[%s2 + $0x70] sm:$0xff]
      %v380 = vld [vmem:[%s2 + $0x78] sm:$0xff]
      %v381 = vld [vmem:[%s2 + $0x80] sm:$0xff]
      %v382 = vld [vmem:[%s2 + $0x88] sm:$0xff]
      %v383 = vld [vmem:[%s2 + $0x90] sm:$0xff]
      %v384 = vld [vmem:[%s2 + $0x98] sm:$0xff]
      %v385 = vld [vmem:[%s2 + $0xa0] sm:$0xff]
      %v386 = vld [vmem:[%s2 + $0xa8] sm:$0xff]
      %v387 = vld [vmem:[%s2 + $0xb0] sm:$0xff]
      %v388 = vld [vmem:[%s2 + $0xb8] sm:$0xff]
      %v389 = vld [vmem:[%s2 + $0xc0] sm:$0xff]
      %v390 = vld [vmem:[%s2 + $0xc8] sm:$0xff]
      %v391 = vld [vmem:[%s2 + $0xd0] sm:$0xff]
      %v392 = vld [vmem:[%s2 + $0xd8] sm:$0xff]
      %v393 = vld [vmem:[%s2 + $0xe0] sm:$0xff]
      %v394 = vld [vmem:[%s2 + $0xe8] sm:$0xff]
      %v395 = vld [vmem:[%s2 + $0xf0] sm:$0xff]
      %v396 = vld [vmem:[%s2 + $0xf8] sm:$0xff]
      %v397 = vld [vmem:[%s2 + $0x100] sm:$0xff]
      %v398 = vld [vmem:[%s2 + $0x108] sm:$0xff]
      %v399 = vld [vmem:[%s2 + $0x110] sm:$0xff]
      %v400 = vld [vmem:[%s2 + $0x118] sm:$0xff]
      %v401 = vld [vmem:[%s2 + $0x120] sm:$0xff]
      %v402 = vld [vmem:[%s2 + $0x128] sm:$0xff]
      %v403 = vld [vmem:[%s2 + $0x130] sm:$0xff]
      %v404 = vld [vmem:[%s2 + $0x138] sm:$0xff]
      %v405 = vld [vmem:[%s2 + $0x140] sm:$0xff]
      %v406 = vld [vmem:[%s2 + $0x148] sm:$0xff]
      %v407 = vld [vmem:[%s2 + $0x150] sm:$0xff]
      %v408 = vld [vmem:[%s2 + $0x158] sm:$0xff]
      %v409 = vld [vmem:[%s2 + $0x160] sm:$0xff]
      %v410 = vld [vmem:[%s2 + $0x168] sm:$0xff]
      %v411 = vld [vmem:[%s2 + $0x170] sm:$0xff]
      %v412 = vld [vmem:[%s2 + $0x178] sm:$0xff]
      %v413 = vld [vmem:[%s2 + $0x180] sm:$0xff]
      %v414 = vld [vmem:[%s2 + $0x188] sm:$0xff]
      %v415 = vld [vmem:[%s2 + $0x190] sm:$0xff]
      %v416 = vld [vmem:[%s2 + $0x198] sm:$0xff]
      %v417 = vld [vmem:[%s2 + $0x1a0] sm:$0xff]
      %v418 = vld [vmem:[%s2 + $0x1a8] sm:$0xff]
      %v419 = vld [vmem:[%s2 + $0x1b0] sm:$0xff]
      %v420 = vld [vmem:[%s2 + $0x1b8] sm:$0xff]
      %v421 = vld [vmem:[%s2 + $0x1c0] sm:$0xff]
      %v422 = vld [vmem:[%s2 + $0x1c8] sm:$0xff]
      %v423 = vld [vmem:[%s2 + $0x1d0] sm:$0xff]
      %v424 = vld [vmem:[%s2 + $0x1d8] sm:$0xff]
      %v425 = vld [vmem:[%s2 + $0x1e0] sm:$0xff]
      %v426 = vld [vmem:[%s2 + $0x1e8] sm:$0xff]
      %v427 = vld [vmem:[%s2 + $0x1f0] sm:$0xff]
      %v428 = vld [vmem:[%s2 + $0x1f8] sm:$0xff]
      %v429 = vld [vmem:[%s3] sm:$0xf]
      %v494 = vunpack.c.l.b16 %v365
      %v495 = vunpack.c.h.b16 %v365
      %v496 = vunpack.c.l.b16 %v366
      %v497 = vunpack.c.h.b16 %v366
      %v498 = vunpack.c.l.b16 %v367
      %v499 = vunpack.c.h.b16 %v367
      %v500 = vunpack.c.l.b16 %v368
      %v501 = vunpack.c.h.b16 %v368
      %v502 = vunpack.c.l.b16 %v369
      %v503 = vunpack.c.h.b16 %v369
      %v504 = vunpack.c.l.b16 %v370
      %v505 = vunpack.c.h.b16 %v370
      %v506 = vunpack.c.l.b16 %v371
      %v507 = vunpack.c.h.b16 %v371
      %v508 = vunpack.c.l.b16 %v372
      %v509 = vunpack.c.h.b16 %v372
      %v510 = vunpack.c.l.b16 %v373
      %v511 = vunpack.c.h.b16 %v373
      %v512 = vunpack.c.l.b16 %v374
      %v513 = vunpack.c.h.b16 %v374
      %v514 = vunpack.c.l.b16 %v375
      %v515 = vunpack.c.h.b16 %v375
      %v516 = vunpack.c.l.b16 %v376
      %v517 = vunpack.c.h.b16 %v376
      %v518 = vunpack.c.l.b16 %v377
      %v519 = vunpack.c.h.b16 %v377
      %v520 = vunpack.c.l.b16 %v378
      %v521 = vunpack.c.h.b16 %v378
      %v522 = vunpack.c.l.b16 %v379
      %v523 = vunpack.c.h.b16 %v379
      %v524 = vunpack.c.l.b16 %v380
      %v525 = vunpack.c.h.b16 %v380
      %v526 = vunpack.c.l.b16 %v381
      %v527 = vunpack.c.h.b16 %v381
      %v528 = vunpack.c.l.b16 %v382
      %v529 = vunpack.c.h.b16 %v382
      %v530 = vunpack.c.l.b16 %v383
      %v531 = vunpack.c.h.b16 %v383
      %v532 = vunpack.c.l.b16 %v384
      %v533 = vunpack.c.h.b16 %v384
      %v534 = vunpack.c.l.b16 %v385
      %v535 = vunpack.c.h.b16 %v385
      %v536 = vunpack.c.l.b16 %v386
      %v537 = vunpack.c.h.b16 %v386
      %v538 = vunpack.c.l.b16 %v387
      %v539 = vunpack.c.h.b16 %v387
      %v540 = vunpack.c.l.b16 %v388
      %v541 = vunpack.c.h.b16 %v388
      %v542 = vunpack.c.l.b16 %v389
      %v543 = vunpack.c.h.b16 %v389
      %v544 = vunpack.c.l.b16 %v390
      %v545 = vunpack.c.h.b16 %v390
      %v546 = vunpack.c.l.b16 %v391
      %v547 = vunpack.c.h.b16 %v391
      %v548 = vunpack.c.l.b16 %v392
      %v549 = vunpack.c.h.b16 %v392
      %v550 = vunpack.c.l.b16 %v393
      %v551 = vunpack.c.h.b16 %v393
      %v552 = vunpack.c.l.b16 %v394
      %v553 = vunpack.c.h.b16 %v394
      %v554 = vunpack.c.l.b16 %v395
      %v555 = vunpack.c.h.b16 %v395
      %v556 = vunpack.c.l.b16 %v396
      %v557 = vunpack.c.h.b16 %v396
      %v558 = vunpack.c.l.b16 %v397
      %v559 = vunpack.c.h.b16 %v397
      %v560 = vunpack.c.l.b16 %v398
      %v561 = vunpack.c.h.b16 %v398
      %v562 = vunpack.c.l.b16 %v399
      %v563 = vunpack.c.h.b16 %v399
      %v564 = vunpack.c.l.b16 %v400
      %v565 = vunpack.c.h.b16 %v400
      %v566 = vunpack.c.l.b16 %v401
      %v567 = vunpack.c.h.b16 %v401
      %v568 = vunpack.c.l.b16 %v402
      %v569 = vunpack.c.h.b16 %v402
      %v570 = vunpack.c.l.b16 %v403
      %v571 = vunpack.c.h.b16 %v403
      %v572 = vunpack.c.l.b16 %v404
      %v573 = vunpack.c.h.b16 %v404
      %v574 = vunpack.c.l.b16 %v405
      %v575 = vunpack.c.h.b16 %v405
      %v576 = vunpack.c.l.b16 %v406
      %v577 = vunpack.c.h.b16 %v406
      %v578 = vunpack.c.l.b16 %v407
      %v579 = vunpack.c.h.b16 %v407
      %v580 = vunpack.c.l.b16 %v408
      %v581 = vunpack.c.h.b16 %v408
      %v582 = vunpack.c.l.b16 %v409
      %v583 = vunpack.c.h.b16 %v409
      %v584 = vunpack.c.l.b16 %v410
      %v585 = vunpack.c.h.b16 %v410
      %v586 = vunpack.c.l.b16 %v411
      %v587 = vunpack.c.h.b16 %v411
      %v588 = vunpack.c.l.b16 %v412
      %v589 = vunpack.c.h.b16 %v412
      %v590 = vunpack.c.l.b16 %v413
      %v591 = vunpack.c.h.b16 %v413
      %v592 = vunpack.c.l.b16 %v414
      %v593 = vunpack.c.h.b16 %v414
      %v594 = vunpack.c.l.b16 %v415
      %v595 = vunpack.c.h.b16 %v415
      %v596 = vunpack.c.l.b16 %v416
      %v597 = vunpack.c.h.b16 %v416
      %v598 = vunpack.c.l.b16 %v417
      %v599 = vunpack.c.h.b16 %v417
      %v600 = vunpack.c.l.b16 %v418
      %v601 = vunpack.c.h.b16 %v418
      %v602 = vunpack.c.l.b16 %v419
      %v603 = vunpack.c.h.b16 %v419
      %v604 = vunpack.c.l.b16 %v420
      %v605 = vunpack.c.h.b16 %v420
      %v606 = vunpack.c.l.b16 %v421
      %v607 = vunpack.c.h.b16 %v421
      %v608 = vunpack.c.l.b16 %v422
      %v609 = vunpack.c.h.b16 %v422
      %v610 = vunpack.c.l.b16 %v423
      %v611 = vunpack.c.h.b16 %v423
      %v612 = vunpack.c.l.b16 %v424
      %v613 = vunpack.c.h.b16 %v424
      %v614 = vunpack.c.l.b16 %v425
      %v615 = vunpack.c.h.b16 %v425
      %v616 = vunpack.c.l.b16 %v426
      %v617 = vunpack.c.h.b16 %v426
      %v618 = vunpack.c.l.b16 %v427
      %v619 = vunpack.c.h.b16 %v427
      %v620 = vunpack.c.l.b16 %v428
      %v621 = vunpack.c.h.b16 %v428
      %v622 = vpack.c.b16 %v498, %v494
      %v623 = vpack.c.b16 %v499, %v495
      %v624 = vpack.c.b16 %v500, %v496
      %v625 = vpack.c.b16 %v501, %v497
      %v626 = vpack.c.b16 %v506, %v502
      %v627 = vpack.c.b16 %v507, %v503
      %v628 = vpack.c.b16 %v508, %v504
      %v629 = vpack.c.b16 %v509, %v505
      %v630 = vpack.c.b16 %v514, %v510
      %v631 = vpack.c.b16 %v515, %v511
      %v632 = vpack.c.b16 %v516, %v512
      %v633 = vpack.c.b16 %v517, %v513
      %v634 = vpack.c.b16 %v522, %v518
      %v635 = vpack.c.b16 %v523, %v519
      %v636 = vpack.c.b16 %v524, %v520
      %v637 = vpack.c.b16 %v525, %v521
      %v638 = vpack.c.b16 %v530, %v526
      %v639 = vpack.c.b16 %v531, %v527
      %v640 = vpack.c.b16 %v532, %v528
      %v641 = vpack.c.b16 %v533, %v529
      %v642 = vpack.c.b16 %v538, %v534
      %v643 = vpack.c.b16 %v539, %v535
      %v644 = vpack.c.b16 %v540, %v536
      %v645 = vpack.c.b16 %v541, %v537
      %v646 = vpack.c.b16 %v546, %v542
      %v647 = vpack.c.b16 %v547, %v543
      %v648 = vpack.c.b16 %v548, %v544
      %v649 = vpack.c.b16 %v549, %v545
      %v650 = vpack.c.b16 %v554, %v550
      %v651 = vpack.c.b16 %v555, %v551
      %v652 = vpack.c.b16 %v556, %v552
      %v653 = vpack.c.b16 %v557, %v553
      %v654 = vpack.c.b16 %v562, %v558
      %v655 = vpack.c.b16 %v563, %v559
      %v656 = vpack.c.b16 %v564, %v560
      %v657 = vpack.c.b16 %v565, %v561
      %v658 = vpack.c.b16 %v570, %v566
      %v659 = vpack.c.b16 %v571, %v567
      %v660 = vpack.c.b16 %v572, %v568
      %v661 = vpack.c.b16 %v573, %v569
      %v662 = vpack.c.b16 %v578, %v574
      %v663 = vpack.c.b16 %v579, %v575
      %v664 = vpack.c.b16 %v580, %v576
      %v665 = vpack.c.b16 %v581, %v577
      %v666 = vpack.c.b16 %v586, %v582
      %v667 = vpack.c.b16 %v587, %v583
      %v668 = vpack.c.b16 %v588, %v584
      %v669 = vpack.c.b16 %v589, %v585
      %v670 = vpack.c.b16 %v594, %v590
      %v671 = vpack.c.b16 %v595, %v591
      %v672 = vpack.c.b16 %v596, %v592
      %v673 = vpack.c.b16 %v597, %v593
      %v674 = vpack.c.b16 %v602, %v598
      %v675 = vpack.c.b16 %v603, %v599
      %v676 = vpack.c.b16 %v604, %v600
      %v677 = vpack.c.b16 %v605, %v601
      %v678 = vpack.c.b16 %v610, %v606
      %v679 = vpack.c.b16 %v611, %v607
      %v680 = vpack.c.b16 %v612, %v608
      %v681 = vpack.c.b16 %v613, %v609
      %v682 = vpack.c.b16 %v618, %v614
      %v683 = vpack.c.b16 %v619, %v615
      %v684 = vpack.c.b16 %v620, %v616
      %v685 = vpack.c.b16 %v621, %v617
      %v751 = vperm.slane %v429, 0
      %v752 = vperm.slane %v429, 1
      %v753 = vperm.slane %v429, 2
      %v754 = vperm.slane %v429, 3
      %759 = vmatpush.bf16.msra.mxu0 %v650
      %760 = vmatpush.bf16.msra.mxu0 %v646
      %761 = vmatpush.bf16.msra.mxu0 %v642
      %762 = vmatpush.bf16.msra.mxu0 %v638
      %763 = vmatpush.bf16.msra.mxu0 %v634
      %764 = vmatpush.bf16.msra.mxu0 %v630
      %765 = vmatpush.bf16.msra.mxu0 %v626
      %766 = vmatpush.bf16.msra.mxu0 %v622
      %767 = vmatmul.bf16.gmra.mxu0 %v359
      %v768 = vpop.f32.mrf.mxu0
      %v769 = vadd.f32 %v751, %v768
      %v770 = vpop.f32.mrf.mxu0
      %771 = vdwg.mxu0
      %772 = vmatpush.bf16.msra.mxu0 %v682
      %773 = vmatpush.bf16.msra.mxu0 %v678
      %774 = vmatpush.bf16.msra.mxu0 %v674
      %775 = vmatpush.bf16.msra.mxu0 %v670
      %776 = vmatpush.bf16.msra.mxu0 %v666
      %777 = vmatpush.bf16.msra.mxu0 %v662
      %778 = vmatpush.bf16.msra.mxu0 %v658
      %779 = vmatpush.bf16.msra.mxu0 %v654
      %780 = vmatmul.bf16.gmra.mxu0 %v364
      %v781 = vpop.f32.mrf.mxu0
      %v782 = vadd.f32 %v769, %v781
      %v783 = vpop.f32.mrf.mxu0
      %784 = vdwg.mxu0
      %785 = vmatpush.bf16.msra.mxu0 %v651
      %786 = vmatpush.bf16.msra.mxu0 %v647
      %787 = vmatpush.bf16.msra.mxu0 %v643
      %788 = vmatpush.bf16.msra.mxu0 %v639
      %789 = vmatpush.bf16.msra.mxu0 %v635
      %790 = vmatpush.bf16.msra.mxu0 %v631
      %791 = vmatpush.bf16.msra.mxu0 %v627
      %792 = vmatpush.bf16.msra.mxu0 %v623
      %793 = vmatmul.bf16.gmra.mxu0 %v359
      %v794 = vpop.f32.mrf.mxu0
      %v795 = vadd.f32 %v752, %v794
      %v796 = vpop.f32.mrf.mxu0
      %797 = vdwg.mxu0
      %798 = vmatpush.bf16.msra.mxu0 %v683
      %799 = vmatpush.bf16.msra.mxu0 %v679
      %800 = vmatpush.bf16.msra.mxu0 %v675
      %801 = vmatpush.bf16.msra.mxu0 %v671
      %802 = vmatpush.bf16.msra.mxu0 %v667
      %803 = vmatpush.bf16.msra.mxu0 %v663
      %804 = vmatpush.bf16.msra.mxu0 %v659
      %805 = vmatpush.bf16.msra.mxu0 %v655
      %806 = vmatmul.bf16.gmra.mxu0 %v364
      %v807 = vpop.f32.mrf.mxu0
      %v808 = vadd.f32 %v795, %v807
      %v809 = vpop.f32.mrf.mxu0
      %810 = vdwg.mxu0
      %811 = vmatpush.bf16.msra.mxu0 %v652
      %812 = vmatpush.bf16.msra.mxu0 %v648
      %813 = vmatpush.bf16.msra.mxu0 %v644
      %814 = vmatpush.bf16.msra.mxu0 %v640
      %815 = vmatpush.bf16.msra.mxu0 %v636
      %816 = vmatpush.bf16.msra.mxu0 %v632
      %817 = vmatpush.bf16.msra.mxu0 %v628
      %818 = vmatpush.bf16.msra.mxu0 %v624
      %819 = vmatmul.bf16.gmra.mxu0 %v359
      %v820 = vpop.f32.mrf.mxu0
      %v821 = vadd.f32 %v753, %v820
      %v822 = vpop.f32.mrf.mxu0
      %823 = vdwg.mxu0
      %824 = vmatpush.bf16.msra.mxu0 %v684
      %825 = vmatpush.bf16.msra.mxu0 %v680
      %826 = vmatpush.bf16.msra.mxu0 %v676
      %827 = vmatpush.bf16.msra.mxu0 %v672
      %828 = vmatpush.bf16.msra.mxu0 %v668
      %829 = vmatpush.bf16.msra.mxu0 %v664
      %830 = vmatpush.bf16.msra.mxu0 %v660
      %831 = vmatpush.bf16.msra.mxu0 %v656
      %832 = vmatmul.bf16.gmra.mxu0 %v364
      %v833 = vpop.f32.mrf.mxu0
      %v834 = vadd.f32 %v821, %v833
      %v835 = vpop.f32.mrf.mxu0
      %836 = vdwg.mxu0
      %837 = vmatpush.bf16.msra.mxu0 %v653
      %838 = vmatpush.bf16.msra.mxu0 %v649
      %839 = vmatpush.bf16.msra.mxu0 %v645
      %840 = vmatpush.bf16.msra.mxu0 %v641
      %841 = vmatpush.bf16.msra.mxu0 %v637
      %842 = vmatpush.bf16.msra.mxu0 %v633
      %843 = vmatpush.bf16.msra.mxu0 %v629
      %844 = vmatpush.bf16.msra.mxu0 %v625
      %845 = vmatmul.bf16.gmra.mxu0 %v359
      %v846 = vpop.f32.mrf.mxu0
      %v847 = vadd.f32 %v754, %v846
      %v848 = vpop.f32.mrf.mxu0
      %849 = vdwg.mxu0
      %850 = vmatpush.bf16.msra.mxu0 %v685
      %851 = vmatpush.bf16.msra.mxu0 %v681
      %852 = vmatpush.bf16.msra.mxu0 %v677
      %853 = vmatpush.bf16.msra.mxu0 %v673
      %854 = vmatpush.bf16.msra.mxu0 %v669
      %855 = vmatpush.bf16.msra.mxu0 %v665
      %856 = vmatpush.bf16.msra.mxu0 %v661
      %857 = vmatpush.bf16.msra.mxu0 %v657
      %858 = vmatmul.bf16.gmra.mxu0 %v364
      %v859 = vpop.f32.mrf.mxu0
      %v860 = vadd.f32 %v847, %v859
      %v861 = vpop.f32.mrf.mxu0
      %862 = vdwg.mxu0
      %v863 = vlaneseq
      %v864 = vshrl.u32 %v863, 7
      %v865 = vstv %s24
      %v866 = vadd.s32 %v864, %v865
      %vm867 = vcmp.eq.s32.totalorder %v866, 0
      %v868 = vsel %vm867, 1, 0
      %v869 = vcvt.s32.f32 %v868
      %v870 = vld [vmem:[%s4] sm:$0xf]
      %v872 = vperm.slane %v870, 0
      %v873 = vperm.slane %v870, 1
      %v874 = vperm.slane %v870, 2
      %v875 = vperm.slane %v870, 3
      %v880 = vmul.f32 %v869, %v872
      %v881 = vmul.f32 %v869, %v873
      %v882 = vmul.f32 %v869, %v874
      %v883 = vmul.f32 %v869, %v875
      %v884 = vsub.f32 %v782, %v880
      %v885 = vsub.f32 %v808, %v881
      %v886 = vsub.f32 %v834, %v882
      %v887 = vsub.f32 %v860, %v883
      %v888 = vmax.f32 %v884, 0.0
      %v889 = vmax.f32 %v885, 0.0
      %v890 = vmax.f32 %v886, 0.0
      %v891 = vmax.f32 %v887, 0.0
      %v892 = vpack.c.bf16 %v889, %v888
      %v893 = vpack.c.bf16 %v891, %v890
      %v896 = vrot.slane %v892, 3
      %v897 = vrot.slane %v893, 6
      %v898 = vrot.slane %v893, 1
      %vm899 = vcmask 1040384
      %v902 = vsel %vm899, %v892, %v896
      %vm903 = vcmask 1042434
      %v906 = vsel %vm903, %v897, %v898
      %vm907 = vcmask 1041408
      %v908 = vsel %vm907, %v902, %v906
      %vm910 = vcmask 1040384
      %vm911 = vsmask.f32 256
      %vm912 = vmand %vm910, %vm911
      %vm913 = vcmask 1041409
      %vm914 = vsmask.f32 1280
      %vm915 = vmand %vm913, %vm914
      %vm916 = vmor %vm915, %vm912
      %vm917 = vcmask 1042434
      %vm918 = vsmask.f32 2304
      %vm919 = vmand %vm917, %vm918
      %vm920 = vmor %vm919, %vm916
      %vm921 = vcmask 1043459
      %vm922 = vsmask.f32 3328
      %vm923 = vmand %vm921, %vm922
      %vm924 = vmor %vm923, %vm920
      %v925 = vld [vmem:[%s342] sm:$0xf]
      %v926 = vsel %vm924, %v908, %v925
      %927 = vst [vmem:[%s342] sm:$0xf] %v926
      %v928 = vadd.f32 %v888, 0.0
      %v929 = vadd.f32 %v889, 0.0
      %v930 = vadd.f32 %v890, 0.0
      %v931 = vadd.f32 %v891, 0.0
      %v936 = vrot.slane %v929, 7
      %v937 = vrot.slane %v930, 6
      %v938 = vrot.slane %v931, 5
      %v939 = vsel %vm899, %v928, %v936
      %v940 = vsel %vm903, %v937, %v938
      %v941 = vsel %vm907, %v939, %v940
      %v943 = vlaneseq
      %vm944 = vcmp.ge.s32.totalorder %v943, 0
      %vm945 = vcmp.lt.s32.totalorder %v943, 512
      %vm946 = vmand %vm944, %vm945
      %947 = vst.msk [vmem:[%s350] sm:$0xf] %vm946, %v941
      %v948 = vmul.f32 %v888, %v888
      %v949 = vmul.f32 %v889, %v889
      %v950 = vmul.f32 %v890, %v890
      %v951 = vmul.f32 %v891, %v891
      %v952 = vadd.f32 %v948, 0.0
      %v953 = vadd.f32 %v949, 0.0
      %v954 = vadd.f32 %v950, 0.0
      %v955 = vadd.f32 %v951, 0.0
      %v960 = vrot.slane %v953, 7
      %v961 = vrot.slane %v954, 6
      %v962 = vrot.slane %v955, 5
      %v963 = vsel %vm899, %v952, %v960
      %v964 = vsel %vm903, %v961, %v962
      %v965 = vsel %vm907, %v963, %v964
      %967 = vst.msk [vmem:[%s358] sm:$0xf] %vm946, %v965
      %p968 = scmp.lt.s32.totalorder %s23, 1
      %s969 = scalar_select %p968, %s23, 1
      %p970 = scmp.lt.s32.totalorder %s24, 0
      %s971 = scalar_select %p970, %s24, 0
      %s972 = smul.addr %s971, 4
      %s973 = smul.addr %s969, 4
      %s974 = sadd.s32 %s972, %s973
      %s975 = scalar_lea.vmem %s5, %s974
      %p976 = scmp.lt.s32.totalorder %s23, 1
      %s977 = scalar_select %p976, %s23, 1
      %p978 = scmp.lt.s32.totalorder %s24, 0
      %s979 = scalar_select %p978, %s24, 0
      %s980 = smul.addr %s979, 4
      %s981 = smul.addr %s977, 4
      %s982 = sadd.s32 %s980, %s981
      %s983 = scalar_lea.vmem %s6, %s982
      %p984 = scmp.lt.s32.totalorder %s23, 1
      %s985 = scalar_select %p984, %s23, 1
      %p986 = scmp.lt.s32.totalorder %s24, 0
      %s987 = scalar_select %p986, %s24, 0
      %s988 = smul.addr %s987, 4
      %s989 = smul.addr %s985, 4
      %s990 = sadd.s32 %s988, %s989
      %s991 = scalar_lea.vmem %s7, %s990
      // Predicated region
      $region41: #{conv_autoencoder_forward.12} parent=39 // pred_check
        %p992 = pneg %p168
      $region42: #{conv_autoencoder_forward.12} parent=39 // pred_check_branch
        %994 = sbr.rel (%p992) target = $region44
      $region43: #{conv_autoencoder_forward.12} parent=39 // pred_region
        _
      $region44: #{conv_autoencoder_forward.12} parent=39 // pred_fallthru
        _
      // Predicated region
      $region45: #{conv_autoencoder_forward.12} parent=39 // pred_check
        %p995 = pneg %p196
      $region46: #{conv_autoencoder_forward.12} parent=39 // pred_check_branch
        %997 = sbr.rel (%p995) target = $region48
      $region47: #{conv_autoencoder_forward.12} parent=39 // pred_region
        _
      $region48: #{conv_autoencoder_forward.12} parent=39 // pred_fallthru
        _
      // Predicated region
      $region49: #{conv_autoencoder_forward.12} parent=39 // pred_check
        %p998 = pneg %p224
      $region50: #{conv_autoencoder_forward.12} parent=39 // pred_check_branch
        %1000 = sbr.rel (%p998) target = $region52
      $region51: #{conv_autoencoder_forward.12} parent=39 // pred_region
        _
      $region52: #{conv_autoencoder_forward.12} parent=39 // pred_fallthru
        _
    $region40: #{conv_autoencoder_forward.12} parent=5 // pred_fallthru
      _
    %p1001 = scmp.le.s32.totalorder 2, %s14
    // Predicated region
    $region53: #{conv_autoencoder_forward.12} parent=5 // pred_check
      %p1002 = pneg %p1001
    $region54: #{conv_autoencoder_forward.12} parent=5 // pred_check_branch
      %1004 = sbr.rel (%p1002) target = $region56
    $region55: #{conv_autoencoder_forward.12} parent=5 // pred_region
      %s1005 = ssub.s32 %s14, 2
      // Predicated region
      $region57: #{conv_autoencoder_forward.12} parent=55 // pred_check
        %p1006 = pneg %p174
      $region58: #{conv_autoencoder_forward.12} parent=55 // pred_check_branch
        %1008 = sbr.rel (%p1006) target = $region60
      $region59: #{conv_autoencoder_forward.12} parent=55 // pred_region
        %p1009 = scmp.lt.s32.totalorder %s25, 1
        %s1010 = scalar_select %p1009, %s25, 1
        %p1011 = scmp.lt.s32.totalorder %s26, 0
        %s1012 = scalar_select %p1011, %s26, 0
        %s1013 = smul.addr %s1012, 4
        %s1014 = smul.addr %s1010, 4
        %s1015 = sadd.s32 %s1013, %s1014
        %s1016 = scalar_lea.vmem %s5, %s1015
      $region60: #{conv_autoencoder_forward.12} parent=55 // pred_fallthru
        _
      // Predicated region
      $region61: #{conv_autoencoder_forward.12} parent=55 // pred_check
        %p1017 = pneg %p202
      $region62: #{conv_autoencoder_forward.12} parent=55 // pred_check_branch
        %1019 = sbr.rel (%p1017) target = $region64
      $region63: #{conv_autoencoder_forward.12} parent=55 // pred_region
        %p1020 = scmp.lt.s32.totalorder %s25, 1
        %s1021 = scalar_select %p1020, %s25, 1
        %p1022 = scmp.lt.s32.totalorder %s26, 0
        %s1023 = scalar_select %p1022, %s26, 0
        %s1024 = smul.addr %s1023, 4
        %s1025 = smul.addr %s1021, 4
        %s1026 = sadd.s32 %s1024, %s1025
        %s1027 = scalar_lea.vmem %s6, %s1026
      $region64: #{conv_autoencoder_forward.12} parent=55 // pred_fallthru
        _
      // Predicated region
      $region65: #{conv_autoencoder_forward.12} parent=55 // pred_check
        %p1028 = pneg %p230
      $region66: #{conv_autoencoder_forward.12} parent=55 // pred_check_branch
        %1030 = sbr.rel (%p1028) target = $region68
      $region67: #{conv_autoencoder_forward.12} parent=55 // pred_region
        %p1031 = scmp.lt.s32.totalorder %s25, 1
        %s1032 = scalar_select %p1031, %s25, 1
        %p1033 = scmp.lt.s32.totalorder %s26, 0
        %s1034 = scalar_select %p1033, %s26, 0
        %s1035 = smul.addr %s1034, 4
        %s1036 = smul.addr %s1032, 4
        %s1037 = sadd.s32 %s1035, %s1036
        %s1038 = scalar_lea.vmem %s7, %s1037
      $region68: #{conv_autoencoder_forward.12} parent=55 // pred_fallthru
        _
    $region56: #{conv_autoencoder_forward.12} parent=5 // pred_fallthru
      _
  $region6: #{conv_autoencoder_forward.12} parent=0 // loop_footer
    %s18 = sadd.s32 1, %s14
  $region7: #{conv_autoencoder_forward.12} parent=0 // loop_footer_branch
    %13 = sbr.rel target = $region3
  $region8: #{conv_autoencoder_forward.12} parent=0 // loop_exit
    _

// kernel: conv_autoencoder_forward.14
$region0: #{conv_autoencoder_forward.14}
  #allocation0 [shape = 'u32[]', space=smem, size = 0x4, offset = 0x4, fixed_abs, tag = 'smem constant byte address 0x4 - core index']
  #allocation1 [shape = 'u32[72,128]{1,0:T(1,128)}', space=vmem, size = 0x9000, scoped, tag = 'internal scratch']
  #allocation2 [shape = 'f32[4,128]{1,0:T(4,128)}', space=vmem, size = 0x800, scoped, tag = 'scratch operand']
  %s0 = inlined_call_operand.vmem [shape: bf16[2,4,128], index: 0, kind: input, shape index: {}]
  %s1 = inlined_call_operand.vmem [shape: f32[2,1,128], index: 1, kind: input, shape index: {}]
  %s2 = inlined_call_operand.vmem [shape: bf16[256,256], index: 2, kind: input, shape index: {}]
  %s3 = inlined_call_operand.vmem [shape: f32[1,256], index: 3, kind: input, shape index: {}]
  %s4 = inlined_call_operand.vmem [shape: f32[1,256], index: 4, kind: input, shape index: {}]
  %s5 = inlined_call_operand.vmem [shape: bf16[2,4,256], index: 5, kind: output, shape index: {0}]
  %s6 = inlined_call_operand.vmem [shape: f32[2,1,1,256], index: 6, kind: output, shape index: {1}]
  %s7 = inlined_call_operand.vmem [shape: f32[2,1,1,256], index: 7, kind: output, shape index: {2}]
  %8 = xla_tuple %s5, %s6, %s7
  %s9 = sld [smem:[#allocation0]]
  $region69: #{conv_autoencoder_forward.14} parent=0
    _
  %s11 = ssub.s32 1, %s9
  %s12 = scalar_select 0, %s11, %s9
  loop: start=0, step=1, limit=4
  $region2: #{conv_autoencoder_forward.14} parent=0 // loop_pre_header
    _
  $region3: #{conv_autoencoder_forward.14} parent=0 // loop_header
    %s14 = sphi 0, %s18
    %p15 = scmp.ge.s32.totalorder %s14, 4
    %s21 = sphi 0, %s33
    %s22 = sphi 0, %s29
    %s23 = sphi 0, %s21
    %s24 = sphi 0, %s22
    %s25 = sphi 0, %s23
    %s26 = sphi 0, %s24
    %s38 = sphi 0, %s40
    %s41 = sphi 0, %s38
    %s42 = sphi 0, %s41
    %s58 = sphi 0, %s42
    %s64 = sphi 0, %s66
    %s67 = sphi 0, %s64
    %s68 = sphi 0, %s67
    %s84 = sphi 0, %s68
    %s88 = sphi 0, %s88
    %s90 = sphi 0, %s88
    %s91 = sphi 0, %s90
    %s105 = sphi 0, %s91
    %s109 = sphi 0, %s109
    %s111 = sphi 0, %s109
    %s112 = sphi 0, %s111
    %s126 = sphi 0, %s112
    %s130 = sphi 0, %s130
    %s132 = sphi 0, %s130
    %s133 = sphi 0, %s132
    %s147 = sphi 0, %s133
    %s155 = sphi 0, %s157
    %s158 = sphi 0, %s155
    %s159 = sphi 0, %s158
    %s175 = sphi 0, %s159
    %s183 = sphi 0, %s185
    %s186 = sphi 0, %s183
    %s187 = sphi 0, %s186
    %s203 = sphi 0, %s187
    %s211 = sphi 0, %s213
    %s214 = sphi 0, %s211
    %s215 = sphi 0, %s214
    %s231 = sphi 0, %s215
  $region4: #{conv_autoencoder_forward.14} parent=0 // loop_header_branch
    %17 = sbr.rel (%p15) target = $region8
  $region5: #{conv_autoencoder_forward.14} parent=0 // loop_body
    %s19 = ssub.s32 %s14, 1
    %s20 = ssub.s32 %s14, 2
    %s27 = sadd.s32 1, %s22
    %p28 = scmp.ge.s32.totalorder %s27, 1
    %s29 = scalar_select %p28, 0, %s27
    %s30 = sadd.s32 1, %s21
    %s31 = scalar_select %p28, %s30, %s21
    %p32 = scmp.ge.s32.totalorder %s31, 2
    %s33 = scalar_select %p32, 0, %s31
    %s34 = ssub.s32 %s21, %s33
    %s35 = ssub.s32 %s22, %s29
    %s36 = sor.u32 %s34, %s35
    %p37 = scmp.eq.s32.totalorder %s36, 0
    %s39 = sadd.s32 %s38, 1
    %s40 = scalar_select %p37, %s38, %s39
    %p43 = pneg %p37
    %p44 = scmp.eq.s32.totalorder %s14, 1
    %p45 = por %p43, %p44
    %p46 = scmp.ne.s32.totalorder %s38, %s41
    %p47 = scmp.eq.s32.totalorder %s14, 0
    %p48 = por %p46, %p47
    %p49 = scmp.ne.s32.totalorder %s38, %s41
    %p50 = scmp.eq.s32.totalorder %s19, 1
    %p51 = por %p49, %p50
    %p52 = scmp.ne.s32.totalorder %s41, %s42
    %p53 = scmp.eq.s32.totalorder %s19, 0
    %p54 = por %p52, %p53
    %p55 = scmp.ne.s32.totalorder %s41, %s42
    %p56 = scmp.eq.s32.totalorder %s20, 1
    %p57 = por %p55, %p56
    %p59 = scmp.ne.s32.totalorder %s42, %s58
    %p60 = scmp.eq.s32.totalorder %s20, 0
    %p61 = por %p59, %p60
    %s62 = ssub.s32 %s21, %s33
    %p63 = scmp.eq.s32.totalorder %s62, 0
    %s65 = sadd.s32 %s64, 1
    %s66 = scalar_select %p63, %s64, %s65
    %p69 = pneg %p63
    %p70 = scmp.eq.s32.totalorder %s14, 1
    %p71 = por %p69, %p70
    %p72 = scmp.ne.s32.totalorder %s64, %s67
    %p73 = scmp.eq.s32.totalorder %s14, 0
    %p74 = por %p72, %p73
    %p75 = scmp.ne.s32.totalorder %s64, %s67
    %p76 = scmp.eq.s32.totalorder %s19, 1
    %p77 = por %p75, %p76
    %p78 = scmp.ne.s32.totalorder %s67, %s68
    %p79 = scmp.eq.s32.totalorder %s19, 0
    %p80 = por %p78, %p79
    %p81 = scmp.ne.s32.totalorder %s67, %s68
    %p82 = scmp.eq.s32.totalorder %s20, 1
    %p83 = por %p81, %p82
    %p85 = scmp.ne.s32.totalorder %s68, %s84
    %p86 = scmp.eq.s32.totalorder %s20, 0
    %p87 = por %p85, %p86
    %s89 = sadd.s32 %s88, 1
    %p92 = scmp.eq.s32.totalorder %s14, 1
    %p93 = scmp.ne.s32.totalorder %s88, %s90
    %p94 = scmp.eq.s32.totalorder %s14, 0
    %p95 = por %p93, %p94
    %p96 = scmp.ne.s32.totalorder %s88, %s90
    %p97 = scmp.eq.s32.totalorder %s19, 1
    %p98 = por %p96, %p97
    %p99 = scmp.ne.s32.totalorder %s90, %s91
    %p100 = scmp.eq.s32.totalorder %s19, 0
    %p101 = por %p99, %p100
    %p102 = scmp.ne.s32.totalorder %s90, %s91
    %p103 = scmp.eq.s32.totalorder %s20, 1
    %p104 = por %p102, %p103
    %p106 = scmp.ne.s32.totalorder %s91, %s105
    %p107 = scmp.eq.s32.totalorder %s20, 0
    %p108 = por %p106, %p107
    %s110 = sadd.s32 %s109, 1
    %p113 = scmp.eq.s32.totalorder %s14, 1
    %p114 = scmp.ne.s32.totalorder %s109, %s111
    %p115 = scmp.eq.s32.totalorder %s14, 0
    %p116 = por %p114, %p115
    %p117 = scmp.ne.s32.totalorder %s109, %s111
    %p118 = scmp.eq.s32.totalorder %s19, 1
    %p119 = por %p117, %p118
    %p120 = scmp.ne.s32.totalorder %s111, %s112
    %p121 = scmp.eq.s32.totalorder %s19, 0
    %p122 = por %p120, %p121
    %p123 = scmp.ne.s32.totalorder %s111, %s112
    %p124 = scmp.eq.s32.totalorder %s20, 1
    %p125 = por %p123, %p124
    %p127 = scmp.ne.s32.totalorder %s112, %s126
    %p128 = scmp.eq.s32.totalorder %s20, 0
    %p129 = por %p127, %p128
    %s131 = sadd.s32 %s130, 1
    %p134 = scmp.eq.s32.totalorder %s14, 1
    %p135 = scmp.ne.s32.totalorder %s130, %s132
    %p136 = scmp.eq.s32.totalorder %s14, 0
    %p137 = por %p135, %p136
    %p138 = scmp.ne.s32.totalorder %s130, %s132
    %p139 = scmp.eq.s32.totalorder %s19, 1
    %p140 = por %p138, %p139
    %p141 = scmp.ne.s32.totalorder %s132, %s133
    %p142 = scmp.eq.s32.totalorder %s19, 0
    %p143 = por %p141, %p142
    %p144 = scmp.ne.s32.totalorder %s132, %s133
    %p145 = scmp.eq.s32.totalorder %s20, 1
    %p146 = por %p144, %p145
    %p148 = scmp.ne.s32.totalorder %s133, %s147
    %p149 = scmp.eq.s32.totalorder %s20, 0
    %p150 = por %p148, %p149
    %s151 = ssub.s32 %s21, %s33
    %s152 = ssub.s32 %s22, %s29
    %s153 = sor.u32 %s151, %s152
    %p154 = scmp.eq.s32.totalorder %s153, 0
    %s156 = sadd.s32 %s155, 1
    %s157 = scalar_select %p154, %s155, %s156
    %p160 = pneg %p154
    %p161 = scmp.eq.s32.totalorder %s14, 1
    %p162 = por %p160, %p161
    %p163 = scmp.ne.s32.totalorder %s155, %s158
    %p164 = scmp.eq.s32.totalorder %s14, 0
    %p165 = por %p163, %p164
    %p166 = scmp.ne.s32.totalorder %s155, %s158
    %p167 = scmp.eq.s32.totalorder %s19, 1
    %p168 = por %p166, %p167
    %p169 = scmp.ne.s32.totalorder %s158, %s159
    %p170 = scmp.eq.s32.totalorder %s19, 0
    %p171 = por %p169, %p170
    %p172 = scmp.ne.s32.totalorder %s158, %s159
    %p173 = scmp.eq.s32.totalorder %s20, 1
    %p174 = por %p172, %p173
    %p176 = scmp.ne.s32.totalorder %s159, %s175
    %p177 = scmp.eq.s32.totalorder %s20, 0
    %p178 = por %p176, %p177
    %s179 = ssub.s32 %s21, %s33
    %s180 = ssub.s32 %s22, %s29
    %s181 = sor.u32 %s179, %s180
    %p182 = scmp.eq.s32.totalorder %s181, 0
    %s184 = sadd.s32 %s183, 1
    %s185 = scalar_select %p182, %s183, %s184
    %p188 = pneg %p182
    %p189 = scmp.eq.s32.totalorder %s14, 1
    %p190 = por %p188, %p189
    %p191 = scmp.ne.s32.totalorder %s183, %s186
    %p192 = scmp.eq.s32.totalorder %s14, 0
    %p193 = por %p191, %p192
    %p194 = scmp.ne.s32.totalorder %s183, %s186
    %p195 = scmp.eq.s32.totalorder %s19, 1
    %p196 = por %p194, %p195
    %p197 = scmp.ne.s32.totalorder %s186, %s187
    %p198 = scmp.eq.s32.totalorder %s19, 0
    %p199 = por %p197, %p198
    %p200 = scmp.ne.s32.totalorder %s186, %s187
    %p201 = scmp.eq.s32.totalorder %s20, 1
    %p202 = por %p200, %p201
    %p204 = scmp.ne.s32.totalorder %s187, %s203
    %p205 = scmp.eq.s32.totalorder %s20, 0
    %p206 = por %p204, %p205
    %s207 = ssub.s32 %s21, %s33
    %s208 = ssub.s32 %s22, %s29
    %s209 = sor.u32 %s207, %s208
    %p210 = scmp.eq.s32.totalorder %s209, 0
    %s212 = sadd.s32 %s211, 1
    %s213 = scalar_select %p210, %s211, %s212
    %p216 = pneg %p210
    %p217 = scmp.eq.s32.totalorder %s14, 1
    %p218 = por %p216, %p217
    %p219 = scmp.ne.s32.totalorder %s211, %s214
    %p220 = scmp.eq.s32.totalorder %s14, 0
    %p221 = por %p219, %p220
    %p222 = scmp.ne.s32.totalorder %s211, %s214
    %p223 = scmp.eq.s32.totalorder %s19, 1
    %p224 = por %p222, %p223
    %p225 = scmp.ne.s32.totalorder %s214, %s215
    %p226 = scmp.eq.s32.totalorder %s19, 0
    %p227 = por %p225, %p226
    %p228 = scmp.ne.s32.totalorder %s214, %s215
    %p229 = scmp.eq.s32.totalorder %s20, 1
    %p230 = por %p228, %p229
    %p232 = scmp.ne.s32.totalorder %s215, %s231
    %p233 = scmp.eq.s32.totalorder %s20, 0
    %p234 = por %p232, %p233
    %p235 = scmp.le.s32.totalorder 1, %s14
    %p236 = scmp.lt.s32.totalorder %s14, 3
    %p237 = pnand %p235, %p236
    %p238 = pneg %p237
    // Predicated region
    $region9: #{conv_autoencoder_forward.14} parent=5 // pred_check
      _
    $region10: #{conv_autoencoder_forward.14} parent=5 // pred_check_branch
      %240 = sbr.rel (%p237) target = $region12
    $region11: #{conv_autoencoder_forward.14} parent=5 // pred_region
      %s241 = ssub.s32 %s14, 1
      // Predicated region
      $region13: #{conv_autoencoder_forward.14} parent=11 // pred_check
        %p242 = pneg %p101
      $region14: #{conv_autoencoder_forward.14} parent=11 // pred_check_branch
        %244 = sbr.rel (%p242) target = $region16
      $region15: #{conv_autoencoder_forward.14} parent=11 // pred_region
        _
      $region16: #{conv_autoencoder_forward.14} parent=11 // pred_fallthru
        _
      // Predicated region
      $region17: #{conv_autoencoder_forward.14} parent=11 // pred_check
        %p245 = pneg %p122
      $region18: #{conv_autoencoder_forward.14} parent=11 // pred_check_branch
        %247 = sbr.rel (%p245) target = $region20
      $region19: #{conv_autoencoder_forward.14} parent=11 // pred_region
        _
      $region20: #{conv_autoencoder_forward.14} parent=11 // pred_fallthru
        _
      // Predicated region
      $region21: #{conv_autoencoder_forward.14} parent=11 // pred_check
        %p248 = pneg %p143
      $region22: #{conv_autoencoder_forward.14} parent=11 // pred_check_branch
        %250 = sbr.rel (%p248) target = $region24
      $region23: #{conv_autoencoder_forward.14} parent=11 // pred_region
        _
      $region24: #{conv_autoencoder_forward.14} parent=11 // pred_fallthru
        _
    $region12: #{conv_autoencoder_forward.14} parent=5 // pred_fallthru
      _
    %p251 = scmp.lt.s32.totalorder %s14, 2
    // Predicated region
    $region25: #{conv_autoencoder_forward.14} parent=5 // pred_check
      %p252 = pneg %p251
    $region26: #{conv_autoencoder_forward.14} parent=5 // pred_check_branch
      %254 = sbr.rel (%p252) target = $region28
    $region27: #{conv_autoencoder_forward.14} parent=5 // pred_region
      // Predicated region
      $region29: #{conv_autoencoder_forward.14} parent=27 // pred_check
        %p255 = pneg %p48
      $region30: #{conv_autoencoder_forward.14} parent=27 // pred_check_branch
        %257 = sbr.rel (%p255) target = $region32
      $region31: #{conv_autoencoder_forward.14} parent=27 // pred_region
        %p258 = scmp.lt.s32.totalorder %s21, 1
        %s259 = scalar_select %p258, %s21, 1
        %p260 = scmp.lt.s32.totalorder %s22, 0
        %s261 = scalar_select %p260, %s22, 0
        %s262 = sadd.s32 %s261, %s259
        %s263 = smul.addr %s262, 2
        %s264 = scalar_lea.vmem %s0, %s263
      $region32: #{conv_autoencoder_forward.14} parent=27 // pred_fallthru
        _
      // Predicated region
      $region33: #{conv_autoencoder_forward.14} parent=27 // pred_check
        %p265 = pneg %p74
      $region34: #{conv_autoencoder_forward.14} parent=27 // pred_check_branch
        %267 = sbr.rel (%p265) target = $region36
      $region35: #{conv_autoencoder_forward.14} parent=27 // pred_region
        %p268 = scmp.lt.s32.totalorder %s21, 1
        %s269 = scalar_select %p268, %s21, 1
        %s270 = scalar_lea.vmem %s1, %s269
      $region36: #{conv_autoencoder_forward.14} parent=27 // pred_fallthru
        _
    $region28: #{conv_autoencoder_forward.14} parent=5 // pred_fallthru
      _
    %p271 = scmp.le.s32.totalorder 1, %s14
    %p272 = scmp.lt.s32.totalorder %s14, 3
    %p273 = pnand %p271, %p272
    %p274 = pneg %p273
    // Predicated region
    $region37: #{conv_autoencoder_forward.14} parent=5 // pred_check
      _
    $region38: #{conv_autoencoder_forward.14} parent=5 // pred_check_branch
      %276 = sbr.rel (%p273) target = $region40
    $region39: #{conv_autoencoder_forward.14} parent=5 // pred_region
      %s277 = ssub.s32 %s14, 1
      %p278 = scmp.lt.s32.totalorder %s23, 1
      %s279 = scalar_select %p278, %s23, 1
      %p280 = scmp.lt.s32.totalorder %s24, 0
      %s281 = scalar_select %p280, %s24, 0
      %s282 = sadd.s32 %s281, %s279
      %s283 = smul.addr %s282, 2
      %s284 = scalar_lea.vmem %s0, %s283
      %p285 = pneg %p54
      %p286 = pneg %p51
      %p287 = scmp.lt.s32.totalorder %s23, 1
      %s288 = scalar_select %p287, %s23, 1
      %s289 = scalar_lea.vmem %s1, %s288
      %p290 = pneg %p80
      %p291 = pneg %p77
      %p292 = pneg %p101
      %p293 = pneg %p98
      %p294 = pneg %p122
      %p295 = pneg %p119
      %p296 = pneg %p143
      %p297 = pneg %p140
      %p298 = pneg %p171
      %p299 = pneg %p168
      %p300 = scmp.lt.s32.totalorder %s23, 1
      %s301 = scalar_select %p300, %s23, 1
      %p302 = scmp.lt.s32.totalorder %s24, 0
      %s303 = scalar_select %p302, %s24, 0
      %s304 = smul.addr %s303, 2
      %s305 = smul.addr %s301, 2
      %s306 = sadd.s32 %s304, %s305
      %s307 = smul.addr %s306, 2
      %s308 = scalar_lea.vmem %s5, %s307
      %p309 = pneg %p199
      %p310 = pneg %p196
      %p311 = scmp.lt.s32.totalorder %s23, 1
      %s312 = scalar_select %p311, %s23, 1
      %p313 = scmp.lt.s32.totalorder %s24, 0
      %s314 = scalar_select %p313, %s24, 0
      %s315 = smul.addr %s314, 2
      %s316 = smul.addr %s312, 2
      %s317 = sadd.s32 %s315, %s316
      %s318 = scalar_lea.vmem %s6, %s317
      %p319 = pneg %p227
      %p320 = pneg %p224
      %p321 = scmp.lt.s32.totalorder %s23, 1
      %s322 = scalar_select %p321, %s23, 1
      %p323 = scmp.lt.s32.totalorder %s24, 0
      %s324 = scalar_select %p323, %s24, 0
      %s325 = smul.addr %s324, 2
      %s326 = smul.addr %s322, 2
      %s327 = sadd.s32 %s325, %s326
      %s328 = scalar_lea.vmem %s7, %s327
      %p329 = scmp.lt.s32.totalorder %s23, 1
      %s330 = scalar_select %p329, %s23, 1
      %p331 = scmp.lt.s32.totalorder %s24, 0
      %s332 = scalar_select %p331, %s24, 0
      %s333 = sadd.s32 %s332, %s330
      %s334 = smul.addr %s333, 2
      %s335 = scalar_lea.vmem %s0, %s334
      %p336 = scmp.lt.s32.totalorder %s23, 1
      %s337 = scalar_select %p336, %s23, 1
      %s338 = scalar_lea.vmem %s1, %s337
      %p339 = scmp.lt.s32.totalorder %s23, 1
      %s340 = scalar_select %p339, %s23, 1
      %p341 = scmp.lt.s32.totalorder %s24, 0
      %s342 = scalar_select %p341, %s24, 0
      %s343 = smul.addr %s342, 2
      %s344 = smul.addr %s340, 2
      %s345 = sadd.s32 %s343, %s344
      %s346 = smul.addr %s345, 2
      %s347 = scalar_lea.vmem %s5, %s346
      %p348 = scmp.lt.s32.totalorder %s23, 1
      %s349 = scalar_select %p348, %s23, 1
      %p350 = scmp.lt.s32.totalorder %s24, 0
      %s351 = scalar_select %p350, %s24, 0
      %s352 = smul.addr %s351, 2
      %s353 = smul.addr %s349, 2
      %s354 = sadd.s32 %s352, %s353
      %s355 = scalar_lea.vmem %s6, %s354
      %p356 = scmp.lt.s32.totalorder %s23, 1
      %s357 = scalar_select %p356, %s23, 1
      %p358 = scmp.lt.s32.totalorder %s24, 0
      %s359 = scalar_select %p358, %s24, 0
      %s360 = smul.addr %s359, 2
      %s361 = smul.addr %s357, 2
      %s362 = sadd.s32 %s360, %s361
      %s363 = scalar_lea.vmem %s7, %s362
      %v364 = vld [vmem:[%s335] sm:$0x3]
      %s365 = scalar_lea.vmem %s338, %s24
      %v366 = vld [vmem:[%s365] sm:$0x1]
      %v367 = vunpack.c.l.bf16 %v364
      %368 = vst [vmem:[#allocation2 - $0x1] sm:$0xe] %v367
      %369 = vst [vmem:[#allocation2 + $0x3] sm:$0x1] %v366
      %v370 = vld [vmem:[#allocation2] sm:$0xf]
      %v371 = vpack.c.bf16 %v370, %v370
      %v372 = vld [vmem:[%s2] sm:$0xff]
      %v373 = vld [vmem:[%s2 + $0x8] sm:$0xff]
      %v374 = vld [vmem:[%s2 + $0x10] sm:$0xff]
      %v375 = vld [vmem:[%s2 + $0x18] sm:$0xff]
      %v376 = vld [vmem:[%s2 + $0x20] sm:$0xff]
      %v377 = vld [vmem:[%s2 + $0x28] sm:$0xff]
      %v378 = vld [vmem:[%s2 + $0x30] sm:$0xff]
      %v379 = vld [vmem:[%s2 + $0x38] sm:$0xff]
      %v380 = vld [vmem:[%s2 + $0x40] sm:$0xff]
      %v381 = vld [vmem:[%s2 + $0x48] sm:$0xff]
      %v382 = vld [vmem:[%s2 + $0x50] sm:$0xff]
      %v383 = vld [vmem:[%s2 + $0x58] sm:$0xff]
      %v384 = vld [vmem:[%s2 + $0x60] sm:$0xff]
      %v385 = vld [vmem:[%s2 + $0x68] sm:$0xff]
      %v386 = vld [vmem:[%s2 + $0x70] sm:$0xff]
      %v387 = vld [vmem:[%s2 + $0x78] sm:$0xff]
      %v388 = vld [vmem:[%s2 + $0x80] sm:$0xff]
      %v389 = vld [vmem:[%s2 + $0x88] sm:$0xff]
      %v390 = vld [vmem:[%s2 + $0x90] sm:$0xff]
      %v391 = vld [vmem:[%s2 + $0x98] sm:$0xff]
      %v392 = vld [vmem:[%s2 + $0xa0] sm:$0xff]
      %v393 = vld [vmem:[%s2 + $0xa8] sm:$0xff]
      %v394 = vld [vmem:[%s2 + $0xb0] sm:$0xff]
      %v395 = vld [vmem:[%s2 + $0xb8] sm:$0xff]
      %v396 = vld [vmem:[%s2 + $0xc0] sm:$0xff]
      %v397 = vld [vmem:[%s2 + $0xc8] sm:$0xff]
      %v398 = vld [vmem:[%s2 + $0xd0] sm:$0xff]
      %v399 = vld [vmem:[%s2 + $0xd8] sm:$0xff]
      %v400 = vld [vmem:[%s2 + $0xe0] sm:$0xff]
      %v401 = vld [vmem:[%s2 + $0xe8] sm:$0xff]
      %v402 = vld [vmem:[%s2 + $0xf0] sm:$0xff]
      %v403 = vld [vmem:[%s2 + $0xf8] sm:$0xff]
      %v404 = vld [vmem:[%s3] sm:$0x3]
      %v406 = vperm.slane %v404, 0
      %v407 = vperm.slane %v404, 1
      %v442 = vunpack.c.l.b16 %v372
      %v443 = vunpack.c.h.b16 %v372
      %v444 = vunpack.c.l.b16 %v373
      %v445 = vunpack.c.h.b16 %v373
      %v446 = vunpack.c.l.b16 %v374
      %v447 = vunpack.c.h.b16 %v374
      %v448 = vunpack.c.l.b16 %v375
      %v449 = vunpack.c.h.b16 %v375
      %v450 = vunpack.c.l.b16 %v376
      %v451 = vunpack.c.h.b16 %v376
      %v452 = vunpack.c.l.b16 %v377
      %v453 = vunpack.c.h.b16 %v377
      %v454 = vunpack.c.l.b16 %v378
      %v455 = vunpack.c.h.b16 %v378
      %v456 = vunpack.c.l.b16 %v379
      %v457 = vunpack.c.h.b16 %v379
      %v458 = vunpack.c.l.b16 %v380
      %v459 = vunpack.c.h.b16 %v380
      %v460 = vunpack.c.l.b16 %v381
      %v461 = vunpack.c.h.b16 %v381
      %v462 = vunpack.c.l.b16 %v382
      %v463 = vunpack.c.h.b16 %v382
      %v464 = vunpack.c.l.b16 %v383
      %v465 = vunpack.c.h.b16 %v383
      %v466 = vunpack.c.l.b16 %v384
      %v467 = vunpack.c.h.b16 %v384
      %v468 = vunpack.c.l.b16 %v385
      %v469 = vunpack.c.h.b16 %v385
      %v470 = vunpack.c.l.b16 %v386
      %v471 = vunpack.c.h.b16 %v386
      %v472 = vunpack.c.l.b16 %v387
      %v473 = vunpack.c.h.b16 %v387
      %v474 = vunpack.c.l.b16 %v388
      %v475 = vunpack.c.h.b16 %v388
      %v476 = vunpack.c.l.b16 %v389
      %v477 = vunpack.c.h.b16 %v389
      %v478 = vunpack.c.l.b16 %v390
      %v479 = vunpack.c.h.b16 %v390
      %v480 = vunpack.c.l.b16 %v391
      %v481 = vunpack.c.h.b16 %v391
      %v482 = vunpack.c.l.b16 %v392
      %v483 = vunpack.c.h.b16 %v392
      %v484 = vunpack.c.l.b16 %v393
      %v485 = vunpack.c.h.b16 %v393
      %v486 = vunpack.c.l.b16 %v394
      %v487 = vunpack.c.h.b16 %v394
      %v488 = vunpack.c.l.b16 %v395
      %v489 = vunpack.c.h.b16 %v395
      %v490 = vunpack.c.l.b16 %v396
      %v491 = vunpack.c.h.b16 %v396
      %v492 = vunpack.c.l.b16 %v397
      %v493 = vunpack.c.h.b16 %v397
      %v494 = vunpack.c.l.b16 %v398
      %v495 = vunpack.c.h.b16 %v398
      %v496 = vunpack.c.l.b16 %v399
      %v497 = vunpack.c.h.b16 %v399
      %v498 = vunpack.c.l.b16 %v400
      %v499 = vunpack.c.h.b16 %v400
      %v500 = vunpack.c.l.b16 %v401
      %v501 = vunpack.c.h.b16 %v401
      %v502 = vunpack.c.l.b16 %v402
      %v503 = vunpack.c.h.b16 %v402
      %v504 = vunpack.c.l.b16 %v403
      %v505 = vunpack.c.h.b16 %v403
      %v506 = vpack.c.b16 %v444, %v442
      %v507 = vpack.c.b16 %v445, %v443
      %v508 = vpack.c.b16 %v448, %v446
      %v509 = vpack.c.b16 %v449, %v447
      %v510 = vpack.c.b16 %v452, %v450
      %v511 = vpack.c.b16 %v453, %v451
      %v512 = vpack.c.b16 %v456, %v454
      %v513 = vpack.c.b16 %v457, %v455
      %v514 = vpack.c.b16 %v460, %v458
      %v515 = vpack.c.b16 %v461, %v459
      %v516 = vpack.c.b16 %v464, %v462
      %v517 = vpack.c.b16 %v465, %v463
      %v518 = vpack.c.b16 %v468, %v466
      %v519 = vpack.c.b16 %v469, %v467
      %v520 = vpack.c.b16 %v472, %v470
      %v521 = vpack.c.b16 %v473, %v471
      %v522 = vpack.c.b16 %v476, %v474
      %v523 = vpack.c.b16 %v477, %v475
      %v524 = vpack.c.b16 %v480, %v478
      %v525 = vpack.c.b16 %v481, %v479
      %v526 = vpack.c.b16 %v484, %v482
      %v527 = vpack.c.b16 %v485, %v483
      %v528 = vpack.c.b16 %v488, %v486
      %v529 = vpack.c.b16 %v489, %v487
      %v530 = vpack.c.b16 %v492, %v490
      %v531 = vpack.c.b16 %v493, %v491
      %v532 = vpack.c.b16 %v496, %v494
      %v533 = vpack.c.b16 %v497, %v495
      %v534 = vpack.c.b16 %v500, %v498
      %v535 = vpack.c.b16 %v501, %v499
      %v536 = vpack.c.b16 %v504, %v502
      %v537 = vpack.c.b16 %v505, %v503
      %570 = vmatpush.bf16.msra.mxu0 %v520
      %571 = vmatpush.bf16.msra.mxu0 %v518
      %572 = vmatpush.bf16.msra.mxu0 %v516
      %573 = vmatpush.bf16.msra.mxu0 %v514
      %574 = vmatpush.bf16.msra.mxu0 %v512
      %575 = vmatpush.bf16.msra.mxu0 %v510
      %576 = vmatpush.bf16.msra.mxu0 %v508
      %577 = vmatpush.bf16.msra.mxu0 %v506
      %578 = vmatmul.bf16.gmra.mxu0 %v364
      %v579 = vpop.f32.mrf.mxu0
      %v580 = vadd.f32 %v406, %v579
      %v581 = vpop.f32.mrf.mxu0
      %582 = vdwg.mxu0
      %583 = vmatpush.bf16.msra.mxu0 %v536
      %584 = vmatpush.bf16.msra.mxu0 %v534
      %585 = vmatpush.bf16.msra.mxu0 %v532
      %586 = vmatpush.bf16.msra.mxu0 %v530
      %587 = vmatpush.bf16.msra.mxu0 %v528
      %588 = vmatpush.bf16.msra.mxu0 %v526
      %589 = vmatpush.bf16.msra.mxu0 %v524
      %590 = vmatpush.bf16.msra.mxu0 %v522
      %591 = vmatmul.bf16.gmra.mxu0 %v371
      %v592 = vpop.f32.mrf.mxu0
      %v593 = vadd.f32 %v580, %v592
      %v594 = vpop.f32.mrf.mxu0
      %595 = vdwg.mxu0
      %596 = vmatpush.bf16.msra.mxu0 %v521
      %597 = vmatpush.bf16.msra.mxu0 %v519
      %598 = vmatpush.bf16.msra.mxu0 %v517
      %599 = vmatpush.bf16.msra.mxu0 %v515
      %600 = vmatpush.bf16.msra.mxu0 %v513
      %601 = vmatpush.bf16.msra.mxu0 %v511
      %602 = vmatpush.bf16.msra.mxu0 %v509
      %603 = vmatpush.bf16.msra.mxu0 %v507
      %604 = vmatmul.bf16.gmra.mxu0 %v364
      %v605 = vpop.f32.mrf.mxu0
      %v606 = vadd.f32 %v407, %v605
      %v607 = vpop.f32.mrf.mxu0
      %608 = vdwg.mxu0
      %609 = vmatpush.bf16.msra.mxu0 %v537
      %610 = vmatpush.bf16.msra.mxu0 %v535
      %611 = vmatpush.bf16.msra.mxu0 %v533
      %612 = vmatpush.bf16.msra.mxu0 %v531
      %613 = vmatpush.bf16.msra.mxu0 %v529
      %614 = vmatpush.bf16.msra.mxu0 %v527
      %615 = vmatpush.bf16.msra.mxu0 %v525
      %616 = vmatpush.bf16.msra.mxu0 %v523
      %617 = vmatmul.bf16.gmra.mxu0 %v371
      %v618 = vpop.f32.mrf.mxu0
      %v619 = vadd.f32 %v606, %v618
      %v620 = vpop.f32.mrf.mxu0
      %621 = vdwg.mxu0
      %v622 = vlaneseq
      %v623 = vshrl.u32 %v622, 7
      %s624 = smul.u32 %s24, 4
      %v625 = vstv %s624
      %v626 = vadd.s32 %v623, %v625
      %vm627 = vcmp.eq.s32.totalorder %v626, 3
      %v628 = vsel %vm627, 1, 0
      %v629 = vcvt.s32.f32 %v628
      %v630 = vld [vmem:[%s4] sm:$0x3]
      %v632 = vperm.slane %v630, 0
      %v633 = vperm.slane %v630, 1
      %v636 = vmul.f32 %v629, %v632
      %v637 = vmul.f32 %v629, %v633
      %v638 = vsub.f32 %v593, %v636
      %v639 = vsub.f32 %v619, %v637
      %v640 = vmax.f32 %v638, 0.0
      %v641 = vmax.f32 %v639, 0.0
      %v642 = vpack.c.bf16 %v641, %v640
      %v644 = vrot.slane %v642, 2
      %vm645 = vcmask 1041408
      %v648 = vsel %vm645, %v642, %v644
      %650 = vst [vmem:[%s347] sm:$0xf] %v648
      %vm651 = vcmask 1043456
      %v652 = vsel %vm651, %v640, 0.0
      %v653 = vrot.slane %v652, 4
      %v654 = vadd.f32 %v652, %v653
      %v655 = vrot.slane %v654, 2
      %v656 = vadd.f32 %v654, %v655
      %v657 = vrot.slane %v656, 1
      %v658 = vadd.f32 %v656, %v657
      %v659 = vsel %vm651, %v641, 0.0
      %v660 = vrot.slane %v659, 4
      %v661 = vadd.f32 %v659, %v660
      %v662 = vrot.slane %v661, 2
      %v663 = vadd.f32 %v661, %v662
      %v664 = vrot.slane %v663, 1
      %v665 = vadd.f32 %v663, %v664
      %v668 = vrot.slane %v665, 7
      %vm669 = vcmask 1040384
      %v670 = vsel %vm669, %v658, %v668
      %v672 = vlaneseq
      %vm673 = vcmp.ge.s32.totalorder %v672, 0
      %vm674 = vcmp.lt.s32.totalorder %v672, 256
      %vm675 = vmand %vm673, %vm674
      %676 = vst.msk [vmem:[%s355] sm:$0x3] %vm675, %v670
      %v677 = vmul.f32 %v640, %v640
      %v678 = vmul.f32 %v641, %v641
      %v679 = vsel %vm651, %v677, 0.0
      %v680 = vrot.slane %v679, 4
      %v681 = vadd.f32 %v679, %v680
      %v682 = vrot.slane %v681, 2
      %v683 = vadd.f32 %v681, %v682
      %v684 = vrot.slane %v683, 1
      %v685 = vadd.f32 %v683, %v684
      %v686 = vsel %vm651, %v678, 0.0
      %v687 = vrot.slane %v686, 4
      %v688 = vadd.f32 %v686, %v687
      %v689 = vrot.slane %v688, 2
      %v690 = vadd.f32 %v688, %v689
      %v691 = vrot.slane %v690, 1
      %v692 = vadd.f32 %v690, %v691
      %v695 = vrot.slane %v692, 7
      %v696 = vsel %vm669, %v685, %v695
      %698 = vst.msk [vmem:[%s363] sm:$0x3] %vm675, %v696
      %p699 = scmp.lt.s32.totalorder %s23, 1
      %s700 = scalar_select %p699, %s23, 1
      %p701 = scmp.lt.s32.totalorder %s24, 0
      %s702 = scalar_select %p701, %s24, 0
      %s703 = smul.addr %s702, 2
      %s704 = smul.addr %s700, 2
      %s705 = sadd.s32 %s703, %s704
      %s706 = smul.addr %s705, 2
      %s707 = scalar_lea.vmem %s5, %s706
      %p708 = scmp.lt.s32.totalorder %s23, 1
      %s709 = scalar_select %p708, %s23, 1
      %p710 = scmp.lt.s32.totalorder %s24, 0
      %s711 = scalar_select %p710, %s24, 0
      %s712 = smul.addr %s711, 2
      %s713 = smul.addr %s709, 2
      %s714 = sadd.s32 %s712, %s713
      %s715 = scalar_lea.vmem %s6, %s714
      %p716 = scmp.lt.s32.totalorder %s23, 1
      %s717 = scalar_select %p716, %s23, 1
      %p718 = scmp.lt.s32.totalorder %s24, 0
      %s719 = scalar_select %p718, %s24, 0
      %s720 = smul.addr %s719, 2
      %s721 = smul.addr %s717, 2
      %s722 = sadd.s32 %s720, %s721
      %s723 = scalar_lea.vmem %s7, %s722
      // Predicated region
      $region41: #{conv_autoencoder_forward.14} parent=39 // pred_check
        %p724 = pneg %p168
      $region42: #{conv_autoencoder_forward.14} parent=39 // pred_check_branch
        %726 = sbr.rel (%p724) target = $region44
      $region43: #{conv_autoencoder_forward.14} parent=39 // pred_region
        _
      $region44: #{conv_autoencoder_forward.14} parent=39 // pred_fallthru
        _
      // Predicated region
      $region45: #{conv_autoencoder_forward.14} parent=39 // pred_check
        %p727 = pneg %p196
      $region46: #{conv_autoencoder_forward.14} parent=39 // pred_check_branch
        %729 = sbr.rel (%p727) target = $region48
      $region47: #{conv_autoencoder_forward.14} parent=39 // pred_region
        _
      $region48: #{conv_autoencoder_forward.14} parent=39 // pred_fallthru
        _
      // Predicated region
      $region49: #{conv_autoencoder_forward.14} parent=39 // pred_check
        %p730 = pneg %p224
      $region50: #{conv_autoencoder_forward.14} parent=39 // pred_check_branch
        %732 = sbr.rel (%p730) target = $region52
      $region51: #{conv_autoencoder_forward.14} parent=39 // pred_region
        _
      $region52: #{conv_autoencoder_forward.14} parent=39 // pred_fallthru
        _
    $region40: #{conv_autoencoder_forward.14} parent=5 // pred_fallthru
      _
    %p733 = scmp.le.s32.totalorder 2, %s14
    // Predicated region
    $region53: #{conv_autoencoder_forward.14} parent=5 // pred_check
      %p734 = pneg %p733
    $region54: #{conv_autoencoder_forward.14} parent=5 // pred_check_branch
      %736 = sbr.rel (%p734) target = $region56
    $region55: #{conv_autoencoder_forward.14} parent=5 // pred_region
      %s737 = ssub.s32 %s14, 2
      // Predicated region
      $region57: #{conv_autoencoder_forward.14} parent=55 // pred_check
        %p738 = pneg %p174
      $region58: #{conv_autoencoder_forward.14} parent=55 // pred_check_branch
        %740 = sbr.rel (%p738) target = $region60
      $region59: #{conv_autoencoder_forward.14} parent=55 // pred_region
        %p741 = scmp.lt.s32.totalorder %s25, 1
        %s742 = scalar_select %p741, %s25, 1
        %p743 = scmp.lt.s32.totalorder %s26, 0
        %s744 = scalar_select %p743, %s26, 0
        %s745 = smul.addr %s744, 2
        %s746 = smul.addr %s742, 2
        %s747 = sadd.s32 %s745, %s746
        %s748 = smul.addr %s747, 2
        %s749 = scalar_lea.vmem %s5, %s748
      $region60: #{conv_autoencoder_forward.14} parent=55 // pred_fallthru
        _
      // Predicated region
      $region61: #{conv_autoencoder_forward.14} parent=55 // pred_check
        %p750 = pneg %p202
      $region62: #{conv_autoencoder_forward.14} parent=55 // pred_check_branch
        %752 = sbr.rel (%p750) target = $region64
      $region63: #{conv_autoencoder_forward.14} parent=55 // pred_region
        %p753 = scmp.lt.s32.totalorder %s25, 1
        %s754 = scalar_select %p753, %s25, 1
        %p755 = scmp.lt.s32.totalorder %s26, 0
        %s756 = scalar_select %p755, %s26, 0
        %s757 = smul.addr %s756, 2
        %s758 = smul.addr %s754, 2
        %s759 = sadd.s32 %s757, %s758
        %s760 = scalar_lea.vmem %s6, %s759
      $region64: #{conv_autoencoder_forward.14} parent=55 // pred_fallthru
        _
      // Predicated region
      $region65: #{conv_autoencoder_forward.14} parent=55 // pred_check
        %p761 = pneg %p230
      $region66: #{conv_autoencoder_forward.14} parent=55 // pred_check_branch
        %763 = sbr.rel (%p761) target = $region68
      $region67: #{conv_autoencoder_forward.14} parent=55 // pred_region
        %p764 = scmp.lt.s32.totalorder %s25, 1
        %s765 = scalar_select %p764, %s25, 1
        %p766 = scmp.lt.s32.totalorder %s26, 0
        %s767 = scalar_select %p766, %s26, 0
        %s768 = smul.addr %s767, 2
        %s769 = smul.addr %s765, 2
        %s770 = sadd.s32 %s768, %s769
        %s771 = scalar_lea.vmem %s7, %s770
      $region68: #{conv_autoencoder_forward.14} parent=55 // pred_fallthru
        _
    $region56: #{conv_autoencoder_forward.14} parent=5 // pred_fallthru
      _
  $region6: #{conv_autoencoder_forward.14} parent=0 // loop_footer
    %s18 = sadd.s32 1, %s14
  $region7: #{conv_autoencoder_forward.14} parent=0 // loop_footer_branch
    %13 = sbr.rel target = $region3
  $region8: #{conv_autoencoder_forward.14} parent=0 // loop_exit
    _

// kernel: conv_autoencoder_forward.13
$region0: #{conv_autoencoder_forward.13}
  #allocation0 [shape = 'u32[]', space=smem, size = 0x4, offset = 0x4, fixed_abs, tag = 'smem constant byte address 0x4 - core index']
  #allocation1 [shape = 'u32[72,128]{1,0:T(1,128)}', space=vmem, size = 0x9000, scoped, tag = 'internal scratch']
  #allocation2 [shape = 'f32[2,256]{1,0:T(2,128)}', space=vmem, size = 0x800, scoped, tag = 'scratch operand']
  %s0 = inlined_call_operand.vmem [shape: bf16[2,2,256], index: 0, kind: input, shape index: {}]
  %s1 = inlined_call_operand.vmem [shape: f32[2,1,256], index: 1, kind: input, shape index: {}]
  %s2 = inlined_call_operand.vmem [shape: bf16[512,256], index: 2, kind: input, shape index: {}]
  %s3 = inlined_call_operand.vmem [shape: f32[1,256], index: 3, kind: input, shape index: {}]
  %s4 = inlined_call_operand.vmem [shape: f32[1,256], index: 4, kind: input, shape index: {}]
  %s5 = inlined_call_operand.vmem [shape: bf16[2,2,256], index: 5, kind: output, shape index: {0}]
  %s6 = inlined_call_operand.vmem [shape: f32[2,1,1,256], index: 6, kind: output, shape index: {1}]
  %s7 = inlined_call_operand.vmem [shape: f32[2,1,1,256], index: 7, kind: output, shape index: {2}]
  %8 = xla_tuple %s5, %s6, %s7
  %s9 = sld [smem:[#allocation0]]
  $region69: #{conv_autoencoder_forward.13} parent=0
    _
  %s11 = ssub.s32 1, %s9
  %s12 = scalar_select 0, %s11, %s9
  loop: start=0, step=1, limit=4
  $region2: #{conv_autoencoder_forward.13} parent=0 // loop_pre_header
    _
  $region3: #{conv_autoencoder_forward.13} parent=0 // loop_header
    %s14 = sphi 0, %s18
    %p15 = scmp.ge.s32.totalorder %s14, 4
    %s21 = sphi 0, %s33
    %s22 = sphi 0, %s29
    %s23 = sphi 0, %s21
    %s24 = sphi 0, %s22
    %s25 = sphi 0, %s23
    %s26 = sphi 0, %s24
    %s38 = sphi 0, %s40
    %s41 = sphi 0, %s38
    %s42 = sphi 0, %s41
    %s58 = sphi 0, %s42
    %s64 = sphi 0, %s66
    %s67 = sphi 0, %s64
    %s68 = sphi 0, %s67
    %s84 = sphi 0, %s68
    %s88 = sphi 0, %s88
    %s90 = sphi 0, %s88
    %s91 = sphi 0, %s90
    %s105 = sphi 0, %s91
    %s109 = sphi 0, %s109
    %s111 = sphi 0, %s109
    %s112 = sphi 0, %s111
    %s126 = sphi 0, %s112
    %s130 = sphi 0, %s130
    %s132 = sphi 0, %s130
    %s133 = sphi 0, %s132
    %s147 = sphi 0, %s133
    %s155 = sphi 0, %s157
    %s158 = sphi 0, %s155
    %s159 = sphi 0, %s158
    %s175 = sphi 0, %s159
    %s183 = sphi 0, %s185
    %s186 = sphi 0, %s183
    %s187 = sphi 0, %s186
    %s203 = sphi 0, %s187
    %s211 = sphi 0, %s213
    %s214 = sphi 0, %s211
    %s215 = sphi 0, %s214
    %s231 = sphi 0, %s215
  $region4: #{conv_autoencoder_forward.13} parent=0 // loop_header_branch
    %17 = sbr.rel (%p15) target = $region8
  $region5: #{conv_autoencoder_forward.13} parent=0 // loop_body
    %s19 = ssub.s32 %s14, 1
    %s20 = ssub.s32 %s14, 2
    %s27 = sadd.s32 1, %s22
    %p28 = scmp.ge.s32.totalorder %s27, 1
    %s29 = scalar_select %p28, 0, %s27
    %s30 = sadd.s32 1, %s21
    %s31 = scalar_select %p28, %s30, %s21
    %p32 = scmp.ge.s32.totalorder %s31, 2
    %s33 = scalar_select %p32, 0, %s31
    %s34 = ssub.s32 %s21, %s33
    %s35 = ssub.s32 %s22, %s29
    %s36 = sor.u32 %s34, %s35
    %p37 = scmp.eq.s32.totalorder %s36, 0
    %s39 = sadd.s32 %s38, 1
    %s40 = scalar_select %p37, %s38, %s39
    %p43 = pneg %p37
    %p44 = scmp.eq.s32.totalorder %s14, 1
    %p45 = por %p43, %p44
    %p46 = scmp.ne.s32.totalorder %s38, %s41
    %p47 = scmp.eq.s32.totalorder %s14, 0
    %p48 = por %p46, %p47
    %p49 = scmp.ne.s32.totalorder %s38, %s41
    %p50 = scmp.eq.s32.totalorder %s19, 1
    %p51 = por %p49, %p50
    %p52 = scmp.ne.s32.totalorder %s41, %s42
    %p53 = scmp.eq.s32.totalorder %s19, 0
    %p54 = por %p52, %p53
    %p55 = scmp.ne.s32.totalorder %s41, %s42
    %p56 = scmp.eq.s32.totalorder %s20, 1
    %p57 = por %p55, %p56
    %p59 = scmp.ne.s32.totalorder %s42, %s58
    %p60 = scmp.eq.s32.totalorder %s20, 0
    %p61 = por %p59, %p60
    %s62 = ssub.s32 %s21, %s33
    %p63 = scmp.eq.s32.totalorder %s62, 0
    %s65 = sadd.s32 %s64, 1
    %s66 = scalar_select %p63, %s64, %s65
    %p69 = pneg %p63
    %p70 = scmp.eq.s32.totalorder %s14, 1
    %p71 = por %p69, %p70
    %p72 = scmp.ne.s32.totalorder %s64, %s67
    %p73 = scmp.eq.s32.totalorder %s14, 0
    %p74 = por %p72, %p73
    %p75 = scmp.ne.s32.totalorder %s64, %s67
    %p76 = scmp.eq.s32.totalorder %s19, 1
    %p77 = por %p75, %p76
    %p78 = scmp.ne.s32.totalorder %s67, %s68
    %p79 = scmp.eq.s32.totalorder %s19, 0
    %p80 = por %p78, %p79
    %p81 = scmp.ne.s32.totalorder %s67, %s68
    %p82 = scmp.eq.s32.totalorder %s20, 1
    %p83 = por %p81, %p82
    %p85 = scmp.ne.s32.totalorder %s68, %s84
    %p86 = scmp.eq.s32.totalorder %s20, 0
    %p87 = por %p85, %p86
    %s89 = sadd.s32 %s88, 1
    %p92 = scmp.eq.s32.totalorder %s14, 1
    %p93 = scmp.ne.s32.totalorder %s88, %s90
    %p94 = scmp.eq.s32.totalorder %s14, 0
    %p95 = por %p93, %p94
    %p96 = scmp.ne.s32.totalorder %s88, %s90
    %p97 = scmp.eq.s32.totalorder %s19, 1
    %p98 = por %p96, %p97
    %p99 = scmp.ne.s32.totalorder %s90, %s91
    %p100 = scmp.eq.s32.totalorder %s19, 0
    %p101 = por %p99, %p100
    %p102 = scmp.ne.s32.totalorder %s90, %s91
    %p103 = scmp.eq.s32.totalorder %s20, 1
    %p104 = por %p102, %p103
    %p106 = scmp.ne.s32.totalorder %s91, %s105
    %p107 = scmp.eq.s32.totalorder %s20, 0
    %p108 = por %p106, %p107
    %s110 = sadd.s32 %s109, 1
    %p113 = scmp.eq.s32.totalorder %s14, 1
    %p114 = scmp.ne.s32.totalorder %s109, %s111
    %p115 = scmp.eq.s32.totalorder %s14, 0
    %p116 = por %p114, %p115
    %p117 = scmp.ne.s32.totalorder %s109, %s111
    %p118 = scmp.eq.s32.totalorder %s19, 1
    %p119 = por %p117, %p118
    %p120 = scmp.ne.s32.totalorder %s111, %s112
    %p121 = scmp.eq.s32.totalorder %s19, 0
    %p122 = por %p120, %p121
    %p123 = scmp.ne.s32.totalorder %s111, %s112
    %p124 = scmp.eq.s32.totalorder %s20, 1
    %p125 = por %p123, %p124
    %p127 = scmp.ne.s32.totalorder %s112, %s126
    %p128 = scmp.eq.s32.totalorder %s20, 0
    %p129 = por %p127, %p128
    %s131 = sadd.s32 %s130, 1
    %p134 = scmp.eq.s32.totalorder %s14, 1
    %p135 = scmp.ne.s32.totalorder %s130, %s132
    %p136 = scmp.eq.s32.totalorder %s14, 0
    %p137 = por %p135, %p136
    %p138 = scmp.ne.s32.totalorder %s130, %s132
    %p139 = scmp.eq.s32.totalorder %s19, 1
    %p140 = por %p138, %p139
    %p141 = scmp.ne.s32.totalorder %s132, %s133
    %p142 = scmp.eq.s32.totalorder %s19, 0
    %p143 = por %p141, %p142
    %p144 = scmp.ne.s32.totalorder %s132, %s133
    %p145 = scmp.eq.s32.totalorder %s20, 1
    %p146 = por %p144, %p145
    %p148 = scmp.ne.s32.totalorder %s133, %s147
    %p149 = scmp.eq.s32.totalorder %s20, 0
    %p150 = por %p148, %p149
    %s151 = ssub.s32 %s21, %s33
    %s152 = ssub.s32 %s22, %s29
    %s153 = sor.u32 %s151, %s152
    %p154 = scmp.eq.s32.totalorder %s153, 0
    %s156 = sadd.s32 %s155, 1
    %s157 = scalar_select %p154, %s155, %s156
    %p160 = pneg %p154
    %p161 = scmp.eq.s32.totalorder %s14, 1
    %p162 = por %p160, %p161
    %p163 = scmp.ne.s32.totalorder %s155, %s158
    %p164 = scmp.eq.s32.totalorder %s14, 0
    %p165 = por %p163, %p164
    %p166 = scmp.ne.s32.totalorder %s155, %s158
    %p167 = scmp.eq.s32.totalorder %s19, 1
    %p168 = por %p166, %p167
    %p169 = scmp.ne.s32.totalorder %s158, %s159
    %p170 = scmp.eq.s32.totalorder %s19, 0
    %p171 = por %p169, %p170
    %p172 = scmp.ne.s32.totalorder %s158, %s159
    %p173 = scmp.eq.s32.totalorder %s20, 1
    %p174 = por %p172, %p173
    %p176 = scmp.ne.s32.totalorder %s159, %s175
    %p177 = scmp.eq.s32.totalorder %s20, 0
    %p178 = por %p176, %p177
    %s179 = ssub.s32 %s21, %s33
    %s180 = ssub.s32 %s22, %s29
    %s181 = sor.u32 %s179, %s180
    %p182 = scmp.eq.s32.totalorder %s181, 0
    %s184 = sadd.s32 %s183, 1
    %s185 = scalar_select %p182, %s183, %s184
    %p188 = pneg %p182
    %p189 = scmp.eq.s32.totalorder %s14, 1
    %p190 = por %p188, %p189
    %p191 = scmp.ne.s32.totalorder %s183, %s186
    %p192 = scmp.eq.s32.totalorder %s14, 0
    %p193 = por %p191, %p192
    %p194 = scmp.ne.s32.totalorder %s183, %s186
    %p195 = scmp.eq.s32.totalorder %s19, 1
    %p196 = por %p194, %p195
    %p197 = scmp.ne.s32.totalorder %s186, %s187
    %p198 = scmp.eq.s32.totalorder %s19, 0
    %p199 = por %p197, %p198
    %p200 = scmp.ne.s32.totalorder %s186, %s187
    %p201 = scmp.eq.s32.totalorder %s20, 1
    %p202 = por %p200, %p201
    %p204 = scmp.ne.s32.totalorder %s187, %s203
    %p205 = scmp.eq.s32.totalorder %s20, 0
    %p206 = por %p204, %p205
    %s207 = ssub.s32 %s21, %s33
    %s208 = ssub.s32 %s22, %s29
    %s209 = sor.u32 %s207, %s208
    %p210 = scmp.eq.s32.totalorder %s209, 0
    %s212 = sadd.s32 %s211, 1
    %s213 = scalar_select %p210, %s211, %s212
    %p216 = pneg %p210
    %p217 = scmp.eq.s32.totalorder %s14, 1
    %p218 = por %p216, %p217
    %p219 = scmp.ne.s32.totalorder %s211, %s214
    %p220 = scmp.eq.s32.totalorder %s14, 0
    %p221 = por %p219, %p220
    %p222 = scmp.ne.s32.totalorder %s211, %s214
    %p223 = scmp.eq.s32.totalorder %s19, 1
    %p224 = por %p222, %p223
    %p225 = scmp.ne.s32.totalorder %s214, %s215
    %p226 = scmp.eq.s32.totalorder %s19, 0
    %p227 = por %p225, %p226
    %p228 = scmp.ne.s32.totalorder %s214, %s215
    %p229 = scmp.eq.s32.totalorder %s20, 1
    %p230 = por %p228, %p229
    %p232 = scmp.ne.s32.totalorder %s215, %s231
    %p233 = scmp.eq.s32.totalorder %s20, 0
    %p234 = por %p232, %p233
    %p235 = scmp.le.s32.totalorder 1, %s14
    %p236 = scmp.lt.s32.totalorder %s14, 3
    %p237 = pnand %p235, %p236
    %p238 = pneg %p237
    // Predicated region
    $region9: #{conv_autoencoder_forward.13} parent=5 // pred_check
      _
    $region10: #{conv_autoencoder_forward.13} parent=5 // pred_check_branch
      %240 = sbr.rel (%p237) target = $region12
    $region11: #{conv_autoencoder_forward.13} parent=5 // pred_region
      %s241 = ssub.s32 %s14, 1
      // Predicated region
      $region13: #{conv_autoencoder_forward.13} parent=11 // pred_check
        %p242 = pneg %p101
      $region14: #{conv_autoencoder_forward.13} parent=11 // pred_check_branch
        %244 = sbr.rel (%p242) target = $region16
      $region15: #{conv_autoencoder_forward.13} parent=11 // pred_region
        _
      $region16: #{conv_autoencoder_forward.13} parent=11 // pred_fallthru
        _
      // Predicated region
      $region17: #{conv_autoencoder_forward.13} parent=11 // pred_check
        %p245 = pneg %p122
      $region18: #{conv_autoencoder_forward.13} parent=11 // pred_check_branch
        %247 = sbr.rel (%p245) target = $region20
      $region19: #{conv_autoencoder_forward.13} parent=11 // pred_region
        _
      $region20: #{conv_autoencoder_forward.13} parent=11 // pred_fallthru
        _
      // Predicated region
      $region21: #{conv_autoencoder_forward.13} parent=11 // pred_check
        %p248 = pneg %p143
      $region22: #{conv_autoencoder_forward.13} parent=11 // pred_check_branch
        %250 = sbr.rel (%p248) target = $region24
      $region23: #{conv_autoencoder_forward.13} parent=11 // pred_region
        _
      $region24: #{conv_autoencoder_forward.13} parent=11 // pred_fallthru
        _
    $region12: #{conv_autoencoder_forward.13} parent=5 // pred_fallthru
      _
    %p251 = scmp.lt.s32.totalorder %s14, 2
    // Predicated region
    $region25: #{conv_autoencoder_forward.13} parent=5 // pred_check
      %p252 = pneg %p251
    $region26: #{conv_autoencoder_forward.13} parent=5 // pred_check_branch
      %254 = sbr.rel (%p252) target = $region28
    $region27: #{conv_autoencoder_forward.13} parent=5 // pred_region
      // Predicated region
      $region29: #{conv_autoencoder_forward.13} parent=27 // pred_check
        %p255 = pneg %p48
      $region30: #{conv_autoencoder_forward.13} parent=27 // pred_check_branch
        %257 = sbr.rel (%p255) target = $region32
      $region31: #{conv_autoencoder_forward.13} parent=27 // pred_region
        %p258 = scmp.lt.s32.totalorder %s21, 1
        %s259 = scalar_select %p258, %s21, 1
        %p260 = scmp.lt.s32.totalorder %s22, 0
        %s261 = scalar_select %p260, %s22, 0
        %s262 = smul.addr %s261, 2
        %s263 = smul.addr %s259, 2
        %s264 = sadd.s32 %s262, %s263
        %s265 = scalar_lea.vmem %s0, %s264
      $region32: #{conv_autoencoder_forward.13} parent=27 // pred_fallthru
        _
      // Predicated region
      $region33: #{conv_autoencoder_forward.13} parent=27 // pred_check
        %p266 = pneg %p74
      $region34: #{conv_autoencoder_forward.13} parent=27 // pred_check_branch
        %268 = sbr.rel (%p266) target = $region36
      $region35: #{conv_autoencoder_forward.13} parent=27 // pred_region
        %p269 = scmp.lt.s32.totalorder %s21, 1
        %s270 = scalar_select %p269, %s21, 1
        %s271 = smul.addr %s270, 2
        %s272 = scalar_lea.vmem %s1, %s271
      $region36: #{conv_autoencoder_forward.13} parent=27 // pred_fallthru
        _
    $region28: #{conv_autoencoder_forward.13} parent=5 // pred_fallthru
      _
    %p273 = scmp.le.s32.totalorder 1, %s14
    %p274 = scmp.lt.s32.totalorder %s14, 3
    %p275 = pnand %p273, %p274
    %p276 = pneg %p275
    // Predicated region
    $region37: #{conv_autoencoder_forward.13} parent=5 // pred_check
      _
    $region38: #{conv_autoencoder_forward.13} parent=5 // pred_check_branch
      %278 = sbr.rel (%p275) target = $region40
    $region39: #{conv_autoencoder_forward.13} parent=5 // pred_region
      %s279 = ssub.s32 %s14, 1
      %p280 = scmp.lt.s32.totalorder %s23, 1
      %s281 = scalar_select %p280, %s23, 1
      %p282 = scmp.lt.s32.totalorder %s24, 0
      %s283 = scalar_select %p282, %s24, 0
      %s284 = smul.addr %s283, 2
      %s285 = smul.addr %s281, 2
      %s286 = sadd.s32 %s284, %s285
      %s287 = scalar_lea.vmem %s0, %s286
      %p288 = pneg %p54
      %p289 = pneg %p51
      %p290 = scmp.lt.s32.totalorder %s23, 1
      %s291 = scalar_select %p290, %s23, 1
      %s292 = smul.addr %s291, 2
      %s293 = scalar_lea.vmem %s1, %s292
      %p294 = pneg %p80
      %p295 = pneg %p77
      %p296 = pneg %p101
      %p297 = pneg %p98
      %p298 = pneg %p122
      %p299 = pneg %p119
      %p300 = pneg %p143
      %p301 = pneg %p140
      %p302 = pneg %p171
      %p303 = pneg %p168
      %p304 = scmp.lt.s32.totalorder %s23, 1
      %s305 = scalar_select %p304, %s23, 1
      %p306 = scmp.lt.s32.totalorder %s24, 0
      %s307 = scalar_select %p306, %s24, 0
      %s308 = smul.addr %s307, 2
      %s309 = smul.addr %s305, 2
      %s310 = sadd.s32 %s308, %s309
      %s311 = scalar_lea.vmem %s5, %s310
      %p312 = pneg %p199
      %p313 = pneg %p196
      %p314 = scmp.lt.s32.totalorder %s23, 1
      %s315 = scalar_select %p314, %s23, 1
      %p316 = scmp.lt.s32.totalorder %s24, 0
      %s317 = scalar_select %p316, %s24, 0
      %s318 = smul.addr %s317, 2
      %s319 = smul.addr %s315, 2
      %s320 = sadd.s32 %s318, %s319
      %s321 = scalar_lea.vmem %s6, %s320
      %p322 = pneg %p227
      %p323 = pneg %p224
      %p324 = scmp.lt.s32.totalorder %s23, 1
      %s325 = scalar_select %p324, %s23, 1
      %p326 = scmp.lt.s32.totalorder %s24, 0
      %s327 = scalar_select %p326, %s24, 0
      %s328 = smul.addr %s327, 2
      %s329 = smul.addr %s325, 2
      %s330 = sadd.s32 %s328, %s329
      %s331 = scalar_lea.vmem %s7, %s330
      %p332 = scmp.lt.s32.totalorder %s23, 1
      %s333 = scalar_select %p332, %s23, 1
      %p334 = scmp.lt.s32.totalorder %s24, 0
      %s335 = scalar_select %p334, %s24, 0
      %s336 = smul.addr %s335, 2
      %s337 = smul.addr %s333, 2
      %s338 = sadd.s32 %s336, %s337
      %s339 = scalar_lea.vmem %s0, %s338
      %p340 = scmp.lt.s32.totalorder %s23, 1
      %s341 = scalar_select %p340, %s23, 1
      %s342 = smul.addr %s341, 2
      %s343 = scalar_lea.vmem %s1, %s342
      %p344 = scmp.lt.s32.totalorder %s23, 1
      %s345 = scalar_select %p344, %s23, 1
      %p346 = scmp.lt.s32.totalorder %s24, 0
      %s347 = scalar_select %p346, %s24, 0
      %s348 = smul.addr %s347, 2
      %s349 = smul.addr %s345, 2
      %s350 = sadd.s32 %s348, %s349
      %s351 = scalar_lea.vmem %s5, %s350
      %p352 = scmp.lt.s32.totalorder %s23, 1
      %s353 = scalar_select %p352, %s23, 1
      %p354 = scmp.lt.s32.totalorder %s24, 0
      %s355 = scalar_select %p354, %s24, 0
      %s356 = smul.addr %s355, 2
      %s357 = smul.addr %s353, 2
      %s358 = sadd.s32 %s356, %s357
      %s359 = scalar_lea.vmem %s6, %s358
      %p360 = scmp.lt.s32.totalorder %s23, 1
      %s361 = scalar_select %p360, %s23, 1
      %p362 = scmp.lt.s32.totalorder %s24, 0
      %s363 = scalar_select %p362, %s24, 0
      %s364 = smul.addr %s363, 2
      %s365 = smul.addr %s361, 2
      %s366 = sadd.s32 %s364, %s365
      %s367 = scalar_lea.vmem %s7, %s366
      %v368 = vld [vmem:[%s339] sm:$0x3]
      %s369 = smul.u32 %s24, 2
      %s370 = scalar_lea.vmem %s343, %s369
      %v371 = vld [vmem:[%s370] sm:$0x3]
      %v372 = vunpack.c.l.bf16 %v368
      %374 = vst [vmem:[#allocation1] sm:$0xff] %v372
      %s375 = scalar_lea.vmem [#allocation1], 1
      %v376 = vld [vmem:[%s375] ss:$2 sm:$0xff]
      %v378 = vlaneseq
      %vm379 = vcmp.ge.s32.totalorder %v378, 0
      %vm380 = vcmp.lt.s32.totalorder %v378, 256
      %vm381 = vmand %vm379, %vm380
      %382 = vst.msk [vmem:[#allocation2] ss:$2 sm:$0x3] %vm381, %v376
      %s383 = scalar_lea.vmem [#allocation2], 1
      %384 = vst.msk [vmem:[%s383] ss:$2 sm:$0x3] %vm381, %v371
      %v385 = vld [vmem:[#allocation2] sm:$0xf]
      %387 = vst [vmem:[#allocation1] ss:$4 sm:$0xff] %v385
      %v388 = vld.sshfl [vmem:[#allocation1] sm:$0xff pattern:$0x73625140]
      %v389 = vld.sshfl [vmem:[#allocation1 + $0x8] sm:$0xff pattern:$0x73625140]
      %v392 = vpack.c.bf16 %v389, %v388
      %394 = vst [vmem:[#allocation1] ss:$9 sm:$0xff] %v368
      %v395 = vld [vmem:[#allocation1] sm:$0xff]
      %v396 = vld [vmem:[#allocation1 + $0x9] sm:$0xff]
      %v400 = vunpack.c.l.b16 %v392
      %v401 = vunpack.c.h.b16 %v392
      %v402 = vpack.c.b16 %v400, %v400
      %v403 = vpack.c.b16 %v401, %v401
      %v406 = vld [vmem:[%s2] sm:$0xff]
      %v407 = vld [vmem:[%s2 + $0x8] sm:$0xff]
      %v408 = vld [vmem:[%s2 + $0x10] sm:$0xff]
      %v409 = vld [vmem:[%s2 + $0x18] sm:$0xff]
      %v410 = vld [vmem:[%s2 + $0x20] sm:$0xff]
      %v411 = vld [vmem:[%s2 + $0x28] sm:$0xff]
      %v412 = vld [vmem:[%s2 + $0x30] sm:$0xff]
      %v413 = vld [vmem:[%s2 + $0x38] sm:$0xff]
      %v414 = vld [vmem:[%s2 + $0x40] sm:$0xff]
      %v415 = vld [vmem:[%s2 + $0x48] sm:$0xff]
      %v416 = vld [vmem:[%s2 + $0x50] sm:$0xff]
      %v417 = vld [vmem:[%s2 + $0x58] sm:$0xff]
      %v418 = vld [vmem:[%s2 + $0x60] sm:$0xff]
      %v419 = vld [vmem:[%s2 + $0x68] sm:$0xff]
      %v420 = vld [vmem:[%s2 + $0x70] sm:$0xff]
      %v421 = vld [vmem:[%s2 + $0x78] sm:$0xff]
      %v422 = vld [vmem:[%s2 + $0x80] sm:$0xff]
      %v423 = vld [vmem:[%s2 + $0x88] sm:$0xff]
      %v424 = vld [vmem:[%s2 + $0x90] sm:$0xff]
      %v425 = vld [vmem:[%s2 + $0x98] sm:$0xff]
      %v426 = vld [vmem:[%s2 + $0xa0] sm:$0xff]
      %v427 = vld [vmem:[%s2 + $0xa8] sm:$0xff]
      %v428 = vld [vmem:[%s2 + $0xb0] sm:$0xff]
      %v429 = vld [vmem:[%s2 + $0xb8] sm:$0xff]
      %v430 = vld [vmem:[%s2 + $0xc0] sm:$0xff]
      %v431 = vld [vmem:[%s2 + $0xc8] sm:$0xff]
      %v432 = vld [vmem:[%s2 + $0xd0] sm:$0xff]
      %v433 = vld [vmem:[%s2 + $0xd8] sm:$0xff]
      %v434 = vld [vmem:[%s2 + $0xe0] sm:$0xff]
      %v435 = vld [vmem:[%s2 + $0xe8] sm:$0xff]
      %v436 = vld [vmem:[%s2 + $0xf0] sm:$0xff]
      %v437 = vld [vmem:[%s2 + $0xf8] sm:$0xff]
      %v438 = vld [vmem:[%s2 + $0x100] sm:$0xff]
      %v439 = vld [vmem:[%s2 + $0x108] sm:$0xff]
      %v440 = vld [vmem:[%s2 + $0x110] sm:$0xff]
      %v441 = vld [vmem:[%s2 + $0x118] sm:$0xff]
      %v442 = vld [vmem:[%s2 + $0x120] sm:$0xff]
      %v443 = vld [vmem:[%s2 + $0x128] sm:$0xff]
      %v444 = vld [vmem:[%s2 + $0x130] sm:$0xff]
      %v445 = vld [vmem:[%s2 + $0x138] sm:$0xff]
      %v446 = vld [vmem:[%s2 + $0x140] sm:$0xff]
      %v447 = vld [vmem:[%s2 + $0x148] sm:$0xff]
      %v448 = vld [vmem:[%s2 + $0x150] sm:$0xff]
      %v449 = vld [vmem:[%s2 + $0x158] sm:$0xff]
      %v450 = vld [vmem:[%s2 + $0x160] sm:$0xff]
      %v451 = vld [vmem:[%s2 + $0x168] sm:$0xff]
      %v452 = vld [vmem:[%s2 + $0x170] sm:$0xff]
      %v453 = vld [vmem:[%s2 + $0x178] sm:$0xff]
      %v454 = vld [vmem:[%s2 + $0x180] sm:$0xff]
      %v455 = vld [vmem:[%s2 + $0x188] sm:$0xff]
      %v456 = vld [vmem:[%s2 + $0x190] sm:$0xff]
      %v457 = vld [vmem:[%s2 + $0x198] sm:$0xff]
      %v458 = vld [vmem:[%s2 + $0x1a0] sm:$0xff]
      %v459 = vld [vmem:[%s2 + $0x1a8] sm:$0xff]
      %v460 = vld [vmem:[%s2 + $0x1b0] sm:$0xff]
      %v461 = vld [vmem:[%s2 + $0x1b8] sm:$0xff]
      %v462 = vld [vmem:[%s2 + $0x1c0] sm:$0xff]
      %v463 = vld [vmem:[%s2 + $0x1c8] sm:$0xff]
      %v464 = vld [vmem:[%s2 + $0x1d0] sm:$0xff]
      %v465 = vld [vmem:[%s2 + $0x1d8] sm:$0xff]
      %v466 = vld [vmem:[%s2 + $0x1e0] sm:$0xff]
      %v467 = vld [vmem:[%s2 + $0x1e8] sm:$0xff]
      %v468 = vld [vmem:[%s2 + $0x1f0] sm:$0xff]
      %v469 = vld [vmem:[%s2 + $0x1f8] sm:$0xff]
      %v470 = vld [vmem:[%s3] sm:$0x3]
      %v472 = vperm.slane %v470, 0
      %v473 = vperm.slane %v470, 1
      %v540 = vunpack.c.l.b16 %v406
      %v541 = vunpack.c.h.b16 %v406
      %v542 = vunpack.c.l.b16 %v407
      %v543 = vunpack.c.h.b16 %v407
      %v544 = vunpack.c.l.b16 %v408
      %v545 = vunpack.c.h.b16 %v408
      %v546 = vunpack.c.l.b16 %v409
      %v547 = vunpack.c.h.b16 %v409
      %v548 = vunpack.c.l.b16 %v410
      %v549 = vunpack.c.h.b16 %v410
      %v550 = vunpack.c.l.b16 %v411
      %v551 = vunpack.c.h.b16 %v411
      %v552 = vunpack.c.l.b16 %v412
      %v553 = vunpack.c.h.b16 %v412
      %v554 = vunpack.c.l.b16 %v413
      %v555 = vunpack.c.h.b16 %v413
      %v556 = vunpack.c.l.b16 %v414
      %v557 = vunpack.c.h.b16 %v414
      %v558 = vunpack.c.l.b16 %v415
      %v559 = vunpack.c.h.b16 %v415
      %v560 = vunpack.c.l.b16 %v416
      %v561 = vunpack.c.h.b16 %v416
      %v562 = vunpack.c.l.b16 %v417
      %v563 = vunpack.c.h.b16 %v417
      %v564 = vunpack.c.l.b16 %v418
      %v565 = vunpack.c.h.b16 %v418
      %v566 = vunpack.c.l.b16 %v419
      %v567 = vunpack.c.h.b16 %v419
      %v568 = vunpack.c.l.b16 %v420
      %v569 = vunpack.c.h.b16 %v420
      %v570 = vunpack.c.l.b16 %v421
      %v571 = vunpack.c.h.b16 %v421
      %v572 = vunpack.c.l.b16 %v422
      %v573 = vunpack.c.h.b16 %v422
      %v574 = vunpack.c.l.b16 %v423
      %v575 = vunpack.c.h.b16 %v423
      %v576 = vunpack.c.l.b16 %v424
      %v577 = vunpack.c.h.b16 %v424
      %v578 = vunpack.c.l.b16 %v425
      %v579 = vunpack.c.h.b16 %v425
      %v580 = vunpack.c.l.b16 %v426
      %v581 = vunpack.c.h.b16 %v426
      %v582 = vunpack.c.l.b16 %v427
      %v583 = vunpack.c.h.b16 %v427
      %v584 = vunpack.c.l.b16 %v428
      %v585 = vunpack.c.h.b16 %v428
      %v586 = vunpack.c.l.b16 %v429
      %v587 = vunpack.c.h.b16 %v429
      %v588 = vunpack.c.l.b16 %v430
      %v589 = vunpack.c.h.b16 %v430
      %v590 = vunpack.c.l.b16 %v431
      %v591 = vunpack.c.h.b16 %v431
      %v592 = vunpack.c.l.b16 %v432
      %v593 = vunpack.c.h.b16 %v432
      %v594 = vunpack.c.l.b16 %v433
      %v595 = vunpack.c.h.b16 %v433
      %v596 = vunpack.c.l.b16 %v434
      %v597 = vunpack.c.h.b16 %v434
      %v598 = vunpack.c.l.b16 %v435
      %v599 = vunpack.c.h.b16 %v435
      %v600 = vunpack.c.l.b16 %v436
      %v601 = vunpack.c.h.b16 %v436
      %v602 = vunpack.c.l.b16 %v437
      %v603 = vunpack.c.h.b16 %v437
      %v604 = vunpack.c.l.b16 %v438
      %v605 = vunpack.c.h.b16 %v438
      %v606 = vunpack.c.l.b16 %v439
      %v607 = vunpack.c.h.b16 %v439
      %v608 = vunpack.c.l.b16 %v440
      %v609 = vunpack.c.h.b16 %v440
      %v610 = vunpack.c.l.b16 %v441
      %v611 = vunpack.c.h.b16 %v441
      %v612 = vunpack.c.l.b16 %v442
      %v613 = vunpack.c.h.b16 %v442
      %v614 = vunpack.c.l.b16 %v443
      %v615 = vunpack.c.h.b16 %v443
      %v616 = vunpack.c.l.b16 %v444
      %v617 = vunpack.c.h.b16 %v444
      %v618 = vunpack.c.l.b16 %v445
      %v619 = vunpack.c.h.b16 %v445
      %v620 = vunpack.c.l.b16 %v446
      %v621 = vunpack.c.h.b16 %v446
      %v622 = vunpack.c.l.b16 %v447
      %v623 = vunpack.c.h.b16 %v447
      %v624 = vunpack.c.l.b16 %v448
      %v625 = vunpack.c.h.b16 %v448
      %v626 = vunpack.c.l.b16 %v449
      %v627 = vunpack.c.h.b16 %v449
      %v628 = vunpack.c.l.b16 %v450
      %v629 = vunpack.c.h.b16 %v450
      %v630 = vunpack.c.l.b16 %v451
      %v631 = vunpack.c.h.b16 %v451
      %v632 = vunpack.c.l.b16 %v452
      %v633 = vunpack.c.h.b16 %v452
      %v634 = vunpack.c.l.b16 %v453
      %v635 = vunpack.c.h.b16 %v453
      %v636 = vunpack.c.l.b16 %v454
      %v637 = vunpack.c.h.b16 %v454
      %v638 = vunpack.c.l.b16 %v455
      %v639 = vunpack.c.h.b16 %v455
      %v640 = vunpack.c.l.b16 %v456
      %v641 = vunpack.c.h.b16 %v456
      %v642 = vunpack.c.l.b16 %v457
      %v643 = vunpack.c.h.b16 %v457
      %v644 = vunpack.c.l.b16 %v458
      %v645 = vunpack.c.h.b16 %v458
      %v646 = vunpack.c.l.b16 %v459
      %v647 = vunpack.c.h.b16 %v459
      %v648 = vunpack.c.l.b16 %v460
      %v649 = vunpack.c.h.b16 %v460
      %v650 = vunpack.c.l.b16 %v461
      %v651 = vunpack.c.h.b16 %v461
      %v652 = vunpack.c.l.b16 %v462
      %v653 = vunpack.c.h.b16 %v462
      %v654 = vunpack.c.l.b16 %v463
      %v655 = vunpack.c.h.b16 %v463
      %v656 = vunpack.c.l.b16 %v464
      %v657 = vunpack.c.h.b16 %v464
      %v658 = vunpack.c.l.b16 %v465
      %v659 = vunpack.c.h.b16 %v465
      %v660 = vunpack.c.l.b16 %v466
      %v661 = vunpack.c.h.b16 %v466
      %v662 = vunpack.c.l.b16 %v467
      %v663 = vunpack.c.h.b16 %v467
      %v664 = vunpack.c.l.b16 %v468
      %v665 = vunpack.c.h.b16 %v468
      %v666 = vunpack.c.l.b16 %v469
      %v667 = vunpack.c.h.b16 %v469
      %v668 = vpack.c.b16 %v542, %v540
      %v669 = vpack.c.b16 %v543, %v541
      %v670 = vpack.c.b16 %v546, %v544
      %v671 = vpack.c.b16 %v547, %v545
      %v672 = vpack.c.b16 %v550, %v548
      %v673 = vpack.c.b16 %v551, %v549
      %v674 = vpack.c.b16 %v554, %v552
      %v675 = vpack.c.b16 %v555, %v553
      %v676 = vpack.c.b16 %v558, %v556
      %v677 = vpack.c.b16 %v559, %v557
      %v678 = vpack.c.b16 %v562, %v560
      %v679 = vpack.c.b16 %v563, %v561
      %v680 = vpack.c.b16 %v566, %v564
      %v681 = vpack.c.b16 %v567, %v565
      %v682 = vpack.c.b16 %v570, %v568
      %v683 = vpack.c.b16 %v571, %v569
      %v684 = vpack.c.b16 %v574, %v572
      %v685 = vpack.c.b16 %v575, %v573
      %v686 = vpack.c.b16 %v578, %v576
      %v687 = vpack.c.b16 %v579, %v577
      %v688 = vpack.c.b16 %v582, %v580
      %v689 = vpack.c.b16 %v583, %v581
      %v690 = vpack.c.b16 %v586, %v584
      %v691 = vpack.c.b16 %v587, %v585
      %v692 = vpack.c.b16 %v590, %v588
      %v693 = vpack.c.b16 %v591, %v589
      %v694 = vpack.c.b16 %v594, %v592
      %v695 = vpack.c.b16 %v595, %v593
      %v696 = vpack.c.b16 %v598, %v596
      %v697 = vpack.c.b16 %v599, %v597
      %v698 = vpack.c.b16 %v602, %v600
      %v699 = vpack.c.b16 %v603, %v601
      %v700 = vpack.c.b16 %v606, %v604
      %v701 = vpack.c.b16 %v607, %v605
      %v702 = vpack.c.b16 %v610, %v608
      %v703 = vpack.c.b16 %v611, %v609
      %v704 = vpack.c.b16 %v614, %v612
      %v705 = vpack.c.b16 %v615, %v613
      %v706 = vpack.c.b16 %v618, %v616
      %v707 = vpack.c.b16 %v619, %v617
      %v708 = vpack.c.b16 %v622, %v620
      %v709 = vpack.c.b16 %v623, %v621
      %v710 = vpack.c.b16 %v626, %v624
      %v711 = vpack.c.b16 %v627, %v625
      %v712 = vpack.c.b16 %v630, %v628
      %v713 = vpack.c.b16 %v631, %v629
      %v714 = vpack.c.b16 %v634, %v632
      %v715 = vpack.c.b16 %v635, %v633
      %v716 = vpack.c.b16 %v638, %v636
      %v717 = vpack.c.b16 %v639, %v637
      %v718 = vpack.c.b16 %v642, %v640
      %v719 = vpack.c.b16 %v643, %v641
      %v720 = vpack.c.b16 %v646, %v644
      %v721 = vpack.c.b16 %v647, %v645
      %v722 = vpack.c.b16 %v650, %v648
      %v723 = vpack.c.b16 %v651, %v649
      %v724 = vpack.c.b16 %v654, %v652
      %v725 = vpack.c.b16 %v655, %v653
      %v726 = vpack.c.b16 %v658, %v656
      %v727 = vpack.c.b16 %v659, %v657
      %v728 = vpack.c.b16 %v662, %v660
      %v729 = vpack.c.b16 %v663, %v661
      %v730 = vpack.c.b16 %v666, %v664
      %v731 = vpack.c.b16 %v667, %v665
      %796 = vmatpush.bf16.msra.mxu0 %v682
      %797 = vmatpush.bf16.msra.mxu0 %v680
      %798 = vmatpush.bf16.msra.mxu0 %v678
      %799 = vmatpush.bf16.msra.mxu0 %v676
      %800 = vmatpush.bf16.msra.mxu0 %v674
      %801 = vmatpush.bf16.msra.mxu0 %v672
      %802 = vmatpush.bf16.msra.mxu0 %v670
      %803 = vmatpush.bf16.msra.mxu0 %v668
      %804 = vmatmul.bf16.gmra.mxu0 %v395
      %v805 = vpop.f32.mrf.mxu0
      %v806 = vadd.f32 %v472, %v805
      %v807 = vpop.f32.mrf.mxu0
      %808 = vdwg.mxu0
      %809 = vmatpush.bf16.msra.mxu0 %v698
      %810 = vmatpush.bf16.msra.mxu0 %v696
      %811 = vmatpush.bf16.msra.mxu0 %v694
      %812 = vmatpush.bf16.msra.mxu0 %v692
      %813 = vmatpush.bf16.msra.mxu0 %v690
      %814 = vmatpush.bf16.msra.mxu0 %v688
      %815 = vmatpush.bf16.msra.mxu0 %v686
      %816 = vmatpush.bf16.msra.mxu0 %v684
      %817 = vmatmul.bf16.gmra.mxu0 %v396
      %v818 = vpop.f32.mrf.mxu0
      %v819 = vadd.f32 %v806, %v818
      %v820 = vpop.f32.mrf.mxu0
      %821 = vdwg.mxu0
      %822 = vmatpush.bf16.msra.mxu0 %v714
      %823 = vmatpush.bf16.msra.mxu0 %v712
      %824 = vmatpush.bf16.msra.mxu0 %v710
      %825 = vmatpush.bf16.msra.mxu0 %v708
      %826 = vmatpush.bf16.msra.mxu0 %v706
      %827 = vmatpush.bf16.msra.mxu0 %v704
      %828 = vmatpush.bf16.msra.mxu0 %v702
      %829 = vmatpush.bf16.msra.mxu0 %v700
      %830 = vmatmul.bf16.gmra.mxu0 %v402
      %v831 = vpop.f32.mrf.mxu0
      %v832 = vadd.f32 %v819, %v831
      %v833 = vpop.f32.mrf.mxu0
      %834 = vdwg.mxu0
      %835 = vmatpush.bf16.msra.mxu0 %v730
      %836 = vmatpush.bf16.msra.mxu0 %v728
      %837 = vmatpush.bf16.msra.mxu0 %v726
      %838 = vmatpush.bf16.msra.mxu0 %v724
      %839 = vmatpush.bf16.msra.mxu0 %v722
      %840 = vmatpush.bf16.msra.mxu0 %v720
      %841 = vmatpush.bf16.msra.mxu0 %v718
      %842 = vmatpush.bf16.msra.mxu0 %v716
      %843 = vmatmul.bf16.gmra.mxu0 %v403
      %v844 = vpop.f32.mrf.mxu0
      %v845 = vadd.f32 %v832, %v844
      %v846 = vpop.f32.mrf.mxu0
      %847 = vdwg.mxu0
      %848 = vmatpush.bf16.msra.mxu0 %v683
      %849 = vmatpush.bf16.msra.mxu0 %v681
      %850 = vmatpush.bf16.msra.mxu0 %v679
      %851 = vmatpush.bf16.msra.mxu0 %v677
      %852 = vmatpush.bf16.msra.mxu0 %v675
      %853 = vmatpush.bf16.msra.mxu0 %v673
      %854 = vmatpush.bf16.msra.mxu0 %v671
      %855 = vmatpush.bf16.msra.mxu0 %v669
      %856 = vmatmul.bf16.gmra.mxu0 %v395
      %v857 = vpop.f32.mrf.mxu0
      %v858 = vadd.f32 %v473, %v857
      %v859 = vpop.f32.mrf.mxu0
      %860 = vdwg.mxu0
      %861 = vmatpush.bf16.msra.mxu0 %v699
      %862 = vmatpush.bf16.msra.mxu0 %v697
      %863 = vmatpush.bf16.msra.mxu0 %v695
      %864 = vmatpush.bf16.msra.mxu0 %v693
      %865 = vmatpush.bf16.msra.mxu0 %v691
      %866 = vmatpush.bf16.msra.mxu0 %v689
      %867 = vmatpush.bf16.msra.mxu0 %v687
      %868 = vmatpush.bf16.msra.mxu0 %v685
      %869 = vmatmul.bf16.gmra.mxu0 %v396
      %v870 = vpop.f32.mrf.mxu0
      %v871 = vadd.f32 %v858, %v870
      %v872 = vpop.f32.mrf.mxu0
      %873 = vdwg.mxu0
      %874 = vmatpush.bf16.msra.mxu0 %v715
      %875 = vmatpush.bf16.msra.mxu0 %v713
      %876 = vmatpush.bf16.msra.mxu0 %v711
      %877 = vmatpush.bf16.msra.mxu0 %v709
      %878 = vmatpush.bf16.msra.mxu0 %v707
      %879 = vmatpush.bf16.msra.mxu0 %v705
      %880 = vmatpush.bf16.msra.mxu0 %v703
      %881 = vmatpush.bf16.msra.mxu0 %v701
      %882 = vmatmul.bf16.gmra.mxu0 %v402
      %v883 = vpop.f32.mrf.mxu0
      %v884 = vadd.f32 %v871, %v883
      %v885 = vpop.f32.mrf.mxu0
      %886 = vdwg.mxu0
      %887 = vmatpush.bf16.msra.mxu0 %v731
      %888 = vmatpush.bf16.msra.mxu0 %v729
      %889 = vmatpush.bf16.msra.mxu0 %v727
      %890 = vmatpush.bf16.msra.mxu0 %v725
      %891 = vmatpush.bf16.msra.mxu0 %v723
      %892 = vmatpush.bf16.msra.mxu0 %v721
      %893 = vmatpush.bf16.msra.mxu0 %v719
      %894 = vmatpush.bf16.msra.mxu0 %v717
      %895 = vmatmul.bf16.gmra.mxu0 %v403
      %v896 = vpop.f32.mrf.mxu0
      %v897 = vadd.f32 %v884, %v896
      %v898 = vpop.f32.mrf.mxu0
      %899 = vdwg.mxu0
      %v900 = vlaneseq
      %v901 = vshrl.u32 %v900, 7
      %v902 = vstv %s369
      %v903 = vadd.s32 %v901, %v902
      %vm904 = vcmp.eq.s32.totalorder %v903, 1
      %v905 = vsel %vm904, 1, 0
      %v906 = vcvt.s32.f32 %v905
      %v907 = vld [vmem:[%s4] sm:$0x3]
      %v909 = vperm.slane %v907, 0
      %v910 = vperm.slane %v907, 1
      %v913 = vmul.f32 %v906, %v909
      %v914 = vmul.f32 %v906, %v910
      %v915 = vsub.f32 %v845, %v913
      %v916 = vsub.f32 %v897, %v914
      %v917 = vmax.f32 %v915, 0.0
      %v918 = vmax.f32 %v916, 0.0
      %v919 = vpack.c.bf16 %v918, %v917
      %v921 = vrot.slane %v919, 3
      %vm922 = vcmask 1040384
      %v925 = vsel %vm922, %v919, %v921
      %927 = vst [vmem:[%s351] sm:$0x3] %v925
      %vm928 = vcmask 1041408
      %v929 = vsel %vm928, %v917, 0.0
      %v930 = vrot.slane %v929, 4
      %v931 = vadd.f32 %v929, %v930
      %v932 = vrot.slane %v931, 2
      %v933 = vadd.f32 %v931, %v932
      %v934 = vrot.slane %v933, 1
      %v935 = vadd.f32 %v933, %v934
      %v936 = vsel %vm928, %v918, 0.0
      %v937 = vrot.slane %v936, 4
      %v938 = vadd.f32 %v936, %v937
      %v939 = vrot.slane %v938, 2
      %v940 = vadd.f32 %v938, %v939
      %v941 = vrot.slane %v940, 1
      %v942 = vadd.f32 %v940, %v941
      %v945 = vrot.slane %v942, 7
      %v946 = vsel %vm922, %v935, %v945
      %948 = vst.msk [vmem:[%s359] sm:$0x3] %vm381, %v946
      %v949 = vmul.f32 %v917, %v917
      %v950 = vmul.f32 %v918, %v918
      %v951 = vsel %vm928, %v949, 0.0
      %v952 = vrot.slane %v951, 4
      %v953 = vadd.f32 %v951, %v952
      %v954 = vrot.slane %v953, 2
      %v955 = vadd.f32 %v953, %v954
      %v956 = vrot.slane %v955, 1
      %v957 = vadd.f32 %v955, %v956
      %v958 = vsel %vm928, %v950, 0.0
      %v959 = vrot.slane %v958, 4
      %v960 = vadd.f32 %v958, %v959
      %v961 = vrot.slane %v960, 2
      %v962 = vadd.f32 %v960, %v961
      %v963 = vrot.slane %v962, 1
      %v964 = vadd.f32 %v962, %v963
      %v967 = vrot.slane %v964, 7
      %v968 = vsel %vm922, %v957, %v967
      %970 = vst.msk [vmem:[%s367] sm:$0x3] %vm381, %v968
      %p971 = scmp.lt.s32.totalorder %s23, 1
      %s972 = scalar_select %p971, %s23, 1
      %p973 = scmp.lt.s32.totalorder %s24, 0
      %s974 = scalar_select %p973, %s24, 0
      %s975 = smul.addr %s974, 2
      %s976 = smul.addr %s972, 2
      %s977 = sadd.s32 %s975, %s976
      %s978 = scalar_lea.vmem %s5, %s977
      %p979 = scmp.lt.s32.totalorder %s23, 1
      %s980 = scalar_select %p979, %s23, 1
      %p981 = scmp.lt.s32.totalorder %s24, 0
      %s982 = scalar_select %p981, %s24, 0
      %s983 = smul.addr %s982, 2
      %s984 = smul.addr %s980, 2
      %s985 = sadd.s32 %s983, %s984
      %s986 = scalar_lea.vmem %s6, %s985
      %p987 = scmp.lt.s32.totalorder %s23, 1
      %s988 = scalar_select %p987, %s23, 1
      %p989 = scmp.lt.s32.totalorder %s24, 0
      %s990 = scalar_select %p989, %s24, 0
      %s991 = smul.addr %s990, 2
      %s992 = smul.addr %s988, 2
      %s993 = sadd.s32 %s991, %s992
      %s994 = scalar_lea.vmem %s7, %s993
      // Predicated region
      $region41: #{conv_autoencoder_forward.13} parent=39 // pred_check
        %p995 = pneg %p168
      $region42: #{conv_autoencoder_forward.13} parent=39 // pred_check_branch
        %997 = sbr.rel (%p995) target = $region44
      $region43: #{conv_autoencoder_forward.13} parent=39 // pred_region
        _
      $region44: #{conv_autoencoder_forward.13} parent=39 // pred_fallthru
        _
      // Predicated region
      $region45: #{conv_autoencoder_forward.13} parent=39 // pred_check
        %p998 = pneg %p196
      $region46: #{conv_autoencoder_forward.13} parent=39 // pred_check_branch
        %1000 = sbr.rel (%p998) target = $region48
      $region47: #{conv_autoencoder_forward.13} parent=39 // pred_region
        _
      $region48: #{conv_autoencoder_forward.13} parent=39 // pred_fallthru
        _
      // Predicated region
      $region49: #{conv_autoencoder_forward.13} parent=39 // pred_check
        %p1001 = pneg %p224
      $region50: #{conv_autoencoder_forward.13} parent=39 // pred_check_branch
        %1003 = sbr.rel (%p1001) target = $region52
      $region51: #{conv_autoencoder_forward.13} parent=39 // pred_region
        _
      $region52: #{conv_autoencoder_forward.13} parent=39 // pred_fallthru
        _
    $region40: #{conv_autoencoder_forward.13} parent=5 // pred_fallthru
      _
    %p1004 = scmp.le.s32.totalorder 2, %s14
    // Predicated region
    $region53: #{conv_autoencoder_forward.13} parent=5 // pred_check
      %p1005 = pneg %p1004
    $region54: #{conv_autoencoder_forward.13} parent=5 // pred_check_branch
      %1007 = sbr.rel (%p1005) target = $region56
    $region55: #{conv_autoencoder_forward.13} parent=5 // pred_region
      %s1008 = ssub.s32 %s14, 2
      // Predicated region
      $region57: #{conv_autoencoder_forward.13} parent=55 // pred_check
        %p1009 = pneg %p174
      $region58: #{conv_autoencoder_forward.13} parent=55 // pred_check_branch
        %1011 = sbr.rel (%p1009) target = $region60
      $region59: #{conv_autoencoder_forward.13} parent=55 // pred_region
        %p1012 = scmp.lt.s32.totalorder %s25, 1
        %s1013 = scalar_select %p1012, %s25, 1
        %p1014 = scmp.lt.s32.totalorder %s26, 0
        %s1015 = scalar_select %p1014, %s26, 0
        %s1016 = smul.addr %s1015, 2
        %s1017 = smul.addr %s1013, 2
        %s1018 = sadd.s32 %s1016, %s1017
        %s1019 = scalar_lea.vmem %s5, %s1018
      $region60: #{conv_autoencoder_forward.13} parent=55 // pred_fallthru
        _
      // Predicated region
      $region61: #{conv_autoencoder_forward.13} parent=55 // pred_check
        %p1020 = pneg %p202
      $region62: #{conv_autoencoder_forward.13} parent=55 // pred_check_branch
        %1022 = sbr.rel (%p1020) target = $region64
      $region63: #{conv_autoencoder_forward.13} parent=55 // pred_region
        %p1023 = scmp.lt.s32.totalorder %s25, 1
        %s1024 = scalar_select %p1023, %s25, 1
        %p1025 = scmp.lt.s32.totalorder %s26, 0
        %s1026 = scalar_select %p1025, %s26, 0
        %s1027 = smul.addr %s1026, 2
        %s1028 = smul.addr %s1024, 2
        %s1029 = sadd.s32 %s1027, %s1028
        %s1030 = scalar_lea.vmem %s6, %s1029
      $region64: #{conv_autoencoder_forward.13} parent=55 // pred_fallthru
        _
      // Predicated region
      $region65: #{conv_autoencoder_forward.13} parent=55 // pred_check
        %p1031 = pneg %p230
      $region66: #{conv_autoencoder_forward.13} parent=55 // pred_check_branch
        %1033 = sbr.rel (%p1031) target = $region68
      $region67: #{conv_autoencoder_forward.13} parent=55 // pred_region
        %p1034 = scmp.lt.s32.totalorder %s25, 1
        %s1035 = scalar_select %p1034, %s25, 1
        %p1036 = scmp.lt.s32.totalorder %s26, 0
        %s1037 = scalar_select %p1036, %s26, 0
        %s1038 = smul.addr %s1037, 2
        %s1039 = smul.addr %s1035, 2
        %s1040 = sadd.s32 %s1038, %s1039
        %s1041 = scalar_lea.vmem %s7, %s1040
      $region68: #{conv_autoencoder_forward.13} parent=55 // pred_fallthru
        _
    $region56: #{conv_autoencoder_forward.13} parent=5 // pred_fallthru
      _
  $region6: #{conv_autoencoder_forward.13} parent=0 // loop_footer
    %s18 = sadd.s32 1, %s14
  $region7: #{conv_autoencoder_forward.13} parent=0 // loop_footer_branch
    %13 = sbr.rel target = $region3
  $region8: #{conv_autoencoder_forward.13} parent=0 // loop_exit
    _

// kernel: conv_autoencoder_forward.15
$region0: #{conv_autoencoder_forward.15}
  #allocation0 [shape = 'u32[]', space=smem, size = 0x4, offset = 0x4, fixed_abs, tag = 'smem constant byte address 0x4 - core index']
  #allocation1 [shape = 'u32[72,128]{1,0:T(1,128)}', space=vmem, size = 0x9000, scoped, tag = 'internal scratch']
  #allocation2 [shape = 'f32[8,128]{1,0:T(8,128)}', space=vmem, size = 0x1000, scoped, tag = 'scratch operand']
  %s0 = inlined_call_operand.vmem [shape: bf16[2,8,128], index: 0, kind: input, shape index: {}]
  %s1 = inlined_call_operand.vmem [shape: f32[2,1,128], index: 1, kind: input, shape index: {}]
  %s2 = inlined_call_operand.vmem [shape: bf16[256,256], index: 2, kind: input, shape index: {}]
  %s3 = inlined_call_operand.vmem [shape: f32[1,256], index: 3, kind: input, shape index: {}]
  %s4 = inlined_call_operand.vmem [shape: f32[1,256], index: 4, kind: input, shape index: {}]
  %s5 = inlined_call_operand.vmem [shape: f32[2,8,256], index: 5, kind: output, shape index: {}]
  %s6 = sld [smem:[#allocation0]]
  $region53: #{conv_autoencoder_forward.15} parent=0
    _
  %s8 = ssub.s32 1, %s6
  %s9 = scalar_select 0, %s8, %s6
  loop: start=0, step=1, limit=4
  $region2: #{conv_autoencoder_forward.15} parent=0 // loop_pre_header
    _
  $region3: #{conv_autoencoder_forward.15} parent=0 // loop_header
    %s11 = sphi 0, %s15
    %p12 = scmp.ge.s32.totalorder %s11, 4
    %s18 = sphi 0, %s30
    %s19 = sphi 0, %s26
    %s20 = sphi 0, %s18
    %s21 = sphi 0, %s19
    %s22 = sphi 0, %s20
    %s23 = sphi 0, %s21
    %s35 = sphi 0, %s37
    %s38 = sphi 0, %s35
    %s39 = sphi 0, %s38
    %s55 = sphi 0, %s39
    %s61 = sphi 0, %s63
    %s64 = sphi 0, %s61
    %s65 = sphi 0, %s64
    %s81 = sphi 0, %s65
    %s85 = sphi 0, %s85
    %s87 = sphi 0, %s85
    %s88 = sphi 0, %s87
    %s102 = sphi 0, %s88
    %s106 = sphi 0, %s106
    %s108 = sphi 0, %s106
    %s109 = sphi 0, %s108
    %s123 = sphi 0, %s109
    %s127 = sphi 0, %s127
    %s129 = sphi 0, %s127
    %s130 = sphi 0, %s129
    %s144 = sphi 0, %s130
    %s152 = sphi 0, %s154
    %s155 = sphi 0, %s152
    %s156 = sphi 0, %s155
    %s172 = sphi 0, %s156
  $region4: #{conv_autoencoder_forward.15} parent=0 // loop_header_branch
    %14 = sbr.rel (%p12) target = $region8
  $region5: #{conv_autoencoder_forward.15} parent=0 // loop_body
    %s16 = ssub.s32 %s11, 1
    %s17 = ssub.s32 %s11, 2
    %s24 = sadd.s32 1, %s19
    %p25 = scmp.ge.s32.totalorder %s24, 1
    %s26 = scalar_select %p25, 0, %s24
    %s27 = sadd.s32 1, %s18
    %s28 = scalar_select %p25, %s27, %s18
    %p29 = scmp.ge.s32.totalorder %s28, 2
    %s30 = scalar_select %p29, 0, %s28
    %s31 = ssub.s32 %s18, %s30
    %s32 = ssub.s32 %s19, %s26
    %s33 = sor.u32 %s31, %s32
    %p34 = scmp.eq.s32.totalorder %s33, 0
    %s36 = sadd.s32 %s35, 1
    %s37 = scalar_select %p34, %s35, %s36
    %p40 = pneg %p34
    %p41 = scmp.eq.s32.totalorder %s11, 1
    %p42 = por %p40, %p41
    %p43 = scmp.ne.s32.totalorder %s35, %s38
    %p44 = scmp.eq.s32.totalorder %s11, 0
    %p45 = por %p43, %p44
    %p46 = scmp.ne.s32.totalorder %s35, %s38
    %p47 = scmp.eq.s32.totalorder %s16, 1
    %p48 = por %p46, %p47
    %p49 = scmp.ne.s32.totalorder %s38, %s39
    %p50 = scmp.eq.s32.totalorder %s16, 0
    %p51 = por %p49, %p50
    %p52 = scmp.ne.s32.totalorder %s38, %s39
    %p53 = scmp.eq.s32.totalorder %s17, 1
    %p54 = por %p52, %p53
    %p56 = scmp.ne.s32.totalorder %s39, %s55
    %p57 = scmp.eq.s32.totalorder %s17, 0
    %p58 = por %p56, %p57
    %s59 = ssub.s32 %s18, %s30
    %p60 = scmp.eq.s32.totalorder %s59, 0
    %s62 = sadd.s32 %s61, 1
    %s63 = scalar_select %p60, %s61, %s62
    %p66 = pneg %p60
    %p67 = scmp.eq.s32.totalorder %s11, 1
    %p68 = por %p66, %p67
    %p69 = scmp.ne.s32.totalorder %s61, %s64
    %p70 = scmp.eq.s32.totalorder %s11, 0
    %p71 = por %p69, %p70
    %p72 = scmp.ne.s32.totalorder %s61, %s64
    %p73 = scmp.eq.s32.totalorder %s16, 1
    %p74 = por %p72, %p73
    %p75 = scmp.ne.s32.totalorder %s64, %s65
    %p76 = scmp.eq.s32.totalorder %s16, 0
    %p77 = por %p75, %p76
    %p78 = scmp.ne.s32.totalorder %s64, %s65
    %p79 = scmp.eq.s32.totalorder %s17, 1
    %p80 = por %p78, %p79
    %p82 = scmp.ne.s32.totalorder %s65, %s81
    %p83 = scmp.eq.s32.totalorder %s17, 0
    %p84 = por %p82, %p83
    %s86 = sadd.s32 %s85, 1
    %p89 = scmp.eq.s32.totalorder %s11, 1
    %p90 = scmp.ne.s32.totalorder %s85, %s87
    %p91 = scmp.eq.s32.totalorder %s11, 0
    %p92 = por %p90, %p91
    %p93 = scmp.ne.s32.totalorder %s85, %s87
    %p94 = scmp.eq.s32.totalorder %s16, 1
    %p95 = por %p93, %p94
    %p96 = scmp.ne.s32.totalorder %s87, %s88
    %p97 = scmp.eq.s32.totalorder %s16, 0
    %p98 = por %p96, %p97
    %p99 = scmp.ne.s32.totalorder %s87, %s88
    %p100 = scmp.eq.s32.totalorder %s17, 1
    %p101 = por %p99, %p100
    %p103 = scmp.ne.s32.totalorder %s88, %s102
    %p104 = scmp.eq.s32.totalorder %s17, 0
    %p105 = por %p103, %p104
    %s107 = sadd.s32 %s106, 1
    %p110 = scmp.eq.s32.totalorder %s11, 1
    %p111 = scmp.ne.s32.totalorder %s106, %s108
    %p112 = scmp.eq.s32.totalorder %s11, 0
    %p113 = por %p111, %p112
    %p114 = scmp.ne.s32.totalorder %s106, %s108
    %p115 = scmp.eq.s32.totalorder %s16, 1
    %p116 = por %p114, %p115
    %p117 = scmp.ne.s32.totalorder %s108, %s109
    %p118 = scmp.eq.s32.totalorder %s16, 0
    %p119 = por %p117, %p118
    %p120 = scmp.ne.s32.totalorder %s108, %s109
    %p121 = scmp.eq.s32.totalorder %s17, 1
    %p122 = por %p120, %p121
    %p124 = scmp.ne.s32.totalorder %s109, %s123
    %p125 = scmp.eq.s32.totalorder %s17, 0
    %p126 = por %p124, %p125
    %s128 = sadd.s32 %s127, 1
    %p131 = scmp.eq.s32.totalorder %s11, 1
    %p132 = scmp.ne.s32.totalorder %s127, %s129
    %p133 = scmp.eq.s32.totalorder %s11, 0
    %p134 = por %p132, %p133
    %p135 = scmp.ne.s32.totalorder %s127, %s129
    %p136 = scmp.eq.s32.totalorder %s16, 1
    %p137 = por %p135, %p136
    %p138 = scmp.ne.s32.totalorder %s129, %s130
    %p139 = scmp.eq.s32.totalorder %s16, 0
    %p140 = por %p138, %p139
    %p141 = scmp.ne.s32.totalorder %s129, %s130
    %p142 = scmp.eq.s32.totalorder %s17, 1
    %p143 = por %p141, %p142
    %p145 = scmp.ne.s32.totalorder %s130, %s144
    %p146 = scmp.eq.s32.totalorder %s17, 0
    %p147 = por %p145, %p146
    %s148 = ssub.s32 %s18, %s30
    %s149 = ssub.s32 %s19, %s26
    %s150 = sor.u32 %s148, %s149
    %p151 = scmp.eq.s32.totalorder %s150, 0
    %s153 = sadd.s32 %s152, 1
    %s154 = scalar_select %p151, %s152, %s153
    %p157 = pneg %p151
    %p158 = scmp.eq.s32.totalorder %s11, 1
    %p159 = por %p157, %p158
    %p160 = scmp.ne.s32.totalorder %s152, %s155
    %p161 = scmp.eq.s32.totalorder %s11, 0
    %p162 = por %p160, %p161
    %p163 = scmp.ne.s32.totalorder %s152, %s155
    %p164 = scmp.eq.s32.totalorder %s16, 1
    %p165 = por %p163, %p164
    %p166 = scmp.ne.s32.totalorder %s155, %s156
    %p167 = scmp.eq.s32.totalorder %s16, 0
    %p168 = por %p166, %p167
    %p169 = scmp.ne.s32.totalorder %s155, %s156
    %p170 = scmp.eq.s32.totalorder %s17, 1
    %p171 = por %p169, %p170
    %p173 = scmp.ne.s32.totalorder %s156, %s172
    %p174 = scmp.eq.s32.totalorder %s17, 0
    %p175 = por %p173, %p174
    %p176 = scmp.le.s32.totalorder 1, %s11
    %p177 = scmp.lt.s32.totalorder %s11, 3
    %p178 = pnand %p176, %p177
    %p179 = pneg %p178
    // Predicated region
    $region9: #{conv_autoencoder_forward.15} parent=5 // pred_check
      _
    $region10: #{conv_autoencoder_forward.15} parent=5 // pred_check_branch
      %181 = sbr.rel (%p178) target = $region12
    $region11: #{conv_autoencoder_forward.15} parent=5 // pred_region
      %s182 = ssub.s32 %s11, 1
      // Predicated region
      $region13: #{conv_autoencoder_forward.15} parent=11 // pred_check
        %p183 = pneg %p98
      $region14: #{conv_autoencoder_forward.15} parent=11 // pred_check_branch
        %185 = sbr.rel (%p183) target = $region16
      $region15: #{conv_autoencoder_forward.15} parent=11 // pred_region
        _
      $region16: #{conv_autoencoder_forward.15} parent=11 // pred_fallthru
        _
      // Predicated region
      $region17: #{conv_autoencoder_forward.15} parent=11 // pred_check
        %p186 = pneg %p119
      $region18: #{conv_autoencoder_forward.15} parent=11 // pred_check_branch
        %188 = sbr.rel (%p186) target = $region20
      $region19: #{conv_autoencoder_forward.15} parent=11 // pred_region
        _
      $region20: #{conv_autoencoder_forward.15} parent=11 // pred_fallthru
        _
      // Predicated region
      $region21: #{conv_autoencoder_forward.15} parent=11 // pred_check
        %p189 = pneg %p140
      $region22: #{conv_autoencoder_forward.15} parent=11 // pred_check_branch
        %191 = sbr.rel (%p189) target = $region24
      $region23: #{conv_autoencoder_forward.15} parent=11 // pred_region
        _
      $region24: #{conv_autoencoder_forward.15} parent=11 // pred_fallthru
        _
    $region12: #{conv_autoencoder_forward.15} parent=5 // pred_fallthru
      _
    %p192 = scmp.lt.s32.totalorder %s11, 2
    // Predicated region
    $region25: #{conv_autoencoder_forward.15} parent=5 // pred_check
      %p193 = pneg %p192
    $region26: #{conv_autoencoder_forward.15} parent=5 // pred_check_branch
      %195 = sbr.rel (%p193) target = $region28
    $region27: #{conv_autoencoder_forward.15} parent=5 // pred_region
      // Predicated region
      $region29: #{conv_autoencoder_forward.15} parent=27 // pred_check
        %p196 = pneg %p45
      $region30: #{conv_autoencoder_forward.15} parent=27 // pred_check_branch
        %198 = sbr.rel (%p196) target = $region32
      $region31: #{conv_autoencoder_forward.15} parent=27 // pred_region
        %p199 = scmp.lt.s32.totalorder %s18, 1
        %s200 = scalar_select %p199, %s18, 1
        %p201 = scmp.lt.s32.totalorder %s19, 0
        %s202 = scalar_select %p201, %s19, 0
        %s203 = sadd.s32 %s202, %s200
        %s204 = smul.addr %s203, 4
        %s205 = scalar_lea.vmem %s0, %s204
      $region32: #{conv_autoencoder_forward.15} parent=27 // pred_fallthru
        _
      // Predicated region
      $region33: #{conv_autoencoder_forward.15} parent=27 // pred_check
        %p206 = pneg %p71
      $region34: #{conv_autoencoder_forward.15} parent=27 // pred_check_branch
        %208 = sbr.rel (%p206) target = $region36
      $region35: #{conv_autoencoder_forward.15} parent=27 // pred_region
        %p209 = scmp.lt.s32.totalorder %s18, 1
        %s210 = scalar_select %p209, %s18, 1
        %s211 = scalar_lea.vmem %s1, %s210
      $region36: #{conv_autoencoder_forward.15} parent=27 // pred_fallthru
        _
    $region28: #{conv_autoencoder_forward.15} parent=5 // pred_fallthru
      _
    %p212 = scmp.le.s32.totalorder 1, %s11
    %p213 = scmp.lt.s32.totalorder %s11, 3
    %p214 = pnand %p212, %p213
    %p215 = pneg %p214
    // Predicated region
    $region37: #{conv_autoencoder_forward.15} parent=5 // pred_check
      _
    $region38: #{conv_autoencoder_forward.15} parent=5 // pred_check_branch
      %217 = sbr.rel (%p214) target = $region40
    $region39: #{conv_autoencoder_forward.15} parent=5 // pred_region
      %s218 = ssub.s32 %s11, 1
      %p219 = scmp.lt.s32.totalorder %s20, 1
      %s220 = scalar_select %p219, %s20, 1
      %p221 = scmp.lt.s32.totalorder %s21, 0
      %s222 = scalar_select %p221, %s21, 0
      %s223 = sadd.s32 %s222, %s220
      %s224 = smul.addr %s223, 4
      %s225 = scalar_lea.vmem %s0, %s224
      %p226 = pneg %p51
      %p227 = pneg %p48
      %p228 = scmp.lt.s32.totalorder %s20, 1
      %s229 = scalar_select %p228, %s20, 1
      %s230 = scalar_lea.vmem %s1, %s229
      %p231 = pneg %p77
      %p232 = pneg %p74
      %p233 = pneg %p98
      %p234 = pneg %p95
      %p235 = pneg %p119
      %p236 = pneg %p116
      %p237 = pneg %p140
      %p238 = pneg %p137
      %p239 = pneg %p168
      %p240 = pneg %p165
      %p241 = scmp.lt.s32.totalorder %s20, 1
      %s242 = scalar_select %p241, %s20, 1
      %p243 = scmp.lt.s32.totalorder %s21, 0
      %s244 = scalar_select %p243, %s21, 0
      %s245 = smul.addr %s244, 2
      %s246 = smul.addr %s242, 2
      %s247 = sadd.s32 %s245, %s246
      %s248 = smul.addr %s247, 8
      %s249 = scalar_lea.vmem %s5, %s248
      %p250 = scmp.lt.s32.totalorder %s20, 1
      %s251 = scalar_select %p250, %s20, 1
      %p252 = scmp.lt.s32.totalorder %s21, 0
      %s253 = scalar_select %p252, %s21, 0
      %s254 = sadd.s32 %s253, %s251
      %s255 = smul.addr %s254, 4
      %s256 = scalar_lea.vmem %s0, %s255
      %p257 = scmp.lt.s32.totalorder %s20, 1
      %s258 = scalar_select %p257, %s20, 1
      %s259 = scalar_lea.vmem %s1, %s258
      %p260 = scmp.lt.s32.totalorder %s20, 1
      %s261 = scalar_select %p260, %s20, 1
      %p262 = scmp.lt.s32.totalorder %s21, 0
      %s263 = scalar_select %p262, %s21, 0
      %s264 = smul.addr %s263, 2
      %s265 = smul.addr %s261, 2
      %s266 = sadd.s32 %s264, %s265
      %s267 = smul.addr %s266, 8
      %s268 = scalar_lea.vmem %s5, %s267
      %v269 = vld [vmem:[%s256] sm:$0xf]
      %s270 = scalar_lea.vmem %s259, %s21
      %v271 = vld [vmem:[%s270] sm:$0x1]
      %v272 = vunpack.c.l.bf16 %v269
      %273 = vst [vmem:[#allocation2 - $0x1] sm:$0xfe] %v272
      %274 = vst [vmem:[#allocation2 + $0x7] sm:$0x1] %v271
      %v275 = vld [vmem:[#allocation2] sm:$0xff]
      %v276 = vpack.c.bf16 %v275, %v275
      %v277 = vld [vmem:[%s2] sm:$0xff]
      %v278 = vld [vmem:[%s2 + $0x8] sm:$0xff]
      %v279 = vld [vmem:[%s2 + $0x10] sm:$0xff]
      %v280 = vld [vmem:[%s2 + $0x18] sm:$0xff]
      %v281 = vld [vmem:[%s2 + $0x20] sm:$0xff]
      %v282 = vld [vmem:[%s2 + $0x28] sm:$0xff]
      %v283 = vld [vmem:[%s2 + $0x30] sm:$0xff]
      %v284 = vld [vmem:[%s2 + $0x38] sm:$0xff]
      %v285 = vld [vmem:[%s2 + $0x40] sm:$0xff]
      %v286 = vld [vmem:[%s2 + $0x48] sm:$0xff]
      %v287 = vld [vmem:[%s2 + $0x50] sm:$0xff]
      %v288 = vld [vmem:[%s2 + $0x58] sm:$0xff]
      %v289 = vld [vmem:[%s2 + $0x60] sm:$0xff]
      %v290 = vld [vmem:[%s2 + $0x68] sm:$0xff]
      %v291 = vld [vmem:[%s2 + $0x70] sm:$0xff]
      %v292 = vld [vmem:[%s2 + $0x78] sm:$0xff]
      %v293 = vld [vmem:[%s2 + $0x80] sm:$0xff]
      %v294 = vld [vmem:[%s2 + $0x88] sm:$0xff]
      %v295 = vld [vmem:[%s2 + $0x90] sm:$0xff]
      %v296 = vld [vmem:[%s2 + $0x98] sm:$0xff]
      %v297 = vld [vmem:[%s2 + $0xa0] sm:$0xff]
      %v298 = vld [vmem:[%s2 + $0xa8] sm:$0xff]
      %v299 = vld [vmem:[%s2 + $0xb0] sm:$0xff]
      %v300 = vld [vmem:[%s2 + $0xb8] sm:$0xff]
      %v301 = vld [vmem:[%s2 + $0xc0] sm:$0xff]
      %v302 = vld [vmem:[%s2 + $0xc8] sm:$0xff]
      %v303 = vld [vmem:[%s2 + $0xd0] sm:$0xff]
      %v304 = vld [vmem:[%s2 + $0xd8] sm:$0xff]
      %v305 = vld [vmem:[%s2 + $0xe0] sm:$0xff]
      %v306 = vld [vmem:[%s2 + $0xe8] sm:$0xff]
      %v307 = vld [vmem:[%s2 + $0xf0] sm:$0xff]
      %v308 = vld [vmem:[%s2 + $0xf8] sm:$0xff]
      %v309 = vld [vmem:[%s3] sm:$0x3]
      %v311 = vperm.slane %v309, 0
      %v312 = vperm.slane %v309, 1
      %v347 = vunpack.c.l.b16 %v277
      %v348 = vunpack.c.h.b16 %v277
      %v349 = vunpack.c.l.b16 %v278
      %v350 = vunpack.c.h.b16 %v278
      %v351 = vunpack.c.l.b16 %v279
      %v352 = vunpack.c.h.b16 %v279
      %v353 = vunpack.c.l.b16 %v280
      %v354 = vunpack.c.h.b16 %v280
      %v355 = vunpack.c.l.b16 %v281
      %v356 = vunpack.c.h.b16 %v281
      %v357 = vunpack.c.l.b16 %v282
      %v358 = vunpack.c.h.b16 %v282
      %v359 = vunpack.c.l.b16 %v283
      %v360 = vunpack.c.h.b16 %v283
      %v361 = vunpack.c.l.b16 %v284
      %v362 = vunpack.c.h.b16 %v284
      %v363 = vunpack.c.l.b16 %v285
      %v364 = vunpack.c.h.b16 %v285
      %v365 = vunpack.c.l.b16 %v286
      %v366 = vunpack.c.h.b16 %v286
      %v367 = vunpack.c.l.b16 %v287
      %v368 = vunpack.c.h.b16 %v287
      %v369 = vunpack.c.l.b16 %v288
      %v370 = vunpack.c.h.b16 %v288
      %v371 = vunpack.c.l.b16 %v289
      %v372 = vunpack.c.h.b16 %v289
      %v373 = vunpack.c.l.b16 %v290
      %v374 = vunpack.c.h.b16 %v290
      %v375 = vunpack.c.l.b16 %v291
      %v376 = vunpack.c.h.b16 %v291
      %v377 = vunpack.c.l.b16 %v292
      %v378 = vunpack.c.h.b16 %v292
      %v379 = vunpack.c.l.b16 %v293
      %v380 = vunpack.c.h.b16 %v293
      %v381 = vunpack.c.l.b16 %v294
      %v382 = vunpack.c.h.b16 %v294
      %v383 = vunpack.c.l.b16 %v295
      %v384 = vunpack.c.h.b16 %v295
      %v385 = vunpack.c.l.b16 %v296
      %v386 = vunpack.c.h.b16 %v296
      %v387 = vunpack.c.l.b16 %v297
      %v388 = vunpack.c.h.b16 %v297
      %v389 = vunpack.c.l.b16 %v298
      %v390 = vunpack.c.h.b16 %v298
      %v391 = vunpack.c.l.b16 %v299
      %v392 = vunpack.c.h.b16 %v299
      %v393 = vunpack.c.l.b16 %v300
      %v394 = vunpack.c.h.b16 %v300
      %v395 = vunpack.c.l.b16 %v301
      %v396 = vunpack.c.h.b16 %v301
      %v397 = vunpack.c.l.b16 %v302
      %v398 = vunpack.c.h.b16 %v302
      %v399 = vunpack.c.l.b16 %v303
      %v400 = vunpack.c.h.b16 %v303
      %v401 = vunpack.c.l.b16 %v304
      %v402 = vunpack.c.h.b16 %v304
      %v403 = vunpack.c.l.b16 %v305
      %v404 = vunpack.c.h.b16 %v305
      %v405 = vunpack.c.l.b16 %v306
      %v406 = vunpack.c.h.b16 %v306
      %v407 = vunpack.c.l.b16 %v307
      %v408 = vunpack.c.h.b16 %v307
      %v409 = vunpack.c.l.b16 %v308
      %v410 = vunpack.c.h.b16 %v308
      %v411 = vpack.c.b16 %v349, %v347
      %v412 = vpack.c.b16 %v350, %v348
      %v413 = vpack.c.b16 %v353, %v351
      %v414 = vpack.c.b16 %v354, %v352
      %v415 = vpack.c.b16 %v357, %v355
      %v416 = vpack.c.b16 %v358, %v356
      %v417 = vpack.c.b16 %v361, %v359
      %v418 = vpack.c.b16 %v362, %v360
      %v419 = vpack.c.b16 %v365, %v363
      %v420 = vpack.c.b16 %v366, %v364
      %v421 = vpack.c.b16 %v369, %v367
      %v422 = vpack.c.b16 %v370, %v368
      %v423 = vpack.c.b16 %v373, %v371
      %v424 = vpack.c.b16 %v374, %v372
      %v425 = vpack.c.b16 %v377, %v375
      %v426 = vpack.c.b16 %v378, %v376
      %v427 = vpack.c.b16 %v381, %v379
      %v428 = vpack.c.b16 %v382, %v380
      %v429 = vpack.c.b16 %v385, %v383
      %v430 = vpack.c.b16 %v386, %v384
      %v431 = vpack.c.b16 %v389, %v387
      %v432 = vpack.c.b16 %v390, %v388
      %v433 = vpack.c.b16 %v393, %v391
      %v434 = vpack.c.b16 %v394, %v392
      %v435 = vpack.c.b16 %v397, %v395
      %v436 = vpack.c.b16 %v398, %v396
      %v437 = vpack.c.b16 %v401, %v399
      %v438 = vpack.c.b16 %v402, %v400
      %v439 = vpack.c.b16 %v405, %v403
      %v440 = vpack.c.b16 %v406, %v404
      %v441 = vpack.c.b16 %v409, %v407
      %v442 = vpack.c.b16 %v410, %v408
      %475 = vmatpush.bf16.msra.mxu0 %v425
      %476 = vmatpush.bf16.msra.mxu0 %v423
      %477 = vmatpush.bf16.msra.mxu0 %v421
      %478 = vmatpush.bf16.msra.mxu0 %v419
      %479 = vmatpush.bf16.msra.mxu0 %v417
      %480 = vmatpush.bf16.msra.mxu0 %v415
      %481 = vmatpush.bf16.msra.mxu0 %v413
      %482 = vmatpush.bf16.msra.mxu0 %v411
      %483 = vmatmul.bf16.gmra.mxu0 %v269
      %v484 = vpop.f32.mrf.mxu0
      %v485 = vadd.f32 %v311, %v484
      %v486 = vpop.f32.mrf.mxu0
      %487 = vdwg.mxu0
      %488 = vmatpush.bf16.msra.mxu0 %v441
      %489 = vmatpush.bf16.msra.mxu0 %v439
      %490 = vmatpush.bf16.msra.mxu0 %v437
      %491 = vmatpush.bf16.msra.mxu0 %v435
      %492 = vmatpush.bf16.msra.mxu0 %v433
      %493 = vmatpush.bf16.msra.mxu0 %v431
      %494 = vmatpush.bf16.msra.mxu0 %v429
      %495 = vmatpush.bf16.msra.mxu0 %v427
      %496 = vmatmul.bf16.gmra.mxu0 %v276
      %v497 = vpop.f32.mrf.mxu0
      %v498 = vadd.f32 %v485, %v497
      %v499 = vpop.f32.mrf.mxu0
      %500 = vdwg.mxu0
      %501 = vmatpush.bf16.msra.mxu0 %v426
      %502 = vmatpush.bf16.msra.mxu0 %v424
      %503 = vmatpush.bf16.msra.mxu0 %v422
      %504 = vmatpush.bf16.msra.mxu0 %v420
      %505 = vmatpush.bf16.msra.mxu0 %v418
      %506 = vmatpush.bf16.msra.mxu0 %v416
      %507 = vmatpush.bf16.msra.mxu0 %v414
      %508 = vmatpush.bf16.msra.mxu0 %v412
      %509 = vmatmul.bf16.gmra.mxu0 %v269
      %v510 = vpop.f32.mrf.mxu0
      %v511 = vadd.f32 %v312, %v510
      %v512 = vpop.f32.mrf.mxu0
      %513 = vdwg.mxu0
      %514 = vmatpush.bf16.msra.mxu0 %v442
      %515 = vmatpush.bf16.msra.mxu0 %v440
      %516 = vmatpush.bf16.msra.mxu0 %v438
      %517 = vmatpush.bf16.msra.mxu0 %v436
      %518 = vmatpush.bf16.msra.mxu0 %v434
      %519 = vmatpush.bf16.msra.mxu0 %v432
      %520 = vmatpush.bf16.msra.mxu0 %v430
      %521 = vmatpush.bf16.msra.mxu0 %v428
      %522 = vmatmul.bf16.gmra.mxu0 %v276
      %v523 = vpop.f32.mrf.mxu0
      %v524 = vadd.f32 %v511, %v523
      %v525 = vpop.f32.mrf.mxu0
      %526 = vdwg.mxu0
      %v527 = vlaneseq
      %v528 = vshrl.u32 %v527, 7
      %s529 = smul.u32 %s21, 8
      %v530 = vstv %s529
      %v531 = vadd.s32 %v528, %v530
      %vm532 = vcmp.eq.s32.totalorder %v531, 7
      %v533 = vsel %vm532, 1, 0
      %v534 = vcvt.s32.f32 %v533
      %v535 = vld [vmem:[%s4] sm:$0x3]
      %v537 = vperm.slane %v535, 0
      %v538 = vperm.slane %v535, 1
      %v541 = vmul.f32 %v534, %v537
      %v542 = vmul.f32 %v534, %v538
      %v543 = vsub.f32 %v498, %v541
      %v544 = vsub.f32 %v524, %v542
      %v545 = vxor.u32 %v543, 2147483648
      %v546 = vxor.u32 %v544, 2147483648
      %v547 = vmul.f32 %v545, 1.442695
      %v548 = vpow.pop %v547
      %v549 = vmul.f32 %v546, 1.442695
      %v550 = vpow.pop %v549
      %v551 = vadd.f32 %v548, 1.0
      %v552 = vadd.f32 %v550, 1.0
      %v553 = vrcp.pop %v551
      %v554 = vmul.f32 %v551, %v553
      %v555 = vsub.f32 1.0, %v554
      %v556 = vmul.f32 %v553, %v555
      %v557 = vadd.f32 %v553, %v556
      %vm558 = vweird.f32 %v551
      %vm559 = vweird.f32 %v553
      %vm560 = vmor %vm558, %vm559
      %v561 = vsel %vm560, %v553, %v557
      %v562 = vand.u32 2147483647, %v551
      %vm563 = vcmp.eq.f32.partialorder %v562, 8.507059e+37
      %v564 = vand.u32 %v551, 2147483648
      %v565 = vor.u32 1.1754944e-38, %v564
      %v566 = vsel %vm563, %v565, %v561
      %v567 = vmul.f32 1.0, %v566
      %v568 = vrcp.pop %v552
      %v569 = vmul.f32 %v552, %v568
      %v570 = vsub.f32 1.0, %v569
      %v571 = vmul.f32 %v568, %v570
      %v572 = vadd.f32 %v568, %v571
      %vm573 = vweird.f32 %v552
      %vm574 = vweird.f32 %v568
      %vm575 = vmor %vm573, %vm574
      %v576 = vsel %vm575, %v568, %v572
      %v577 = vand.u32 2147483647, %v552
      %vm578 = vcmp.eq.f32.partialorder %v577, 8.507059e+37
      %v579 = vand.u32 %v552, 2147483648
      %v580 = vor.u32 1.1754944e-38, %v579
      %v581 = vsel %vm578, %v580, %v576
      %v582 = vmul.f32 1.0, %v581
      %583 = vst [vmem:[%s268] sm:$0xff] %v567
      %584 = vst [vmem:[%s268 + $0x8] sm:$0xff] %v582
      %p585 = scmp.lt.s32.totalorder %s20, 1
      %s586 = scalar_select %p585, %s20, 1
      %p587 = scmp.lt.s32.totalorder %s21, 0
      %s588 = scalar_select %p587, %s21, 0
      %s589 = smul.addr %s588, 2
      %s590 = smul.addr %s586, 2
      %s591 = sadd.s32 %s589, %s590
      %s592 = smul.addr %s591, 8
      %s593 = scalar_lea.vmem %s5, %s592
      // Predicated region
      $region41: #{conv_autoencoder_forward.15} parent=39 // pred_check
        %p594 = pneg %p165
      $region42: #{conv_autoencoder_forward.15} parent=39 // pred_check_branch
        %596 = sbr.rel (%p594) target = $region44
      $region43: #{conv_autoencoder_forward.15} parent=39 // pred_region
        _
      $region44: #{conv_autoencoder_forward.15} parent=39 // pred_fallthru
        _
    $region40: #{conv_autoencoder_forward.15} parent=5 // pred_fallthru
      _
    %p597 = scmp.le.s32.totalorder 2, %s11
    // Predicated region
    $region45: #{conv_autoencoder_forward.15} parent=5 // pred_check
      %p598 = pneg %p597
    $region46: #{conv_autoencoder_forward.15} parent=5 // pred_check_branch
      %600 = sbr.rel (%p598) target = $region48
    $region47: #{conv_autoencoder_forward.15} parent=5 // pred_region
      %s601 = ssub.s32 %s11, 2
      // Predicated region
      $region49: #{conv_autoencoder_forward.15} parent=47 // pred_check
        %p602 = pneg %p171
      $region50: #{conv_autoencoder_forward.15} parent=47 // pred_check_branch
        %604 = sbr.rel (%p602) target = $region52
      $region51: #{conv_autoencoder_forward.15} parent=47 // pred_region
        %p605 = scmp.lt.s32.totalorder %s22, 1
        %s606 = scalar_select %p605, %s22, 1
        %p607 = scmp.lt.s32.totalorder %s23, 0
        %s608 = scalar_select %p607, %s23, 0
        %s609 = smul.addr %s608, 2
        %s610 = smul.addr %s606, 2
        %s611 = sadd.s32 %s609, %s610
        %s612 = smul.addr %s611, 8
        %s613 = scalar_lea.vmem %s5, %s612
      $region52: #{conv_autoencoder_forward.15} parent=47 // pred_fallthru
        _
    $region48: #{conv_autoencoder_forward.15} parent=5 // pred_fallthru
      _
  $region6: #{conv_autoencoder_forward.15} parent=0 // loop_footer
    %s15 = sadd.s32 1, %s11
  $region7: #{conv_autoencoder_forward.15} parent=0 // loop_footer_branch
    %10 = sbr.rel target = $region3
  $region8: #{conv_autoencoder_forward.15} parent=0 // loop_exit
    _

</llo_original>
